<compile_context>
chip_gen: v6e
topology: v6e:2x2x1
jax: 0.10.0
libtpu: 0.0.40
codegen_flags: <defaults>
</compile_context>

<pallas_src>
import functools
import math

import jax
import jax.numpy as jnp
from jax import lax
from jax.experimental import pallas as pl
from jax.experimental.pallas import tpu as pltpu

VMEM = pltpu.MemorySpace.VMEM
NEG_BIG = -1e30
LN_EPS = 1e-5


def _vspec():
    # whole-array block resident in VMEM (used for small, un-gridded calls)
    return pl.BlockSpec(memory_space=VMEM)


def _round_up(n, m):
    return ((n + m - 1) // m) * m


def _bf16(x):
    return x.astype(jnp.bfloat16)


# --------------------------------------------------------------------------
# shared in-kernel math (traced helpers, not pallas_calls)
# --------------------------------------------------------------------------
def _ln(x, g, b, eps=LN_EPS):
    mu = jnp.mean(x, axis=-1, keepdims=True)
    var = jnp.mean((x - mu) ** 2, axis=-1, keepdims=True)
    return (x - mu) * lax.rsqrt(var + eps) * g + b


def _elu(x):
    return jnp.where(x > 0.0, x, jnp.exp(jnp.minimum(x, 0.0)) - 1.0)


def _masked_softmax_rows(s, n_valid):
    """Softmax over the last axis with columns >= n_valid masked out."""
    col = lax.broadcasted_iota(jnp.int32, s.shape, 1)
    valid = col < n_valid
    s = jnp.where(valid, s, NEG_BIG)
    s = s - jnp.max(s, axis=-1, keepdims=True)
    p = jnp.where(valid, jnp.exp(s), 0.0)
    return p * pl.reciprocal(jnp.sum(p, axis=-1, keepdims=True), approx=True)


def _tiny_self_attn(x, n_valid, d, ln_g, ln_b, wqkv, bqkv, wo, bo):
    """Exact single-head TransLayer (x + Attn(LN(x))) for a VMEM-resident
    token block; 1/sqrt(d) is already folded into the Q columns of wqkv."""
    xn = _ln(x, ln_g, ln_b)
    qkv = jnp.dot(_bf16(xn), wqkv, preferred_element_type=jnp.float32) + bqkv
    q, k, v = qkv[:, 0:d], qkv[:, d:2 * d], qkv[:, 2 * d:3 * d]
    s = lax.dot_general(_bf16(q), _bf16(k), (((1,), (1,)), ((), ())),
                        preferred_element_type=jnp.float32)
    p = _masked_softmax_rows(s, n_valid)
    ctx = jnp.dot(_bf16(p), _bf16(v), preferred_element_type=jnp.float32)
    return x + jnp.dot(_bf16(ctx), wo, preferred_element_type=jnp.float32) + bo


# --------------------------------------------------------------------------
# Pathomics embedding: fused Linear+ReLU chain, gridded over token tiles
# --------------------------------------------------------------------------
def _mlp_chain_kernel(*refs, n_layers):
    x_ref = refs[0]
    o_ref = refs[1 + 2 * n_layers]
    h = x_ref[...]
    for li in range(n_layers):
        w = refs[1 + 2 * li][...]
        b = refs[2 + 2 * li][...]
        h = jnp.dot(_bf16(h), w, preferred_element_type=jnp.float32) + b
        h = jnp.maximum(h, 0.0)                     # ReLU (Dropout = eval no-op)
    o_ref[...] = h


def pathomics_embed(x, layers):
    n, din = x.shape
    dout = layers[-1]["w"].shape[1]
    tm = min(1024, _round_up(n, 8))                 # large tiles: HBM-bound chain
    n_pad = _round_up(n, tm)
    if n_pad != n:
        x = jnp.pad(x, ((0, n_pad - n), (0, 0)))
    args = [x]
    in_specs = [pl.BlockSpec((tm, din), lambda i: (i, 0))]
    for lyr in layers:
        args += [lyr["w"], lyr["b"]]
        in_specs.append(pl.BlockSpec(lyr["w"].shape, lambda i: (0, 0)))
        in_specs.append(pl.BlockSpec(lyr["b"].shape, lambda i: (0, 0)))
    out = pl.pallas_call(
        functools.partial(_mlp_chain_kernel, n_layers=len(layers)),
        out_shape=jax.ShapeDtypeStruct((n_pad, dout), jnp.float32),
        grid_spec=pltpu.PrefetchScalarGridSpec(
            num_scalar_prefetch=0,
            grid=(n_pad // tm,),
            in_specs=in_specs,
            out_specs=pl.BlockSpec((tm, dout), lambda i: (i, 0)),
        ),
        compiler_params=pltpu.CompilerParams(dimension_semantics=("parallel",)),
    )(*args)
    return out[:n]


# --------------------------------------------------------------------------
# Pathomics TransLayer = (LN + fused QKV projection kernel) + (flash kernel)
# --------------------------------------------------------------------------
def _qkv_proj_kernel(x_ref, g_ref, b_ref, w_ref, bias_ref, qkv_ref):
    xn = _ln(x_ref[...], g_ref[...], b_ref[...])
    qkv = jnp.dot(_bf16(xn), w_ref[...],
                  preferred_element_type=jnp.float32) + bias_ref[...]
    qkv_ref[...] = _bf16(qkv)


def _flash_attn_kernel(x_ref, qq_ref, kv_ref, g2_ref, b2_ref, wo_ref, bo_ref,
                       o_ref, m_sc, l_sc, acc_sc, *, d, kv_len, tkv, post_ln):
    ki = pl.program_id(1)

    @pl.when(ki == 0)
    def _():
        m_sc[...] = jnp.full(m_sc.shape, NEG_BIG, jnp.float32)
        l_sc[...] = jnp.zeros(l_sc.shape, jnp.float32)
        acc_sc[...] = jnp.zeros(acc_sc.shape, jnp.float32)

    q = qq_ref[...][:, 0:d]                  # bf16; 1/sqrt(d) folded into Wq
    kvb = kv_ref[...]
    k = kvb[:, d:2 * d]
    v = kvb[:, 2 * d:3 * d]

    s = lax.dot_general(q, k, (((1,), (1,)), ((), ())),
                        preferred_element_type=jnp.float32)
    col = lax.broadcasted_iota(jnp.int32, s.shape, 1) + ki * tkv
    valid = col < kv_len
    s = jnp.where(valid, s, NEG_BIG)

    m_prev = m_sc[...]
    m_new = jnp.maximum(m_prev, jnp.max(s, axis=-1, keepdims=True))
    alpha = jnp.exp(m_prev - m_new)
    p = jnp.where(valid, jnp.exp(s - m_new), 0.0)   # explicit pad-column guard
    l_sc[...] = alpha * l_sc[...] + jnp.sum(p, axis=-1, keepdims=True)
    acc_sc[...] = alpha * acc_sc[...] + jnp.dot(
        _bf16(p), v, preferred_element_type=jnp.float32)
    m_sc[...] = m_new

    @pl.when(ki == pl.num_programs(1) - 1)
    def _():
        ctx = acc_sc[...] * pl.reciprocal(l_sc[...], approx=True)
        out = jnp.dot(_bf16(ctx), wo_ref[...],
                      preferred_element_type=jnp.float32) + bo_ref[...]
        out = out + x_ref[...]                       # residual
        if post_ln:
            out = _ln(out, g2_ref[...], b2_ref[...])
        o_ref[...] = out


def self_attn_layer(x, layer_p, *, final_ln=None):
    """TransLayer x + Attn(LN(x)) [+ transformer final LN]."""
    # TODO(synk): original TransLayer uses NystromAttention (8 heads, landmark
    # pseudo-inverse, conv residual); replaced with exact single-head softmax
    # attention of the same residual form.
    S, d = x.shape
    attn = layer_p["attn"]
    qkv_cols = attn["wqkv"].shape[1]
    blk = min(512, _round_up(S, 8))
    S_pad = _round_up(S, blk)
    x_p = jnp.pad(x, ((0, S_pad - S), (0, 0))) if S_pad != S else x
    n_blk = S_pad // blk

    # 1) LN + fused QKV projection, once per row; lane-dense 128-wide bf16 out.
    qkv = pl.pallas_call(
        _qkv_proj_kernel,
        out_shape=jax.ShapeDtypeStruct((S_pad, qkv_cols), jnp.bfloat16),
        grid_spec=pltpu.PrefetchScalarGridSpec(
            num_scalar_prefetch=0,
            grid=(n_blk,),
            in_specs=[pl.BlockSpec((blk, d), lambda i: (i, 0)),
                      pl.BlockSpec((1, d), lambda i: (0, 0)),
                      pl.BlockSpec((1, d), lambda i: (0, 0)),
                      pl.BlockSpec((d, qkv_cols), lambda i: (0, 0)),
                      pl.BlockSpec((1, qkv_cols), lambda i: (0, 0))],
            out_specs=pl.BlockSpec((blk, qkv_cols), lambda i: (i, 0)),
        ),
        compiler_params=pltpu.CompilerParams(dimension_semantics=("parallel",)),
    )(x_p, layer_p["norm_g"], layer_p["norm_b"], attn["wqkv"], attn["bqkv"])

    post_ln = final_ln is not None
    if post_ln:
        g2, b2 = final_ln
    else:
        g2 = jnp.ones((1, d), jnp.float32)
        b2 = jnp.zeros((1, d), jnp.float32)

    # 2) flash-style online-softmax attention + out-proj + residual [+ LN].
    # TODO(synk): outputs keep the model's 32-wide feature dim (lane-sparse
    # stores); a 128-lane-padded carried layout is a further possible win.
    out = pl.pallas_call(
        functools.partial(_flash_attn_kernel, d=d, kv_len=S, tkv=blk,
                          post_ln=post_ln),
        out_shape=jax.ShapeDtypeStruct((S_pad, d), jnp.float32),
        grid_spec=pltpu.PrefetchScalarGridSpec(
            num_scalar_prefetch=0,
            grid=(n_blk, n_blk),
            in_specs=[
                pl.BlockSpec((blk, d), lambda qi, ki: (qi, 0)),         # residual
                pl.BlockSpec((blk, qkv_cols), lambda qi, ki: (qi, 0)),  # q rows
                pl.BlockSpec((blk, qkv_cols), lambda qi, ki: (ki, 0)),  # kv rows
                pl.BlockSpec((1, d), lambda qi, ki: (0, 0)),            # LN gamma
                pl.BlockSpec((1, d), lambda qi, ki: (0, 0)),            # LN beta
                pl.BlockSpec((d, d), lambda qi, ki: (0, 0)),            # wo
                pl.BlockSpec((1, d), lambda qi, ki: (0, 0)),            # bo
            ],
            out_specs=pl.BlockSpec((blk, d), lambda qi, ki: (qi, 0)),
            scratch_shapes=[pltpu.VMEM((blk, 1), jnp.float32),
                            pltpu.VMEM((blk, 1), jnp.float32),
                            pltpu.VMEM((blk, d), jnp.float32)],
        ),
        compiler_params=pltpu.CompilerParams(
            dimension_semantics=("parallel", "arbitrary")),
    )(x_p, qkv, qkv, g2, b2, attn["wo"], attn["bo"])
    return out[:S]


# --------------------------------------------------------------------------
# Fused PPEG: identity + depthwise 7x7/5x5/3x3 collapsed into 49 taps
# --------------------------------------------------------------------------
def _ppeg_kernel(xpad_ref, w_ref, b_ref, o_ref, *, H, W, pad):
    K = 2 * pad + 1
    C = o_ref.shape[-1]
    acc = jnp.zeros((H, W, C), jnp.float32) + b_ref[...].reshape(1, 1, C)
    for i in range(K):
        for j in range(K):
            tap = xpad_ref[i:i + H, j:j + W, :]
            wij = w_ref[i * K + j:i * K + j + 1, :].reshape(1, 1, C)
            acc = acc + tap * wij
    o_ref[...] = acc


def ppeg(p, x, H, W):
    # TODO(synk): un-gridded (whole padded map resident in VMEM); tile output
    # rows with a 6-row halo for WSI-scale H*W on v7x's 64 MiB VMEM.
    C = x.shape[-1]
    cls_tok, feat = x[:1], x[1:]
    pad = 3
    xpad = jnp.pad(feat.reshape(H, W, C), ((pad, pad), (pad, pad), (0, 0)))
    out = pl.pallas_call(
        functools.partial(_ppeg_kernel, H=H, W=W, pad=pad),
        out_shape=jax.ShapeDtypeStruct((H, W, C), jnp.float32),
        in_specs=[_vspec()] * 3,
        out_specs=_vspec(),
    )(xpad, p["w"], p["b"])
    return jnp.concatenate([cls_tok, out.reshape(H * W, C)], axis=0)


# --------------------------------------------------------------------------
# P->G cross attention (queries = pathomics patches, gridded; KV tiny)
# --------------------------------------------------------------------------
def _cross_attn_kernel(xq_ref, xkv_ref, wq_ref, bq_ref, wkv_ref, bkv_ref,
                       wo_ref, bo_ref, o_ref, *, d, kv_len):
    q = jnp.dot(_bf16(xq_ref[...]), wq_ref[...],
                preferred_element_type=jnp.float32) + bq_ref[...]
    kv = jnp.dot(_bf16(xkv_ref[...]), wkv_ref[...],
                 preferred_element_type=jnp.float32) + bkv_ref[...]
    k, v = kv[:, 0:d], kv[:, d:2 * d]
    s = lax.dot_general(_bf16(q), _bf16(k), (((1,), (1,)), ((), ())),
                        preferred_element_type=jnp.float32)
    p = _masked_softmax_rows(s, kv_len)
    ctx = jnp.dot(_bf16(p), _bf16(v), preferred_element_type=jnp.float32)
    o_ref[...] = jnp.dot(_bf16(ctx), wo_ref[...],
                         preferred_element_type=jnp.float32) + bo_ref[...]


def cross_attention(xq, xkv, attn_p):
    sq, d = xq.shape
    skv = xkv.shape[0]
    blk = min(512, _round_up(sq, 8))
    sq_pad = _round_up(sq, blk)
    skv_pad = _round_up(skv, 8)
    if sq_pad != sq:
        xq = jnp.pad(xq, ((0, sq_pad - sq), (0, 0)))
    if skv_pad != skv:
        xkv = jnp.pad(xkv, ((0, skv_pad - skv), (0, 0)))
    out = pl.pallas_call(
        functools.partial(_cross_attn_kernel, d=d, kv_len=skv),
        out_shape=jax.ShapeDtypeStruct((sq_pad, d), jnp.float32),
        grid_spec=pltpu.PrefetchScalarGridSpec(
            num_scalar_prefetch=0,
            grid=(sq_pad // blk,),
            in_specs=[pl.BlockSpec((blk, d), lambda i: (i, 0)),
                      pl.BlockSpec((skv_pad, d), lambda i: (0, 0)),
                      pl.BlockSpec((d, d), lambda i: (0, 0)),
                      pl.BlockSpec((1, d), lambda i: (0, 0)),
                      pl.BlockSpec((d, 2 * d), lambda i: (0, 0)),
                      pl.BlockSpec((1, 2 * d), lambda i: (0, 0)),
                      pl.BlockSpec((d, d), lambda i: (0, 0)),
                      pl.BlockSpec((1, d), lambda i: (0, 0))],
            out_specs=pl.BlockSpec((blk, d), lambda i: (i, 0)),
        ),
        compiler_params=pltpu.CompilerParams(dimension_semantics=("parallel",)),
    )(xq, xkv, attn_p["wq"], attn_p["bq"], attn_p["wkv"], attn_p["bkv"],
      attn_p["wo"], attn_p["bo"])
    return out[:sq]


# --------------------------------------------------------------------------
# Genomics mega-kernel 1: per-omic SNNs + genomics encoder (2 layers + LN)
# --------------------------------------------------------------------------
def _genomics_encoder_kernel(*refs, d, n_omics, n_snn_layers):
    idx = 0
    omic_refs = refs[idx:idx + n_omics]; idx += n_omics
    snn_refs = refs[idx:idx + 2 * n_snn_layers * n_omics]
    idx += 2 * n_snn_layers * n_omics
    (cls_ref,
     l1g, l1b, l1_wqkv, l1_bqkv, l1_wo, l1_bo,
     l2g, l2b, l2_wqkv, l2_bqkv, l2_wo, l2_bo,
     fng, fnb) = refs[idx:idx + 15]
    idx += 15
    out_ref = refs[idx]
    tok_sc = refs[idx + 1]

    tok_sc[...] = jnp.zeros_like(tok_sc)
    tok_sc[0:1, :] = cls_ref[...]
    for oi in range(n_omics):
        h = omic_refs[oi][...]
        for li in range(n_snn_layers):
            w = snn_refs[2 * (oi * n_snn_layers + li)][...]
            b = snn_refs[2 * (oi * n_snn_layers + li) + 1][...]
            h = jnp.dot(_bf16(h), w, preferred_element_type=jnp.float32) + b
            h = _elu(h)                              # AlphaDropout = eval no-op
        tok_sc[1 + oi:2 + oi, :] = h

    n_valid = n_omics + 1
    x = tok_sc[...]
    x = _tiny_self_attn(x, n_valid, d, l1g[...], l1b[...], l1_wqkv[...],
                        l1_bqkv[...], l1_wo[...], l1_bo[...])
    x = _tiny_self_attn(x, n_valid, d, l2g[...], l2b[...], l2_wqkv[...],
                        l2_bqkv[...], l2_wo[...], l2_bo[...])
    out_ref[...] = _ln(x, fng[...], fnb[...])


def genomics_encoder_fused(omics, gfc_params, enc_p, d):
    n_omics = len(omics)
    n_snn_layers = len(gfc_params[0])
    n_pad = _round_up(n_omics + 1, 8)
    l1, l2 = enc_p["layer1"], enc_p["layer2"]
    args = list(omics)
    for layers in gfc_params:
        for lyr in layers:
            args += [lyr["w"], lyr["b"]]
    args += [enc_p["cls"],
             l1["norm_g"], l1["norm_b"], l1["attn"]["wqkv"], l1["attn"]["bqkv"],
             l1["attn"]["wo"], l1["attn"]["bo"],
             l2["norm_g"], l2["norm_b"], l2["attn"]["wqkv"], l2["attn"]["bqkv"],
             l2["attn"]["wo"], l2["attn"]["bo"],
             enc_p["norm_g"], enc_p["norm_b"]]
    return pl.pallas_call(
        functools.partial(_genomics_encoder_kernel, d=d, n_omics=n_omics,
                          n_snn_layers=n_snn_layers),
        out_shape=jax.ShapeDtypeStruct((n_pad, d), jnp.float32),
        in_specs=[_vspec()] * len(args),
        out_specs=_vspec(),
        scratch_shapes=[pltpu.VMEM((n_pad, d), jnp.float32)],
    )(*args)


# --------------------------------------------------------------------------
# Genomics mega-kernel 2: G->P cross attention + genomics decoder + head
# --------------------------------------------------------------------------
def _genomics_decoder_head_kernel(
        g_tok_ref, pp_ref, cpe_ref, cpd_ref,
        ca_wq, ca_bq, ca_wkv, ca_bkv, ca_wo, ca_bo,
        dcls_ref,
        l1g, l1b, l1_wqkv, l1_bqkv, l1_wo, l1_bo,
        l2g, l2b, l2_wqkv, l2_bqkv, l2_wo, l2_bo,
        fng, fnb, hwp, hwg, hb,
        p_ref, g_ref, logit_ref, align_ref, tok_sc,
        *, d, n_omics, pp_len):
    # --- G->P cross attention: Q = genomics patch tokens, KV = pathomics ---
    gt = g_tok_ref[...]
    q = jnp.dot(_bf16(gt), ca_wq[...],
                preferred_element_type=jnp.float32) + ca_bq[...]
    kv = jnp.dot(_bf16(pp_ref[...]), ca_wkv[...],
                 preferred_element_type=jnp.float32) + ca_bkv[...]
    k, v = kv[:, 0:d], kv[:, d:2 * d]
    s = lax.dot_general(_bf16(q), _bf16(k), (((1,), (1,)), ((), ())),
                        preferred_element_type=jnp.float32)
    p_att = _masked_softmax_rows(s, pp_len)
    ctx = jnp.dot(_bf16(p_att), _bf16(v), preferred_element_type=jnp.float32)
    gip = jnp.dot(_bf16(ctx), ca_wo[...],
                  preferred_element_type=jnp.float32) + ca_bo[...]

    # --- genomics decoder (2 TransLayers + final LN) on resident tokens ---
    tok_sc[...] = jnp.zeros_like(tok_sc)
    tok_sc[0:1, :] = dcls_ref[...]
    tok_sc[1:1 + n_omics, :] = gip[1:1 + n_omics, :]
    n_valid = n_omics + 1
    x = tok_sc[...]
    x = _tiny_self_attn(x, n_valid, d, l1g[...], l1b[...], l1_wqkv[...],
                        l1_bqkv[...], l1_wo[...], l1_bo[...])
    x = _tiny_self_attn(x, n_valid, d, l2g[...], l2b[...], l2_wqkv[...],
                        l2_bqkv[...], l2_wo[...], l2_bo[...])
    x = _ln(x, fng[...], fnb[...])

    # --- head: p/g averaging + 2d->1 linear + L1 alignment ---
    cls_g_dec = x[0:1, :]
    cls_g_enc = gt[0:1, :]
    p_vec = (cpe_ref[...] + cpd_ref[...]) * 0.5
    g_vec = (cls_g_enc + cls_g_dec) * 0.5
    p_ref[...] = p_vec
    g_ref[...] = g_vec
    logit_ref[...] = (jnp.sum(p_vec * hwp[...], axis=-1, keepdims=True)
                      + jnp.sum(g_vec * hwg[...], axis=-1, keepdims=True)
                      + hb[...])
    align_ref[...] = jnp.mean(jnp.abs(p_vec - g_vec), keepdims=True)


def genomics_decoder_head_fused(g_tok_enc, patch_p, cls_p_enc, cls_p_dec,
                                ca_p, dec_p, head_p, *, n_omics):
    d = g_tok_enc.shape[-1]
    n_pad = g_tok_enc.shape[0]
    pp_len = patch_p.shape[0]
    pp_pad = _round_up(pp_len, 8)
    if pp_pad != pp_len:
        patch_p = jnp.pad(patch_p, ((0, pp_pad - pp_len), (0, 0)))
    l1, l2 = dec_p["layer1"], dec_p["layer2"]
    args = [g_tok_enc, patch_p, cls_p_enc, cls_p_dec,
            ca_p["wq"], ca_p["bq"], ca_p["wkv"], ca_p["bkv"],
            ca_p["wo"], ca_p["bo"],
            dec_p["cls"],
            l1["norm_g"], l1["norm_b"], l1["attn"]["wqkv"], l1["attn"]["bqkv"],
            l1["attn"]["wo"], l1["attn"]["bo"],
            l2["norm_g"], l2["norm_b"], l2["attn"]["wqkv"], l2["attn"]["bqkv"],
            l2["attn"]["wo"], l2["attn"]["bo"],
            dec_p["norm_g"], dec_p["norm_b"],
            head_p["wp"], head_p["wg"], head_p["b"]]
    return pl.pallas_call(
        functools.partial(_genomics_decoder_head_kernel, d=d,
                          n_omics=n_omics, pp_len=pp_len),
        out_shape=(jax.ShapeDtypeStruct((1, d), jnp.float32),
                   jax.ShapeDtypeStruct((1, d), jnp.float32),
                   jax.ShapeDtypeStruct((1, 1), jnp.float32),
                   jax.ShapeDtypeStruct((1, 1), jnp.float32)),
        in_specs=[_vspec()] * len(args),
        out_specs=(_vspec(),) * 4,
        scratch_shapes=[pltpu.VMEM((n_pad, d), jnp.float32)],
    )(*args)


# --------------------------------------------------------------------------
# Parameter initialization (deterministic, synthetic)
# --------------------------------------------------------------------------
class KeyGen:
    def __init__(self, key):
        self._key = key

    def __call__(self):
        self._key, sub = jax.random.split(self._key)
        return sub


def _init_linear(kg, din, dout):
    w = (1.0 / math.sqrt(din)) * jax.random.normal(kg(), (din, dout), jnp.float32)
    return {"w": w.astype(jnp.bfloat16), "b": jnp.zeros((1, dout), jnp.float32)}


def _init_self_attn(kg, d, scale):
    def w(din, dout):
        return (1.0 / math.sqrt(din)) * jax.random.normal(kg(), (din, dout),
                                                          jnp.float32)
    qkv_cols = max(128, _round_up(3 * d, 128))      # lane-dense fused Wqkv
    wqkv = jnp.zeros((d, qkv_cols), jnp.float32)
    wqkv = wqkv.at[:, 0:d].set(w(d, d) * scale)     # 1/sqrt(d) folded into Wq
    wqkv = wqkv.at[:, d:2 * d].set(w(d, d))
    wqkv = wqkv.at[:, 2 * d:3 * d].set(w(d, d))
    return {"wqkv": wqkv.astype(jnp.bfloat16),
            "bqkv": jnp.zeros((1, qkv_cols), jnp.float32),
            "wo": w(d, d).astype(jnp.bfloat16),
            "bo": jnp.zeros((1, d), jnp.float32)}


def _init_cross_attn(kg, d, scale):
    def w(din, dout):
        return (1.0 / math.sqrt(din)) * jax.random.normal(kg(), (din, dout),
                                                          jnp.float32)
    return {"wq": (w(d, d) * scale).astype(jnp.bfloat16),
            "bq": jnp.zeros((1, d), jnp.float32),
            "wkv": jnp.concatenate([w(d, d), w(d, d)], axis=1).astype(jnp.bfloat16),
            "bkv": jnp.zeros((1, 2 * d), jnp.float32),
            "wo": w(d, d).astype(jnp.bfloat16),
            "bo": jnp.zeros((1, d), jnp.float32)}


def _init_ppeg(kg, d):
    w7 = (1.0 / 7.0) * jax.random.normal(kg(), (7, 7, d), jnp.float32)
    w5 = (1.0 / 5.0) * jax.random.normal(kg(), (5, 5, d), jnp.float32)
    w3 = (1.0 / 3.0) * jax.random.normal(kg(), (3, 3, d), jnp.float32)
    comb = w7
    comb = comb.at[1:6, 1:6, :].add(w5)             # 5x5 taps are a 7x7 subset
    comb = comb.at[2:5, 2:5, :].add(w3)             # 3x3 taps are a 7x7 subset
    comb = comb.at[3, 3, :].add(1.0)                # identity folded into center
    return {"w": comb.reshape(49, d),
            "b": jnp.zeros((1, d), jnp.float32)}    # b7+b5+b3 pre-summed


def _init_translayer(kg, d, scale):
    return {"norm_g": jnp.ones((1, d), jnp.float32),
            "norm_b": jnp.zeros((1, d), jnp.float32),
            "attn": _init_self_attn(kg, d, scale)}


def _init_transformer(kg, d, scale, with_ppeg):
    p = {"cls": 1e-6 * jax.random.normal(kg(), (1, d), jnp.float32),
         "layer1": _init_translayer(kg, d, scale),
         "layer2": _init_translayer(kg, d, scale),
         "norm_g": jnp.ones((1, d), jnp.float32),
         "norm_b": jnp.zeros((1, d), jnp.float32)}
    if with_ppeg:
        p["ppeg"] = _init_ppeg(kg, d)
    return p


def init_params(key, omic_sizes, path_size=None, model_size="small"):
    # scaled-down analogue of CMTA.size_dict for small synthetic shapes
    size_dict = {
        "pathomics": {"small": [64, 32, 32], "large": [64, 48, 32]},
        "genomics": {"small": [48, 32], "large": [48, 48, 48, 32]},
    }
    kg = KeyGen(key)
    p_hidden = list(size_dict["pathomics"][model_size])
    if path_size is not None:
        p_hidden[0] = path_size
    g_hidden = list(size_dict["genomics"][model_size])
    d = p_hidden[-1]
    scale = 1.0 / math.sqrt(d)

    params = {}
    params["pathomics_fc"] = [_init_linear(kg, p_hidden[i], p_hidden[i + 1])
                              for i in range(len(p_hidden) - 1)]
    params["genomics_fc"] = []
    for sz in omic_sizes:
        dims = [sz] + g_hidden
        params["genomics_fc"].append(
            [_init_linear(kg, dims[i], dims[i + 1]) for i in range(len(dims) - 1)])

    params["pathomics_encoder"] = _init_transformer(kg, d, scale, with_ppeg=True)
    params["pathomics_decoder"] = _init_transformer(kg, d, scale, with_ppeg=True)
    params["genomics_encoder"] = _init_transformer(kg, d, scale, with_ppeg=False)
    params["genomics_decoder"] = _init_transformer(kg, d, scale, with_ppeg=False)
    params["p_in_g_att"] = _init_cross_attn(kg, d, scale)
    params["g_in_p_att"] = _init_cross_attn(kg, d, scale)

    head_w = (1.0 / math.sqrt(2 * d)) * jax.random.normal(kg(), (1, 2 * d),
                                                          jnp.float32)
    params["head"] = {"wp": head_w[:, :d], "wg": head_w[:, d:],
                      "b": jnp.zeros((1, 1), jnp.float32)}
    return params, d


# --------------------------------------------------------------------------
# Model forward (thin glue around the fused Pallas kernels)
# --------------------------------------------------------------------------
def transformer_p(p, feats):
    n, d = feats.shape
    s = int(math.ceil(math.sqrt(n)))
    add = s * s - n
    if add > 0:
        feats = jnp.concatenate([feats, feats[:add]], axis=0)
    h = jnp.concatenate([p["cls"], feats], axis=0)
    h = self_attn_layer(h, p["layer1"])
    h = ppeg(p["ppeg"], h, s, s)
    h = self_attn_layer(h, p["layer2"], final_ln=(p["norm_g"], p["norm_b"]))
    return h[:1], h[1:]


def cmta_binary_forward(params, x_path, x_embed):
    # squeeze the batch-of-1 dims exactly as the torch module does
    xp = x_path[0] if (x_path.ndim == 3 and x_path.shape[0] == 1) else x_path
    if not isinstance(x_embed, (list, tuple)):
        x_embed = [x_embed]
    omics = [e[0] if (e.ndim == 2 and e.shape[0] == 1) else e for e in x_embed]
    omics = [o.reshape(1, -1) for o in omics]
    n_omics = len(omics)

    # pathomics embedding: fused Linear+ReLU chain over a parallel token grid
    path_feats = pathomics_embed(xp, params["pathomics_fc"])          # [N, d]
    d = path_feats.shape[-1]

    # pathomics encoder (TransLayer + PPEG + TransLayer + LN)
    cls_p_enc, patch_p = transformer_p(params["pathomics_encoder"], path_feats)

    # genomics SNNs + genomics encoder: ONE fused kernel
    g_tok_enc = genomics_encoder_fused(omics, params["genomics_fc"],
                                       params["genomics_encoder"], d)
    patch_g = g_tok_enc[1:1 + n_omics]

    # P->G cross attention (pathomics queries, gridded; genomics KV resident)
    p_in_g = cross_attention(patch_p, patch_g, params["p_in_g_att"])

    # pathomics decoder
    cls_p_dec, _ = transformer_p(params["pathomics_decoder"], p_in_g)

    # G->P cross attention + genomics decoder + head: ONE fused kernel
    p_vec, g_vec, logit, align = genomics_decoder_head_fused(
        g_tok_enc, patch_p, cls_p_enc, cls_p_dec,
        params["g_in_p_att"], params["genomics_decoder"], params["head"],
        n_omics=n_omics)

    logits = logit.reshape(1)        # [batch] == [1]
    align_loss = align.reshape(())   # scalar L1 alignment loss
    return logits, align_loss, p_vec, g_vec


# --------------------------------------------------------------------------
if __name__ == "__main__":
    omic_sizes = [16, 24]
    path_size = 64
    num_patches = 7

    params, d = init_params(jax.random.PRNGKey(42), omic_sizes,
                            path_size=path_size, model_size="small")

    key = jax.random.PRNGKey(0)
    kx, k1, k2 = jax.random.split(key, 3)
    x_path = jax.random.normal(kx, (1, num_patches, path_size), jnp.float32)
    x_embed = [jax.random.normal(k, (1, sz), jnp.float32)
               for k, sz in zip((k1, k2), omic_sizes)]

    fwd = jax.jit(cmta_binary_forward)
    logits, align_loss, p, g = fwd(params, x_path, x_embed)
    jax.block_until_ready((logits, align_loss, p, g))

    assert logits.shape == (1,)
    assert align_loss.shape == ()
    assert p.shape == (1, d) and g.shape == (1, d)
    assert bool(jnp.isfinite(logits).all()) and bool(jnp.isfinite(align_loss))
    print("KERNEL_OK")
</pallas_src>

<mosaic_0001>
module attributes {stable_mosaic.version = 11 : i64} {
  func.func @_genomics_encoder_kernel(%arg0: memref<1x16xf32, #tpu.memory_space<vmem>>, %arg1: memref<1x24xf32, #tpu.memory_space<vmem>>, %arg2: memref<16x48xbf16, #tpu.memory_space<vmem>>, %arg3: memref<1x48xf32, #tpu.memory_space<vmem>>, %arg4: memref<48x32xbf16, #tpu.memory_space<vmem>>, %arg5: memref<1x32xf32, #tpu.memory_space<vmem>>, %arg6: memref<24x48xbf16, #tpu.memory_space<vmem>>, %arg7: memref<1x48xf32, #tpu.memory_space<vmem>>, %arg8: memref<48x32xbf16, #tpu.memory_space<vmem>>, %arg9: memref<1x32xf32, #tpu.memory_space<vmem>>, %arg10: memref<1x32xf32, #tpu.memory_space<vmem>>, %arg11: memref<1x32xf32, #tpu.memory_space<vmem>>, %arg12: memref<1x32xf32, #tpu.memory_space<vmem>>, %arg13: memref<32x128xbf16, #tpu.memory_space<vmem>>, %arg14: memref<1x128xf32, #tpu.memory_space<vmem>>, %arg15: memref<32x32xbf16, #tpu.memory_space<vmem>>, %arg16: memref<1x32xf32, #tpu.memory_space<vmem>>, %arg17: memref<1x32xf32, #tpu.memory_space<vmem>>, %arg18: memref<1x32xf32, #tpu.memory_space<vmem>>, %arg19: memref<32x128xbf16, #tpu.memory_space<vmem>>, %arg20: memref<1x128xf32, #tpu.memory_space<vmem>>, %arg21: memref<32x32xbf16, #tpu.memory_space<vmem>>, %arg22: memref<1x32xf32, #tpu.memory_space<vmem>>, %arg23: memref<1x32xf32, #tpu.memory_space<vmem>>, %arg24: memref<1x32xf32, #tpu.memory_space<vmem>>, %arg25: memref<8x32xf32, #tpu.memory_space<vmem>>, %arg26: memref<8x32xf32, #tpu.memory_space<vmem>>) attributes {dimension_semantics = [], scalar_prefetch = 0 : i64, scratch_operands = 1 : i64, tpu.core_type = #tpu.core_type<tc>} {
    %cst = arith.constant 0.000000e+00 : f32
    %0 = vector.broadcast %cst : f32 to vector<8x32xf32>
    %c0 = arith.constant 0 : index
    %c0_0 = arith.constant 0 : index
    %1 = vector.load %arg26[%c0, %c0_0] : memref<8x32xf32, #tpu.memory_space<vmem>>, vector<8x32xf32>
    tpu.vector_store %arg26[%c0, %c0_0], %0 {strides = array<i32>} : memref<8x32xf32, #tpu.memory_space<vmem>>, vector<8x32xf32>,
    %c0_1 = arith.constant 0 : index
    %c0_2 = arith.constant 0 : index
    %2 = vector.load %arg10[%c0_1, %c0_2] : memref<1x32xf32, #tpu.memory_space<vmem>>, vector<1x32xf32>
    %c0_3 = arith.constant 0 : index
    %c0_4 = arith.constant 0 : index
    %3 = vector.load %arg26[%c0_3, %c0_4] : memref<8x32xf32, #tpu.memory_space<vmem>>, vector<1x32xf32>
    tpu.vector_store %arg26[%c0_3, %c0_4], %2 {strides = array<i32>} : memref<8x32xf32, #tpu.memory_space<vmem>>, vector<1x32xf32>,
    %c0_5 = arith.constant 0 : index
    %c0_6 = arith.constant 0 : index
    %4 = vector.load %arg0[%c0_5, %c0_6] : memref<1x16xf32, #tpu.memory_space<vmem>>, vector<1x16xf32>
    %c0_7 = arith.constant 0 : index
    %c0_8 = arith.constant 0 : index
    %5 = vector.load %arg2[%c0_7, %c0_8] : memref<16x48xbf16, #tpu.memory_space<vmem>>, vector<16x48xbf16>
    %c0_9 = arith.constant 0 : index
    %c0_10 = arith.constant 0 : index
    %6 = vector.load %arg3[%c0_9, %c0_10] : memref<1x48xf32, #tpu.memory_space<vmem>>, vector<1x48xf32>
    %7 = arith.truncf %4 : vector<1x16xf32> to vector<1x16xbf16>
    %cst_11 = arith.constant dense<0.000000e+00> : vector<1x48xf32>
    %8 = tpu.matmul %7, %5, %cst_11 {dimension_numbers = #tpu.dot_dimension_numbers<[1], [0], [0], [1], [0, 0, 1, 1], [], []>} : vector<1x16xbf16>, vector<16x48xbf16>, vector<1x48xf32> -> vector<1x48xf32>
    %9 = arith.addf %8, %6 : vector<1x48xf32>
    %cst_12 = arith.constant 0.000000e+00 : f32
    %10 = vector.broadcast %cst_12 : f32 to vector<1x48xf32>
    %11 = arith.cmpf ogt, %9, %10 : vector<1x48xf32>
    %cst_13 = arith.constant 0.000000e+00 : f32
    %12 = vector.broadcast %cst_13 : f32 to vector<1x48xf32>
    %13 = arith.minimumf %9, %12 : vector<1x48xf32>
    %14 = math.exp %13 : vector<1x48xf32>
    %cst_14 = arith.constant 1.000000e+00 : f32
    %15 = vector.broadcast %cst_14 : f32 to vector<1x48xf32>
    %16 = arith.subf %14, %15 : vector<1x48xf32>
    %17 = arith.select %11, %9, %16 : vector<1x48xi1>, vector<1x48xf32>
    %c0_15 = arith.constant 0 : index
    %c0_16 = arith.constant 0 : index
    %18 = vector.load %arg4[%c0_15, %c0_16] : memref<48x32xbf16, #tpu.memory_space<vmem>>, vector<48x32xbf16>
    %c0_17 = arith.constant 0 : index
    %c0_18 = arith.constant 0 : index
    %19 = vector.load %arg5[%c0_17, %c0_18] : memref<1x32xf32, #tpu.memory_space<vmem>>, vector<1x32xf32>
    %20 = arith.truncf %17 : vector<1x48xf32> to vector<1x48xbf16>
    %cst_19 = arith.constant dense<0.000000e+00> : vector<1x32xf32>
    %21 = tpu.matmul %20, %18, %cst_19 {dimension_numbers = #tpu.dot_dimension_numbers<[1], [0], [0], [1], [0, 0, 1, 1], [], []>} : vector<1x48xbf16>, vector<48x32xbf16>, vector<1x32xf32> -> vector<1x32xf32>
    %22 = arith.addf %21, %19 : vector<1x32xf32>
    %cst_20 = arith.constant 0.000000e+00 : f32
    %23 = vector.broadcast %cst_20 : f32 to vector<1x32xf32>
    %24 = arith.cmpf ogt, %22, %23 : vector<1x32xf32>
    %cst_21 = arith.constant 0.000000e+00 : f32
    %25 = vector.broadcast %cst_21 : f32 to vector<1x32xf32>
    %26 = arith.minimumf %22, %25 : vector<1x32xf32>
    %27 = math.exp %26 : vector<1x32xf32>
    %cst_22 = arith.constant 1.000000e+00 : f32
    %28 = vector.broadcast %cst_22 : f32 to vector<1x32xf32>
    %29 = arith.subf %27, %28 : vector<1x32xf32>
    %30 = arith.select %24, %22, %29 : vector<1x32xi1>, vector<1x32xf32>
    %c1 = arith.constant 1 : index
    %c0_23 = arith.constant 0 : index
    %31 = vector.load %arg26[%c1, %c0_23] : memref<8x32xf32, #tpu.memory_space<vmem>>, vector<1x32xf32>
    tpu.vector_store %arg26[%c1, %c0_23], %30 {strides = array<i32>} : memref<8x32xf32, #tpu.memory_space<vmem>>, vector<1x32xf32>,
    %c0_24 = arith.constant 0 : index
    %c0_25 = arith.constant 0 : index
    %32 = vector.load %arg1[%c0_24, %c0_25] : memref<1x24xf32, #tpu.memory_space<vmem>>, vector<1x24xf32>
    %c0_26 = arith.constant 0 : index
    %c0_27 = arith.constant 0 : index
    %33 = vector.load %arg6[%c0_26, %c0_27] : memref<24x48xbf16, #tpu.memory_space<vmem>>, vector<24x48xbf16>
    %c0_28 = arith.constant 0 : index
    %c0_29 = arith.constant 0 : index
    %34 = vector.load %arg7[%c0_28, %c0_29] : memref<1x48xf32, #tpu.memory_space<vmem>>, vector<1x48xf32>
    %35 = arith.truncf %32 : vector<1x24xf32> to vector<1x24xbf16>
    %cst_30 = arith.constant dense<0.000000e+00> : vector<1x48xf32>
    %36 = tpu.matmul %35, %33, %cst_30 {dimension_numbers = #tpu.dot_dimension_numbers<[1], [0], [0], [1], [0, 0, 1, 1], [], []>} : vector<1x24xbf16>, vector<24x48xbf16>, vector<1x48xf32> -> vector<1x48xf32>
    %37 = arith.addf %36, %34 : vector<1x48xf32>
    %cst_31 = arith.constant 0.000000e+00 : f32
    %38 = vector.broadcast %cst_31 : f32 to vector<1x48xf32>
    %39 = arith.cmpf ogt, %37, %38 : vector<1x48xf32>
    %cst_32 = arith.constant 0.000000e+00 : f32
    %40 = vector.broadcast %cst_32 : f32 to vector<1x48xf32>
    %41 = arith.minimumf %37, %40 : vector<1x48xf32>
    %42 = math.exp %41 : vector<1x48xf32>
    %cst_33 = arith.constant 1.000000e+00 : f32
    %43 = vector.broadcast %cst_33 : f32 to vector<1x48xf32>
    %44 = arith.subf %42, %43 : vector<1x48xf32>
    %45 = arith.select %39, %37, %44 : vector<1x48xi1>, vector<1x48xf32>
    %c0_34 = arith.constant 0 : index
    %c0_35 = arith.constant 0 : index
    %46 = vector.load %arg8[%c0_34, %c0_35] : memref<48x32xbf16, #tpu.memory_space<vmem>>, vector<48x32xbf16>
    %c0_36 = arith.constant 0 : index
    %c0_37 = arith.constant 0 : index
    %47 = vector.load %arg9[%c0_36, %c0_37] : memref<1x32xf32, #tpu.memory_space<vmem>>, vector<1x32xf32>
    %48 = arith.truncf %45 : vector<1x48xf32> to vector<1x48xbf16>
    %cst_38 = arith.constant dense<0.000000e+00> : vector<1x32xf32>
    %49 = tpu.matmul %48, %46, %cst_38 {dimension_numbers = #tpu.dot_dimension_numbers<[1], [0], [0], [1], [0, 0, 1, 1], [], []>} : vector<1x48xbf16>, vector<48x32xbf16>, vector<1x32xf32> -> vector<1x32xf32>
    %50 = arith.addf %49, %47 : vector<1x32xf32>
    %cst_39 = arith.constant 0.000000e+00 : f32
    %51 = vector.broadcast %cst_39 : f32 to vector<1x32xf32>
    %52 = arith.cmpf ogt, %50, %51 : vector<1x32xf32>
    %cst_40 = arith.constant 0.000000e+00 : f32
    %53 = vector.broadcast %cst_40 : f32 to vector<1x32xf32>
    %54 = arith.minimumf %50, %53 : vector<1x32xf32>
    %55 = math.exp %54 : vector<1x32xf32>
    %cst_41 = arith.constant 1.000000e+00 : f32
    %56 = vector.broadcast %cst_41 : f32 to vector<1x32xf32>
    %57 = arith.subf %55, %56 : vector<1x32xf32>
    %58 = arith.select %52, %50, %57 : vector<1x32xi1>, vector<1x32xf32>
    %c2 = arith.constant 2 : index
    %c0_42 = arith.constant 0 : index
    %59 = vector.load %arg26[%c2, %c0_42] : memref<8x32xf32, #tpu.memory_space<vmem>>, vector<1x32xf32>
    tpu.vector_store %arg26[%c2, %c0_42], %58 {strides = array<i32>} : memref<8x32xf32, #tpu.memory_space<vmem>>, vector<1x32xf32>,
    %c0_43 = arith.constant 0 : index
    %c0_44 = arith.constant 0 : index
    %60 = vector.load %arg26[%c0_43, %c0_44] : memref<8x32xf32, #tpu.memory_space<vmem>>, vector<8x32xf32>
    %c0_45 = arith.constant 0 : index
    %c0_46 = arith.constant 0 : index
    %61 = vector.load %arg11[%c0_45, %c0_46] : memref<1x32xf32, #tpu.memory_space<vmem>>, vector<1x32xf32>
    %c0_47 = arith.constant 0 : index
    %c0_48 = arith.constant 0 : index
    %62 = vector.load %arg12[%c0_47, %c0_48] : memref<1x32xf32, #tpu.memory_space<vmem>>, vector<1x32xf32>
    %c0_49 = arith.constant 0 : index
    %c0_50 = arith.constant 0 : index
    %63 = vector.load %arg13[%c0_49, %c0_50] : memref<32x128xbf16, #tpu.memory_space<vmem>>, vector<32x128xbf16>
    %c0_51 = arith.constant 0 : index
    %c0_52 = arith.constant 0 : index
    %64 = vector.load %arg14[%c0_51, %c0_52] : memref<1x128xf32, #tpu.memory_space<vmem>>, vector<1x128xf32>
    %c0_53 = arith.constant 0 : index
    %c0_54 = arith.constant 0 : index
    %65 = vector.load %arg15[%c0_53, %c0_54] : memref<32x32xbf16, #tpu.memory_space<vmem>>, vector<32x32xbf16>
    %c0_55 = arith.constant 0 : index
    %c0_56 = arith.constant 0 : index
    %66 = vector.load %arg16[%c0_55, %c0_56] : memref<1x32xf32, #tpu.memory_space<vmem>>, vector<1x32xf32>
    %cst_57 = arith.constant dense<0.000000e+00> : vector<8xf32>
    %67 = vector.multi_reduction <add>, %60, %cst_57 [1] : vector<8x32xf32> to vector<8xf32>
    %68 = vector.shape_cast %67 : vector<8xf32> to vector<8x1xf32>
    %cst_58 = arith.constant 3.200000e+01 : f32
    %69 = vector.broadcast %cst_58 : f32 to vector<8x1xf32>
    %70 = arith.divf %68, %69 : vector<8x1xf32>
    %71 = vector.broadcast %70 : vector<8x1xf32> to vector<8x32xf32>
    %72 = arith.subf %60, %71 : vector<8x32xf32>
    %73 = arith.mulf %72, %72 : vector<8x32xf32>
    %cst_59 = arith.constant dense<0.000000e+00> : vector<8xf32>
    %74 = vector.multi_reduction <add>, %73, %cst_59 [1] : vector<8x32xf32> to vector<8xf32>
    %75 = vector.shape_cast %74 : vector<8xf32> to vector<8x1xf32>
    %cst_60 = arith.constant 3.200000e+01 : f32
    %76 = vector.broadcast %cst_60 : f32 to vector<8x1xf32>
    %77 = arith.divf %75, %76 : vector<8x1xf32>
    %78 = vector.broadcast %70 : vector<8x1xf32> to vector<8x32xf32>
    %79 = arith.subf %60, %78 : vector<8x32xf32>
    %cst_61 = arith.constant 9.99999974E-6 : f32
    %80 = vector.broadcast %cst_61 : f32 to vector<8x1xf32>
    %81 = arith.addf %77, %80 : vector<8x1xf32>
    %82 = math.rsqrt %81 : vector<8x1xf32>
    %83 = vector.broadcast %82 : vector<8x1xf32> to vector<8x32xf32>
    %84 = arith.mulf %79, %83 : vector<8x32xf32>
    %85 = vector.broadcast %61 : vector<1x32xf32> to vector<8x32xf32>
    %86 = arith.mulf %84, %85 : vector<8x32xf32>
    %87 = vector.broadcast %62 : vector<1x32xf32> to vector<8x32xf32>
    %88 = arith.addf %86, %87 : vector<8x32xf32>
    %89 = arith.truncf %88 : vector<8x32xf32> to vector<8x32xbf16>
    %cst_62 = arith.constant dense<0.000000e+00> : vector<8x128xf32>
    %90 = tpu.matmul %89, %63, %cst_62 {dimension_numbers = #tpu.dot_dimension_numbers<[1], [0], [0], [1], [0, 0, 1, 1], [], []>} : vector<8x32xbf16>, vector<32x128xbf16>, vector<8x128xf32> -> vector<8x128xf32>
    %91 = vector.broadcast %64 : vector<1x128xf32> to vector<8x128xf32>
    %92 = arith.addf %90, %91 : vector<8x128xf32>
    %93 = vector.extract_strided_slice %92 {offsets = [0, 0], sizes = [8, 32], strides = [1, 1]} : vector<8x128xf32> to vector<8x32xf32>
    %94 = vector.extract_strided_slice %92 {offsets = [0, 32], sizes = [8, 32], strides = [1, 1]} : vector<8x128xf32> to vector<8x32xf32>
    %95 = vector.extract_strided_slice %92 {offsets = [0, 64], sizes = [8, 32], strides = [1, 1]} : vector<8x128xf32> to vector<8x32xf32>
    %96 = arith.truncf %93 : vector<8x32xf32> to vector<8x32xbf16>
    %97 = arith.truncf %94 : vector<8x32xf32> to vector<8x32xbf16>
    %cst_63 = arith.constant dense<0.000000e+00> : vector<8x8xf32>
    %98 = tpu.matmul %96, %97, %cst_63 {dimension_numbers = #tpu.dot_dimension_numbers<[1], [1], [0], [0], [0, 0, 1, 0], [], []>} : vector<8x32xbf16>, vector<8x32xbf16>, vector<8x8xf32> -> vector<8x8xf32>
    %99 = tpu.iota {dimensions = array<i32: 1>} : vector<8x8xi32>
    %c3_i32 = arith.constant 3 : i32
    %100 = vector.broadcast %c3_i32 : i32 to vector<8x8xi32>
    %101 = arith.cmpi slt, %99, %100 : vector<8x8xi32>
    %cst_64 = arith.constant -1.000000e+30 : f32
    %102 = vector.broadcast %cst_64 : f32 to vector<8x8xf32>
    %103 = arith.select %101, %98, %102 : vector<8x8xi1>, vector<8x8xf32>
    %cst_65 = arith.constant dense<0xFF800000> : vector<8xf32>
    %104 = vector.multi_reduction <maximumf>, %103, %cst_65 [1] : vector<8x8xf32> to vector<8xf32>
    %105 = vector.shape_cast %104 : vector<8xf32> to vector<8x1xf32>
    %106 = vector.broadcast %105 : vector<8x1xf32> to vector<8x8xf32>
    %107 = arith.subf %103, %106 : vector<8x8xf32>
    %108 = math.exp %107 : vector<8x8xf32>
    %cst_66 = arith.constant 0.000000e+00 : f32
    %109 = vector.broadcast %cst_66 : f32 to vector<8x8xf32>
    %110 = arith.select %101, %108, %109 : vector<8x8xi1>, vector<8x8xf32>
    %cst_67 = arith.constant dense<0.000000e+00> : vector<8xf32>
    %111 = vector.multi_reduction <add>, %110, %cst_67 [1] : vector<8x8xf32> to vector<8xf32>
    %112 = vector.shape_cast %111 : vector<8xf32> to vector<8x1xf32>
    %113 = tpu.reciprocal %112 {approx = true} : vector<8x1xf32> -> vector<8x1xf32>
    %114 = vector.broadcast %113 : vector<8x1xf32> to vector<8x8xf32>
    %115 = arith.mulf %110, %114 : vector<8x8xf32>
    %116 = arith.truncf %115 : vector<8x8xf32> to vector<8x8xbf16>
    %117 = arith.truncf %95 : vector<8x32xf32> to vector<8x32xbf16>
    %cst_68 = arith.constant dense<0.000000e+00> : vector<8x32xf32>
    %118 = tpu.matmul %116, %117, %cst_68 {dimension_numbers = #tpu.dot_dimension_numbers<[1], [0], [0], [1], [0, 0, 1, 1], [], []>} : vector<8x8xbf16>, vector<8x32xbf16>, vector<8x32xf32> -> vector<8x32xf32>
    %119 = arith.truncf %118 : vector<8x32xf32> to vector<8x32xbf16>
    %cst_69 = arith.constant dense<0.000000e+00> : vector<8x32xf32>
    %120 = tpu.matmul %119, %65, %cst_69 {dimension_numbers = #tpu.dot_dimension_numbers<[1], [0], [0], [1], [0, 0, 1, 1], [], []>} : vector<8x32xbf16>, vector<32x32xbf16>, vector<8x32xf32> -> vector<8x32xf32>
    %121 = arith.addf %60, %120 : vector<8x32xf32>
    %122 = vector.broadcast %66 : vector<1x32xf32> to vector<8x32xf32>
    %123 = arith.addf %121, %122 : vector<8x32xf32>
    %c0_70 = arith.constant 0 : index
    %c0_71 = arith.constant 0 : index
    %124 = vector.load %arg17[%c0_70, %c0_71] : memref<1x32xf32, #tpu.memory_space<vmem>>, vector<1x32xf32>
    %c0_72 = arith.constant 0 : index
    %c0_73 = arith.constant 0 : index
    %125 = vector.load %arg18[%c0_72, %c0_73] : memref<1x32xf32, #tpu.memory_space<vmem>>, vector<1x32xf32>
    %c0_74 = arith.constant 0 : index
    %c0_75 = arith.constant 0 : index
    %126 = vector.load %arg19[%c0_74, %c0_75] : memref<32x128xbf16, #tpu.memory_space<vmem>>, vector<32x128xbf16>
    %c0_76 = arith.constant 0 : index
    %c0_77 = arith.constant 0 : index
    %127 = vector.load %arg20[%c0_76, %c0_77] : memref<1x128xf32, #tpu.memory_space<vmem>>, vector<1x128xf32>
    %c0_78 = arith.constant 0 : index
    %c0_79 = arith.constant 0 : index
    %128 = vector.load %arg21[%c0_78, %c0_79] : memref<32x32xbf16, #tpu.memory_space<vmem>>, vector<32x32xbf16>
    %c0_80 = arith.constant 0 : index
    %c0_81 = arith.constant 0 : index
    %129 = vector.load %arg22[%c0_80, %c0_81] : memref<1x32xf32, #tpu.memory_space<vmem>>, vector<1x32xf32>
    %cst_82 = arith.constant dense<0.000000e+00> : vector<8xf32>
    %130 = vector.multi_reduction <add>, %123, %cst_82 [1] : vector<8x32xf32> to vector<8xf32>
    %131 = vector.shape_cast %130 : vector<8xf32> to vector<8x1xf32>
    %cst_83 = arith.constant 3.200000e+01 : f32
    %132 = vector.broadcast %cst_83 : f32 to vector<8x1xf32>
    %133 = arith.divf %131, %132 : vector<8x1xf32>
    %134 = vector.broadcast %133 : vector<8x1xf32> to vector<8x32xf32>
    %135 = arith.subf %123, %134 : vector<8x32xf32>
    %136 = arith.mulf %135, %135 : vector<8x32xf32>
    %cst_84 = arith.constant dense<0.000000e+00> : vector<8xf32>
    %137 = vector.multi_reduction <add>, %136, %cst_84 [1] : vector<8x32xf32> to vector<8xf32>
    %138 = vector.shape_cast %137 : vector<8xf32> to vector<8x1xf32>
    %cst_85 = arith.constant 3.200000e+01 : f32
    %139 = vector.broadcast %cst_85 : f32 to vector<8x1xf32>
    %140 = arith.divf %138, %139 : vector<8x1xf32>
    %141 = vector.broadcast %133 : vector<8x1xf32> to vector<8x32xf32>
    %142 = arith.subf %123, %141 : vector<8x32xf32>
    %cst_86 = arith.constant 9.99999974E-6 : f32
    %143 = vector.broadcast %cst_86 : f32 to vector<8x1xf32>
    %144 = arith.addf %140, %143 : vector<8x1xf32>
    %145 = math.rsqrt %144 : vector<8x1xf32>
    %146 = vector.broadcast %145 : vector<8x1xf32> to vector<8x32xf32>
    %147 = arith.mulf %142, %146 : vector<8x32xf32>
    %148 = vector.broadcast %124 : vector<1x32xf32> to vector<8x32xf32>
    %149 = arith.mulf %147, %148 : vector<8x32xf32>
    %150 = vector.broadcast %125 : vector<1x32xf32> to vector<8x32xf32>
    %151 = arith.addf %149, %150 : vector<8x32xf32>
    %152 = arith.truncf %151 : vector<8x32xf32> to vector<8x32xbf16>
    %cst_87 = arith.constant dense<0.000000e+00> : vector<8x128xf32>
    %153 = tpu.matmul %152, %126, %cst_87 {dimension_numbers = #tpu.dot_dimension_numbers<[1], [0], [0], [1], [0, 0, 1, 1], [], []>} : vector<8x32xbf16>, vector<32x128xbf16>, vector<8x128xf32> -> vector<8x128xf32>
    %154 = vector.broadcast %127 : vector<1x128xf32> to vector<8x128xf32>
    %155 = arith.addf %153, %154 : vector<8x128xf32>
    %156 = vector.extract_strided_slice %155 {offsets = [0, 0], sizes = [8, 32], strides = [1, 1]} : vector<8x128xf32> to vector<8x32xf32>
    %157 = vector.extract_strided_slice %155 {offsets = [0, 32], sizes = [8, 32], strides = [1, 1]} : vector<8x128xf32> to vector<8x32xf32>
    %158 = vector.extract_strided_slice %155 {offsets = [0, 64], sizes = [8, 32], strides = [1, 1]} : vector<8x128xf32> to vector<8x32xf32>
    %159 = arith.truncf %156 : vector<8x32xf32> to vector<8x32xbf16>
    %160 = arith.truncf %157 : vector<8x32xf32> to vector<8x32xbf16>
    %cst_88 = arith.constant dense<0.000000e+00> : vector<8x8xf32>
    %161 = tpu.matmul %159, %160, %cst_88 {dimension_numbers = #tpu.dot_dimension_numbers<[1], [1], [0], [0], [0, 0, 1, 0], [], []>} : vector<8x32xbf16>, vector<8x32xbf16>, vector<8x8xf32> -> vector<8x8xf32>
    %162 = tpu.iota {dimensions = array<i32: 1>} : vector<8x8xi32>
    %c3_i32_89 = arith.constant 3 : i32
    %163 = vector.broadcast %c3_i32_89 : i32 to vector<8x8xi32>
    %164 = arith.cmpi slt, %162, %163 : vector<8x8xi32>
    %cst_90 = arith.constant -1.000000e+30 : f32
    %165 = vector.broadcast %cst_90 : f32 to vector<8x8xf32>
    %166 = arith.select %164, %161, %165 : vector<8x8xi1>, vector<8x8xf32>
    %cst_91 = arith.constant dense<0xFF800000> : vector<8xf32>
    %167 = vector.multi_reduction <maximumf>, %166, %cst_91 [1] : vector<8x8xf32> to vector<8xf32>
    %168 = vector.shape_cast %167 : vector<8xf32> to vector<8x1xf32>
    %169 = vector.broadcast %168 : vector<8x1xf32> to vector<8x8xf32>
    %170 = arith.subf %166, %169 : vector<8x8xf32>
    %171 = math.exp %170 : vector<8x8xf32>
    %cst_92 = arith.constant 0.000000e+00 : f32
    %172 = vector.broadcast %cst_92 : f32 to vector<8x8xf32>
    %173 = arith.select %164, %171, %172 : vector<8x8xi1>, vector<8x8xf32>
    %cst_93 = arith.constant dense<0.000000e+00> : vector<8xf32>
    %174 = vector.multi_reduction <add>, %173, %cst_93 [1] : vector<8x8xf32> to vector<8xf32>
    %175 = vector.shape_cast %174 : vector<8xf32> to vector<8x1xf32>
    %176 = tpu.reciprocal %175 {approx = true} : vector<8x1xf32> -> vector<8x1xf32>
    %177 = vector.broadcast %176 : vector<8x1xf32> to vector<8x8xf32>
    %178 = arith.mulf %173, %177 : vector<8x8xf32>
    %179 = arith.truncf %178 : vector<8x8xf32> to vector<8x8xbf16>
    %180 = arith.truncf %158 : vector<8x32xf32> to vector<8x32xbf16>
    %cst_94 = arith.constant dense<0.000000e+00> : vector<8x32xf32>
    %181 = tpu.matmul %179, %180, %cst_94 {dimension_numbers = #tpu.dot_dimension_numbers<[1], [0], [0], [1], [0, 0, 1, 1], [], []>} : vector<8x8xbf16>, vector<8x32xbf16>, vector<8x32xf32> -> vector<8x32xf32>
    %182 = arith.truncf %181 : vector<8x32xf32> to vector<8x32xbf16>
    %cst_95 = arith.constant dense<0.000000e+00> : vector<8x32xf32>
    %183 = tpu.matmul %182, %128, %cst_95 {dimension_numbers = #tpu.dot_dimension_numbers<[1], [0], [0], [1], [0, 0, 1, 1], [], []>} : vector<8x32xbf16>, vector<32x32xbf16>, vector<8x32xf32> -> vector<8x32xf32>
    %184 = arith.addf %123, %183 : vector<8x32xf32>
    %185 = vector.broadcast %129 : vector<1x32xf32> to vector<8x32xf32>
    %186 = arith.addf %184, %185 : vector<8x32xf32>
    %c0_96 = arith.constant 0 : index
    %c0_97 = arith.constant 0 : index
    %187 = vector.load %arg23[%c0_96, %c0_97] : memref<1x32xf32, #tpu.memory_space<vmem>>, vector<1x32xf32>
    %c0_98 = arith.constant 0 : index
    %c0_99 = arith.constant 0 : index
    %188 = vector.load %arg24[%c0_98, %c0_99] : memref<1x32xf32, #tpu.memory_space<vmem>>, vector<1x32xf32>
    %cst_100 = arith.constant dense<0.000000e+00> : vector<8xf32>
    %189 = vector.multi_reduction <add>, %186, %cst_100 [1] : vector<8x32xf32> to vector<8xf32>
    %190 = vector.shape_cast %189 : vector<8xf32> to vector<8x1xf32>
    %cst_101 = arith.constant 3.200000e+01 : f32
    %191 = vector.broadcast %cst_101 : f32 to vector<8x1xf32>
    %192 = arith.divf %190, %191 : vector<8x1xf32>
    %193 = vector.broadcast %192 : vector<8x1xf32> to vector<8x32xf32>
    %194 = arith.subf %186, %193 : vector<8x32xf32>
    %195 = arith.mulf %194, %194 : vector<8x32xf32>
    %cst_102 = arith.constant dense<0.000000e+00> : vector<8xf32>
    %196 = vector.multi_reduction <add>, %195, %cst_102 [1] : vector<8x32xf32> to vector<8xf32>
    %197 = vector.shape_cast %196 : vector<8xf32> to vector<8x1xf32>
    %cst_103 = arith.constant 3.200000e+01 : f32
    %198 = vector.broadcast %cst_103 : f32 to vector<8x1xf32>
    %199 = arith.divf %197, %198 : vector<8x1xf32>
    %200 = vector.broadcast %192 : vector<8x1xf32> to vector<8x32xf32>
    %201 = arith.subf %186, %200 : vector<8x32xf32>
    %cst_104 = arith.constant 9.99999974E-6 : f32
    %202 = vector.broadcast %cst_104 : f32 to vector<8x1xf32>
    %203 = arith.addf %199, %202 : vector<8x1xf32>
    %204 = math.rsqrt %203 : vector<8x1xf32>
    %205 = vector.broadcast %204 : vector<8x1xf32> to vector<8x32xf32>
    %206 = arith.mulf %201, %205 : vector<8x32xf32>
    %207 = vector.broadcast %187 : vector<1x32xf32> to vector<8x32xf32>
    %208 = arith.mulf %206, %207 : vector<8x32xf32>
    %209 = vector.broadcast %188 : vector<1x32xf32> to vector<8x32xf32>
    %210 = arith.addf %208, %209 : vector<8x32xf32>
    %c0_105 = arith.constant 0 : index
    %c0_106 = arith.constant 0 : index
    %211 = vector.load %arg25[%c0_105, %c0_106] : memref<8x32xf32, #tpu.memory_space<vmem>>, vector<8x32xf32>
    tpu.vector_store %arg25[%c0_105, %c0_106], %210 {strides = array<i32>} : memref<8x32xf32, #tpu.memory_space<vmem>>, vector<8x32xf32>,
    return
  }
}

module attributes {stable_mosaic.version = 11 : i64} {
  func.func @_mlp_chain_kernel(%arg0: i32, %arg1: memref<8x64xf32, #tpu.memory_space<vmem>>, %arg2: memref<64x32xbf16, #tpu.memory_space<vmem>>, %arg3: memref<1x32xf32, #tpu.memory_space<vmem>>, %arg4: memref<32x32xbf16, #tpu.memory_space<vmem>>, %arg5: memref<1x32xf32, #tpu.memory_space<vmem>>, %arg6: memref<8x32xf32, #tpu.memory_space<vmem>>) attributes {dimension_semantics = [#tpu.dimension_semantics<parallel>], iteration_bounds = array<i64: 1>, scalar_prefetch = 0 : i64, scratch_operands = 0 : i64, tpu.core_type = #tpu.core_type<tc>, window_params = [{transform_indices = @transform_0, window_bounds = array<i64: 8, 64>}, {pipeline_mode = #tpu.pipeline_mode<synchronous>, transform_indices = @transform_1, window_bounds = array<i64: 64, 32>}, {pipeline_mode = #tpu.pipeline_mode<synchronous>, transform_indices = @transform_2, window_bounds = array<i64: 1, 32>}, {pipeline_mode = #tpu.pipeline_mode<synchronous>, transform_indices = @transform_3, window_bounds = array<i64: 32, 32>}, {pipeline_mode = #tpu.pipeline_mode<synchronous>, transform_indices = @transform_4, window_bounds = array<i64: 1, 32>}, {transform_indices = @transform_5, window_bounds = array<i64: 8, 32>}]} {
    %c0 = arith.constant 0 : index
    %c0_0 = arith.constant 0 : index
    %0 = vector.load %arg1[%c0, %c0_0] : memref<8x64xf32, #tpu.memory_space<vmem>>, vector<8x64xf32>
    %c0_1 = arith.constant 0 : index
    %c0_2 = arith.constant 0 : index
    %1 = vector.load %arg2[%c0_1, %c0_2] : memref<64x32xbf16, #tpu.memory_space<vmem>>, vector<64x32xbf16>
    %c0_3 = arith.constant 0 : index
    %c0_4 = arith.constant 0 : index
    %2 = vector.load %arg3[%c0_3, %c0_4] : memref<1x32xf32, #tpu.memory_space<vmem>>, vector<1x32xf32>
    %3 = arith.truncf %0 : vector<8x64xf32> to vector<8x64xbf16>
    %cst = arith.constant dense<0.000000e+00> : vector<8x32xf32>
    %4 = tpu.matmul %3, %1, %cst {dimension_numbers = #tpu.dot_dimension_numbers<[1], [0], [0], [1], [0, 0, 1, 1], [], []>} : vector<8x64xbf16>, vector<64x32xbf16>, vector<8x32xf32> -> vector<8x32xf32>
    %5 = vector.broadcast %2 : vector<1x32xf32> to vector<8x32xf32>
    %6 = arith.addf %4, %5 : vector<8x32xf32>
    %cst_5 = arith.constant 0.000000e+00 : f32
    %7 = vector.broadcast %cst_5 : f32 to vector<8x32xf32>
    %8 = arith.maximumf %6, %7 : vector<8x32xf32>
    %c0_6 = arith.constant 0 : index
    %c0_7 = arith.constant 0 : index
    %9 = vector.load %arg4[%c0_6, %c0_7] : memref<32x32xbf16, #tpu.memory_space<vmem>>, vector<32x32xbf16>
    %c0_8 = arith.constant 0 : index
    %c0_9 = arith.constant 0 : index
    %10 = vector.load %arg5[%c0_8, %c0_9] : memref<1x32xf32, #tpu.memory_space<vmem>>, vector<1x32xf32>
    %11 = arith.truncf %8 : vector<8x32xf32> to vector<8x32xbf16>
    %cst_10 = arith.constant dense<0.000000e+00> : vector<8x32xf32>
    %12 = tpu.matmul %11, %9, %cst_10 {dimension_numbers = #tpu.dot_dimension_numbers<[1], [0], [0], [1], [0, 0, 1, 1], [], []>} : vector<8x32xbf16>, vector<32x32xbf16>, vector<8x32xf32> -> vector<8x32xf32>
    %13 = vector.broadcast %10 : vector<1x32xf32> to vector<8x32xf32>
    %14 = arith.addf %12, %13 : vector<8x32xf32>
    %cst_11 = arith.constant 0.000000e+00 : f32
    %15 = vector.broadcast %cst_11 : f32 to vector<8x32xf32>
    %16 = arith.maximumf %14, %15 : vector<8x32xf32>
    %c0_12 = arith.constant 0 : index
    %c0_13 = arith.constant 0 : index
    %17 = vector.load %arg6[%c0_12, %c0_13] : memref<8x32xf32, #tpu.memory_space<vmem>>, vector<8x32xf32>
    tpu.vector_store %arg6[%c0_12, %c0_13], %16 {strides = array<i32>} : memref<8x32xf32, #tpu.memory_space<vmem>>, vector<8x32xf32>,
    return
  }
  func.func @transform_0(%arg0: i32) -> (i32, i32) {
    %c0_i32 = arith.constant 0 : i32
    %c0_i32_0 = arith.constant 0 : i32
    return %arg0, %c0_i32 : i32, i32
  }
  func.func @transform_1(%arg0: i32) -> (i32, i32) {
    %c0_i32 = arith.constant 0 : i32
    %c0_i32_0 = arith.constant 0 : i32
    %c0_i32_1 = arith.constant 0 : i32
    return %c0_i32, %c0_i32_0 : i32, i32
  }
  func.func @transform_2(%arg0: i32) -> (i32, i32) {
    %c0_i32 = arith.constant 0 : i32
    %c0_i32_0 = arith.constant 0 : i32
    %c0_i32_1 = arith.constant 0 : i32
    return %c0_i32, %c0_i32_0 : i32, i32
  }
  func.func @transform_3(%arg0: i32) -> (i32, i32) {
    %c0_i32 = arith.constant 0 : i32
    %c0_i32_0 = arith.constant 0 : i32
    %c0_i32_1 = arith.constant 0 : i32
    return %c0_i32, %c0_i32_0 : i32, i32
  }
  func.func @transform_4(%arg0: i32) -> (i32, i32) {
    %c0_i32 = arith.constant 0 : i32
    %c0_i32_0 = arith.constant 0 : i32
    %c0_i32_1 = arith.constant 0 : i32
    return %c0_i32, %c0_i32_0 : i32, i32
  }
  func.func @transform_5(%arg0: i32) -> (i32, i32) {
    %c0_i32 = arith.constant 0 : i32
    %c0_i32_0 = arith.constant 0 : i32
    return %arg0, %c0_i32 : i32, i32
  }
}

module attributes {stable_mosaic.version = 11 : i64} {
  func.func @_qkv_proj_kernel(%arg0: i32, %arg1: memref<16x32xf32, #tpu.memory_space<vmem>>, %arg2: memref<1x32xf32, #tpu.memory_space<vmem>>, %arg3: memref<1x32xf32, #tpu.memory_space<vmem>>, %arg4: memref<32x128xbf16, #tpu.memory_space<vmem>>, %arg5: memref<1x128xf32, #tpu.memory_space<vmem>>, %arg6: memref<16x128xbf16, #tpu.memory_space<vmem>>) attributes {dimension_semantics = [#tpu.dimension_semantics<parallel>], iteration_bounds = array<i64: 1>, scalar_prefetch = 0 : i64, scratch_operands = 0 : i64, tpu.core_type = #tpu.core_type<tc>, window_params = [{transform_indices = @transform_0, window_bounds = array<i64: 16, 32>}, {pipeline_mode = #tpu.pipeline_mode<synchronous>, transform_indices = @transform_1, window_bounds = array<i64: 1, 32>}, {pipeline_mode = #tpu.pipeline_mode<synchronous>, transform_indices = @transform_2, window_bounds = array<i64: 1, 32>}, {pipeline_mode = #tpu.pipeline_mode<synchronous>, transform_indices = @transform_3, window_bounds = array<i64: 32, 128>}, {pipeline_mode = #tpu.pipeline_mode<synchronous>, transform_indices = @transform_4, window_bounds = array<i64: 1, 128>}, {transform_indices = @transform_5, window_bounds = array<i64: 16, 128>}]} {
    %c0 = arith.constant 0 : index
    %c0_0 = arith.constant 0 : index
    %0 = vector.load %arg1[%c0, %c0_0] : memref<16x32xf32, #tpu.memory_space<vmem>>, vector<16x32xf32>
    %c0_1 = arith.constant 0 : index
    %c0_2 = arith.constant 0 : index
    %1 = vector.load %arg2[%c0_1, %c0_2] : memref<1x32xf32, #tpu.memory_space<vmem>>, vector<1x32xf32>
    %c0_3 = arith.constant 0 : index
    %c0_4 = arith.constant 0 : index
    %2 = vector.load %arg3[%c0_3, %c0_4] : memref<1x32xf32, #tpu.memory_space<vmem>>, vector<1x32xf32>
    %cst = arith.constant dense<0.000000e+00> : vector<16xf32>
    %3 = vector.multi_reduction <add>, %0, %cst [1] : vector<16x32xf32> to vector<16xf32>
    %4 = vector.shape_cast %3 : vector<16xf32> to vector<16x1xf32>
    %cst_5 = arith.constant 3.200000e+01 : f32
    %5 = vector.broadcast %cst_5 : f32 to vector<16x1xf32>
    %6 = arith.divf %4, %5 : vector<16x1xf32>
    %7 = vector.broadcast %6 : vector<16x1xf32> to vector<16x32xf32>
    %8 = arith.subf %0, %7 : vector<16x32xf32>
    %9 = arith.mulf %8, %8 : vector<16x32xf32>
    %cst_6 = arith.constant dense<0.000000e+00> : vector<16xf32>
    %10 = vector.multi_reduction <add>, %9, %cst_6 [1] : vector<16x32xf32> to vector<16xf32>
    %11 = vector.shape_cast %10 : vector<16xf32> to vector<16x1xf32>
    %cst_7 = arith.constant 3.200000e+01 : f32
    %12 = vector.broadcast %cst_7 : f32 to vector<16x1xf32>
    %13 = arith.divf %11, %12 : vector<16x1xf32>
    %14 = vector.broadcast %6 : vector<16x1xf32> to vector<16x32xf32>
    %15 = arith.subf %0, %14 : vector<16x32xf32>
    %cst_8 = arith.constant 9.99999974E-6 : f32
    %16 = vector.broadcast %cst_8 : f32 to vector<16x1xf32>
    %17 = arith.addf %13, %16 : vector<16x1xf32>
    %18 = math.rsqrt %17 : vector<16x1xf32>
    %19 = vector.broadcast %18 : vector<16x1xf32> to vector<16x32xf32>
    %20 = arith.mulf %15, %19 : vector<16x32xf32>
    %21 = vector.broadcast %1 : vector<1x32xf32> to vector<16x32xf32>
    %22 = arith.mulf %20, %21 : vector<16x32xf32>
    %23 = vector.broadcast %2 : vector<1x32xf32> to vector<16x32xf32>
    %24 = arith.addf %22, %23 : vector<16x32xf32>
    %25 = arith.truncf %24 : vector<16x32xf32> to vector<16x32xbf16>
    %c0_9 = arith.constant 0 : index
    %c0_10 = arith.constant 0 : index
    %26 = vector.load %arg4[%c0_9, %c0_10] : memref<32x128xbf16, #tpu.memory_space<vmem>>, vector<32x128xbf16>
    %cst_11 = arith.constant dense<0.000000e+00> : vector<16x128xf32>
    %27 = tpu.matmul %25, %26, %cst_11 {dimension_numbers = #tpu.dot_dimension_numbers<[1], [0], [0], [1], [0, 0, 1, 1], [], []>} : vector<16x32xbf16>, vector<32x128xbf16>, vector<16x128xf32> -> vector<16x128xf32>
    %c0_12 = arith.constant 0 : index
    %c0_13 = arith.constant 0 : index
    %28 = vector.load %arg5[%c0_12, %c0_13] : memref<1x128xf32, #tpu.memory_space<vmem>>, vector<1x128xf32>
    %29 = vector.broadcast %28 : vector<1x128xf32> to vector<16x128xf32>
    %30 = arith.addf %27, %29 : vector<16x128xf32>
    %31 = arith.truncf %30 : vector<16x128xf32> to vector<16x128xbf16>
    %c0_14 = arith.constant 0 : index
    %c0_15 = arith.constant 0 : index
    %32 = vector.load %arg6[%c0_14, %c0_15] : memref<16x128xbf16, #tpu.memory_space<vmem>>, vector<16x128xbf16>
    tpu.vector_store %arg6[%c0_14, %c0_15], %31 {strides = array<i32>} : memref<16x128xbf16, #tpu.memory_space<vmem>>, vector<16x128xbf16>,
    return
  }
  func.func @transform_0(%arg0: i32) -> (i32, i32) {
    %c0_i32 = arith.constant 0 : i32
    %c0_i32_0 = arith.constant 0 : i32
    return %arg0, %c0_i32 : i32, i32
  }
  func.func @transform_1(%arg0: i32) -> (i32, i32) {
    %c0_i32 = arith.constant 0 : i32
    %c0_i32_0 = arith.constant 0 : i32
    %c0_i32_1 = arith.constant 0 : i32
    return %c0_i32, %c0_i32_0 : i32, i32
  }
  func.func @transform_2(%arg0: i32) -> (i32, i32) {
    %c0_i32 = arith.constant 0 : i32
    %c0_i32_0 = arith.constant 0 : i32
    %c0_i32_1 = arith.constant 0 : i32
    return %c0_i32, %c0_i32_0 : i32, i32
  }
  func.func @transform_3(%arg0: i32) -> (i32, i32) {
    %c0_i32 = arith.constant 0 : i32
    %c0_i32_0 = arith.constant 0 : i32
    %c0_i32_1 = arith.constant 0 : i32
    return %c0_i32, %c0_i32_0 : i32, i32
  }
  func.func @transform_4(%arg0: i32) -> (i32, i32) {
    %c0_i32 = arith.constant 0 : i32
    %c0_i32_0 = arith.constant 0 : i32
    %c0_i32_1 = arith.constant 0 : i32
    return %c0_i32, %c0_i32_0 : i32, i32
  }
  func.func @transform_5(%arg0: i32) -> (i32, i32) {
    %c0_i32 = arith.constant 0 : i32
    %c0_i32_0 = arith.constant 0 : i32
    return %arg0, %c0_i32 : i32, i32
  }
}

module attributes {stable_mosaic.version = 11 : i64} {
  func.func @_flash_attn_kernel(%arg0: i32, %arg1: i32, %arg2: memref<16x32xf32, #tpu.memory_space<vmem>>, %arg3: memref<16x128xbf16, #tpu.memory_space<vmem>>, %arg4: memref<16x128xbf16, #tpu.memory_space<vmem>>, %arg5: memref<1x32xf32, #tpu.memory_space<vmem>>, %arg6: memref<1x32xf32, #tpu.memory_space<vmem>>, %arg7: memref<32x32xbf16, #tpu.memory_space<vmem>>, %arg8: memref<1x32xf32, #tpu.memory_space<vmem>>, %arg9: memref<16x32xf32, #tpu.memory_space<vmem>>, %arg10: memref<16x1xf32, #tpu.memory_space<vmem>>, %arg11: memref<16x1xf32, #tpu.memory_space<vmem>>, %arg12: memref<16x32xf32, #tpu.memory_space<vmem>>) attributes {dimension_semantics = [#tpu.dimension_semantics<parallel>, #tpu.dimension_semantics<arbitrary>], iteration_bounds = array<i64: 1, 1>, scalar_prefetch = 0 : i64, scratch_operands = 3 : i64, tpu.core_type = #tpu.core_type<tc>, window_params = [{transform_indices = @transform_0, window_bounds = array<i64: 16, 32>}, {transform_indices = @transform_1, window_bounds = array<i64: 16, 128>}, {transform_indices = @transform_2, window_bounds = array<i64: 16, 128>}, {pipeline_mode = #tpu.pipeline_mode<synchronous>, transform_indices = @transform_3, window_bounds = array<i64: 1, 32>}, {pipeline_mode = #tpu.pipeline_mode<synchronous>, transform_indices = @transform_4, window_bounds = array<i64: 1, 32>}, {pipeline_mode = #tpu.pipeline_mode<synchronous>, transform_indices = @transform_5, window_bounds = array<i64: 32, 32>}, {pipeline_mode = #tpu.pipeline_mode<synchronous>, transform_indices = @transform_6, window_bounds = array<i64: 1, 32>}, {transform_indices = @transform_7, window_bounds = array<i64: 16, 32>}]} {
    %c0_i32 = arith.constant 0 : i32
    %0 = arith.cmpi eq, %arg1, %c0_i32 : i32
    %1 = arith.extui %0 : i1 to i32
    %c0_i32_0 = arith.constant 0 : i32
    %2 = arith.cmpi ne, %1, %c0_i32_0 : i32
    scf.if %2 {
      %cst_23 = arith.constant -1.000000e+30 : f32
      %45 = vector.broadcast %cst_23 : f32 to vector<16x1xf32>
      %c0_24 = arith.constant 0 : index
      %c0_25 = arith.constant 0 : index
      %46 = vector.load %arg10[%c0_24, %c0_25] : memref<16x1xf32, #tpu.memory_space<vmem>>, vector<16x1xf32>
      tpu.vector_store %arg10[%c0_24, %c0_25], %45 {strides = array<i32>} : memref<16x1xf32, #tpu.memory_space<vmem>>, vector<16x1xf32>,
      %cst_26 = arith.constant 0.000000e+00 : f32
      %47 = vector.broadcast %cst_26 : f32 to vector<16x1xf32>
      %c0_27 = arith.constant 0 : index
      %c0_28 = arith.constant 0 : index
      %48 = vector.load %arg11[%c0_27, %c0_28] : memref<16x1xf32, #tpu.memory_space<vmem>>, vector<16x1xf32>
      tpu.vector_store %arg11[%c0_27, %c0_28], %47 {strides = array<i32>} : memref<16x1xf32, #tpu.memory_space<vmem>>, vector<16x1xf32>,
      %cst_29 = arith.constant 0.000000e+00 : f32
      %49 = vector.broadcast %cst_29 : f32 to vector<16x32xf32>
      %c0_30 = arith.constant 0 : index
      %c0_31 = arith.constant 0 : index
      %50 = vector.load %arg12[%c0_30, %c0_31] : memref<16x32xf32, #tpu.memory_space<vmem>>, vector<16x32xf32>
      tpu.vector_store %arg12[%c0_30, %c0_31], %49 {strides = array<i32>} : memref<16x32xf32, #tpu.memory_space<vmem>>, vector<16x32xf32>,
    } else {
    }
    %c0 = arith.constant 0 : index
    %c0_1 = arith.constant 0 : index
    %3 = vector.load %arg3[%c0, %c0_1] : memref<16x128xbf16, #tpu.memory_space<vmem>>, vector<16x128xbf16>
    %4 = vector.extract_strided_slice %3 {offsets = [0, 0], sizes = [16, 32], strides = [1, 1]} : vector<16x128xbf16> to vector<16x32xbf16>
    %c0_2 = arith.constant 0 : index
    %c0_3 = arith.constant 0 : index
    %5 = vector.load %arg4[%c0_2, %c0_3] : memref<16x128xbf16, #tpu.memory_space<vmem>>, vector<16x128xbf16>
    %6 = vector.extract_strided_slice %5 {offsets = [0, 32], sizes = [16, 32], strides = [1, 1]} : vector<16x128xbf16> to vector<16x32xbf16>
    %7 = vector.extract_strided_slice %5 {offsets = [0, 64], sizes = [16, 32], strides = [1, 1]} : vector<16x128xbf16> to vector<16x32xbf16>
    %cst = arith.constant dense<0.000000e+00> : vector<16x16xf32>
    %8 = tpu.matmul %4, %6, %cst {dimension_numbers = #tpu.dot_dimension_numbers<[1], [1], [0], [0], [0, 0, 1, 0], [], []>} : vector<16x32xbf16>, vector<16x32xbf16>, vector<16x16xf32> -> vector<16x16xf32>
    %9 = tpu.iota {dimensions = array<i32: 1>} : vector<16x16xi32>
    %c16_i32 = arith.constant 16 : i32
    %10 = arith.muli %arg1, %c16_i32 : i32
    %11 = vector.broadcast %10 : i32 to vector<16x16xi32>
    %12 = arith.addi %9, %11 : vector<16x16xi32>
    %c10_i32 = arith.constant 10 : i32
    %13 = vector.broadcast %c10_i32 : i32 to vector<16x16xi32>
    %14 = arith.cmpi slt, %12, %13 : vector<16x16xi32>
    %cst_4 = arith.constant -1.000000e+30 : f32
    %15 = vector.broadcast %cst_4 : f32 to vector<16x16xf32>
    %16 = arith.select %14, %8, %15 : vector<16x16xi1>, vector<16x16xf32>
    %c0_5 = arith.constant 0 : index
    %c0_6 = arith.constant 0 : index
    %17 = vector.load %arg10[%c0_5, %c0_6] : memref<16x1xf32, #tpu.memory_space<vmem>>, vector<16x1xf32>
    %cst_7 = arith.constant dense<0xFF800000> : vector<16xf32>
    %18 = vector.multi_reduction <maximumf>, %16, %cst_7 [1] : vector<16x16xf32> to vector<16xf32>
    %19 = vector.shape_cast %18 : vector<16xf32> to vector<16x1xf32>
    %20 = arith.maximumf %17, %19 : vector<16x1xf32>
    %21 = arith.subf %17, %20 : vector<16x1xf32>
    %22 = math.exp %21 : vector<16x1xf32>
    %23 = vector.broadcast %20 : vector<16x1xf32> to vector<16x16xf32>
    %24 = arith.subf %16, %23 : vector<16x16xf32>
    %25 = math.exp %24 : vector<16x16xf32>
    %cst_8 = arith.constant 0.000000e+00 : f32
    %26 = vector.broadcast %cst_8 : f32 to vector<16x16xf32>
    %27 = arith.select %14, %25, %26 : vector<16x16xi1>, vector<16x16xf32>
    %c0_9 = arith.constant 0 : index
    %c0_10 = arith.constant 0 : index
    %28 = vector.load %arg11[%c0_9, %c0_10] : memref<16x1xf32, #tpu.memory_space<vmem>>, vector<16x1xf32>
    %29 = arith.mulf %22, %28 : vector<16x1xf32>
    %cst_11 = arith.constant dense<0.000000e+00> : vector<16xf32>
    %30 = vector.multi_reduction <add>, %27, %cst_11 [1] : vector<16x16xf32> to vector<16xf32>
    %31 = vector.shape_cast %30 : vector<16xf32> to vector<16x1xf32>
    %32 = arith.addf %29, %31 : vector<16x1xf32>
    %c0_12 = arith.constant 0 : index
    %c0_13 = arith.constant 0 : index
    %33 = vector.load %arg11[%c0_12, %c0_13] : memref<16x1xf32, #tpu.memory_space<vmem>>, vector<16x1xf32>
    tpu.vector_store %arg11[%c0_12, %c0_13], %32 {strides = array<i32>} : memref<16x1xf32, #tpu.memory_space<vmem>>, vector<16x1xf32>,
    %c0_14 = arith.constant 0 : index
    %c0_15 = arith.constant 0 : index
    %34 = vector.load %arg12[%c0_14, %c0_15] : memref<16x32xf32, #tpu.memory_space<vmem>>, vector<16x32xf32>
    %35 = vector.broadcast %22 : vector<16x1xf32> to vector<16x32xf32>
    %36 = arith.mulf %35, %34 : vector<16x32xf32>
    %37 = arith.truncf %27 : vector<16x16xf32> to vector<16x16xbf16>
    %cst_16 = arith.constant dense<0.000000e+00> : vector<16x32xf32>
    %38 = tpu.matmul %37, %7, %cst_16 {dimension_numbers = #tpu.dot_dimension_numbers<[1], [0], [0], [1], [0, 0, 1, 1], [], []>} : vector<16x16xbf16>, vector<16x32xbf16>, vector<16x32xf32> -> vector<16x32xf32>
    %39 = arith.addf %36, %38 : vector<16x32xf32>
    %c0_17 = arith.constant 0 : index
    %c0_18 = arith.constant 0 : index
    %40 = vector.load %arg12[%c0_17, %c0_18] : memref<16x32xf32, #tpu.memory_space<vmem>>, vector<16x32xf32>
    tpu.vector_store %arg12[%c0_17, %c0_18], %39 {strides = array<i32>} : memref<16x32xf32, #tpu.memory_space<vmem>>, vector<16x32xf32>,
    %c0_19 = arith.constant 0 : index
    %c0_20 = arith.constant 0 : index
    %41 = vector.load %arg10[%c0_19, %c0_20] : memref<16x1xf32, #tpu.memory_space<vmem>>, vector<16x1xf32>
    tpu.vector_store %arg10[%c0_19, %c0_20], %20 {strides = array<i32>} : memref<16x1xf32, #tpu.memory_space<vmem>>, vector<16x1xf32>,
    %c0_i32_21 = arith.constant 0 : i32
    %42 = arith.cmpi eq, %arg1, %c0_i32_21 : i32
    %43 = arith.extui %42 : i1 to i32
    %c0_i32_22 = arith.constant 0 : i32
    %44 = arith.cmpi ne, %43, %c0_i32_22 : i32
    scf.if %44 {
      %c0_23 = arith.constant 0 : index
      %c0_24 = arith.constant 0 : index
      %45 = vector.load %arg12[%c0_23, %c0_24] : memref<16x32xf32, #tpu.memory_space<vmem>>, vector<16x32xf32>
      %c0_25 = arith.constant 0 : index
      %c0_26 = arith.constant 0 : index
      %46 = vector.load %arg11[%c0_25, %c0_26] : memref<16x1xf32, #tpu.memory_space<vmem>>, vector<16x1xf32>
      %47 = tpu.reciprocal %46 {approx = true} : vector<16x1xf32> -> vector<16x1xf32>
      %48 = vector.broadcast %47 : vector<16x1xf32> to vector<16x32xf32>
      %49 = arith.mulf %45, %48 : vector<16x32xf32>
      %50 = arith.truncf %49 : vector<16x32xf32> to vector<16x32xbf16>
      %c0_27 = arith.constant 0 : index
      %c0_28 = arith.constant 0 : index
      %51 = vector.load %arg7[%c0_27, %c0_28] : memref<32x32xbf16, #tpu.memory_space<vmem>>, vector<32x32xbf16>
      %cst_29 = arith.constant dense<0.000000e+00> : vector<16x32xf32>
      %52 = tpu.matmul %50, %51, %cst_29 {dimension_numbers = #tpu.dot_dimension_numbers<[1], [0], [0], [1], [0, 0, 1, 1], [], []>} : vector<16x32xbf16>, vector<32x32xbf16>, vector<16x32xf32> -> vector<16x32xf32>
      %c0_30 = arith.constant 0 : index
      %c0_31 = arith.constant 0 : index
      %53 = vector.load %arg8[%c0_30, %c0_31] : memref<1x32xf32, #tpu.memory_space<vmem>>, vector<1x32xf32>
      %54 = vector.broadcast %53 : vector<1x32xf32> to vector<16x32xf32>
      %55 = arith.addf %52, %54 : vector<16x32xf32>
      %c0_32 = arith.constant 0 : index
      %c0_33 = arith.constant 0 : index
      %56 = vector.load %arg2[%c0_32, %c0_33] : memref<16x32xf32, #tpu.memory_space<vmem>>, vector<16x32xf32>
      %57 = arith.addf %55, %56 : vector<16x32xf32>
      %c0_34 = arith.constant 0 : index
      %c0_35 = arith.constant 0 : index
      %58 = vector.load %arg9[%c0_34, %c0_35] : memref<16x32xf32, #tpu.memory_space<vmem>>, vector<16x32xf32>
      tpu.vector_store %arg9[%c0_34, %c0_35], %57 {strides = array<i32>} : memref<16x32xf32, #tpu.memory_space<vmem>>, vector<16x32xf32>,
    } else {
    }
    return
  }
  func.func @transform_0(%arg0: i32, %arg1: i32) -> (i32, i32) {
    %c0_i32 = arith.constant 0 : i32
    %c0_i32_0 = arith.constant 0 : i32
    return %arg0, %c0_i32 : i32, i32
  }
  func.func @transform_1(%arg0: i32, %arg1: i32) -> (i32, i32) {
    %c0_i32 = arith.constant 0 : i32
    %c0_i32_0 = arith.constant 0 : i32
    return %arg0, %c0_i32 : i32, i32
  }
  func.func @transform_2(%arg0: i32, %arg1: i32) -> (i32, i32) {
    %c0_i32 = arith.constant 0 : i32
    %c0_i32_0 = arith.constant 0 : i32
    return %arg1, %c0_i32 : i32, i32
  }
  func.func @transform_3(%arg0: i32, %arg1: i32) -> (i32, i32) {
    %c0_i32 = arith.constant 0 : i32
    %c0_i32_0 = arith.constant 0 : i32
    %c0_i32_1 = arith.constant 0 : i32
    return %c0_i32, %c0_i32_0 : i32, i32
  }
  func.func @transform_4(%arg0: i32, %arg1: i32) -> (i32, i32) {
    %c0_i32 = arith.constant 0 : i32
    %c0_i32_0 = arith.constant 0 : i32
    %c0_i32_1 = arith.constant 0 : i32
    return %c0_i32, %c0_i32_0 : i32, i32
  }
  func.func @transform_5(%arg0: i32, %arg1: i32) -> (i32, i32) {
    %c0_i32 = arith.constant 0 : i32
    %c0_i32_0 = arith.constant 0 : i32
    %c0_i32_1 = arith.constant 0 : i32
    return %c0_i32, %c0_i32_0 : i32, i32
  }
  func.func @transform_6(%arg0: i32, %arg1: i32) -> (i32, i32) {
    %c0_i32 = arith.constant 0 : i32
    %c0_i32_0 = arith.constant 0 : i32
    %c0_i32_1 = arith.constant 0 : i32
    return %c0_i32, %c0_i32_0 : i32, i32
  }
  func.func @transform_7(%arg0: i32, %arg1: i32) -> (i32, i32) {
    %c0_i32 = arith.constant 0 : i32
    %c0_i32_0 = arith.constant 0 : i32
    return %arg0, %c0_i32 : i32, i32
  }
}

module attributes {stable_mosaic.version = 11 : i64} {
  func.func @_ppeg_kernel(%arg0: memref<9x9x32xf32, #tpu.memory_space<vmem>>, %arg1: memref<49x32xf32, #tpu.memory_space<vmem>>, %arg2: memref<1x32xf32, #tpu.memory_space<vmem>>, %arg3: memref<3x3x32xf32, #tpu.memory_space<vmem>>) attributes {dimension_semantics = [], scalar_prefetch = 0 : i64, scratch_operands = 0 : i64, tpu.core_type = #tpu.core_type<tc>} {
    %cst = arith.constant 0.000000e+00 : f32
    %0 = vector.broadcast %cst : f32 to vector<3x3x32xf32>
    %c0 = arith.constant 0 : index
    %c0_0 = arith.constant 0 : index
    %1 = vector.load %arg2[%c0, %c0_0] : memref<1x32xf32, #tpu.memory_space<vmem>>, vector<1x32xf32>
    %2 = vector.shape_cast %1 : vector<1x32xf32> to vector<1x1x32xf32>
    %3 = vector.broadcast %2 : vector<1x1x32xf32> to vector<3x3x32xf32>
    %4 = arith.addf %0, %3 : vector<3x3x32xf32>
    %c0_1 = arith.constant 0 : index
    %c0_2 = arith.constant 0 : index
    %c0_3 = arith.constant 0 : index
    %5 = vector.load %arg0[%c0_1, %c0_2, %c0_3] : memref<9x9x32xf32, #tpu.memory_space<vmem>>, vector<3x3x32xf32>
    %c0_4 = arith.constant 0 : index
    %c0_5 = arith.constant 0 : index
    %6 = vector.load %arg1[%c0_4, %c0_5] : memref<49x32xf32, #tpu.memory_space<vmem>>, vector<1x32xf32>
    %7 = vector.shape_cast %6 : vector<1x32xf32> to vector<1x1x32xf32>
    %8 = vector.broadcast %7 : vector<1x1x32xf32> to vector<3x3x32xf32>
    %9 = arith.mulf %5, %8 : vector<3x3x32xf32>
    %10 = arith.addf %4, %9 : vector<3x3x32xf32>
    %c0_6 = arith.constant 0 : index
    %c1 = arith.constant 1 : index
    %c0_7 = arith.constant 0 : index
    %11 = vector.load %arg0[%c0_6, %c1, %c0_7] : memref<9x9x32xf32, #tpu.memory_space<vmem>>, vector<3x3x32xf32>
    %c1_8 = arith.constant 1 : index
    %c0_9 = arith.constant 0 : index
    %12 = vector.load %arg1[%c1_8, %c0_9] : memref<49x32xf32, #tpu.memory_space<vmem>>, vector<1x32xf32>
    %13 = vector.shape_cast %12 : vector<1x32xf32> to vector<1x1x32xf32>
    %14 = vector.broadcast %13 : vector<1x1x32xf32> to vector<3x3x32xf32>
    %15 = arith.mulf %11, %14 : vector<3x3x32xf32>
    %16 = arith.addf %10, %15 : vector<3x3x32xf32>
    %c0_10 = arith.constant 0 : index
    %c2 = arith.constant 2 : index
    %c0_11 = arith.constant 0 : index
    %17 = vector.load %arg0[%c0_10, %c2, %c0_11] : memref<9x9x32xf32, #tpu.memory_space<vmem>>, vector<3x3x32xf32>
    %c2_12 = arith.constant 2 : index
    %c0_13 = arith.constant 0 : index
    %18 = vector.load %arg1[%c2_12, %c0_13] : memref<49x32xf32, #tpu.memory_space<vmem>>, vector<1x32xf32>
    %19 = vector.shape_cast %18 : vector<1x32xf32> to vector<1x1x32xf32>
    %20 = vector.broadcast %19 : vector<1x1x32xf32> to vector<3x3x32xf32>
    %21 = arith.mulf %17, %20 : vector<3x3x32xf32>
    %22 = arith.addf %16, %21 : vector<3x3x32xf32>
    %c0_14 = arith.constant 0 : index
    %c3 = arith.constant 3 : index
    %c0_15 = arith.constant 0 : index
    %23 = vector.load %arg0[%c0_14, %c3, %c0_15] : memref<9x9x32xf32, #tpu.memory_space<vmem>>, vector<3x3x32xf32>
    %c3_16 = arith.constant 3 : index
    %c0_17 = arith.constant 0 : index
    %24 = vector.load %arg1[%c3_16, %c0_17] : memref<49x32xf32, #tpu.memory_space<vmem>>, vector<1x32xf32>
    %25 = vector.shape_cast %24 : vector<1x32xf32> to vector<1x1x32xf32>
    %26 = vector.broadcast %25 : vector<1x1x32xf32> to vector<3x3x32xf32>
    %27 = arith.mulf %23, %26 : vector<3x3x32xf32>
    %28 = arith.addf %22, %27 : vector<3x3x32xf32>
    %c0_18 = arith.constant 0 : index
    %c4 = arith.constant 4 : index
    %c0_19 = arith.constant 0 : index
    %29 = vector.load %arg0[%c0_18, %c4, %c0_19] : memref<9x9x32xf32, #tpu.memory_space<vmem>>, vector<3x3x32xf32>
    %c4_20 = arith.constant 4 : index
    %c0_21 = arith.constant 0 : index
    %30 = vector.load %arg1[%c4_20, %c0_21] : memref<49x32xf32, #tpu.memory_space<vmem>>, vector<1x32xf32>
    %31 = vector.shape_cast %30 : vector<1x32xf32> to vector<1x1x32xf32>
    %32 = vector.broadcast %31 : vector<1x1x32xf32> to vector<3x3x32xf32>
    %33 = arith.mulf %29, %32 : vector<3x3x32xf32>
    %34 = arith.addf %28, %33 : vector<3x3x32xf32>
    %c0_22 = arith.constant 0 : index
    %c5 = arith.constant 5 : index
    %c0_23 = arith.constant 0 : index
    %35 = vector.load %arg0[%c0_22, %c5, %c0_23] : memref<9x9x32xf32, #tpu.memory_space<vmem>>, vector<3x3x32xf32>
    %c5_24 = arith.constant 5 : index
    %c0_25 = arith.constant 0 : index
    %36 = vector.load %arg1[%c5_24, %c0_25] : memref<49x32xf32, #tpu.memory_space<vmem>>, vector<1x32xf32>
    %37 = vector.shape_cast %36 : vector<1x32xf32> to vector<1x1x32xf32>
    %38 = vector.broadcast %37 : vector<1x1x32xf32> to vector<3x3x32xf32>
    %39 = arith.mulf %35, %38 : vector<3x3x32xf32>
    %40 = arith.addf %34, %39 : vector<3x3x32xf32>
    %c0_26 = arith.constant 0 : index
    %c6 = arith.constant 6 : index
    %c0_27 = arith.constant 0 : index
    %41 = vector.load %arg0[%c0_26, %c6, %c0_27] : memref<9x9x32xf32, #tpu.memory_space<vmem>>, vector<3x3x32xf32>
    %c6_28 = arith.constant 6 : index
    %c0_29 = arith.constant 0 : index
    %42 = vector.load %arg1[%c6_28, %c0_29] : memref<49x32xf32, #tpu.memory_space<vmem>>, vector<1x32xf32>
    %43 = vector.shape_cast %42 : vector<1x32xf32> to vector<1x1x32xf32>
    %44 = vector.broadcast %43 : vector<1x1x32xf32> to vector<3x3x32xf32>
    %45 = arith.mulf %41, %44 : vector<3x3x32xf32>
    %46 = arith.addf %40, %45 : vector<3x3x32xf32>
    %c1_30 = arith.constant 1 : index
    %c0_31 = arith.constant 0 : index
    %c0_32 = arith.constant 0 : index
    %47 = vector.load %arg0[%c1_30, %c0_31, %c0_32] : memref<9x9x32xf32, #tpu.memory_space<vmem>>, vector<3x3x32xf32>
    %c7 = arith.constant 7 : index
    %c0_33 = arith.constant 0 : index
    %48 = vector.load %arg1[%c7, %c0_33] : memref<49x32xf32, #tpu.memory_space<vmem>>, vector<1x32xf32>
    %49 = vector.shape_cast %48 : vector<1x32xf32> to vector<1x1x32xf32>
    %50 = vector.broadcast %49 : vector<1x1x32xf32> to vector<3x3x32xf32>
    %51 = arith.mulf %47, %50 : vector<3x3x32xf32>
    %52 = arith.addf %46, %51 : vector<3x3x32xf32>
    %c1_34 = arith.constant 1 : index
    %c1_35 = arith.constant 1 : index
    %c0_36 = arith.constant 0 : index
    %53 = vector.load %arg0[%c1_34, %c1_35, %c0_36] : memref<9x9x32xf32, #tpu.memory_space<vmem>>, vector<3x3x32xf32>
    %c8 = arith.constant 8 : index
    %c0_37 = arith.constant 0 : index
    %54 = vector.load %arg1[%c8, %c0_37] : memref<49x32xf32, #tpu.memory_space<vmem>>, vector<1x32xf32>
    %55 = vector.shape_cast %54 : vector<1x32xf32> to vector<1x1x32xf32>
    %56 = vector.broadcast %55 : vector<1x1x32xf32> to vector<3x3x32xf32>
    %57 = arith.mulf %53, %56 : vector<3x3x32xf32>
    %58 = arith.addf %52, %57 : vector<3x3x32xf32>
    %c1_38 = arith.constant 1 : index
    %c2_39 = arith.constant 2 : index
    %c0_40 = arith.constant 0 : index
    %59 = vector.load %arg0[%c1_38, %c2_39, %c0_40] : memref<9x9x32xf32, #tpu.memory_space<vmem>>, vector<3x3x32xf32>
    %c9 = arith.constant 9 : index
    %c0_41 = arith.constant 0 : index
    %60 = vector.load %arg1[%c9, %c0_41] : memref<49x32xf32, #tpu.memory_space<vmem>>, vector<1x32xf32>
    %61 = vector.shape_cast %60 : vector<1x32xf32> to vector<1x1x32xf32>
    %62 = vector.broadcast %61 : vector<1x1x32xf32> to vector<3x3x32xf32>
    %63 = arith.mulf %59, %62 : vector<3x3x32xf32>
    %64 = arith.addf %58, %63 : vector<3x3x32xf32>
    %c1_42 = arith.constant 1 : index
    %c3_43 = arith.constant 3 : index
    %c0_44 = arith.constant 0 : index
    %65 = vector.load %arg0[%c1_42, %c3_43, %c0_44] : memref<9x9x32xf32, #tpu.memory_space<vmem>>, vector<3x3x32xf32>
    %c10 = arith.constant 10 : index
    %c0_45 = arith.constant 0 : index
    %66 = vector.load %arg1[%c10, %c0_45] : memref<49x32xf32, #tpu.memory_space<vmem>>, vector<1x32xf32>
    %67 = vector.shape_cast %66 : vector<1x32xf32> to vector<1x1x32xf32>
    %68 = vector.broadcast %67 : vector<1x1x32xf32> to vector<3x3x32xf32>
    %69 = arith.mulf %65, %68 : vector<3x3x32xf32>
    %70 = arith.addf %64, %69 : vector<3x3x32xf32>
    %c1_46 = arith.constant 1 : index
    %c4_47 = arith.constant 4 : index
    %c0_48 = arith.constant 0 : index
    %71 = vector.load %arg0[%c1_46, %c4_47, %c0_48] : memref<9x9x32xf32, #tpu.memory_space<vmem>>, vector<3x3x32xf32>
    %c11 = arith.constant 11 : index
    %c0_49 = arith.constant 0 : index
    %72 = vector.load %arg1[%c11, %c0_49] : memref<49x32xf32, #tpu.memory_space<vmem>>, vector<1x32xf32>
    %73 = vector.shape_cast %72 : vector<1x32xf32> to vector<1x1x32xf32>
    %74 = vector.broadcast %73 : vector<1x1x32xf32> to vector<3x3x32xf32>
    %75 = arith.mulf %71, %74 : vector<3x3x32xf32>
    %76 = arith.addf %70, %75 : vector<3x3x32xf32>
    %c1_50 = arith.constant 1 : index
    %c5_51 = arith.constant 5 : index
    %c0_52 = arith.constant 0 : index
    %77 = vector.load %arg0[%c1_50, %c5_51, %c0_52] : memref<9x9x32xf32, #tpu.memory_space<vmem>>, vector<3x3x32xf32>
    %c12 = arith.constant 12 : index
    %c0_53 = arith.constant 0 : index
    %78 = vector.load %arg1[%c12, %c0_53] : memref<49x32xf32, #tpu.memory_space<vmem>>, vector<1x32xf32>
    %79 = vector.shape_cast %78 : vector<1x32xf32> to vector<1x1x32xf32>
    %80 = vector.broadcast %79 : vector<1x1x32xf32> to vector<3x3x32xf32>
    %81 = arith.mulf %77, %80 : vector<3x3x32xf32>
    %82 = arith.addf %76, %81 : vector<3x3x32xf32>
    %c1_54 = arith.constant 1 : index
    %c6_55 = arith.constant 6 : index
    %c0_56 = arith.constant 0 : index
    %83 = vector.load %arg0[%c1_54, %c6_55, %c0_56] : memref<9x9x32xf32, #tpu.memory_space<vmem>>, vector<3x3x32xf32>
    %c13 = arith.constant 13 : index
    %c0_57 = arith.constant 0 : index
    %84 = vector.load %arg1[%c13, %c0_57] : memref<49x32xf32, #tpu.memory_space<vmem>>, vector<1x32xf32>
    %85 = vector.shape_cast %84 : vector<1x32xf32> to vector<1x1x32xf32>
    %86 = vector.broadcast %85 : vector<1x1x32xf32> to vector<3x3x32xf32>
    %87 = arith.mulf %83, %86 : vector<3x3x32xf32>
    %88 = arith.addf %82, %87 : vector<3x3x32xf32>
    %c2_58 = arith.constant 2 : index
    %c0_59 = arith.constant 0 : index
    %c0_60 = arith.constant 0 : index
    %89 = vector.load %arg0[%c2_58, %c0_59, %c0_60] : memref<9x9x32xf32, #tpu.memory_space<vmem>>, vector<3x3x32xf32>
    %c14 = arith.constant 14 : index
    %c0_61 = arith.constant 0 : index
    %90 = vector.load %arg1[%c14, %c0_61] : memref<49x32xf32, #tpu.memory_space<vmem>>, vector<1x32xf32>
    %91 = vector.shape_cast %90 : vector<1x32xf32> to vector<1x1x32xf32>
    %92 = vector.broadcast %91 : vector<1x1x32xf32> to vector<3x3x32xf32>
    %93 = arith.mulf %89, %92 : vector<3x3x32xf32>
    %94 = arith.addf %88, %93 : vector<3x3x32xf32>
    %c2_62 = arith.constant 2 : index
    %c1_63 = arith.constant 1 : index
    %c0_64 = arith.constant 0 : index
    %95 = vector.load %arg0[%c2_62, %c1_63, %c0_64] : memref<9x9x32xf32, #tpu.memory_space<vmem>>, vector<3x3x32xf32>
    %c15 = arith.constant 15 : index
    %c0_65 = arith.constant 0 : index
    %96 = vector.load %arg1[%c15, %c0_65] : memref<49x32xf32, #tpu.memory_space<vmem>>, vector<1x32xf32>
    %97 = vector.shape_cast %96 : vector<1x32xf32> to vector<1x1x32xf32>
    %98 = vector.broadcast %97 : vector<1x1x32xf32> to vector<3x3x32xf32>
    %99 = arith.mulf %95, %98 : vector<3x3x32xf32>
    %100 = arith.addf %94, %99 : vector<3x3x32xf32>
    %c2_66 = arith.constant 2 : index
    %c2_67 = arith.constant 2 : index
    %c0_68 = arith.constant 0 : index
    %101 = vector.load %arg0[%c2_66, %c2_67, %c0_68] : memref<9x9x32xf32, #tpu.memory_space<vmem>>, vector<3x3x32xf32>
    %c16 = arith.constant 16 : index
    %c0_69 = arith.constant 0 : index
    %102 = vector.load %arg1[%c16, %c0_69] : memref<49x32xf32, #tpu.memory_space<vmem>>, vector<1x32xf32>
    %103 = vector.shape_cast %102 : vector<1x32xf32> to vector<1x1x32xf32>
    %104 = vector.broadcast %103 : vector<1x1x32xf32> to vector<3x3x32xf32>
    %105 = arith.mulf %101, %104 : vector<3x3x32xf32>
    %106 = arith.addf %100, %105 : vector<3x3x32xf32>
    %c2_70 = arith.constant 2 : index
    %c3_71 = arith.constant 3 : index
    %c0_72 = arith.constant 0 : index
    %107 = vector.load %arg0[%c2_70, %c3_71, %c0_72] : memref<9x9x32xf32, #tpu.memory_space<vmem>>, vector<3x3x32xf32>
    %c17 = arith.constant 17 : index
    %c0_73 = arith.constant 0 : index
    %108 = vector.load %arg1[%c17, %c0_73] : memref<49x32xf32, #tpu.memory_space<vmem>>, vector<1x32xf32>
    %109 = vector.shape_cast %108 : vector<1x32xf32> to vector<1x1x32xf32>
    %110 = vector.broadcast %109 : vector<1x1x32xf32> to vector<3x3x32xf32>
    %111 = arith.mulf %107, %110 : vector<3x3x32xf32>
    %112 = arith.addf %106, %111 : vector<3x3x32xf32>
    %c2_74 = arith.constant 2 : index
    %c4_75 = arith.constant 4 : index
    %c0_76 = arith.constant 0 : index
    %113 = vector.load %arg0[%c2_74, %c4_75, %c0_76] : memref<9x9x32xf32, #tpu.memory_space<vmem>>, vector<3x3x32xf32>
    %c18 = arith.constant 18 : index
    %c0_77 = arith.constant 0 : index
    %114 = vector.load %arg1[%c18, %c0_77] : memref<49x32xf32, #tpu.memory_space<vmem>>, vector<1x32xf32>
    %115 = vector.shape_cast %114 : vector<1x32xf32> to vector<1x1x32xf32>
    %116 = vector.broadcast %115 : vector<1x1x32xf32> to vector<3x3x32xf32>
    %117 = arith.mulf %113, %116 : vector<3x3x32xf32>
    %118 = arith.addf %112, %117 : vector<3x3x32xf32>
    %c2_78 = arith.constant 2 : index
    %c5_79 = arith.constant 5 : index
    %c0_80 = arith.constant 0 : index
    %119 = vector.load %arg0[%c2_78, %c5_79, %c0_80] : memref<9x9x32xf32, #tpu.memory_space<vmem>>, vector<3x3x32xf32>
    %c19 = arith.constant 19 : index
    %c0_81 = arith.constant 0 : index
    %120 = vector.load %arg1[%c19, %c0_81] : memref<49x32xf32, #tpu.memory_space<vmem>>, vector<1x32xf32>
    %121 = vector.shape_cast %120 : vector<1x32xf32> to vector<1x1x32xf32>
    %122 = vector.broadcast %121 : vector<1x1x32xf32> to vector<3x3x32xf32>
    %123 = arith.mulf %119, %122 : vector<3x3x32xf32>
    %124 = arith.addf %118, %123 : vector<3x3x32xf32>
    %c2_82 = arith.constant 2 : index
    %c6_83 = arith.constant 6 : index
    %c0_84 = arith.constant 0 : index
    %125 = vector.load %arg0[%c2_82, %c6_83, %c0_84] : memref<9x9x32xf32, #tpu.memory_space<vmem>>, vector<3x3x32xf32>
    %c20 = arith.constant 20 : index
    %c0_85 = arith.constant 0 : index
    %126 = vector.load %arg1[%c20, %c0_85] : memref<49x32xf32, #tpu.memory_space<vmem>>, vector<1x32xf32>
    %127 = vector.shape_cast %126 : vector<1x32xf32> to vector<1x1x32xf32>
    %128 = vector.broadcast %127 : vector<1x1x32xf32> to vector<3x3x32xf32>
    %129 = arith.mulf %125, %128 : vector<3x3x32xf32>
    %130 = arith.addf %124, %129 : vector<3x3x32xf32>
    %c3_86 = arith.constant 3 : index
    %c0_87 = arith.constant 0 : index
    %c0_88 = arith.constant 0 : index
    %131 = vector.load %arg0[%c3_86, %c0_87, %c0_88] : memref<9x9x32xf32, #tpu.memory_space<vmem>>, vector<3x3x32xf32>
    %c21 = arith.constant 21 : index
    %c0_89 = arith.constant 0 : index
    %132 = vector.load %arg1[%c21, %c0_89] : memref<49x32xf32, #tpu.memory_space<vmem>>, vector<1x32xf32>
    %133 = vector.shape_cast %132 : vector<1x32xf32> to vector<1x1x32xf32>
    %134 = vector.broadcast %133 : vector<1x1x32xf32> to vector<3x3x32xf32>
    %135 = arith.mulf %131, %134 : vector<3x3x32xf32>
    %136 = arith.addf %130, %135 : vector<3x3x32xf32>
    %c3_90 = arith.constant 3 : index
    %c1_91 = arith.constant 1 : index
    %c0_92 = arith.constant 0 : index
    %137 = vector.load %arg0[%c3_90, %c1_91, %c0_92] : memref<9x9x32xf32, #tpu.memory_space<vmem>>, vector<3x3x32xf32>
    %c22 = arith.constant 22 : index
    %c0_93 = arith.constant 0 : index
    %138 = vector.load %arg1[%c22, %c0_93] : memref<49x32xf32, #tpu.memory_space<vmem>>, vector<1x32xf32>
    %139 = vector.shape_cast %138 : vector<1x32xf32> to vector<1x1x32xf32>
    %140 = vector.broadcast %139 : vector<1x1x32xf32> to vector<3x3x32xf32>
    %141 = arith.mulf %137, %140 : vector<3x3x32xf32>
    %142 = arith.addf %136, %141 : vector<3x3x32xf32>
    %c3_94 = arith.constant 3 : index
    %c2_95 = arith.constant 2 : index
    %c0_96 = arith.constant 0 : index
    %143 = vector.load %arg0[%c3_94, %c2_95, %c0_96] : memref<9x9x32xf32, #tpu.memory_space<vmem>>, vector<3x3x32xf32>
    %c23 = arith.constant 23 : index
    %c0_97 = arith.constant 0 : index
    %144 = vector.load %arg1[%c23, %c0_97] : memref<49x32xf32, #tpu.memory_space<vmem>>, vector<1x32xf32>
    %145 = vector.shape_cast %144 : vector<1x32xf32> to vector<1x1x32xf32>
    %146 = vector.broadcast %145 : vector<1x1x32xf32> to vector<3x3x32xf32>
    %147 = arith.mulf %143, %146 : vector<3x3x32xf32>
    %148 = arith.addf %142, %147 : vector<3x3x32xf32>
    %c3_98 = arith.constant 3 : index
    %c3_99 = arith.constant 3 : index
    %c0_100 = arith.constant 0 : index
    %149 = vector.load %arg0[%c3_98, %c3_99, %c0_100] : memref<9x9x32xf32, #tpu.memory_space<vmem>>, vector<3x3x32xf32>
    %c24 = arith.constant 24 : index
    %c0_101 = arith.constant 0 : index
    %150 = vector.load %arg1[%c24, %c0_101] : memref<49x32xf32, #tpu.memory_space<vmem>>, vector<1x32xf32>
    %151 = vector.shape_cast %150 : vector<1x32xf32> to vector<1x1x32xf32>
    %152 = vector.broadcast %151 : vector<1x1x32xf32> to vector<3x3x32xf32>
    %153 = arith.mulf %149, %152 : vector<3x3x32xf32>
    %154 = arith.addf %148, %153 : vector<3x3x32xf32>
    %c3_102 = arith.constant 3 : index
    %c4_103 = arith.constant 4 : index
    %c0_104 = arith.constant 0 : index
    %155 = vector.load %arg0[%c3_102, %c4_103, %c0_104] : memref<9x9x32xf32, #tpu.memory_space<vmem>>, vector<3x3x32xf32>
    %c25 = arith.constant 25 : index
    %c0_105 = arith.constant 0 : index
    %156 = vector.load %arg1[%c25, %c0_105] : memref<49x32xf32, #tpu.memory_space<vmem>>, vector<1x32xf32>
    %157 = vector.shape_cast %156 : vector<1x32xf32> to vector<1x1x32xf32>
    %158 = vector.broadcast %157 : vector<1x1x32xf32> to vector<3x3x32xf32>
    %159 = arith.mulf %155, %158 : vector<3x3x32xf32>
    %160 = arith.addf %154, %159 : vector<3x3x32xf32>
    %c3_106 = arith.constant 3 : index
    %c5_107 = arith.constant 5 : index
    %c0_108 = arith.constant 0 : index
    %161 = vector.load %arg0[%c3_106, %c5_107, %c0_108] : memref<9x9x32xf32, #tpu.memory_space<vmem>>, vector<3x3x32xf32>
    %c26 = arith.constant 26 : index
    %c0_109 = arith.constant 0 : index
    %162 = vector.load %arg1[%c26, %c0_109] : memref<49x32xf32, #tpu.memory_space<vmem>>, vector<1x32xf32>
    %163 = vector.shape_cast %162 : vector<1x32xf32> to vector<1x1x32xf32>
    %164 = vector.broadcast %163 : vector<1x1x32xf32> to vector<3x3x32xf32>
    %165 = arith.mulf %161, %164 : vector<3x3x32xf32>
    %166 = arith.addf %160, %165 : vector<3x3x32xf32>
    %c3_110 = arith.constant 3 : index
    %c6_111 = arith.constant 6 : index
    %c0_112 = arith.constant 0 : index
    %167 = vector.load %arg0[%c3_110, %c6_111, %c0_112] : memref<9x9x32xf32, #tpu.memory_space<vmem>>, vector<3x3x32xf32>
    %c27 = arith.constant 27 : index
    %c0_113 = arith.constant 0 : index
    %168 = vector.load %arg1[%c27, %c0_113] : memref<49x32xf32, #tpu.memory_space<vmem>>, vector<1x32xf32>
    %169 = vector.shape_cast %168 : vector<1x32xf32> to vector<1x1x32xf32>
    %170 = vector.broadcast %169 : vector<1x1x32xf32> to vector<3x3x32xf32>
    %171 = arith.mulf %167, %170 : vector<3x3x32xf32>
    %172 = arith.addf %166, %171 : vector<3x3x32xf32>
    %c4_114 = arith.constant 4 : index
    %c0_115 = arith.constant 0 : index
    %c0_116 = arith.constant 0 : index
    %173 = vector.load %arg0[%c4_114, %c0_115, %c0_116] : memref<9x9x32xf32, #tpu.memory_space<vmem>>, vector<3x3x32xf32>
    %c28 = arith.constant 28 : index
    %c0_117 = arith.constant 0 : index
    %174 = vector.load %arg1[%c28, %c0_117] : memref<49x32xf32, #tpu.memory_space<vmem>>, vector<1x32xf32>
    %175 = vector.shape_cast %174 : vector<1x32xf32> to vector<1x1x32xf32>
    %176 = vector.broadcast %175 : vector<1x1x32xf32> to vector<3x3x32xf32>
    %177 = arith.mulf %173, %176 : vector<3x3x32xf32>
    %178 = arith.addf %172, %177 : vector<3x3x32xf32>
    %c4_118 = arith.constant 4 : index
    %c1_119 = arith.constant 1 : index
    %c0_120 = arith.constant 0 : index
    %179 = vector.load %arg0[%c4_118, %c1_119, %c0_120] : memref<9x9x32xf32, #tpu.memory_space<vmem>>, vector<3x3x32xf32>
    %c29 = arith.constant 29 : index
    %c0_121 = arith.constant 0 : index
    %180 = vector.load %arg1[%c29, %c0_121] : memref<49x32xf32, #tpu.memory_space<vmem>>, vector<1x32xf32>
    %181 = vector.shape_cast %180 : vector<1x32xf32> to vector<1x1x32xf32>
    %182 = vector.broadcast %181 : vector<1x1x32xf32> to vector<3x3x32xf32>
    %183 = arith.mulf %179, %182 : vector<3x3x32xf32>
    %184 = arith.addf %178, %183 : vector<3x3x32xf32>
    %c4_122 = arith.constant 4 : index
    %c2_123 = arith.constant 2 : index
    %c0_124 = arith.constant 0 : index
    %185 = vector.load %arg0[%c4_122, %c2_123, %c0_124] : memref<9x9x32xf32, #tpu.memory_space<vmem>>, vector<3x3x32xf32>
    %c30 = arith.constant 30 : index
    %c0_125 = arith.constant 0 : index
    %186 = vector.load %arg1[%c30, %c0_125] : memref<49x32xf32, #tpu.memory_space<vmem>>, vector<1x32xf32>
    %187 = vector.shape_cast %186 : vector<1x32xf32> to vector<1x1x32xf32>
    %188 = vector.broadcast %187 : vector<1x1x32xf32> to vector<3x3x32xf32>
    %189 = arith.mulf %185, %188 : vector<3x3x32xf32>
    %190 = arith.addf %184, %189 : vector<3x3x32xf32>
    %c4_126 = arith.constant 4 : index
    %c3_127 = arith.constant 3 : index
    %c0_128 = arith.constant 0 : index
    %191 = vector.load %arg0[%c4_126, %c3_127, %c0_128] : memref<9x9x32xf32, #tpu.memory_space<vmem>>, vector<3x3x32xf32>
    %c31 = arith.constant 31 : index
    %c0_129 = arith.constant 0 : index
    %192 = vector.load %arg1[%c31, %c0_129] : memref<49x32xf32, #tpu.memory_space<vmem>>, vector<1x32xf32>
    %193 = vector.shape_cast %192 : vector<1x32xf32> to vector<1x1x32xf32>
    %194 = vector.broadcast %193 : vector<1x1x32xf32> to vector<3x3x32xf32>
    %195 = arith.mulf %191, %194 : vector<3x3x32xf32>
    %196 = arith.addf %190, %195 : vector<3x3x32xf32>
    %c4_130 = arith.constant 4 : index
    %c4_131 = arith.constant 4 : index
    %c0_132 = arith.constant 0 : index
    %197 = vector.load %arg0[%c4_130, %c4_131, %c0_132] : memref<9x9x32xf32, #tpu.memory_space<vmem>>, vector<3x3x32xf32>
    %c32 = arith.constant 32 : index
    %c0_133 = arith.constant 0 : index
    %198 = vector.load %arg1[%c32, %c0_133] : memref<49x32xf32, #tpu.memory_space<vmem>>, vector<1x32xf32>
    %199 = vector.shape_cast %198 : vector<1x32xf32> to vector<1x1x32xf32>
    %200 = vector.broadcast %199 : vector<1x1x32xf32> to vector<3x3x32xf32>
    %201 = arith.mulf %197, %200 : vector<3x3x32xf32>
    %202 = arith.addf %196, %201 : vector<3x3x32xf32>
    %c4_134 = arith.constant 4 : index
    %c5_135 = arith.constant 5 : index
    %c0_136 = arith.constant 0 : index
    %203 = vector.load %arg0[%c4_134, %c5_135, %c0_136] : memref<9x9x32xf32, #tpu.memory_space<vmem>>, vector<3x3x32xf32>
    %c33 = arith.constant 33 : index
    %c0_137 = arith.constant 0 : index
    %204 = vector.load %arg1[%c33, %c0_137] : memref<49x32xf32, #tpu.memory_space<vmem>>, vector<1x32xf32>
    %205 = vector.shape_cast %204 : vector<1x32xf32> to vector<1x1x32xf32>
    %206 = vector.broadcast %205 : vector<1x1x32xf32> to vector<3x3x32xf32>
    %207 = arith.mulf %203, %206 : vector<3x3x32xf32>
    %208 = arith.addf %202, %207 : vector<3x3x32xf32>
    %c4_138 = arith.constant 4 : index
    %c6_139 = arith.constant 6 : index
    %c0_140 = arith.constant 0 : index
    %209 = vector.load %arg0[%c4_138, %c6_139, %c0_140] : memref<9x9x32xf32, #tpu.memory_space<vmem>>, vector<3x3x32xf32>
    %c34 = arith.constant 34 : index
    %c0_141 = arith.constant 0 : index
    %210 = vector.load %arg1[%c34, %c0_141] : memref<49x32xf32, #tpu.memory_space<vmem>>, vector<1x32xf32>
    %211 = vector.shape_cast %210 : vector<1x32xf32> to vector<1x1x32xf32>
    %212 = vector.broadcast %211 : vector<1x1x32xf32> to vector<3x3x32xf32>
    %213 = arith.mulf %209, %212 : vector<3x3x32xf32>
    %214 = arith.addf %208, %213 : vector<3x3x32xf32>
    %c5_142 = arith.constant 5 : index
    %c0_143 = arith.constant 0 : index
    %c0_144 = arith.constant 0 : index
    %215 = vector.load %arg0[%c5_142, %c0_143, %c0_144] : memref<9x9x32xf32, #tpu.memory_space<vmem>>, vector<3x3x32xf32>
    %c35 = arith.constant 35 : index
    %c0_145 = arith.constant 0 : index
    %216 = vector.load %arg1[%c35, %c0_145] : memref<49x32xf32, #tpu.memory_space<vmem>>, vector<1x32xf32>
    %217 = vector.shape_cast %216 : vector<1x32xf32> to vector<1x1x32xf32>
    %218 = vector.broadcast %217 : vector<1x1x32xf32> to vector<3x3x32xf32>
    %219 = arith.mulf %215, %218 : vector<3x3x32xf32>
    %220 = arith.addf %214, %219 : vector<3x3x32xf32>
    %c5_146 = arith.constant 5 : index
    %c1_147 = arith.constant 1 : index
    %c0_148 = arith.constant 0 : index
    %221 = vector.load %arg0[%c5_146, %c1_147, %c0_148] : memref<9x9x32xf32, #tpu.memory_space<vmem>>, vector<3x3x32xf32>
    %c36 = arith.constant 36 : index
    %c0_149 = arith.constant 0 : index
    %222 = vector.load %arg1[%c36, %c0_149] : memref<49x32xf32, #tpu.memory_space<vmem>>, vector<1x32xf32>
    %223 = vector.shape_cast %222 : vector<1x32xf32> to vector<1x1x32xf32>
    %224 = vector.broadcast %223 : vector<1x1x32xf32> to vector<3x3x32xf32>
    %225 = arith.mulf %221, %224 : vector<3x3x32xf32>
    %226 = arith.addf %220, %225 : vector<3x3x32xf32>
    %c5_150 = arith.constant 5 : index
    %c2_151 = arith.constant 2 : index
    %c0_152 = arith.constant 0 : index
    %227 = vector.load %arg0[%c5_150, %c2_151, %c0_152] : memref<9x9x32xf32, #tpu.memory_space<vmem>>, vector<3x3x32xf32>
    %c37 = arith.constant 37 : index
    %c0_153 = arith.constant 0 : index
    %228 = vector.load %arg1[%c37, %c0_153] : memref<49x32xf32, #tpu.memory_space<vmem>>, vector<1x32xf32>
    %229 = vector.shape_cast %228 : vector<1x32xf32> to vector<1x1x32xf32>
    %230 = vector.broadcast %229 : vector<1x1x32xf32> to vector<3x3x32xf32>
    %231 = arith.mulf %227, %230 : vector<3x3x32xf32>
    %232 = arith.addf %226, %231 : vector<3x3x32xf32>
    %c5_154 = arith.constant 5 : index
    %c3_155 = arith.constant 3 : index
    %c0_156 = arith.constant 0 : index
    %233 = vector.load %arg0[%c5_154, %c3_155, %c0_156] : memref<9x9x32xf32, #tpu.memory_space<vmem>>, vector<3x3x32xf32>
    %c38 = arith.constant 38 : index
    %c0_157 = arith.constant 0 : index
    %234 = vector.load %arg1[%c38, %c0_157] : memref<49x32xf32, #tpu.memory_space<vmem>>, vector<1x32xf32>
    %235 = vector.shape_cast %234 : vector<1x32xf32> to vector<1x1x32xf32>
    %236 = vector.broadcast %235 : vector<1x1x32xf32> to vector<3x3x32xf32>
    %237 = arith.mulf %233, %236 : vector<3x3x32xf32>
    %238 = arith.addf %232, %237 : vector<3x3x32xf32>
    %c5_158 = arith.constant 5 : index
    %c4_159 = arith.constant 4 : index
    %c0_160 = arith.constant 0 : index
    %239 = vector.load %arg0[%c5_158, %c4_159, %c0_160] : memref<9x9x32xf32, #tpu.memory_space<vmem>>, vector<3x3x32xf32>
    %c39 = arith.constant 39 : index
    %c0_161 = arith.constant 0 : index
    %240 = vector.load %arg1[%c39, %c0_161] : memref<49x32xf32, #tpu.memory_space<vmem>>, vector<1x32xf32>
    %241 = vector.shape_cast %240 : vector<1x32xf32> to vector<1x1x32xf32>
    %242 = vector.broadcast %241 : vector<1x1x32xf32> to vector<3x3x32xf32>
    %243 = arith.mulf %239, %242 : vector<3x3x32xf32>
    %244 = arith.addf %238, %243 : vector<3x3x32xf32>
    %c5_162 = arith.constant 5 : index
    %c5_163 = arith.constant 5 : index
    %c0_164 = arith.constant 0 : index
    %245 = vector.load %arg0[%c5_162, %c5_163, %c0_164] : memref<9x9x32xf32, #tpu.memory_space<vmem>>, vector<3x3x32xf32>
    %c40 = arith.constant 40 : index
    %c0_165 = arith.constant 0 : index
    %246 = vector.load %arg1[%c40, %c0_165] : memref<49x32xf32, #tpu.memory_space<vmem>>, vector<1x32xf32>
    %247 = vector.shape_cast %246 : vector<1x32xf32> to vector<1x1x32xf32>
    %248 = vector.broadcast %247 : vector<1x1x32xf32> to vector<3x3x32xf32>
    %249 = arith.mulf %245, %248 : vector<3x3x32xf32>
    %250 = arith.addf %244, %249 : vector<3x3x32xf32>
    %c5_166 = arith.constant 5 : index
    %c6_167 = arith.constant 6 : index
    %c0_168 = arith.constant 0 : index
    %251 = vector.load %arg0[%c5_166, %c6_167, %c0_168] : memref<9x9x32xf32, #tpu.memory_space<vmem>>, vector<3x3x32xf32>
    %c41 = arith.constant 41 : index
    %c0_169 = arith.constant 0 : index
    %252 = vector.load %arg1[%c41, %c0_169] : memref<49x32xf32, #tpu.memory_space<vmem>>, vector<1x32xf32>
    %253 = vector.shape_cast %252 : vector<1x32xf32> to vector<1x1x32xf32>
    %254 = vector.broadcast %253 : vector<1x1x32xf32> to vector<3x3x32xf32>
    %255 = arith.mulf %251, %254 : vector<3x3x32xf32>
    %256 = arith.addf %250, %255 : vector<3x3x32xf32>
    %c6_170 = arith.constant 6 : index
    %c0_171 = arith.constant 0 : index
    %c0_172 = arith.constant 0 : index
    %257 = vector.load %arg0[%c6_170, %c0_171, %c0_172] : memref<9x9x32xf32, #tpu.memory_space<vmem>>, vector<3x3x32xf32>
    %c42 = arith.constant 42 : index
    %c0_173 = arith.constant 0 : index
    %258 = vector.load %arg1[%c42, %c0_173] : memref<49x32xf32, #tpu.memory_space<vmem>>, vector<1x32xf32>
    %259 = vector.shape_cast %258 : vector<1x32xf32> to vector<1x1x32xf32>
    %260 = vector.broadcast %259 : vector<1x1x32xf32> to vector<3x3x32xf32>
    %261 = arith.mulf %257, %260 : vector<3x3x32xf32>
    %262 = arith.addf %256, %261 : vector<3x3x32xf32>
    %c6_174 = arith.constant 6 : index
    %c1_175 = arith.constant 1 : index
    %c0_176 = arith.constant 0 : index
    %263 = vector.load %arg0[%c6_174, %c1_175, %c0_176] : memref<9x9x32xf32, #tpu.memory_space<vmem>>, vector<3x3x32xf32>
    %c43 = arith.constant 43 : index
    %c0_177 = arith.constant 0 : index
    %264 = vector.load %arg1[%c43, %c0_177] : memref<49x32xf32, #tpu.memory_space<vmem>>, vector<1x32xf32>
    %265 = vector.shape_cast %264 : vector<1x32xf32> to vector<1x1x32xf32>
    %266 = vector.broadcast %265 : vector<1x1x32xf32> to vector<3x3x32xf32>
    %267 = arith.mulf %263, %266 : vector<3x3x32xf32>
    %268 = arith.addf %262, %267 : vector<3x3x32xf32>
    %c6_178 = arith.constant 6 : index
    %c2_179 = arith.constant 2 : index
    %c0_180 = arith.constant 0 : index
    %269 = vector.load %arg0[%c6_178, %c2_179, %c0_180] : memref<9x9x32xf32, #tpu.memory_space<vmem>>, vector<3x3x32xf32>
    %c44 = arith.constant 44 : index
    %c0_181 = arith.constant 0 : index
    %270 = vector.load %arg1[%c44, %c0_181] : memref<49x32xf32, #tpu.memory_space<vmem>>, vector<1x32xf32>
    %271 = vector.shape_cast %270 : vector<1x32xf32> to vector<1x1x32xf32>
    %272 = vector.broadcast %271 : vector<1x1x32xf32> to vector<3x3x32xf32>
    %273 = arith.mulf %269, %272 : vector<3x3x32xf32>
    %274 = arith.addf %268, %273 : vector<3x3x32xf32>
    %c6_182 = arith.constant 6 : index
    %c3_183 = arith.constant 3 : index
    %c0_184 = arith.constant 0 : index
    %275 = vector.load %arg0[%c6_182, %c3_183, %c0_184] : memref<9x9x32xf32, #tpu.memory_space<vmem>>, vector<3x3x32xf32>
    %c45 = arith.constant 45 : index
    %c0_185 = arith.constant 0 : index
    %276 = vector.load %arg1[%c45, %c0_185] : memref<49x32xf32, #tpu.memory_space<vmem>>, vector<1x32xf32>
    %277 = vector.shape_cast %276 : vector<1x32xf32> to vector<1x1x32xf32>
    %278 = vector.broadcast %277 : vector<1x1x32xf32> to vector<3x3x32xf32>
    %279 = arith.mulf %275, %278 : vector<3x3x32xf32>
    %280 = arith.addf %274, %279 : vector<3x3x32xf32>
    %c6_186 = arith.constant 6 : index
    %c4_187 = arith.constant 4 : index
    %c0_188 = arith.constant 0 : index
    %281 = vector.load %arg0[%c6_186, %c4_187, %c0_188] : memref<9x9x32xf32, #tpu.memory_space<vmem>>, vector<3x3x32xf32>
    %c46 = arith.constant 46 : index
    %c0_189 = arith.constant 0 : index
    %282 = vector.load %arg1[%c46, %c0_189] : memref<49x32xf32, #tpu.memory_space<vmem>>, vector<1x32xf32>
    %283 = vector.shape_cast %282 : vector<1x32xf32> to vector<1x1x32xf32>
    %284 = vector.broadcast %283 : vector<1x1x32xf32> to vector<3x3x32xf32>
    %285 = arith.mulf %281, %284 : vector<3x3x32xf32>
    %286 = arith.addf %280, %285 : vector<3x3x32xf32>
    %c6_190 = arith.constant 6 : index
    %c5_191 = arith.constant 5 : index
    %c0_192 = arith.constant 0 : index
    %287 = vector.load %arg0[%c6_190, %c5_191, %c0_192] : memref<9x9x32xf32, #tpu.memory_space<vmem>>, vector<3x3x32xf32>
    %c47 = arith.constant 47 : index
    %c0_193 = arith.constant 0 : index
    %288 = vector.load %arg1[%c47, %c0_193] : memref<49x32xf32, #tpu.memory_space<vmem>>, vector<1x32xf32>
    %289 = vector.shape_cast %288 : vector<1x32xf32> to vector<1x1x32xf32>
    %290 = vector.broadcast %289 : vector<1x1x32xf32> to vector<3x3x32xf32>
    %291 = arith.mulf %287, %290 : vector<3x3x32xf32>
    %292 = arith.addf %286, %291 : vector<3x3x32xf32>
    %c6_194 = arith.constant 6 : index
    %c6_195 = arith.constant 6 : index
    %c0_196 = arith.constant 0 : index
    %293 = vector.load %arg0[%c6_194, %c6_195, %c0_196] : memref<9x9x32xf32, #tpu.memory_space<vmem>>, vector<3x3x32xf32>
    %c48 = arith.constant 48 : index
    %c0_197 = arith.constant 0 : index
    %294 = vector.load %arg1[%c48, %c0_197] : memref<49x32xf32, #tpu.memory_space<vmem>>, vector<1x32xf32>
    %295 = vector.shape_cast %294 : vector<1x32xf32> to vector<1x1x32xf32>
    %296 = vector.broadcast %295 : vector<1x1x32xf32> to vector<3x3x32xf32>
    %297 = arith.mulf %293, %296 : vector<3x3x32xf32>
    %298 = arith.addf %292, %297 : vector<3x3x32xf32>
    %c0_198 = arith.constant 0 : index
    %c0_199 = arith.constant 0 : index
    %c0_200 = arith.constant 0 : index
    %299 = vector.load %arg3[%c0_198, %c0_199, %c0_200] : memref<3x3x32xf32, #tpu.memory_space<vmem>>, vector<3x3x32xf32>
    tpu.vector_store %arg3[%c0_198, %c0_199, %c0_200], %298 {strides = array<i32>} : memref<3x3x32xf32, #tpu.memory_space<vmem>>, vector<3x3x32xf32>,
    return
  }
}

module attributes {stable_mosaic.version = 11 : i64} {
  func.func @_genomics_decoder_head_kernel(%arg0: memref<8x32xf32, #tpu.memory_space<vmem>>, %arg1: memref<16x32xf32, #tpu.memory_space<vmem>>, %arg2: memref<1x32xf32, #tpu.memory_space<vmem>>, %arg3: memref<1x32xf32, #tpu.memory_space<vmem>>, %arg4: memref<32x32xbf16, #tpu.memory_space<vmem>>, %arg5: memref<1x32xf32, #tpu.memory_space<vmem>>, %arg6: memref<32x64xbf16, #tpu.memory_space<vmem>>, %arg7: memref<1x64xf32, #tpu.memory_space<vmem>>, %arg8: memref<32x32xbf16, #tpu.memory_space<vmem>>, %arg9: memref<1x32xf32, #tpu.memory_space<vmem>>, %arg10: memref<1x32xf32, #tpu.memory_space<vmem>>, %arg11: memref<1x32xf32, #tpu.memory_space<vmem>>, %arg12: memref<1x32xf32, #tpu.memory_space<vmem>>, %arg13: memref<32x128xbf16, #tpu.memory_space<vmem>>, %arg14: memref<1x128xf32, #tpu.memory_space<vmem>>, %arg15: memref<32x32xbf16, #tpu.memory_space<vmem>>, %arg16: memref<1x32xf32, #tpu.memory_space<vmem>>, %arg17: memref<1x32xf32, #tpu.memory_space<vmem>>, %arg18: memref<1x32xf32, #tpu.memory_space<vmem>>, %arg19: memref<32x128xbf16, #tpu.memory_space<vmem>>, %arg20: memref<1x128xf32, #tpu.memory_space<vmem>>, %arg21: memref<32x32xbf16, #tpu.memory_space<vmem>>, %arg22: memref<1x32xf32, #tpu.memory_space<vmem>>, %arg23: memref<1x32xf32, #tpu.memory_space<vmem>>, %arg24: memref<1x32xf32, #tpu.memory_space<vmem>>, %arg25: memref<1x32xf32, #tpu.memory_space<vmem>>, %arg26: memref<1x32xf32, #tpu.memory_space<vmem>>, %arg27: memref<1x1xf32, #tpu.memory_space<vmem>>, %arg28: memref<1x32xf32, #tpu.memory_space<vmem>>, %arg29: memref<1x32xf32, #tpu.memory_space<vmem>>, %arg30: memref<1x1xf32, #tpu.memory_space<vmem>>, %arg31: memref<1x1xf32, #tpu.memory_space<vmem>>, %arg32: memref<8x32xf32, #tpu.memory_space<vmem>>) attributes {dimension_semantics = [], scalar_prefetch = 0 : i64, scratch_operands = 1 : i64, tpu.core_type = #tpu.core_type<tc>} {
    %c0 = arith.constant 0 : index
    %c0_0 = arith.constant 0 : index
    %0 = vector.load %arg0[%c0, %c0_0] : memref<8x32xf32, #tpu.memory_space<vmem>>, vector<8x32xf32>
    %1 = arith.truncf %0 : vector<8x32xf32> to vector<8x32xbf16>
    %c0_1 = arith.constant 0 : index
    %c0_2 = arith.constant 0 : index
    %2 = vector.load %arg4[%c0_1, %c0_2] : memref<32x32xbf16, #tpu.memory_space<vmem>>, vector<32x32xbf16>
    %cst = arith.constant dense<0.000000e+00> : vector<8x32xf32>
    %3 = tpu.matmul %1, %2, %cst {dimension_numbers = #tpu.dot_dimension_numbers<[1], [0], [0], [1], [0, 0, 1, 1], [], []>} : vector<8x32xbf16>, vector<32x32xbf16>, vector<8x32xf32> -> vector<8x32xf32>
    %c0_3 = arith.constant 0 : index
    %c0_4 = arith.constant 0 : index
    %4 = vector.load %arg5[%c0_3, %c0_4] : memref<1x32xf32, #tpu.memory_space<vmem>>, vector<1x32xf32>
    %5 = vector.broadcast %4 : vector<1x32xf32> to vector<8x32xf32>
    %6 = arith.addf %3, %5 : vector<8x32xf32>
    %c0_5 = arith.constant 0 : index
    %c0_6 = arith.constant 0 : index
    %7 = vector.load %arg1[%c0_5, %c0_6] : memref<16x32xf32, #tpu.memory_space<vmem>>, vector<16x32xf32>
    %8 = arith.truncf %7 : vector<16x32xf32> to vector<16x32xbf16>
    %c0_7 = arith.constant 0 : index
    %c0_8 = arith.constant 0 : index
    %9 = vector.load %arg6[%c0_7, %c0_8] : memref<32x64xbf16, #tpu.memory_space<vmem>>, vector<32x64xbf16>
    %cst_9 = arith.constant dense<0.000000e+00> : vector<16x64xf32>
    %10 = tpu.matmul %8, %9, %cst_9 {dimension_numbers = #tpu.dot_dimension_numbers<[1], [0], [0], [1], [0, 0, 1, 1], [], []>} : vector<16x32xbf16>, vector<32x64xbf16>, vector<16x64xf32> -> vector<16x64xf32>
    %c0_10 = arith.constant 0 : index
    %c0_11 = arith.constant 0 : index
    %11 = vector.load %arg7[%c0_10, %c0_11] : memref<1x64xf32, #tpu.memory_space<vmem>>, vector<1x64xf32>
    %12 = vector.broadcast %11 : vector<1x64xf32> to vector<16x64xf32>
    %13 = arith.addf %10, %12 : vector<16x64xf32>
    %14 = vector.extract_strided_slice %13 {offsets = [0, 0], sizes = [16, 32], strides = [1, 1]} : vector<16x64xf32> to vector<16x32xf32>
    %15 = vector.extract_strided_slice %13 {offsets = [0, 32], sizes = [16, 32], strides = [1, 1]} : vector<16x64xf32> to vector<16x32xf32>
    %16 = arith.truncf %6 : vector<8x32xf32> to vector<8x32xbf16>
    %17 = arith.truncf %14 : vector<16x32xf32> to vector<16x32xbf16>
    %cst_12 = arith.constant dense<0.000000e+00> : vector<8x16xf32>
    %18 = tpu.matmul %16, %17, %cst_12 {dimension_numbers = #tpu.dot_dimension_numbers<[1], [1], [0], [0], [0, 0, 1, 0], [], []>} : vector<8x32xbf16>, vector<16x32xbf16>, vector<8x16xf32> -> vector<8x16xf32>
    %19 = tpu.iota {dimensions = array<i32: 1>} : vector<8x16xi32>
    %c9_i32 = arith.constant 9 : i32
    %20 = vector.broadcast %c9_i32 : i32 to vector<8x16xi32>
    %21 = arith.cmpi slt, %19, %20 : vector<8x16xi32>
    %cst_13 = arith.constant -1.000000e+30 : f32
    %22 = vector.broadcast %cst_13 : f32 to vector<8x16xf32>
    %23 = arith.select %21, %18, %22 : vector<8x16xi1>, vector<8x16xf32>
    %cst_14 = arith.constant dense<0xFF800000> : vector<8xf32>
    %24 = vector.multi_reduction <maximumf>, %23, %cst_14 [1] : vector<8x16xf32> to vector<8xf32>
    %25 = vector.shape_cast %24 : vector<8xf32> to vector<8x1xf32>
    %26 = vector.broadcast %25 : vector<8x1xf32> to vector<8x16xf32>
    %27 = arith.subf %23, %26 : vector<8x16xf32>
    %28 = math.exp %27 : vector<8x16xf32>
    %cst_15 = arith.constant 0.000000e+00 : f32
    %29 = vector.broadcast %cst_15 : f32 to vector<8x16xf32>
    %30 = arith.select %21, %28, %29 : vector<8x16xi1>, vector<8x16xf32>
    %cst_16 = arith.constant dense<0.000000e+00> : vector<8xf32>
    %31 = vector.multi_reduction <add>, %30, %cst_16 [1] : vector<8x16xf32> to vector<8xf32>
    %32 = vector.shape_cast %31 : vector<8xf32> to vector<8x1xf32>
    %33 = tpu.reciprocal %32 {approx = true} : vector<8x1xf32> -> vector<8x1xf32>
    %34 = vector.broadcast %33 : vector<8x1xf32> to vector<8x16xf32>
    %35 = arith.mulf %30, %34 : vector<8x16xf32>
    %36 = arith.truncf %35 : vector<8x16xf32> to vector<8x16xbf16>
    %37 = arith.truncf %15 : vector<16x32xf32> to vector<16x32xbf16>
    %cst_17 = arith.constant dense<0.000000e+00> : vector<8x32xf32>
    %38 = tpu.matmul %36, %37, %cst_17 {dimension_numbers = #tpu.dot_dimension_numbers<[1], [0], [0], [1], [0, 0, 1, 1], [], []>} : vector<8x16xbf16>, vector<16x32xbf16>, vector<8x32xf32> -> vector<8x32xf32>
    %39 = arith.truncf %38 : vector<8x32xf32> to vector<8x32xbf16>
    %c0_18 = arith.constant 0 : index
    %c0_19 = arith.constant 0 : index
    %40 = vector.load %arg8[%c0_18, %c0_19] : memref<32x32xbf16, #tpu.memory_space<vmem>>, vector<32x32xbf16>
    %cst_20 = arith.constant dense<0.000000e+00> : vector<8x32xf32>
    %41 = tpu.matmul %39, %40, %cst_20 {dimension_numbers = #tpu.dot_dimension_numbers<[1], [0], [0], [1], [0, 0, 1, 1], [], []>} : vector<8x32xbf16>, vector<32x32xbf16>, vector<8x32xf32> -> vector<8x32xf32>
    %c0_21 = arith.constant 0 : index
    %c0_22 = arith.constant 0 : index
    %42 = vector.load %arg9[%c0_21, %c0_22] : memref<1x32xf32, #tpu.memory_space<vmem>>, vector<1x32xf32>
    %43 = vector.broadcast %42 : vector<1x32xf32> to vector<8x32xf32>
    %44 = arith.addf %41, %43 : vector<8x32xf32>
    %cst_23 = arith.constant 0.000000e+00 : f32
    %45 = vector.broadcast %cst_23 : f32 to vector<8x32xf32>
    %c0_24 = arith.constant 0 : index
    %c0_25 = arith.constant 0 : index
    %46 = vector.load %arg32[%c0_24, %c0_25] : memref<8x32xf32, #tpu.memory_space<vmem>>, vector<8x32xf32>
    tpu.vector_store %arg32[%c0_24, %c0_25], %45 {strides = array<i32>} : memref<8x32xf32, #tpu.memory_space<vmem>>, vector<8x32xf32>,
    %c0_26 = arith.constant 0 : index
    %c0_27 = arith.constant 0 : index
    %47 = vector.load %arg10[%c0_26, %c0_27] : memref<1x32xf32, #tpu.memory_space<vmem>>, vector<1x32xf32>
    %c0_28 = arith.constant 0 : index
    %c0_29 = arith.constant 0 : index
    %48 = vector.load %arg32[%c0_28, %c0_29] : memref<8x32xf32, #tpu.memory_space<vmem>>, vector<1x32xf32>
    tpu.vector_store %arg32[%c0_28, %c0_29], %47 {strides = array<i32>} : memref<8x32xf32, #tpu.memory_space<vmem>>, vector<1x32xf32>,
    %49 = vector.extract_strided_slice %44 {offsets = [1, 0], sizes = [2, 32], strides = [1, 1]} : vector<8x32xf32> to vector<2x32xf32>
    %c1 = arith.constant 1 : index
    %c0_30 = arith.constant 0 : index
    %50 = vector.load %arg32[%c1, %c0_30] : memref<8x32xf32, #tpu.memory_space<vmem>>, vector<2x32xf32>
    tpu.vector_store %arg32[%c1, %c0_30], %49 {strides = array<i32>} : memref<8x32xf32, #tpu.memory_space<vmem>>, vector<2x32xf32>,
    %c0_31 = arith.constant 0 : index
    %c0_32 = arith.constant 0 : index
    %51 = vector.load %arg32[%c0_31, %c0_32] : memref<8x32xf32, #tpu.memory_space<vmem>>, vector<8x32xf32>
    %c0_33 = arith.constant 0 : index
    %c0_34 = arith.constant 0 : index
    %52 = vector.load %arg11[%c0_33, %c0_34] : memref<1x32xf32, #tpu.memory_space<vmem>>, vector<1x32xf32>
    %c0_35 = arith.constant 0 : index
    %c0_36 = arith.constant 0 : index
    %53 = vector.load %arg12[%c0_35, %c0_36] : memref<1x32xf32, #tpu.memory_space<vmem>>, vector<1x32xf32>
    %c0_37 = arith.constant 0 : index
    %c0_38 = arith.constant 0 : index
    %54 = vector.load %arg13[%c0_37, %c0_38] : memref<32x128xbf16, #tpu.memory_space<vmem>>, vector<32x128xbf16>
    %c0_39 = arith.constant 0 : index
    %c0_40 = arith.constant 0 : index
    %55 = vector.load %arg14[%c0_39, %c0_40] : memref<1x128xf32, #tpu.memory_space<vmem>>, vector<1x128xf32>
    %c0_41 = arith.constant 0 : index
    %c0_42 = arith.constant 0 : index
    %56 = vector.load %arg15[%c0_41, %c0_42] : memref<32x32xbf16, #tpu.memory_space<vmem>>, vector<32x32xbf16>
    %c0_43 = arith.constant 0 : index
    %c0_44 = arith.constant 0 : index
    %57 = vector.load %arg16[%c0_43, %c0_44] : memref<1x32xf32, #tpu.memory_space<vmem>>, vector<1x32xf32>
    %cst_45 = arith.constant dense<0.000000e+00> : vector<8xf32>
    %58 = vector.multi_reduction <add>, %51, %cst_45 [1] : vector<8x32xf32> to vector<8xf32>
    %59 = vector.shape_cast %58 : vector<8xf32> to vector<8x1xf32>
    %cst_46 = arith.constant 3.200000e+01 : f32
    %60 = vector.broadcast %cst_46 : f32 to vector<8x1xf32>
    %61 = arith.divf %59, %60 : vector<8x1xf32>
    %62 = vector.broadcast %61 : vector<8x1xf32> to vector<8x32xf32>
    %63 = arith.subf %51, %62 : vector<8x32xf32>
    %64 = arith.mulf %63, %63 : vector<8x32xf32>
    %cst_47 = arith.constant dense<0.000000e+00> : vector<8xf32>
    %65 = vector.multi_reduction <add>, %64, %cst_47 [1] : vector<8x32xf32> to vector<8xf32>
    %66 = vector.shape_cast %65 : vector<8xf32> to vector<8x1xf32>
    %cst_48 = arith.constant 3.200000e+01 : f32
    %67 = vector.broadcast %cst_48 : f32 to vector<8x1xf32>
    %68 = arith.divf %66, %67 : vector<8x1xf32>
    %69 = vector.broadcast %61 : vector<8x1xf32> to vector<8x32xf32>
    %70 = arith.subf %51, %69 : vector<8x32xf32>
    %cst_49 = arith.constant 9.99999974E-6 : f32
    %71 = vector.broadcast %cst_49 : f32 to vector<8x1xf32>
    %72 = arith.addf %68, %71 : vector<8x1xf32>
    %73 = math.rsqrt %72 : vector<8x1xf32>
    %74 = vector.broadcast %73 : vector<8x1xf32> to vector<8x32xf32>
    %75 = arith.mulf %70, %74 : vector<8x32xf32>
    %76 = vector.broadcast %52 : vector<1x32xf32> to vector<8x32xf32>
    %77 = arith.mulf %75, %76 : vector<8x32xf32>
    %78 = vector.broadcast %53 : vector<1x32xf32> to vector<8x32xf32>
    %79 = arith.addf %77, %78 : vector<8x32xf32>
    %80 = arith.truncf %79 : vector<8x32xf32> to vector<8x32xbf16>
    %cst_50 = arith.constant dense<0.000000e+00> : vector<8x128xf32>
    %81 = tpu.matmul %80, %54, %cst_50 {dimension_numbers = #tpu.dot_dimension_numbers<[1], [0], [0], [1], [0, 0, 1, 1], [], []>} : vector<8x32xbf16>, vector<32x128xbf16>, vector<8x128xf32> -> vector<8x128xf32>
    %82 = vector.broadcast %55 : vector<1x128xf32> to vector<8x128xf32>
    %83 = arith.addf %81, %82 : vector<8x128xf32>
    %84 = vector.extract_strided_slice %83 {offsets = [0, 0], sizes = [8, 32], strides = [1, 1]} : vector<8x128xf32> to vector<8x32xf32>
    %85 = vector.extract_strided_slice %83 {offsets = [0, 32], sizes = [8, 32], strides = [1, 1]} : vector<8x128xf32> to vector<8x32xf32>
    %86 = vector.extract_strided_slice %83 {offsets = [0, 64], sizes = [8, 32], strides = [1, 1]} : vector<8x128xf32> to vector<8x32xf32>
    %87 = arith.truncf %84 : vector<8x32xf32> to vector<8x32xbf16>
    %88 = arith.truncf %85 : vector<8x32xf32> to vector<8x32xbf16>
    %cst_51 = arith.constant dense<0.000000e+00> : vector<8x8xf32>
    %89 = tpu.matmul %87, %88, %cst_51 {dimension_numbers = #tpu.dot_dimension_numbers<[1], [1], [0], [0], [0, 0, 1, 0], [], []>} : vector<8x32xbf16>, vector<8x32xbf16>, vector<8x8xf32> -> vector<8x8xf32>
    %90 = tpu.iota {dimensions = array<i32: 1>} : vector<8x8xi32>
    %c3_i32 = arith.constant 3 : i32
    %91 = vector.broadcast %c3_i32 : i32 to vector<8x8xi32>
    %92 = arith.cmpi slt, %90, %91 : vector<8x8xi32>
    %cst_52 = arith.constant -1.000000e+30 : f32
    %93 = vector.broadcast %cst_52 : f32 to vector<8x8xf32>
    %94 = arith.select %92, %89, %93 : vector<8x8xi1>, vector<8x8xf32>
    %cst_53 = arith.constant dense<0xFF800000> : vector<8xf32>
    %95 = vector.multi_reduction <maximumf>, %94, %cst_53 [1] : vector<8x8xf32> to vector<8xf32>
    %96 = vector.shape_cast %95 : vector<8xf32> to vector<8x1xf32>
    %97 = vector.broadcast %96 : vector<8x1xf32> to vector<8x8xf32>
    %98 = arith.subf %94, %97 : vector<8x8xf32>
    %99 = math.exp %98 : vector<8x8xf32>
    %cst_54 = arith.constant 0.000000e+00 : f32
    %100 = vector.broadcast %cst_54 : f32 to vector<8x8xf32>
    %101 = arith.select %92, %99, %100 : vector<8x8xi1>, vector<8x8xf32>
    %cst_55 = arith.constant dense<0.000000e+00> : vector<8xf32>
    %102 = vector.multi_reduction <add>, %101, %cst_55 [1] : vector<8x8xf32> to vector<8xf32>
    %103 = vector.shape_cast %102 : vector<8xf32> to vector<8x1xf32>
    %104 = tpu.reciprocal %103 {approx = true} : vector<8x1xf32> -> vector<8x1xf32>
    %105 = vector.broadcast %104 : vector<8x1xf32> to vector<8x8xf32>
    %106 = arith.mulf %101, %105 : vector<8x8xf32>
    %107 = arith.truncf %106 : vector<8x8xf32> to vector<8x8xbf16>
    %108 = arith.truncf %86 : vector<8x32xf32> to vector<8x32xbf16>
    %cst_56 = arith.constant dense<0.000000e+00> : vector<8x32xf32>
    %109 = tpu.matmul %107, %108, %cst_56 {dimension_numbers = #tpu.dot_dimension_numbers<[1], [0], [0], [1], [0, 0, 1, 1], [], []>} : vector<8x8xbf16>, vector<8x32xbf16>, vector<8x32xf32> -> vector<8x32xf32>
    %110 = arith.truncf %109 : vector<8x32xf32> to vector<8x32xbf16>
    %cst_57 = arith.constant dense<0.000000e+00> : vector<8x32xf32>
    %111 = tpu.matmul %110, %56, %cst_57 {dimension_numbers = #tpu.dot_dimension_numbers<[1], [0], [0], [1], [0, 0, 1, 1], [], []>} : vector<8x32xbf16>, vector<32x32xbf16>, vector<8x32xf32> -> vector<8x32xf32>
    %112 = arith.addf %51, %111 : vector<8x32xf32>
    %113 = vector.broadcast %57 : vector<1x32xf32> to vector<8x32xf32>
    %114 = arith.addf %112, %113 : vector<8x32xf32>
    %c0_58 = arith.constant 0 : index
    %c0_59 = arith.constant 0 : index
    %115 = vector.load %arg17[%c0_58, %c0_59] : memref<1x32xf32, #tpu.memory_space<vmem>>, vector<1x32xf32>
    %c0_60 = arith.constant 0 : index
    %c0_61 = arith.constant 0 : index
    %116 = vector.load %arg18[%c0_60, %c0_61] : memref<1x32xf32, #tpu.memory_space<vmem>>, vector<1x32xf32>
    %c0_62 = arith.constant 0 : index
    %c0_63 = arith.constant 0 : index
    %117 = vector.load %arg19[%c0_62, %c0_63] : memref<32x128xbf16, #tpu.memory_space<vmem>>, vector<32x128xbf16>
    %c0_64 = arith.constant 0 : index
    %c0_65 = arith.constant 0 : index
    %118 = vector.load %arg20[%c0_64, %c0_65] : memref<1x128xf32, #tpu.memory_space<vmem>>, vector<1x128xf32>
    %c0_66 = arith.constant 0 : index
    %c0_67 = arith.constant 0 : index
    %119 = vector.load %arg21[%c0_66, %c0_67] : memref<32x32xbf16, #tpu.memory_space<vmem>>, vector<32x32xbf16>
    %c0_68 = arith.constant 0 : index
    %c0_69 = arith.constant 0 : index
    %120 = vector.load %arg22[%c0_68, %c0_69] : memref<1x32xf32, #tpu.memory_space<vmem>>, vector<1x32xf32>
    %cst_70 = arith.constant dense<0.000000e+00> : vector<8xf32>
    %121 = vector.multi_reduction <add>, %114, %cst_70 [1] : vector<8x32xf32> to vector<8xf32>
    %122 = vector.shape_cast %121 : vector<8xf32> to vector<8x1xf32>
    %cst_71 = arith.constant 3.200000e+01 : f32
    %123 = vector.broadcast %cst_71 : f32 to vector<8x1xf32>
    %124 = arith.divf %122, %123 : vector<8x1xf32>
    %125 = vector.broadcast %124 : vector<8x1xf32> to vector<8x32xf32>
    %126 = arith.subf %114, %125 : vector<8x32xf32>
    %127 = arith.mulf %126, %126 : vector<8x32xf32>
    %cst_72 = arith.constant dense<0.000000e+00> : vector<8xf32>
    %128 = vector.multi_reduction <add>, %127, %cst_72 [1] : vector<8x32xf32> to vector<8xf32>
    %129 = vector.shape_cast %128 : vector<8xf32> to vector<8x1xf32>
    %cst_73 = arith.constant 3.200000e+01 : f32
    %130 = vector.broadcast %cst_73 : f32 to vector<8x1xf32>
    %131 = arith.divf %129, %130 : vector<8x1xf32>
    %132 = vector.broadcast %124 : vector<8x1xf32> to vector<8x32xf32>
    %133 = arith.subf %114, %132 : vector<8x32xf32>
    %cst_74 = arith.constant 9.99999974E-6 : f32
    %134 = vector.broadcast %cst_74 : f32 to vector<8x1xf32>
    %135 = arith.addf %131, %134 : vector<8x1xf32>
    %136 = math.rsqrt %135 : vector<8x1xf32>
    %137 = vector.broadcast %136 : vector<8x1xf32> to vector<8x32xf32>
    %138 = arith.mulf %133, %137 : vector<8x32xf32>
    %139 = vector.broadcast %115 : vector<1x32xf32> to vector<8x32xf32>
    %140 = arith.mulf %138, %139 : vector<8x32xf32>
    %141 = vector.broadcast %116 : vector<1x32xf32> to vector<8x32xf32>
    %142 = arith.addf %140, %141 : vector<8x32xf32>
    %143 = arith.truncf %142 : vector<8x32xf32> to vector<8x32xbf16>
    %cst_75 = arith.constant dense<0.000000e+00> : vector<8x128xf32>
    %144 = tpu.matmul %143, %117, %cst_75 {dimension_numbers = #tpu.dot_dimension_numbers<[1], [0], [0], [1], [0, 0, 1, 1], [], []>} : vector<8x32xbf16>, vector<32x128xbf16>, vector<8x128xf32> -> vector<8x128xf32>
    %145 = vector.broadcast %118 : vector<1x128xf32> to vector<8x128xf32>
    %146 = arith.addf %144, %145 : vector<8x128xf32>
    %147 = vector.extract_strided_slice %146 {offsets = [0, 0], sizes = [8, 32], strides = [1, 1]} : vector<8x128xf32> to vector<8x32xf32>
    %148 = vector.extract_strided_slice %146 {offsets = [0, 32], sizes = [8, 32], strides = [1, 1]} : vector<8x128xf32> to vector<8x32xf32>
    %149 = vector.extract_strided_slice %146 {offsets = [0, 64], sizes = [8, 32], strides = [1, 1]} : vector<8x128xf32> to vector<8x32xf32>
    %150 = arith.truncf %147 : vector<8x32xf32> to vector<8x32xbf16>
    %151 = arith.truncf %148 : vector<8x32xf32> to vector<8x32xbf16>
    %cst_76 = arith.constant dense<0.000000e+00> : vector<8x8xf32>
    %152 = tpu.matmul %150, %151, %cst_76 {dimension_numbers = #tpu.dot_dimension_numbers<[1], [1], [0], [0], [0, 0, 1, 0], [], []>} : vector<8x32xbf16>, vector<8x32xbf16>, vector<8x8xf32> -> vector<8x8xf32>
    %153 = tpu.iota {dimensions = array<i32: 1>} : vector<8x8xi32>
    %c3_i32_77 = arith.constant 3 : i32
    %154 = vector.broadcast %c3_i32_77 : i32 to vector<8x8xi32>
    %155 = arith.cmpi slt, %153, %154 : vector<8x8xi32>
    %cst_78 = arith.constant -1.000000e+30 : f32
    %156 = vector.broadcast %cst_78 : f32 to vector<8x8xf32>
    %157 = arith.select %155, %152, %156 : vector<8x8xi1>, vector<8x8xf32>
    %cst_79 = arith.constant dense<0xFF800000> : vector<8xf32>
    %158 = vector.multi_reduction <maximumf>, %157, %cst_79 [1] : vector<8x8xf32> to vector<8xf32>
    %159 = vector.shape_cast %158 : vector<8xf32> to vector<8x1xf32>
    %160 = vector.broadcast %159 : vector<8x1xf32> to vector<8x8xf32>
    %161 = arith.subf %157, %160 : vector<8x8xf32>
    %162 = math.exp %161 : vector<8x8xf32>
    %cst_80 = arith.constant 0.000000e+00 : f32
    %163 = vector.broadcast %cst_80 : f32 to vector<8x8xf32>
    %164 = arith.select %155, %162, %163 : vector<8x8xi1>, vector<8x8xf32>
    %cst_81 = arith.constant dense<0.000000e+00> : vector<8xf32>
    %165 = vector.multi_reduction <add>, %164, %cst_81 [1] : vector<8x8xf32> to vector<8xf32>
    %166 = vector.shape_cast %165 : vector<8xf32> to vector<8x1xf32>
    %167 = tpu.reciprocal %166 {approx = true} : vector<8x1xf32> -> vector<8x1xf32>
    %168 = vector.broadcast %167 : vector<8x1xf32> to vector<8x8xf32>
    %169 = arith.mulf %164, %168 : vector<8x8xf32>
    %170 = arith.truncf %169 : vector<8x8xf32> to vector<8x8xbf16>
    %171 = arith.truncf %149 : vector<8x32xf32> to vector<8x32xbf16>
    %cst_82 = arith.constant dense<0.000000e+00> : vector<8x32xf32>
    %172 = tpu.matmul %170, %171, %cst_82 {dimension_numbers = #tpu.dot_dimension_numbers<[1], [0], [0], [1], [0, 0, 1, 1], [], []>} : vector<8x8xbf16>, vector<8x32xbf16>, vector<8x32xf32> -> vector<8x32xf32>
    %173 = arith.truncf %172 : vector<8x32xf32> to vector<8x32xbf16>
    %cst_83 = arith.constant dense<0.000000e+00> : vector<8x32xf32>
    %174 = tpu.matmul %173, %119, %cst_83 {dimension_numbers = #tpu.dot_dimension_numbers<[1], [0], [0], [1], [0, 0, 1, 1], [], []>} : vector<8x32xbf16>, vector<32x32xbf16>, vector<8x32xf32> -> vector<8x32xf32>
    %175 = arith.addf %114, %174 : vector<8x32xf32>
    %176 = vector.broadcast %120 : vector<1x32xf32> to vector<8x32xf32>
    %177 = arith.addf %175, %176 : vector<8x32xf32>
    %c0_84 = arith.constant 0 : index
    %c0_85 = arith.constant 0 : index
    %178 = vector.load %arg23[%c0_84, %c0_85] : memref<1x32xf32, #tpu.memory_space<vmem>>, vector<1x32xf32>
    %c0_86 = arith.constant 0 : index
    %c0_87 = arith.constant 0 : index
    %179 = vector.load %arg24[%c0_86, %c0_87] : memref<1x32xf32, #tpu.memory_space<vmem>>, vector<1x32xf32>
    %cst_88 = arith.constant dense<0.000000e+00> : vector<8xf32>
    %180 = vector.multi_reduction <add>, %177, %cst_88 [1] : vector<8x32xf32> to vector<8xf32>
    %181 = vector.shape_cast %180 : vector<8xf32> to vector<8x1xf32>
    %cst_89 = arith.constant 3.200000e+01 : f32
    %182 = vector.broadcast %cst_89 : f32 to vector<8x1xf32>
    %183 = arith.divf %181, %182 : vector<8x1xf32>
    %184 = vector.broadcast %183 : vector<8x1xf32> to vector<8x32xf32>
    %185 = arith.subf %177, %184 : vector<8x32xf32>
    %186 = arith.mulf %185, %185 : vector<8x32xf32>
    %cst_90 = arith.constant dense<0.000000e+00> : vector<8xf32>
    %187 = vector.multi_reduction <add>, %186, %cst_90 [1] : vector<8x32xf32> to vector<8xf32>
    %188 = vector.shape_cast %187 : vector<8xf32> to vector<8x1xf32>
    %cst_91 = arith.constant 3.200000e+01 : f32
    %189 = vector.broadcast %cst_91 : f32 to vector<8x1xf32>
    %190 = arith.divf %188, %189 : vector<8x1xf32>
    %191 = vector.broadcast %183 : vector<8x1xf32> to vector<8x32xf32>
    %192 = arith.subf %177, %191 : vector<8x32xf32>
    %cst_92 = arith.constant 9.99999974E-6 : f32
    %193 = vector.broadcast %cst_92 : f32 to vector<8x1xf32>
    %194 = arith.addf %190, %193 : vector<8x1xf32>
    %195 = math.rsqrt %194 : vector<8x1xf32>
    %196 = vector.broadcast %195 : vector<8x1xf32> to vector<8x32xf32>
    %197 = arith.mulf %192, %196 : vector<8x32xf32>
    %198 = vector.broadcast %178 : vector<1x32xf32> to vector<8x32xf32>
    %199 = arith.mulf %197, %198 : vector<8x32xf32>
    %200 = vector.broadcast %179 : vector<1x32xf32> to vector<8x32xf32>
    %201 = arith.addf %199, %200 : vector<8x32xf32>
    %202 = vector.extract_strided_slice %201 {offsets = [0, 0], sizes = [1, 32], strides = [1, 1]} : vector<8x32xf32> to vector<1x32xf32>
    %203 = vector.extract_strided_slice %0 {offsets = [0, 0], sizes = [1, 32], strides = [1, 1]} : vector<8x32xf32> to vector<1x32xf32>
    %c0_93 = arith.constant 0 : index
    %c0_94 = arith.constant 0 : index
    %204 = vector.load %arg2[%c0_93, %c0_94] : memref<1x32xf32, #tpu.memory_space<vmem>>, vector<1x32xf32>
    %c0_95 = arith.constant 0 : index
    %c0_96 = arith.constant 0 : index
    %205 = vector.load %arg3[%c0_95, %c0_96] : memref<1x32xf32, #tpu.memory_space<vmem>>, vector<1x32xf32>
    %206 = arith.addf %204, %205 : vector<1x32xf32>
    %cst_97 = arith.constant 5.000000e-01 : f32
    %207 = vector.broadcast %cst_97 : f32 to vector<1x32xf32>
    %208 = arith.mulf %206, %207 : vector<1x32xf32>
    %209 = arith.addf %203, %202 : vector<1x32xf32>
    %cst_98 = arith.constant 5.000000e-01 : f32
    %210 = vector.broadcast %cst_98 : f32 to vector<1x32xf32>
    %211 = arith.mulf %209, %210 : vector<1x32xf32>
    %c0_99 = arith.constant 0 : index
    %c0_100 = arith.constant 0 : index
    %212 = vector.load %arg28[%c0_99, %c0_100] : memref<1x32xf32, #tpu.memory_space<vmem>>, vector<1x32xf32>
    tpu.vector_store %arg28[%c0_99, %c0_100], %208 {strides = array<i32>} : memref<1x32xf32, #tpu.memory_space<vmem>>, vector<1x32xf32>,
    %c0_101 = arith.constant 0 : index
    %c0_102 = arith.constant 0 : index
    %213 = vector.load %arg29[%c0_101, %c0_102] : memref<1x32xf32, #tpu.memory_space<vmem>>, vector<1x32xf32>
    tpu.vector_store %arg29[%c0_101, %c0_102], %211 {strides = array<i32>} : memref<1x32xf32, #tpu.memory_space<vmem>>, vector<1x32xf32>,
    %c0_103 = arith.constant 0 : index
    %c0_104 = arith.constant 0 : index
    %214 = vector.load %arg25[%c0_103, %c0_104] : memref<1x32xf32, #tpu.memory_space<vmem>>, vector<1x32xf32>
    %215 = arith.mulf %208, %214 : vector<1x32xf32>
    %cst_105 = arith.constant dense<0.000000e+00> : vector<1xf32>
    %216 = vector.multi_reduction <add>, %215, %cst_105 [1] : vector<1x32xf32> to vector<1xf32>
    %217 = vector.shape_cast %216 : vector<1xf32> to vector<1x1xf32>
    %c0_106 = arith.constant 0 : index
    %c0_107 = arith.constant 0 : index
    %218 = vector.load %arg26[%c0_106, %c0_107] : memref<1x32xf32, #tpu.memory_space<vmem>>, vector<1x32xf32>
    %219 = arith.mulf %211, %218 : vector<1x32xf32>
    %cst_108 = arith.constant dense<0.000000e+00> : vector<1xf32>
    %220 = vector.multi_reduction <add>, %219, %cst_108 [1] : vector<1x32xf32> to vector<1xf32>
    %221 = vector.shape_cast %220 : vector<1xf32> to vector<1x1xf32>
    %222 = arith.addf %217, %221 : vector<1x1xf32>
    %c0_109 = arith.constant 0 : index
    %c0_110 = arith.constant 0 : index
    %223 = vector.load %arg27[%c0_109, %c0_110] : memref<1x1xf32, #tpu.memory_space<vmem>>, vector<1x1xf32>
    %224 = arith.addf %222, %223 : vector<1x1xf32>
    %c0_111 = arith.constant 0 : index
    %c0_112 = arith.constant 0 : index
    %225 = vector.load %arg30[%c0_111, %c0_112] : memref<1x1xf32, #tpu.memory_space<vmem>>, vector<1x1xf32>
    tpu.vector_store %arg30[%c0_111, %c0_112], %224 {strides = array<i32>} : memref<1x1xf32, #tpu.memory_space<vmem>>, vector<1x1xf32>,
    %226 = arith.subf %208, %211 : vector<1x32xf32>
    %227 = math.absf %226 : vector<1x32xf32>
    %228 = vector.shape_cast %227 : vector<1x32xf32> to vector<1x1x32xf32>
    %cst_113 = arith.constant dense<0.000000e+00> : vector<1xf32>
    %229 = vector.multi_reduction <add>, %228, %cst_113 [1, 2] : vector<1x1x32xf32> to vector<1xf32>
    %230 = vector.shape_cast %229 : vector<1xf32> to vector<1x1x1xf32>
    %231 = vector.extract %230[0, 0, 0] : f32 from vector<1x1x1xf32>
    %232 = vector.broadcast %231 : f32 to vector<1x1xf32>
    %cst_114 = arith.constant 3.200000e+01 : f32
    %233 = vector.broadcast %cst_114 : f32 to vector<1x1xf32>
    %234 = arith.divf %232, %233 : vector<1x1xf32>
    %c0_115 = arith.constant 0 : index
    %c0_116 = arith.constant 0 : index
    %235 = vector.load %arg31[%c0_115, %c0_116] : memref<1x1xf32, #tpu.memory_space<vmem>>, vector<1x1xf32>
    tpu.vector_store %arg31[%c0_115, %c0_116], %234 {strides = array<i32>} : memref<1x1xf32, #tpu.memory_space<vmem>>, vector<1x1xf32>,
    return
  }
}

module attributes {stable_mosaic.version = 11 : i64} {
  func.func @_cross_attn_kernel(%arg0: i32, %arg1: memref<16x32xf32, #tpu.memory_space<vmem>>, %arg2: memref<8x32xf32, #tpu.memory_space<vmem>>, %arg3: memref<32x32xbf16, #tpu.memory_space<vmem>>, %arg4: memref<1x32xf32, #tpu.memory_space<vmem>>, %arg5: memref<32x64xbf16, #tpu.memory_space<vmem>>, %arg6: memref<1x64xf32, #tpu.memory_space<vmem>>, %arg7: memref<32x32xbf16, #tpu.memory_space<vmem>>, %arg8: memref<1x32xf32, #tpu.memory_space<vmem>>, %arg9: memref<16x32xf32, #tpu.memory_space<vmem>>) attributes {dimension_semantics = [#tpu.dimension_semantics<parallel>], iteration_bounds = array<i64: 1>, scalar_prefetch = 0 : i64, scratch_operands = 0 : i64, tpu.core_type = #tpu.core_type<tc>, window_params = [{transform_indices = @transform_0, window_bounds = array<i64: 16, 32>}, {pipeline_mode = #tpu.pipeline_mode<synchronous>, transform_indices = @transform_1, window_bounds = array<i64: 8, 32>}, {pipeline_mode = #tpu.pipeline_mode<synchronous>, transform_indices = @transform_2, window_bounds = array<i64: 32, 32>}, {pipeline_mode = #tpu.pipeline_mode<synchronous>, transform_indices = @transform_3, window_bounds = array<i64: 1, 32>}, {pipeline_mode = #tpu.pipeline_mode<synchronous>, transform_indices = @transform_4, window_bounds = array<i64: 32, 64>}, {pipeline_mode = #tpu.pipeline_mode<synchronous>, transform_indices = @transform_5, window_bounds = array<i64: 1, 64>}, {pipeline_mode = #tpu.pipeline_mode<synchronous>, transform_indices = @transform_6, window_bounds = array<i64: 32, 32>}, {pipeline_mode = #tpu.pipeline_mode<synchronous>, transform_indices = @transform_7, window_bounds = array<i64: 1, 32>}, {transform_indices = @transform_8, window_bounds = array<i64: 16, 32>}]} {
    %c0 = arith.constant 0 : index
    %c0_0 = arith.constant 0 : index
    %0 = vector.load %arg1[%c0, %c0_0] : memref<16x32xf32, #tpu.memory_space<vmem>>, vector<16x32xf32>
    %1 = arith.truncf %0 : vector<16x32xf32> to vector<16x32xbf16>
    %c0_1 = arith.constant 0 : index
    %c0_2 = arith.constant 0 : index
    %2 = vector.load %arg3[%c0_1, %c0_2] : memref<32x32xbf16, #tpu.memory_space<vmem>>, vector<32x32xbf16>
    %cst = arith.constant dense<0.000000e+00> : vector<16x32xf32>
    %3 = tpu.matmul %1, %2, %cst {dimension_numbers = #tpu.dot_dimension_numbers<[1], [0], [0], [1], [0, 0, 1, 1], [], []>} : vector<16x32xbf16>, vector<32x32xbf16>, vector<16x32xf32> -> vector<16x32xf32>
    %c0_3 = arith.constant 0 : index
    %c0_4 = arith.constant 0 : index
    %4 = vector.load %arg4[%c0_3, %c0_4] : memref<1x32xf32, #tpu.memory_space<vmem>>, vector<1x32xf32>
    %5 = vector.broadcast %4 : vector<1x32xf32> to vector<16x32xf32>
    %6 = arith.addf %3, %5 : vector<16x32xf32>
    %c0_5 = arith.constant 0 : index
    %c0_6 = arith.constant 0 : index
    %7 = vector.load %arg2[%c0_5, %c0_6] : memref<8x32xf32, #tpu.memory_space<vmem>>, vector<8x32xf32>
    %8 = arith.truncf %7 : vector<8x32xf32> to vector<8x32xbf16>
    %c0_7 = arith.constant 0 : index
    %c0_8 = arith.constant 0 : index
    %9 = vector.load %arg5[%c0_7, %c0_8] : memref<32x64xbf16, #tpu.memory_space<vmem>>, vector<32x64xbf16>
    %cst_9 = arith.constant dense<0.000000e+00> : vector<8x64xf32>
    %10 = tpu.matmul %8, %9, %cst_9 {dimension_numbers = #tpu.dot_dimension_numbers<[1], [0], [0], [1], [0, 0, 1, 1], [], []>} : vector<8x32xbf16>, vector<32x64xbf16>, vector<8x64xf32> -> vector<8x64xf32>
    %c0_10 = arith.constant 0 : index
    %c0_11 = arith.constant 0 : index
    %11 = vector.load %arg6[%c0_10, %c0_11] : memref<1x64xf32, #tpu.memory_space<vmem>>, vector<1x64xf32>
    %12 = vector.broadcast %11 : vector<1x64xf32> to vector<8x64xf32>
    %13 = arith.addf %10, %12 : vector<8x64xf32>
    %14 = vector.extract_strided_slice %13 {offsets = [0, 0], sizes = [8, 32], strides = [1, 1]} : vector<8x64xf32> to vector<8x32xf32>
    %15 = vector.extract_strided_slice %13 {offsets = [0, 32], sizes = [8, 32], strides = [1, 1]} : vector<8x64xf32> to vector<8x32xf32>
    %16 = arith.truncf %6 : vector<16x32xf32> to vector<16x32xbf16>
    %17 = arith.truncf %14 : vector<8x32xf32> to vector<8x32xbf16>
    %cst_12 = arith.constant dense<0.000000e+00> : vector<16x8xf32>
    %18 = tpu.matmul %16, %17, %cst_12 {dimension_numbers = #tpu.dot_dimension_numbers<[1], [1], [0], [0], [0, 0, 1, 0], [], []>} : vector<16x32xbf16>, vector<8x32xbf16>, vector<16x8xf32> -> vector<16x8xf32>
    %19 = tpu.iota {dimensions = array<i32: 1>} : vector<16x8xi32>
    %c2_i32 = arith.constant 2 : i32
    %20 = vector.broadcast %c2_i32 : i32 to vector<16x8xi32>
    %21 = arith.cmpi slt, %19, %20 : vector<16x8xi32>
    %cst_13 = arith.constant -1.000000e+30 : f32
    %22 = vector.broadcast %cst_13 : f32 to vector<16x8xf32>
    %23 = arith.select %21, %18, %22 : vector<16x8xi1>, vector<16x8xf32>
    %cst_14 = arith.constant dense<0xFF800000> : vector<16xf32>
    %24 = vector.multi_reduction <maximumf>, %23, %cst_14 [1] : vector<16x8xf32> to vector<16xf32>
    %25 = vector.shape_cast %24 : vector<16xf32> to vector<16x1xf32>
    %26 = vector.broadcast %25 : vector<16x1xf32> to vector<16x8xf32>
    %27 = arith.subf %23, %26 : vector<16x8xf32>
    %28 = math.exp %27 : vector<16x8xf32>
    %cst_15 = arith.constant 0.000000e+00 : f32
    %29 = vector.broadcast %cst_15 : f32 to vector<16x8xf32>
    %30 = arith.select %21, %28, %29 : vector<16x8xi1>, vector<16x8xf32>
    %cst_16 = arith.constant dense<0.000000e+00> : vector<16xf32>
    %31 = vector.multi_reduction <add>, %30, %cst_16 [1] : vector<16x8xf32> to vector<16xf32>
    %32 = vector.shape_cast %31 : vector<16xf32> to vector<16x1xf32>
    %33 = tpu.reciprocal %32 {approx = true} : vector<16x1xf32> -> vector<16x1xf32>
    %34 = vector.broadcast %33 : vector<16x1xf32> to vector<16x8xf32>
    %35 = arith.mulf %30, %34 : vector<16x8xf32>
    %36 = arith.truncf %35 : vector<16x8xf32> to vector<16x8xbf16>
    %37 = arith.truncf %15 : vector<8x32xf32> to vector<8x32xbf16>
    %cst_17 = arith.constant dense<0.000000e+00> : vector<16x32xf32>
    %38 = tpu.matmul %36, %37, %cst_17 {dimension_numbers = #tpu.dot_dimension_numbers<[1], [0], [0], [1], [0, 0, 1, 1], [], []>} : vector<16x8xbf16>, vector<8x32xbf16>, vector<16x32xf32> -> vector<16x32xf32>
    %39 = arith.truncf %38 : vector<16x32xf32> to vector<16x32xbf16>
    %c0_18 = arith.constant 0 : index
    %c0_19 = arith.constant 0 : index
    %40 = vector.load %arg7[%c0_18, %c0_19] : memref<32x32xbf16, #tpu.memory_space<vmem>>, vector<32x32xbf16>
    %cst_20 = arith.constant dense<0.000000e+00> : vector<16x32xf32>
    %41 = tpu.matmul %39, %40, %cst_20 {dimension_numbers = #tpu.dot_dimension_numbers<[1], [0], [0], [1], [0, 0, 1, 1], [], []>} : vector<16x32xbf16>, vector<32x32xbf16>, vector<16x32xf32> -> vector<16x32xf32>
    %c0_21 = arith.constant 0 : index
    %c0_22 = arith.constant 0 : index
    %42 = vector.load %arg8[%c0_21, %c0_22] : memref<1x32xf32, #tpu.memory_space<vmem>>, vector<1x32xf32>
    %43 = vector.broadcast %42 : vector<1x32xf32> to vector<16x32xf32>
    %44 = arith.addf %41, %43 : vector<16x32xf32>
    %c0_23 = arith.constant 0 : index
    %c0_24 = arith.constant 0 : index
    %45 = vector.load %arg9[%c0_23, %c0_24] : memref<16x32xf32, #tpu.memory_space<vmem>>, vector<16x32xf32>
    tpu.vector_store %arg9[%c0_23, %c0_24], %44 {strides = array<i32>} : memref<16x32xf32, #tpu.memory_space<vmem>>, vector<16x32xf32>,
    return
  }
  func.func @transform_0(%arg0: i32) -> (i32, i32) {
    %c0_i32 = arith.constant 0 : i32
    %c0_i32_0 = arith.constant 0 : i32
    return %arg0, %c0_i32 : i32, i32
  }
  func.func @transform_1(%arg0: i32) -> (i32, i32) {
    %c0_i32 = arith.constant 0 : i32
    %c0_i32_0 = arith.constant 0 : i32
    %c0_i32_1 = arith.constant 0 : i32
    return %c0_i32, %c0_i32_0 : i32, i32
  }
  func.func @transform_2(%arg0: i32) -> (i32, i32) {
    %c0_i32 = arith.constant 0 : i32
    %c0_i32_0 = arith.constant 0 : i32
    %c0_i32_1 = arith.constant 0 : i32
    return %c0_i32, %c0_i32_0 : i32, i32
  }
  func.func @transform_3(%arg0: i32) -> (i32, i32) {
    %c0_i32 = arith.constant 0 : i32
    %c0_i32_0 = arith.constant 0 : i32
    %c0_i32_1 = arith.constant 0 : i32
    return %c0_i32, %c0_i32_0 : i32, i32
  }
  func.func @transform_4(%arg0: i32) -> (i32, i32) {
    %c0_i32 = arith.constant 0 : i32
    %c0_i32_0 = arith.constant 0 : i32
    %c0_i32_1 = arith.constant 0 : i32
    return %c0_i32, %c0_i32_0 : i32, i32
  }
  func.func @transform_5(%arg0: i32) -> (i32, i32) {
    %c0_i32 = arith.constant 0 : i32
    %c0_i32_0 = arith.constant 0 : i32
    %c0_i32_1 = arith.constant 0 : i32
    return %c0_i32, %c0_i32_0 : i32, i32
  }
  func.func @transform_6(%arg0: i32) -> (i32, i32) {
    %c0_i32 = arith.constant 0 : i32
    %c0_i32_0 = arith.constant 0 : i32
    %c0_i32_1 = arith.constant 0 : i32
    return %c0_i32, %c0_i32_0 : i32, i32
  }
  func.func @transform_7(%arg0: i32) -> (i32, i32) {
    %c0_i32 = arith.constant 0 : i32
    %c0_i32_0 = arith.constant 0 : i32
    %c0_i32_1 = arith.constant 0 : i32
    return %c0_i32, %c0_i32_0 : i32, i32
  }
  func.func @transform_8(%arg0: i32) -> (i32, i32) {
    %c0_i32 = arith.constant 0 : i32
    %c0_i32_0 = arith.constant 0 : i32
    return %arg0, %c0_i32 : i32, i32
  }
}

module attributes {stable_mosaic.version = 11 : i64} {
  func.func @_flash_attn_kernel(%arg0: i32, %arg1: i32, %arg2: memref<16x32xf32, #tpu.memory_space<vmem>>, %arg3: memref<16x128xbf16, #tpu.memory_space<vmem>>, %arg4: memref<16x128xbf16, #tpu.memory_space<vmem>>, %arg5: memref<1x32xf32, #tpu.memory_space<vmem>>, %arg6: memref<1x32xf32, #tpu.memory_space<vmem>>, %arg7: memref<32x32xbf16, #tpu.memory_space<vmem>>, %arg8: memref<1x32xf32, #tpu.memory_space<vmem>>, %arg9: memref<16x32xf32, #tpu.memory_space<vmem>>, %arg10: memref<16x1xf32, #tpu.memory_space<vmem>>, %arg11: memref<16x1xf32, #tpu.memory_space<vmem>>, %arg12: memref<16x32xf32, #tpu.memory_space<vmem>>) attributes {dimension_semantics = [#tpu.dimension_semantics<parallel>, #tpu.dimension_semantics<arbitrary>], iteration_bounds = array<i64: 1, 1>, scalar_prefetch = 0 : i64, scratch_operands = 3 : i64, tpu.core_type = #tpu.core_type<tc>, window_params = [{transform_indices = @transform_0, window_bounds = array<i64: 16, 32>}, {transform_indices = @transform_1, window_bounds = array<i64: 16, 128>}, {transform_indices = @transform_2, window_bounds = array<i64: 16, 128>}, {pipeline_mode = #tpu.pipeline_mode<synchronous>, transform_indices = @transform_3, window_bounds = array<i64: 1, 32>}, {pipeline_mode = #tpu.pipeline_mode<synchronous>, transform_indices = @transform_4, window_bounds = array<i64: 1, 32>}, {pipeline_mode = #tpu.pipeline_mode<synchronous>, transform_indices = @transform_5, window_bounds = array<i64: 32, 32>}, {pipeline_mode = #tpu.pipeline_mode<synchronous>, transform_indices = @transform_6, window_bounds = array<i64: 1, 32>}, {transform_indices = @transform_7, window_bounds = array<i64: 16, 32>}]} {
    %c0_i32 = arith.constant 0 : i32
    %0 = arith.cmpi eq, %arg1, %c0_i32 : i32
    %1 = arith.extui %0 : i1 to i32
    %c0_i32_0 = arith.constant 0 : i32
    %2 = arith.cmpi ne, %1, %c0_i32_0 : i32
    scf.if %2 {
      %cst_23 = arith.constant -1.000000e+30 : f32
      %45 = vector.broadcast %cst_23 : f32 to vector<16x1xf32>
      %c0_24 = arith.constant 0 : index
      %c0_25 = arith.constant 0 : index
      %46 = vector.load %arg10[%c0_24, %c0_25] : memref<16x1xf32, #tpu.memory_space<vmem>>, vector<16x1xf32>
      tpu.vector_store %arg10[%c0_24, %c0_25], %45 {strides = array<i32>} : memref<16x1xf32, #tpu.memory_space<vmem>>, vector<16x1xf32>,
      %cst_26 = arith.constant 0.000000e+00 : f32
      %47 = vector.broadcast %cst_26 : f32 to vector<16x1xf32>
      %c0_27 = arith.constant 0 : index
      %c0_28 = arith.constant 0 : index
      %48 = vector.load %arg11[%c0_27, %c0_28] : memref<16x1xf32, #tpu.memory_space<vmem>>, vector<16x1xf32>
      tpu.vector_store %arg11[%c0_27, %c0_28], %47 {strides = array<i32>} : memref<16x1xf32, #tpu.memory_space<vmem>>, vector<16x1xf32>,
      %cst_29 = arith.constant 0.000000e+00 : f32
      %49 = vector.broadcast %cst_29 : f32 to vector<16x32xf32>
      %c0_30 = arith.constant 0 : index
      %c0_31 = arith.constant 0 : index
      %50 = vector.load %arg12[%c0_30, %c0_31] : memref<16x32xf32, #tpu.memory_space<vmem>>, vector<16x32xf32>
      tpu.vector_store %arg12[%c0_30, %c0_31], %49 {strides = array<i32>} : memref<16x32xf32, #tpu.memory_space<vmem>>, vector<16x32xf32>,
    } else {
    }
    %c0 = arith.constant 0 : index
    %c0_1 = arith.constant 0 : index
    %3 = vector.load %arg3[%c0, %c0_1] : memref<16x128xbf16, #tpu.memory_space<vmem>>, vector<16x128xbf16>
    %4 = vector.extract_strided_slice %3 {offsets = [0, 0], sizes = [16, 32], strides = [1, 1]} : vector<16x128xbf16> to vector<16x32xbf16>
    %c0_2 = arith.constant 0 : index
    %c0_3 = arith.constant 0 : index
    %5 = vector.load %arg4[%c0_2, %c0_3] : memref<16x128xbf16, #tpu.memory_space<vmem>>, vector<16x128xbf16>
    %6 = vector.extract_strided_slice %5 {offsets = [0, 32], sizes = [16, 32], strides = [1, 1]} : vector<16x128xbf16> to vector<16x32xbf16>
    %7 = vector.extract_strided_slice %5 {offsets = [0, 64], sizes = [16, 32], strides = [1, 1]} : vector<16x128xbf16> to vector<16x32xbf16>
    %cst = arith.constant dense<0.000000e+00> : vector<16x16xf32>
    %8 = tpu.matmul %4, %6, %cst {dimension_numbers = #tpu.dot_dimension_numbers<[1], [1], [0], [0], [0, 0, 1, 0], [], []>} : vector<16x32xbf16>, vector<16x32xbf16>, vector<16x16xf32> -> vector<16x16xf32>
    %9 = tpu.iota {dimensions = array<i32: 1>} : vector<16x16xi32>
    %c16_i32 = arith.constant 16 : i32
    %10 = arith.muli %arg1, %c16_i32 : i32
    %11 = vector.broadcast %10 : i32 to vector<16x16xi32>
    %12 = arith.addi %9, %11 : vector<16x16xi32>
    %c10_i32 = arith.constant 10 : i32
    %13 = vector.broadcast %c10_i32 : i32 to vector<16x16xi32>
    %14 = arith.cmpi slt, %12, %13 : vector<16x16xi32>
    %cst_4 = arith.constant -1.000000e+30 : f32
    %15 = vector.broadcast %cst_4 : f32 to vector<16x16xf32>
    %16 = arith.select %14, %8, %15 : vector<16x16xi1>, vector<16x16xf32>
    %c0_5 = arith.constant 0 : index
    %c0_6 = arith.constant 0 : index
    %17 = vector.load %arg10[%c0_5, %c0_6] : memref<16x1xf32, #tpu.memory_space<vmem>>, vector<16x1xf32>
    %cst_7 = arith.constant dense<0xFF800000> : vector<16xf32>
    %18 = vector.multi_reduction <maximumf>, %16, %cst_7 [1] : vector<16x16xf32> to vector<16xf32>
    %19 = vector.shape_cast %18 : vector<16xf32> to vector<16x1xf32>
    %20 = arith.maximumf %17, %19 : vector<16x1xf32>
    %21 = arith.subf %17, %20 : vector<16x1xf32>
    %22 = math.exp %21 : vector<16x1xf32>
    %23 = vector.broadcast %20 : vector<16x1xf32> to vector<16x16xf32>
    %24 = arith.subf %16, %23 : vector<16x16xf32>
    %25 = math.exp %24 : vector<16x16xf32>
    %cst_8 = arith.constant 0.000000e+00 : f32
    %26 = vector.broadcast %cst_8 : f32 to vector<16x16xf32>
    %27 = arith.select %14, %25, %26 : vector<16x16xi1>, vector<16x16xf32>
    %c0_9 = arith.constant 0 : index
    %c0_10 = arith.constant 0 : index
    %28 = vector.load %arg11[%c0_9, %c0_10] : memref<16x1xf32, #tpu.memory_space<vmem>>, vector<16x1xf32>
    %29 = arith.mulf %22, %28 : vector<16x1xf32>
    %cst_11 = arith.constant dense<0.000000e+00> : vector<16xf32>
    %30 = vector.multi_reduction <add>, %27, %cst_11 [1] : vector<16x16xf32> to vector<16xf32>
    %31 = vector.shape_cast %30 : vector<16xf32> to vector<16x1xf32>
    %32 = arith.addf %29, %31 : vector<16x1xf32>
    %c0_12 = arith.constant 0 : index
    %c0_13 = arith.constant 0 : index
    %33 = vector.load %arg11[%c0_12, %c0_13] : memref<16x1xf32, #tpu.memory_space<vmem>>, vector<16x1xf32>
    tpu.vector_store %arg11[%c0_12, %c0_13], %32 {strides = array<i32>} : memref<16x1xf32, #tpu.memory_space<vmem>>, vector<16x1xf32>,
    %c0_14 = arith.constant 0 : index
    %c0_15 = arith.constant 0 : index
    %34 = vector.load %arg12[%c0_14, %c0_15] : memref<16x32xf32, #tpu.memory_space<vmem>>, vector<16x32xf32>
    %35 = vector.broadcast %22 : vector<16x1xf32> to vector<16x32xf32>
    %36 = arith.mulf %35, %34 : vector<16x32xf32>
    %37 = arith.truncf %27 : vector<16x16xf32> to vector<16x16xbf16>
    %cst_16 = arith.constant dense<0.000000e+00> : vector<16x32xf32>
    %38 = tpu.matmul %37, %7, %cst_16 {dimension_numbers = #tpu.dot_dimension_numbers<[1], [0], [0], [1], [0, 0, 1, 1], [], []>} : vector<16x16xbf16>, vector<16x32xbf16>, vector<16x32xf32> -> vector<16x32xf32>
    %39 = arith.addf %36, %38 : vector<16x32xf32>
    %c0_17 = arith.constant 0 : index
    %c0_18 = arith.constant 0 : index
    %40 = vector.load %arg12[%c0_17, %c0_18] : memref<16x32xf32, #tpu.memory_space<vmem>>, vector<16x32xf32>
    tpu.vector_store %arg12[%c0_17, %c0_18], %39 {strides = array<i32>} : memref<16x32xf32, #tpu.memory_space<vmem>>, vector<16x32xf32>,
    %c0_19 = arith.constant 0 : index
    %c0_20 = arith.constant 0 : index
    %41 = vector.load %arg10[%c0_19, %c0_20] : memref<16x1xf32, #tpu.memory_space<vmem>>, vector<16x1xf32>
    tpu.vector_store %arg10[%c0_19, %c0_20], %20 {strides = array<i32>} : memref<16x1xf32, #tpu.memory_space<vmem>>, vector<16x1xf32>,
    %c0_i32_21 = arith.constant 0 : i32
    %42 = arith.cmpi eq, %arg1, %c0_i32_21 : i32
    %43 = arith.extui %42 : i1 to i32
    %c0_i32_22 = arith.constant 0 : i32
    %44 = arith.cmpi ne, %43, %c0_i32_22 : i32
    scf.if %44 {
      %c0_23 = arith.constant 0 : index
      %c0_24 = arith.constant 0 : index
      %45 = vector.load %arg12[%c0_23, %c0_24] : memref<16x32xf32, #tpu.memory_space<vmem>>, vector<16x32xf32>
      %c0_25 = arith.constant 0 : index
      %c0_26 = arith.constant 0 : index
      %46 = vector.load %arg11[%c0_25, %c0_26] : memref<16x1xf32, #tpu.memory_space<vmem>>, vector<16x1xf32>
      %47 = tpu.reciprocal %46 {approx = true} : vector<16x1xf32> -> vector<16x1xf32>
      %48 = vector.broadcast %47 : vector<16x1xf32> to vector<16x32xf32>
      %49 = arith.mulf %45, %48 : vector<16x32xf32>
      %50 = arith.truncf %49 : vector<16x32xf32> to vector<16x32xbf16>
      %c0_27 = arith.constant 0 : index
      %c0_28 = arith.constant 0 : index
      %51 = vector.load %arg7[%c0_27, %c0_28] : memref<32x32xbf16, #tpu.memory_space<vmem>>, vector<32x32xbf16>
      %cst_29 = arith.constant dense<0.000000e+00> : vector<16x32xf32>
      %52 = tpu.matmul %50, %51, %cst_29 {dimension_numbers = #tpu.dot_dimension_numbers<[1], [0], [0], [1], [0, 0, 1, 1], [], []>} : vector<16x32xbf16>, vector<32x32xbf16>, vector<16x32xf32> -> vector<16x32xf32>
      %c0_30 = arith.constant 0 : index
      %c0_31 = arith.constant 0 : index
      %53 = vector.load %arg8[%c0_30, %c0_31] : memref<1x32xf32, #tpu.memory_space<vmem>>, vector<1x32xf32>
      %54 = vector.broadcast %53 : vector<1x32xf32> to vector<16x32xf32>
      %55 = arith.addf %52, %54 : vector<16x32xf32>
      %c0_32 = arith.constant 0 : index
      %c0_33 = arith.constant 0 : index
      %56 = vector.load %arg2[%c0_32, %c0_33] : memref<16x32xf32, #tpu.memory_space<vmem>>, vector<16x32xf32>
      %57 = arith.addf %55, %56 : vector<16x32xf32>
      %c0_34 = arith.constant 0 : index
      %c0_35 = arith.constant 0 : index
      %58 = vector.load %arg5[%c0_34, %c0_35] : memref<1x32xf32, #tpu.memory_space<vmem>>, vector<1x32xf32>
      %c0_36 = arith.constant 0 : index
      %c0_37 = arith.constant 0 : index
      %59 = vector.load %arg6[%c0_36, %c0_37] : memref<1x32xf32, #tpu.memory_space<vmem>>, vector<1x32xf32>
      %cst_38 = arith.constant dense<0.000000e+00> : vector<16xf32>
      %60 = vector.multi_reduction <add>, %57, %cst_38 [1] : vector<16x32xf32> to vector<16xf32>
      %61 = vector.shape_cast %60 : vector<16xf32> to vector<16x1xf32>
      %cst_39 = arith.constant 3.200000e+01 : f32
      %62 = vector.broadcast %cst_39 : f32 to vector<16x1xf32>
      %63 = arith.divf %61, %62 : vector<16x1xf32>
      %64 = vector.broadcast %63 : vector<16x1xf32> to vector<16x32xf32>
      %65 = arith.subf %57, %64 : vector<16x32xf32>
      %66 = arith.mulf %65, %65 : vector<16x32xf32>
      %cst_40 = arith.constant dense<0.000000e+00> : vector<16xf32>
      %67 = vector.multi_reduction <add>, %66, %cst_40 [1] : vector<16x32xf32> to vector<16xf32>
      %68 = vector.shape_cast %67 : vector<16xf32> to vector<16x1xf32>
      %cst_41 = arith.constant 3.200000e+01 : f32
      %69 = vector.broadcast %cst_41 : f32 to vector<16x1xf32>
      %70 = arith.divf %68, %69 : vector<16x1xf32>
      %71 = vector.broadcast %63 : vector<16x1xf32> to vector<16x32xf32>
      %72 = arith.subf %57, %71 : vector<16x32xf32>
      %cst_42 = arith.constant 9.99999974E-6 : f32
      %73 = vector.broadcast %cst_42 : f32 to vector<16x1xf32>
      %74 = arith.addf %70, %73 : vector<16x1xf32>
      %75 = math.rsqrt %74 : vector<16x1xf32>
      %76 = vector.broadcast %75 : vector<16x1xf32> to vector<16x32xf32>
      %77 = arith.mulf %72, %76 : vector<16x32xf32>
      %78 = vector.broadcast %58 : vector<1x32xf32> to vector<16x32xf32>
      %79 = arith.mulf %77, %78 : vector<16x32xf32>
      %80 = vector.broadcast %59 : vector<1x32xf32> to vector<16x32xf32>
      %81 = arith.addf %79, %80 : vector<16x32xf32>
      %c0_43 = arith.constant 0 : index
      %c0_44 = arith.constant 0 : index
      %82 = vector.load %arg9[%c0_43, %c0_44] : memref<16x32xf32, #tpu.memory_space<vmem>>, vector<16x32xf32>
      tpu.vector_store %arg9[%c0_43, %c0_44], %81 {strides = array<i32>} : memref<16x32xf32, #tpu.memory_space<vmem>>, vector<16x32xf32>,
    } else {
    }
    return
  }
  func.func @transform_0(%arg0: i32, %arg1: i32) -> (i32, i32) {
    %c0_i32 = arith.constant 0 : i32
    %c0_i32_0 = arith.constant 0 : i32
    return %arg0, %c0_i32 : i32, i32
  }
  func.func @transform_1(%arg0: i32, %arg1: i32) -> (i32, i32) {
    %c0_i32 = arith.constant 0 : i32
    %c0_i32_0 = arith.constant 0 : i32
    return %arg0, %c0_i32 : i32, i32
  }
  func.func @transform_2(%arg0: i32, %arg1: i32) -> (i32, i32) {
    %c0_i32 = arith.constant 0 : i32
    %c0_i32_0 = arith.constant 0 : i32
    return %arg1, %c0_i32 : i32, i32
  }
  func.func @transform_3(%arg0: i32, %arg1: i32) -> (i32, i32) {
    %c0_i32 = arith.constant 0 : i32
    %c0_i32_0 = arith.constant 0 : i32
    %c0_i32_1 = arith.constant 0 : i32
    return %c0_i32, %c0_i32_0 : i32, i32
  }
  func.func @transform_4(%arg0: i32, %arg1: i32) -> (i32, i32) {
    %c0_i32 = arith.constant 0 : i32
    %c0_i32_0 = arith.constant 0 : i32
    %c0_i32_1 = arith.constant 0 : i32
    return %c0_i32, %c0_i32_0 : i32, i32
  }
  func.func @transform_5(%arg0: i32, %arg1: i32) -> (i32, i32) {
    %c0_i32 = arith.constant 0 : i32
    %c0_i32_0 = arith.constant 0 : i32
    %c0_i32_1 = arith.constant 0 : i32
    return %c0_i32, %c0_i32_0 : i32, i32
  }
  func.func @transform_6(%arg0: i32, %arg1: i32) -> (i32, i32) {
    %c0_i32 = arith.constant 0 : i32
    %c0_i32_0 = arith.constant 0 : i32
    %c0_i32_1 = arith.constant 0 : i32
    return %c0_i32, %c0_i32_0 : i32, i32
  }
  func.func @transform_7(%arg0: i32, %arg1: i32) -> (i32, i32) {
    %c0_i32 = arith.constant 0 : i32
    %c0_i32_0 = arith.constant 0 : i32
    return %arg0, %c0_i32 : i32, i32
  }
}

</mosaic_0001>

<llo_original>
// kernel: cmta_binary_forward.14
$region0: #{cmta_binary_forward.14}
  #allocation0 [shape = 'u32[]', space=smem, size = 0x4, offset = 0x4, fixed_abs, tag = 'smem constant byte address 0x4 - core index']
  #allocation1 [shape = 'u32[144,128]{1,0:T(1,128)}', space=vmem, size = 0x12000, scoped, tag = 'internal scratch']
  %s0 = inlined_call_operand.vmem [shape: f32[8,64], index: 0, kind: input, shape index: {}]
  %s1 = inlined_call_operand.vmem [shape: bf16[64,32], index: 1, kind: input, shape index: {}]
  %s2 = inlined_call_operand.vmem [shape: f32[1,32], index: 2, kind: input, shape index: {}]
  %s3 = inlined_call_operand.vmem [shape: bf16[32,32], index: 3, kind: input, shape index: {}]
  %s4 = inlined_call_operand.vmem [shape: f32[1,32], index: 4, kind: input, shape index: {}]
  %s5 = inlined_call_operand.vmem [shape: f32[8,32], index: 5, kind: output, shape index: {}]
  %s6 = sld [smem:[#allocation0]]
  $region30: #{cmta_binary_forward.14} parent=0
    _
  %s8 = ssub.s32 1, %s6
  %s9 = scalar_select 0, %s8, %s6
  // Predicated region
  $region2: #{cmta_binary_forward.14} parent=0 // pred_check
    _
  $region3: #{cmta_binary_forward.14} parent=0 // pred_check_branch
    %11 = sbr.rel (0) target = $region5
  $region4: #{cmta_binary_forward.14} parent=0 // pred_region
    _
  $region5: #{cmta_binary_forward.14} parent=0 // pred_fallthru
    _
  // Predicated region
  $region6: #{cmta_binary_forward.14} parent=0 // pred_check
    _
  $region7: #{cmta_binary_forward.14} parent=0 // pred_check_branch
    %13 = sbr.rel (0) target = $region9
  $region8: #{cmta_binary_forward.14} parent=0 // pred_region
    _
  $region9: #{cmta_binary_forward.14} parent=0 // pred_fallthru
    _
  // Predicated region
  $region10: #{cmta_binary_forward.14} parent=0 // pred_check
    _
  $region11: #{cmta_binary_forward.14} parent=0 // pred_check_branch
    %15 = sbr.rel (0) target = $region13
  $region12: #{cmta_binary_forward.14} parent=0 // pred_region
    _
  $region13: #{cmta_binary_forward.14} parent=0 // pred_fallthru
    _
  // Predicated region
  $region14: #{cmta_binary_forward.14} parent=0 // pred_check
    _
  $region15: #{cmta_binary_forward.14} parent=0 // pred_check_branch
    %17 = sbr.rel (0) target = $region17
  $region16: #{cmta_binary_forward.14} parent=0 // pred_region
    _
  $region17: #{cmta_binary_forward.14} parent=0 // pred_fallthru
    _
  // Predicated region
  $region18: #{cmta_binary_forward.14} parent=0 // pred_check
    _
  $region19: #{cmta_binary_forward.14} parent=0 // pred_check_branch
    %19 = sbr.rel (0) target = $region21
  $region20: #{cmta_binary_forward.14} parent=0 // pred_region
    _
  $region21: #{cmta_binary_forward.14} parent=0 // pred_fallthru
    _
  %v21 = vld [vmem:[%s0] sm:$0xff]
  %v22 = vld [vmem:[%s1] sm:$0xf]
  %v23 = vld [vmem:[%s1 + $0x4] sm:$0xf]
  %v24 = vld [vmem:[%s1 + $0x8] sm:$0xf]
  %v25 = vld [vmem:[%s1 + $0xc] sm:$0xf]
  %v26 = vld [vmem:[%s1 + $0x10] sm:$0xf]
  %v27 = vld [vmem:[%s1 + $0x14] sm:$0xf]
  %v28 = vld [vmem:[%s1 + $0x18] sm:$0xf]
  %v29 = vld [vmem:[%s1 + $0x1c] sm:$0xf]
  %v30 = vld [vmem:[%s2] sm:$0x1]
  %v31 = vpack.c.bf16 %v21, %v21
  %v33 = vlaneseq
  %v34 = vshrl.u32 %v33, 7
  %v35 = vsub.s32 0, %v34
  %v36 = vrot.slane %v30, %v35
  %v46 = vunpack.c.l.b16 %v22
  %v47 = vunpack.c.l.b16 %v23
  %v48 = vunpack.c.l.b16 %v24
  %v49 = vunpack.c.l.b16 %v25
  %v50 = vunpack.c.l.b16 %v26
  %v51 = vunpack.c.l.b16 %v27
  %v52 = vunpack.c.l.b16 %v28
  %v53 = vunpack.c.l.b16 %v29
  %v54 = vpack.c.b16 %v47, %v46
  %v55 = vpack.c.b16 %v49, %v48
  %v56 = vpack.c.b16 %v51, %v50
  %v57 = vpack.c.b16 %v53, %v52
  %vm62 = vcmask 523264
  %v64 = vsel %vm62, %v31, 0
  %66 = vmatprep.subr.bf16.mxu0 0
  %67 = vmatpush1.bf16.msra.mxu0 0
  %68 = vmatprep.subr.bf16.mxu0 0
  %69 = vmatpush1.bf16.msra.mxu0 0
  %70 = vmatprep.subr.bf16.mxu0 0
  %71 = vmatpush1.bf16.msra.mxu0 0
  %72 = vmatprep.subr.bf16.mxu0 0
  %73 = vmatpush1.bf16.msra.mxu0 0
  %74 = vmatprep.subr.bf16.mxu0 0
  %75 = vmatpush1.bf16.msra.mxu0 %v57
  %76 = vmatprep.subr.bf16.mxu0 0
  %77 = vmatpush1.bf16.msra.mxu0 %v56
  %78 = vmatprep.subr.bf16.mxu0 0
  %79 = vmatpush1.bf16.msra.mxu0 %v55
  %80 = vmatprep.subr.bf16.mxu0 0
  %81 = vmatpush1.bf16.msra.mxu0 %v54
  %82 = vmatprep.subr.bf16.mxu0 0
  %83 = vmatpush2.bf16.msra.mxu0 0
  %84 = vmatprep.subr.bf16.mxu0 0
  %85 = vmatpush2.bf16.msra.mxu0 0
  %86 = vmatprep.subr.bf16.mxu0 0
  %87 = vmatpush2.bf16.msra.mxu0 0
  %88 = vmatprep.subr.bf16.mxu0 0
  %89 = vmatpush2.bf16.msra.mxu0 0
  %90 = vmatprep.subr.bf16.mxu0 0
  %91 = vmatpush2.bf16.msra.mxu0 0
  %92 = vmatprep.subr.bf16.mxu0 0
  %93 = vmatpush2.bf16.msra.mxu0 0
  %94 = vmatprep.subr.bf16.mxu0 0
  %95 = vmatpush2.bf16.msra.mxu0 0
  %96 = vmatprep.subr.bf16.mxu0 0
  %97 = vmatpush2.bf16.msra.mxu0 0
  %98 = vmatprep.mubr.bf16.mxu0 0
  %99 = vmatmul.mubr.bf16.gmra.mxu0 %v64
  %v100 = vpop.f32.mrf.mxu0
  %v101 = vadd.f32 %v36, %v100
  %v102 = vpop.f32.mrf.mxu0
  %v103 = vpop.f32.mrf.mxu0
  %v104 = vpop.f32.mrf.mxu0
  %105 = vdwg.mxu0
  %v106 = vmax.f32 %v101, 0.0
  %v107 = vld [vmem:[%s3] sm:$0xf]
  %v108 = vld [vmem:[%s3 + $0x4] sm:$0xf]
  %v109 = vld [vmem:[%s3 + $0x8] sm:$0xf]
  %v110 = vld [vmem:[%s3 + $0xc] sm:$0xf]
  %v111 = vld [vmem:[%s4] sm:$0x1]
  %v112 = vpack.c.bf16 %v106, %v106
  %v114 = vlaneseq
  %v115 = vshrl.u32 %v114, 7
  %v116 = vsub.s32 0, %v115
  %v117 = vrot.slane %v111, %v116
  %v123 = vunpack.c.l.b16 %v107
  %v124 = vunpack.c.l.b16 %v108
  %v125 = vunpack.c.l.b16 %v109
  %v126 = vunpack.c.l.b16 %v110
  %v127 = vpack.c.b16 %v124, %v123
  %v128 = vpack.c.b16 %v126, %v125
  %vm131 = vcmask 261120
  %v133 = vsel %vm131, %v112, 0
  %135 = vmatprep.subr.bf16.mxu0 0
  %136 = vmatpush1.bf16.msra.mxu0 0
  %137 = vmatprep.subr.bf16.mxu0 0
  %138 = vmatpush1.bf16.msra.mxu0 0
  %139 = vmatprep.subr.bf16.mxu0 0
  %140 = vmatpush1.bf16.msra.mxu0 0
  %141 = vmatprep.subr.bf16.mxu0 0
  %142 = vmatpush1.bf16.msra.mxu0 0
  %143 = vmatprep.subr.bf16.mxu0 0
  %144 = vmatpush1.bf16.msra.mxu0 0
  %145 = vmatprep.subr.bf16.mxu0 0
  %146 = vmatpush1.bf16.msra.mxu0 0
  %147 = vmatprep.subr.bf16.mxu0 0
  %148 = vmatpush1.bf16.msra.mxu0 %v128
  %149 = vmatprep.subr.bf16.mxu0 0
  %150 = vmatpush1.bf16.msra.mxu0 %v127
  %151 = vmatprep.subr.bf16.mxu0 0
  %152 = vmatpush2.bf16.msra.mxu0 0
  %153 = vmatprep.subr.bf16.mxu0 0
  %154 = vmatpush2.bf16.msra.mxu0 0
  %155 = vmatprep.subr.bf16.mxu0 0
  %156 = vmatpush2.bf16.msra.mxu0 0
  %157 = vmatprep.subr.bf16.mxu0 0
  %158 = vmatpush2.bf16.msra.mxu0 0
  %159 = vmatprep.subr.bf16.mxu0 0
  %160 = vmatpush2.bf16.msra.mxu0 0
  %161 = vmatprep.subr.bf16.mxu0 0
  %162 = vmatpush2.bf16.msra.mxu0 0
  %163 = vmatprep.subr.bf16.mxu0 0
  %164 = vmatpush2.bf16.msra.mxu0 0
  %165 = vmatprep.subr.bf16.mxu0 0
  %166 = vmatpush2.bf16.msra.mxu0 0
  %167 = vmatprep.mubr.bf16.mxu0 0
  %168 = vmatmul.mubr.bf16.gmra.mxu0 %v133
  %v169 = vpop.f32.mrf.mxu0
  %v170 = vadd.f32 %v117, %v169
  %v171 = vpop.f32.mrf.mxu0
  %v172 = vpop.f32.mrf.mxu0
  %v173 = vpop.f32.mrf.mxu0
  %174 = vdwg.mxu0
  %v175 = vmax.f32 %v170, 0.0
  %176 = vst.msk [vmem:[%s5] sm:$0xff] %vm131, %v175
  // Predicated region
  $region22: #{cmta_binary_forward.14} parent=0 // pred_check
    _
  $region23: #{cmta_binary_forward.14} parent=0 // pred_check_branch
    %178 = sbr.rel (0) target = $region25
  $region24: #{cmta_binary_forward.14} parent=0 // pred_region
    _
  $region25: #{cmta_binary_forward.14} parent=0 // pred_fallthru
    _
  // Predicated region
  $region26: #{cmta_binary_forward.14} parent=0 // pred_check
    _
  $region27: #{cmta_binary_forward.14} parent=0 // pred_check_branch
    %180 = sbr.rel (0) target = $region29
  $region28: #{cmta_binary_forward.14} parent=0 // pred_region
    _
  $region29: #{cmta_binary_forward.14} parent=0 // pred_fallthru
    _

// kernel: cmta_binary_forward.15
$region0: #{cmta_binary_forward.15}
  #allocation0 [shape = 'u32[]', space=smem, size = 0x4, offset = 0x4, fixed_abs, tag = 'smem constant byte address 0x4 - core index']
  #allocation1 [shape = 'u32[144,128]{1,0:T(1,128)}', space=vmem, size = 0x12000, scoped, tag = 'internal scratch']
  %s0 = inlined_call_operand.vmem [shape: f32[16,32], index: 0, kind: input, shape index: {}]
  %s1 = inlined_call_operand.vmem [shape: f32[1,32], index: 1, kind: input, shape index: {}]
  %s2 = inlined_call_operand.vmem [shape: f32[1,32], index: 2, kind: input, shape index: {}]
  %s3 = inlined_call_operand.vmem [shape: bf16[32,128], index: 3, kind: input, shape index: {}]
  %s4 = inlined_call_operand.vmem [shape: f32[1,128], index: 4, kind: input, shape index: {}]
  %s5 = inlined_call_operand.vmem [shape: bf16[16,128], index: 5, kind: output, shape index: {}]
  %s6 = sld [smem:[#allocation0]]
  $region30: #{cmta_binary_forward.15} parent=0
    _
  %s8 = ssub.s32 1, %s6
  %s9 = scalar_select 0, %s8, %s6
  // Predicated region
  $region2: #{cmta_binary_forward.15} parent=0 // pred_check
    _
  $region3: #{cmta_binary_forward.15} parent=0 // pred_check_branch
    %11 = sbr.rel (0) target = $region5
  $region4: #{cmta_binary_forward.15} parent=0 // pred_region
    _
  $region5: #{cmta_binary_forward.15} parent=0 // pred_fallthru
    _
  // Predicated region
  $region6: #{cmta_binary_forward.15} parent=0 // pred_check
    _
  $region7: #{cmta_binary_forward.15} parent=0 // pred_check_branch
    %13 = sbr.rel (0) target = $region9
  $region8: #{cmta_binary_forward.15} parent=0 // pred_region
    _
  $region9: #{cmta_binary_forward.15} parent=0 // pred_fallthru
    _
  // Predicated region
  $region10: #{cmta_binary_forward.15} parent=0 // pred_check
    _
  $region11: #{cmta_binary_forward.15} parent=0 // pred_check_branch
    %15 = sbr.rel (0) target = $region13
  $region12: #{cmta_binary_forward.15} parent=0 // pred_region
    _
  $region13: #{cmta_binary_forward.15} parent=0 // pred_fallthru
    _
  // Predicated region
  $region14: #{cmta_binary_forward.15} parent=0 // pred_check
    _
  $region15: #{cmta_binary_forward.15} parent=0 // pred_check_branch
    %17 = sbr.rel (0) target = $region17
  $region16: #{cmta_binary_forward.15} parent=0 // pred_region
    _
  $region17: #{cmta_binary_forward.15} parent=0 // pred_fallthru
    _
  // Predicated region
  $region18: #{cmta_binary_forward.15} parent=0 // pred_check
    _
  $region19: #{cmta_binary_forward.15} parent=0 // pred_check_branch
    %19 = sbr.rel (0) target = $region21
  $region20: #{cmta_binary_forward.15} parent=0 // pred_region
    _
  $region21: #{cmta_binary_forward.15} parent=0 // pred_fallthru
    _
  %v21 = vld [vmem:[%s0] sm:$0xff]
  %v22 = vld [vmem:[%s0 + $0x8] sm:$0xff]
  %v23 = vld [vmem:[%s1] sm:$0x1]
  %v24 = vld [vmem:[%s2] sm:$0x1]
  %vm25 = vcmask 261120
  %v26 = vsel %vm25, %v21, 0.0
  %27 = vadd.xlane.f32.xlu0 %v26
  %v28 = vpop.xlane.xlu0 %27
  %v29 = vsel %vm25, %v22, 0.0
  %30 = vadd.xlane.f32.xlu0 %v29
  %v31 = vpop.xlane.xlu0 %30
  %v32 = vrcp.pop 32.0
  %v33 = vmul.f32 %v28, %v32
  %v34 = vmul.f32 %v31, %v32
  %v35 = vsub.f32 %v21, %v33
  %v36 = vsub.f32 %v22, %v34
  %v37 = vmul.f32 %v35, %v35
  %v38 = vmul.f32 %v36, %v36
  %v39 = vsel %vm25, %v37, 0.0
  %40 = vadd.xlane.f32.xlu0 %v39
  %v41 = vpop.xlane.xlu0 %40
  %v42 = vsel %vm25, %v38, 0.0
  %43 = vadd.xlane.f32.xlu0 %v42
  %v44 = vpop.xlane.xlu0 %43
  %v45 = vmul.f32 %v41, %v32
  %v46 = vmul.f32 %v44, %v32
  %v47 = vadd.f32 %v45, 1e-05
  %v48 = vadd.f32 %v46, 1e-05
  %v49 = vrsqrt.pop %v47
  %v50 = vrsqrt.pop %v48
  %v51 = vmul.f32 %v35, %v49
  %v52 = vmul.f32 %v36, %v50
  %v54 = vlaneseq
  %v55 = vshrl.u32 %v54, 7
  %v56 = vsub.s32 0, %v55
  %v57 = vrot.slane %v23, %v56
  %v59 = vmul.f32 %v51, %v57
  %v60 = vmul.f32 %v52, %v57
  %v62 = vlaneseq
  %v63 = vshrl.u32 %v62, 7
  %v64 = vsub.s32 0, %v63
  %v65 = vrot.slane %v24, %v64
  %v67 = vadd.f32 %v59, %v65
  %v68 = vadd.f32 %v60, %v65
  %v69 = vpack.c.bf16 %v68, %v67
  %v70 = vld [vmem:[%s3] sm:$0xf]
  %v71 = vld [vmem:[%s3 + $0x4] sm:$0xf]
  %v72 = vld [vmem:[%s3 + $0x8] sm:$0xf]
  %v73 = vld [vmem:[%s3 + $0xc] sm:$0xf]
  %v74 = vld [vmem:[%s4] sm:$0x1]
  %v76 = vlaneseq
  %v77 = vshrl.u32 %v76, 7
  %v78 = vsub.s32 0, %v77
  %v79 = vrot.slane %v74, %v78
  %v85 = vunpack.c.l.b16 %v70
  %v86 = vunpack.c.l.b16 %v71
  %v87 = vunpack.c.l.b16 %v72
  %v88 = vunpack.c.l.b16 %v73
  %v89 = vpack.c.b16 %v86, %v85
  %v90 = vpack.c.b16 %v88, %v87
  %v94 = vsel %vm25, %v69, 0
  %96 = vmatprep.subr.bf16.mxu0 0
  %97 = vmatpush1.bf16.msra.mxu0 0
  %98 = vmatprep.subr.bf16.mxu0 0
  %99 = vmatpush1.bf16.msra.mxu0 0
  %100 = vmatprep.subr.bf16.mxu0 0
  %101 = vmatpush1.bf16.msra.mxu0 0
  %102 = vmatprep.subr.bf16.mxu0 0
  %103 = vmatpush1.bf16.msra.mxu0 0
  %104 = vmatprep.subr.bf16.mxu0 0
  %105 = vmatpush1.bf16.msra.mxu0 0
  %106 = vmatprep.subr.bf16.mxu0 0
  %107 = vmatpush1.bf16.msra.mxu0 0
  %108 = vmatprep.subr.bf16.mxu0 0
  %109 = vmatpush1.bf16.msra.mxu0 %v90
  %110 = vmatprep.subr.bf16.mxu0 0
  %111 = vmatpush1.bf16.msra.mxu0 %v89
  %112 = vmatprep.subr.bf16.mxu0 0
  %113 = vmatpush2.bf16.msra.mxu0 0
  %114 = vmatprep.subr.bf16.mxu0 0
  %115 = vmatpush2.bf16.msra.mxu0 0
  %116 = vmatprep.subr.bf16.mxu0 0
  %117 = vmatpush2.bf16.msra.mxu0 0
  %118 = vmatprep.subr.bf16.mxu0 0
  %119 = vmatpush2.bf16.msra.mxu0 0
  %120 = vmatprep.subr.bf16.mxu0 0
  %121 = vmatpush2.bf16.msra.mxu0 0
  %122 = vmatprep.subr.bf16.mxu0 0
  %123 = vmatpush2.bf16.msra.mxu0 0
  %124 = vmatprep.subr.bf16.mxu0 0
  %125 = vmatpush2.bf16.msra.mxu0 0
  %126 = vmatprep.subr.bf16.mxu0 0
  %127 = vmatpush2.bf16.msra.mxu0 0
  %128 = vmatprep.mubr.bf16.mxu0 0
  %129 = vmatmul.mubr.bf16.gmra.mxu0 %v94
  %v130 = vpop.f32.mrf.mxu0
  %v131 = vadd.f32 %v79, %v130
  %v132 = vpop.f32.mrf.mxu0
  %v133 = vpop.f32.mrf.mxu0
  %v134 = vadd.f32 %v79, %v133
  %v135 = vpop.f32.mrf.mxu0
  %136 = vdwg.mxu0
  %v137 = vpack.c.bf16 %v134, %v131
  %v139 = vunpack.c.l.b16 %v137
  %v140 = vunpack.c.h.b16 %v137
  %v141 = vpack.c.b16 %v139, %v139
  %v142 = vpack.c.b16 %v140, %v140
  %145 = vst [vmem:[%s5] sm:$0xf] %v141
  %146 = vst [vmem:[%s5 + $0x4] sm:$0xf] %v142
  // Predicated region
  $region22: #{cmta_binary_forward.15} parent=0 // pred_check
    _
  $region23: #{cmta_binary_forward.15} parent=0 // pred_check_branch
    %148 = sbr.rel (0) target = $region25
  $region24: #{cmta_binary_forward.15} parent=0 // pred_region
    _
  $region25: #{cmta_binary_forward.15} parent=0 // pred_fallthru
    _
  // Predicated region
  $region26: #{cmta_binary_forward.15} parent=0 // pred_check
    _
  $region27: #{cmta_binary_forward.15} parent=0 // pred_check_branch
    %150 = sbr.rel (0) target = $region29
  $region28: #{cmta_binary_forward.15} parent=0 // pred_region
    _
  $region29: #{cmta_binary_forward.15} parent=0 // pred_fallthru
    _

// kernel: cmta_binary_forward.16
$region0: #{cmta_binary_forward.16}
  #allocation0 [shape = 'u32[]', space=smem, size = 0x4, offset = 0x4, fixed_abs, tag = 'smem constant byte address 0x4 - core index']
  #allocation1 [shape = 'u32[144,128]{1,0:T(1,128)}', space=vmem, size = 0x12000, scoped, tag = 'internal scratch']
  #allocation2 [shape = 'f32[16,1]{1,0:T(8,128)}', space=vmem, size = 0x2000, scoped, tag = 'scratch operand']
  #allocation3 [shape = 'f32[16,1]{1,0:T(8,128)}', space=vmem, size = 0x2000, scoped, tag = 'scratch operand']
  #allocation4 [shape = 'f32[16,32]{1,0:T(8,128)}', space=vmem, size = 0x2000, scoped, tag = 'scratch operand']
  %s0 = inlined_call_operand.vmem [shape: f32[16,32], index: 0, kind: input, shape index: {}]
  %s1 = inlined_call_operand.vmem [shape: bf16[16,128], index: 1, kind: input, shape index: {}, may-alias: {1,2}]
  %s2 = inlined_call_operand.vmem [shape: bf16[16,128], index: 2, kind: input, shape index: {}, may-alias: {1,2}]
  %s3 = inlined_call_operand.vmem [shape: f32[1,32], index: 3, kind: input, shape index: {}]
  %s4 = inlined_call_operand.vmem [shape: f32[1,32], index: 4, kind: input, shape index: {}]
  %s5 = inlined_call_operand.vmem [shape: bf16[32,32], index: 5, kind: input, shape index: {}]
  %s6 = inlined_call_operand.vmem [shape: f32[1,32], index: 6, kind: input, shape index: {}]
  %s7 = inlined_call_operand.vmem [shape: f32[16,32], index: 7, kind: output, shape index: {}]
  %s8 = sld [smem:[#allocation0]]
  $region46: #{cmta_binary_forward.16} parent=0
    _
  %s10 = ssub.s32 1, %s8
  %s11 = scalar_select 0, %s10, %s8
  // Predicated region
  $region2: #{cmta_binary_forward.16} parent=0 // pred_check
    _
  $region3: #{cmta_binary_forward.16} parent=0 // pred_check_branch
    %13 = sbr.rel (0) target = $region5
  $region4: #{cmta_binary_forward.16} parent=0 // pred_region
    _
  $region5: #{cmta_binary_forward.16} parent=0 // pred_fallthru
    _
  // Predicated region
  $region6: #{cmta_binary_forward.16} parent=0 // pred_check
    _
  $region7: #{cmta_binary_forward.16} parent=0 // pred_check_branch
    %15 = sbr.rel (0) target = $region9
  $region8: #{cmta_binary_forward.16} parent=0 // pred_region
    _
  $region9: #{cmta_binary_forward.16} parent=0 // pred_fallthru
    _
  // Predicated region
  $region10: #{cmta_binary_forward.16} parent=0 // pred_check
    _
  $region11: #{cmta_binary_forward.16} parent=0 // pred_check_branch
    %17 = sbr.rel (0) target = $region13
  $region12: #{cmta_binary_forward.16} parent=0 // pred_region
    _
  $region13: #{cmta_binary_forward.16} parent=0 // pred_fallthru
    _
  // Predicated region
  $region14: #{cmta_binary_forward.16} parent=0 // pred_check
    _
  $region15: #{cmta_binary_forward.16} parent=0 // pred_check_branch
    %19 = sbr.rel (0) target = $region17
  $region16: #{cmta_binary_forward.16} parent=0 // pred_region
    _
  $region17: #{cmta_binary_forward.16} parent=0 // pred_fallthru
    _
  // Predicated region
  $region18: #{cmta_binary_forward.16} parent=0 // pred_check
    _
  $region19: #{cmta_binary_forward.16} parent=0 // pred_check_branch
    %21 = sbr.rel (0) target = $region21
  $region20: #{cmta_binary_forward.16} parent=0 // pred_region
    _
  $region21: #{cmta_binary_forward.16} parent=0 // pred_fallthru
    _
  // Predicated region
  $region22: #{cmta_binary_forward.16} parent=0 // pred_check
    _
  $region23: #{cmta_binary_forward.16} parent=0 // pred_check_branch
    %23 = sbr.rel (0) target = $region25
  $region24: #{cmta_binary_forward.16} parent=0 // pred_region
    _
  $region25: #{cmta_binary_forward.16} parent=0 // pred_fallthru
    _
  // Predicated region
  $region26: #{cmta_binary_forward.16} parent=0 // pred_check
    _
  $region27: #{cmta_binary_forward.16} parent=0 // pred_check_branch
    %25 = sbr.rel (0) target = $region29
  $region28: #{cmta_binary_forward.16} parent=0 // pred_region
    _
  $region29: #{cmta_binary_forward.16} parent=0 // pred_fallthru
    _
  %p27 = scmp.eq.s32.totalorder 0, 0
  // Predicated region
  $region30: #{cmta_binary_forward.16} parent=0 // pred_check
    %p28 = pneg %p27
  $region31: #{cmta_binary_forward.16} parent=0 // pred_check_branch
    %30 = sbr.rel (%p28) target = $region33
  $region32: #{cmta_binary_forward.16} parent=0 // pred_region
    %vm31 = vcmask 7168
    %32 = vst.msk [vmem:[#allocation2] sm:$0xff] %vm31, -1e+30
    %33 = vst.msk [vmem:[#allocation2 + $0x8] sm:$0xff] %vm31, -1e+30
    %34 = vst.msk [vmem:[#allocation3] sm:$0xff] %vm31, 0.0
    %35 = vst.msk [vmem:[#allocation3 + $0x8] sm:$0xff] %vm31, 0.0
    %vm36 = vcmask 261120
    %37 = vst.msk [vmem:[#allocation4] sm:$0xff] %vm36, 0.0
    %38 = vst.msk [vmem:[#allocation4 + $0x8] sm:$0xff] %vm36, 0.0
  $region33: #{cmta_binary_forward.16} parent=0 // pred_fallthru
    _
  %v39 = vld [vmem:[%s1] sm:$0xf]
  %v40 = vld [vmem:[%s1 + $0x4] sm:$0xf]
  %v41 = vld [vmem:[%s2] sm:$0xf]
  %v42 = vld [vmem:[%s2 + $0x4] sm:$0xf]
  %v45 = vunpack.c.l.b16 %v39
  %v46 = vunpack.c.l.b16 %v40
  %v47 = vpack.c.b16 %v46, %v45
  %v50 = vunpack.c.l.b16 %v41
  %v51 = vunpack.c.l.b16 %v42
  %v52 = vpack.c.b16 %v51, %v50
  %53 = vrot.lane.b32.xlu0 %v52, 96
  %v54 = vpop.permute.xlu0 %53
  %vm55 = vcmask 261120
  %v57 = vsel %vm55, %v47, 0
  %v60 = vsel %vm55, %v54, 0
  %62 = vmatprep.subr.bf16.mxu0 0
  %63 = vmatpush1.bf16.xpose.msra.mxu0 0
  %64 = vmatprep.subr.bf16.mxu0 0
  %65 = vmatpush1.bf16.xpose.msra.mxu0 0
  %66 = vmatprep.subr.bf16.mxu0 0
  %67 = vmatpush1.bf16.xpose.msra.mxu0 0
  %68 = vmatprep.subr.bf16.mxu0 0
  %69 = vmatpush1.bf16.xpose.msra.mxu0 0
  %70 = vmatprep.subr.bf16.mxu0 0
  %71 = vmatpush1.bf16.xpose.msra.mxu0 0
  %72 = vmatprep.subr.bf16.mxu0 0
  %73 = vmatpush1.bf16.xpose.msra.mxu0 0
  %74 = vmatprep.subr.bf16.mxu0 0
  %75 = vmatpush1.bf16.xpose.msra.mxu0 0
  %76 = vmatprep.subr.bf16.mxu0 0
  %77 = vmatpush1.bf16.xpose.msra.mxu0 %v60
  %78 = vmatprep.subr.bf16.mxu0 0
  %79 = vmatpush2.bf16.xpose.msra.mxu0 0
  %80 = vmatprep.subr.bf16.mxu0 0
  %81 = vmatpush2.bf16.xpose.msra.mxu0 0
  %82 = vmatprep.subr.bf16.mxu0 0
  %83 = vmatpush2.bf16.xpose.msra.mxu0 0
  %84 = vmatprep.subr.bf16.mxu0 0
  %85 = vmatpush2.bf16.xpose.msra.mxu0 0
  %86 = vmatprep.subr.bf16.mxu0 0
  %87 = vmatpush2.bf16.xpose.msra.mxu0 0
  %88 = vmatprep.subr.bf16.mxu0 0
  %89 = vmatpush2.bf16.xpose.msra.mxu0 0
  %90 = vmatprep.subr.bf16.mxu0 0
  %91 = vmatpush2.bf16.xpose.msra.mxu0 0
  %92 = vmatprep.subr.bf16.mxu0 0
  %93 = vmatpush2.bf16.xpose.msra.mxu0 0
  %94 = vmatprep.mubr.bf16.mxu0 0
  %95 = vmatmul.mubr.bf16.gmra.mxu0 %v57
  %v96 = vpop.f32.mrf.mxu0
  %v97 = vadd.f32 0.0, %v96
  %v98 = vpop.f32.mrf.mxu0
  %v99 = vpop.f32.mrf.mxu0
  %v100 = vadd.f32 0.0, %v99
  %v101 = vpop.f32.mrf.mxu0
  %102 = vdwg.mxu0
  %v103 = vlaneseq
  %v104 = vand.u32 %v103, 127
  %s105 = smul.u32 0, 16
  %v106 = vstv %s105
  %v107 = vadd.s32 %v104, %v106
  %vm108 = vcmp.lt.s32.totalorder %v107, 10
  %v109 = vsel %vm108, %v97, -1e+30
  %v110 = vsel %vm108, %v100, -1e+30
  %v111 = vld [vmem:[#allocation2] sm:$0xff]
  %v112 = vld [vmem:[#allocation2 + $0x8] sm:$0xff]
  %vm113 = vcmask 130048
  %v114 = vsel %vm113, %v109, -inf
  %115 = vmax.xlane.f32.xlu0 %v114
  %v116 = vpop.xlane.xlu0 %115
  %v117 = vsel %vm113, %v110, -inf
  %118 = vmax.xlane.f32.xlu0 %v117
  %v119 = vpop.xlane.xlu0 %118
  %v120 = vmax.f32 %v111, %v116
  %v121 = vmax.f32 %v112, %v119
  %v122 = vsub.f32 %v111, %v120
  %v123 = vsub.f32 %v112, %v121
  %v124 = vmul.f32 %v122, 1.442695
  %v125 = vpow.pop %v124
  %v126 = vmul.f32 %v123, 1.442695
  %v127 = vpow.pop %v126
  %129 = vset.pattern.permute.xlu0 0
  %130 = vperm.xlu0 %129, %v120
  %v131 = vpop.permute.xlu0 %130
  %134 = vset.pattern.permute.xlu0 0
  %135 = vperm.xlu0 %134, %v121
  %v136 = vpop.permute.xlu0 %135
  %v138 = vsub.f32 %v109, %v131
  %v139 = vsub.f32 %v110, %v136
  %v140 = vmul.f32 %v138, 1.442695
  %v141 = vpow.pop %v140
  %v142 = vmul.f32 %v139, 1.442695
  %v143 = vpow.pop %v142
  %v144 = vsel %vm108, %v141, 0.0
  %v145 = vsel %vm108, %v143, 0.0
  %v146 = vld [vmem:[#allocation3] sm:$0xff]
  %v147 = vld [vmem:[#allocation3 + $0x8] sm:$0xff]
  %v148 = vmul.f32 %v125, %v146
  %v149 = vmul.f32 %v127, %v147
  %v150 = vsel %vm113, %v144, 0.0
  %151 = vadd.xlane.f32.xlu0 %v150
  %v152 = vpop.xlane.xlu0 %151
  %v153 = vsel %vm113, %v145, 0.0
  %154 = vadd.xlane.f32.xlu0 %v153
  %v155 = vpop.xlane.xlu0 %154
  %v156 = vadd.f32 %v148, %v152
  %v157 = vadd.f32 %v149, %v155
  %vm158 = vcmask 7168
  %159 = vst.msk [vmem:[#allocation3] sm:$0xff] %vm158, %v156
  %160 = vst.msk [vmem:[#allocation3 + $0x8] sm:$0xff] %vm158, %v157
  %v161 = vld [vmem:[#allocation4] sm:$0xff]
  %v162 = vld [vmem:[#allocation4 + $0x8] sm:$0xff]
  %164 = vset.pattern.permute.xlu0 0
  %165 = vperm.xlu0 %164, %v125
  %v166 = vpop.permute.xlu0 %165
  %169 = vset.pattern.permute.xlu0 0
  %170 = vperm.xlu0 %169, %v127
  %v171 = vpop.permute.xlu0 %170
  %v173 = vmul.f32 %v166, %v161
  %v174 = vmul.f32 %v171, %v162
  %v175 = vpack.c.bf16 %v145, %v144
  %176 = vrot.lane.b32.xlu0 %v52, 64
  %v177 = vpop.permute.xlu0 %176
  %v180 = vsel %vm113, %v175, 0
  %182 = vmatprep.subr.bf16.mxu0 0
  %183 = vmatpush1.bf16.msra.mxu0 0
  %184 = vmatprep.subr.bf16.mxu0 0
  %185 = vmatpush1.bf16.msra.mxu0 0
  %186 = vmatprep.subr.bf16.mxu0 0
  %187 = vmatpush1.bf16.msra.mxu0 0
  %188 = vmatprep.subr.bf16.mxu0 0
  %189 = vmatpush1.bf16.msra.mxu0 0
  %190 = vmatprep.subr.bf16.mxu0 0
  %191 = vmatpush1.bf16.msra.mxu0 0
  %192 = vmatprep.subr.bf16.mxu0 0
  %193 = vmatpush1.bf16.msra.mxu0 0
  %194 = vmatprep.subr.bf16.mxu0 0
  %195 = vmatpush1.bf16.msra.mxu0 0
  %196 = vmatprep.subr.bf16.mxu0 0
  %197 = vmatpush1.bf16.msra.mxu0 %v177
  %198 = vmatprep.subr.bf16.mxu0 0
  %199 = vmatpush2.bf16.msra.mxu0 0
  %200 = vmatprep.subr.bf16.mxu0 0
  %201 = vmatpush2.bf16.msra.mxu0 0
  %202 = vmatprep.subr.bf16.mxu0 0
  %203 = vmatpush2.bf16.msra.mxu0 0
  %204 = vmatprep.subr.bf16.mxu0 0
  %205 = vmatpush2.bf16.msra.mxu0 0
  %206 = vmatprep.subr.bf16.mxu0 0
  %207 = vmatpush2.bf16.msra.mxu0 0
  %208 = vmatprep.subr.bf16.mxu0 0
  %209 = vmatpush2.bf16.msra.mxu0 0
  %210 = vmatprep.subr.bf16.mxu0 0
  %211 = vmatpush2.bf16.msra.mxu0 0
  %212 = vmatprep.subr.bf16.mxu0 0
  %213 = vmatpush2.bf16.msra.mxu0 0
  %214 = vmatprep.mubr.bf16.mxu0 0
  %215 = vmatmul.mubr.bf16.gmra.mxu0 %v180
  %v216 = vpop.f32.mrf.mxu0
  %v217 = vadd.f32 0.0, %v216
  %v218 = vpop.f32.mrf.mxu0
  %v219 = vpop.f32.mrf.mxu0
  %v220 = vadd.f32 0.0, %v219
  %v221 = vpop.f32.mrf.mxu0
  %222 = vdwg.mxu0
  %v223 = vadd.f32 %v173, %v217
  %v224 = vadd.f32 %v174, %v220
  %225 = vst.msk [vmem:[#allocation4] sm:$0xff] %vm55, %v223
  %226 = vst.msk [vmem:[#allocation4 + $0x8] sm:$0xff] %vm55, %v224
  %227 = vst.msk [vmem:[#allocation2] sm:$0xff] %vm158, %v120
  %228 = vst.msk [vmem:[#allocation2 + $0x8] sm:$0xff] %vm158, %v121
  // Predicated region
  $region34: #{cmta_binary_forward.16} parent=0 // pred_check
    %p229 = pneg %p27
  $region35: #{cmta_binary_forward.16} parent=0 // pred_check_branch
    %231 = sbr.rel (%p229) target = $region37
  $region36: #{cmta_binary_forward.16} parent=0 // pred_region
    %v232 = vld [vmem:[#allocation4] sm:$0xff]
    %v233 = vld [vmem:[#allocation4 + $0x8] sm:$0xff]
    %v234 = vld [vmem:[#allocation3] sm:$0xff]
    %v235 = vld [vmem:[#allocation3 + $0x8] sm:$0xff]
    %v236 = vrcp.pop %v234
    %v237 = vrcp.pop %v235
    %239 = vset.pattern.permute.xlu0 0
    %240 = vperm.xlu0 %239, %v236
    %v241 = vpop.permute.xlu0 %240
    %244 = vset.pattern.permute.xlu0 0
    %245 = vperm.xlu0 %244, %v237
    %v246 = vpop.permute.xlu0 %245
    %v248 = vmul.f32 %v232, %v241
    %v249 = vmul.f32 %v233, %v246
    %v250 = vpack.c.bf16 %v249, %v248
    %v251 = vld [vmem:[%s5] sm:$0xf]
    %v252 = vld [vmem:[%s5 + $0x4] sm:$0xf]
    %v253 = vld [vmem:[%s5 + $0x8] sm:$0xf]
    %v254 = vld [vmem:[%s5 + $0xc] sm:$0xf]
    %v255 = vld [vmem:[%s6] sm:$0x1]
    %v257 = vlaneseq
    %v258 = vshrl.u32 %v257, 7
    %v259 = vsub.s32 0, %v258
    %v260 = vrot.slane %v255, %v259
    %v266 = vunpack.c.l.b16 %v251
    %v267 = vunpack.c.l.b16 %v252
    %v268 = vunpack.c.l.b16 %v253
    %v269 = vunpack.c.l.b16 %v254
    %v270 = vpack.c.b16 %v267, %v266
    %v271 = vpack.c.b16 %v269, %v268
    %v275 = vsel %vm55, %v250, 0
    %277 = vmatprep.subr.bf16.mxu0 0
    %278 = vmatpush1.bf16.msra.mxu0 0
    %279 = vmatprep.subr.bf16.mxu0 0
    %280 = vmatpush1.bf16.msra.mxu0 0
    %281 = vmatprep.subr.bf16.mxu0 0
    %282 = vmatpush1.bf16.msra.mxu0 0
    %283 = vmatprep.subr.bf16.mxu0 0
    %284 = vmatpush1.bf16.msra.mxu0 0
    %285 = vmatprep.subr.bf16.mxu0 0
    %286 = vmatpush1.bf16.msra.mxu0 0
    %287 = vmatprep.subr.bf16.mxu0 0
    %288 = vmatpush1.bf16.msra.mxu0 0
    %289 = vmatprep.subr.bf16.mxu0 0
    %290 = vmatpush1.bf16.msra.mxu0 %v271
    %291 = vmatprep.subr.bf16.mxu0 0
    %292 = vmatpush1.bf16.msra.mxu0 %v270
    %293 = vmatprep.subr.bf16.mxu0 0
    %294 = vmatpush2.bf16.msra.mxu0 0
    %295 = vmatprep.subr.bf16.mxu0 0
    %296 = vmatpush2.bf16.msra.mxu0 0
    %297 = vmatprep.subr.bf16.mxu0 0
    %298 = vmatpush2.bf16.msra.mxu0 0
    %299 = vmatprep.subr.bf16.mxu0 0
    %300 = vmatpush2.bf16.msra.mxu0 0
    %301 = vmatprep.subr.bf16.mxu0 0
    %302 = vmatpush2.bf16.msra.mxu0 0
    %303 = vmatprep.subr.bf16.mxu0 0
    %304 = vmatpush2.bf16.msra.mxu0 0
    %305 = vmatprep.subr.bf16.mxu0 0
    %306 = vmatpush2.bf16.msra.mxu0 0
    %307 = vmatprep.subr.bf16.mxu0 0
    %308 = vmatpush2.bf16.msra.mxu0 0
    %309 = vmatprep.mubr.bf16.mxu0 0
    %310 = vmatmul.mubr.bf16.gmra.mxu0 %v275
    %v311 = vpop.f32.mrf.mxu0
    %v312 = vadd.f32 %v260, %v311
    %v313 = vpop.f32.mrf.mxu0
    %v314 = vpop.f32.mrf.mxu0
    %v315 = vadd.f32 %v260, %v314
    %v316 = vpop.f32.mrf.mxu0
    %317 = vdwg.mxu0
    %v318 = vld [vmem:[%s0] sm:$0xff]
    %v319 = vld [vmem:[%s0 + $0x8] sm:$0xff]
    %v320 = vadd.f32 %v312, %v318
    %v321 = vadd.f32 %v315, %v319
    %322 = vst.msk [vmem:[%s7] sm:$0xff] %vm55, %v320
    %323 = vst.msk [vmem:[%s7 + $0x8] sm:$0xff] %vm55, %v321
  $region37: #{cmta_binary_forward.16} parent=0 // pred_fallthru
    _
  // Predicated region
  $region38: #{cmta_binary_forward.16} parent=0 // pred_check
    _
  $region39: #{cmta_binary_forward.16} parent=0 // pred_check_branch
    %325 = sbr.rel (0) target = $region41
  $region40: #{cmta_binary_forward.16} parent=0 // pred_region
    _
  $region41: #{cmta_binary_forward.16} parent=0 // pred_fallthru
    _
  // Predicated region
  $region42: #{cmta_binary_forward.16} parent=0 // pred_check
    _
  $region43: #{cmta_binary_forward.16} parent=0 // pred_check_branch
    %327 = sbr.rel (0) target = $region45
  $region44: #{cmta_binary_forward.16} parent=0 // pred_region
    _
  $region45: #{cmta_binary_forward.16} parent=0 // pred_fallthru
    _

// kernel: cmta_binary_forward.20
$region0: #{cmta_binary_forward.20}
  #allocation0 [shape = 'u32[]', space=smem, size = 0x4, offset = 0x4, fixed_abs, tag = 'smem constant byte address 0x4 - core index']
  #allocation1 [shape = 'u32[144,128]{1,0:T(1,128)}', space=vmem, size = 0x12000, scoped, tag = 'internal scratch']
  #allocation2 [shape = 'f32[8,32]{1,0:T(8,128)}', space=vmem, size = 0x1000, scoped, tag = 'scratch operand']
  %s0 = inlined_call_operand.vmem [shape: f32[1,16], index: 0, kind: input, shape index: {}]
  %s1 = inlined_call_operand.vmem [shape: f32[1,24], index: 1, kind: input, shape index: {}]
  %s2 = inlined_call_operand.vmem [shape: bf16[16,48], index: 2, kind: input, shape index: {}]
  %s3 = inlined_call_operand.vmem [shape: f32[1,48], index: 3, kind: input, shape index: {}]
  %s4 = inlined_call_operand.vmem [shape: bf16[48,32], index: 4, kind: input, shape index: {}]
  %s5 = inlined_call_operand.vmem [shape: f32[1,32], index: 5, kind: input, shape index: {}]
  %s6 = inlined_call_operand.vmem [shape: bf16[24,48], index: 6, kind: input, shape index: {}]
  %s7 = inlined_call_operand.vmem [shape: f32[1,48], index: 7, kind: input, shape index: {}]
  %s8 = inlined_call_operand.vmem [shape: bf16[48,32], index: 8, kind: input, shape index: {}]
  %s9 = inlined_call_operand.vmem [shape: f32[1,32], index: 9, kind: input, shape index: {}]
  %s10 = inlined_call_operand.vmem [shape: f32[1,32], index: 10, kind: input, shape index: {}]
  %s11 = inlined_call_operand.vmem [shape: f32[1,32], index: 11, kind: input, shape index: {}]
  %s12 = inlined_call_operand.vmem [shape: f32[1,32], index: 12, kind: input, shape index: {}]
  %s13 = inlined_call_operand.vmem [shape: bf16[32,128], index: 13, kind: input, shape index: {}]
  %s14 = inlined_call_operand.vmem [shape: f32[1,128], index: 14, kind: input, shape index: {}]
  %s15 = inlined_call_operand.vmem [shape: bf16[32,32], index: 15, kind: input, shape index: {}]
  %s16 = inlined_call_operand.vmem [shape: f32[1,32], index: 16, kind: input, shape index: {}]
  %s17 = inlined_call_operand.vmem [shape: f32[1,32], index: 17, kind: input, shape index: {}]
  %s18 = inlined_call_operand.vmem [shape: f32[1,32], index: 18, kind: input, shape index: {}]
  %s19 = inlined_call_operand.vmem [shape: bf16[32,128], index: 19, kind: input, shape index: {}]
  %s20 = inlined_call_operand.vmem [shape: f32[1,128], index: 20, kind: input, shape index: {}]
  %s21 = inlined_call_operand.vmem [shape: bf16[32,32], index: 21, kind: input, shape index: {}]
  %s22 = inlined_call_operand.vmem [shape: f32[1,32], index: 22, kind: input, shape index: {}]
  %s23 = inlined_call_operand.vmem [shape: f32[1,32], index: 23, kind: input, shape index: {}]
  %s24 = inlined_call_operand.vmem [shape: f32[1,32], index: 24, kind: input, shape index: {}]
  %s25 = inlined_call_operand.vmem [shape: f32[8,32], index: 25, kind: output, shape index: {}]
  %s26 = sld [smem:[#allocation0]]
  $region110: #{cmta_binary_forward.20} parent=0
    _
  %s28 = ssub.s32 1, %s26
  %s29 = scalar_select 0, %s28, %s26
  // Predicated region
  $region2: #{cmta_binary_forward.20} parent=0 // pred_check
    _
  $region3: #{cmta_binary_forward.20} parent=0 // pred_check_branch
    %31 = sbr.rel (0) target = $region5
  $region4: #{cmta_binary_forward.20} parent=0 // pred_region
    _
  $region5: #{cmta_binary_forward.20} parent=0 // pred_fallthru
    _
  // Predicated region
  $region6: #{cmta_binary_forward.20} parent=0 // pred_check
    _
  $region7: #{cmta_binary_forward.20} parent=0 // pred_check_branch
    %33 = sbr.rel (0) target = $region9
  $region8: #{cmta_binary_forward.20} parent=0 // pred_region
    _
  $region9: #{cmta_binary_forward.20} parent=0 // pred_fallthru
    _
  // Predicated region
  $region10: #{cmta_binary_forward.20} parent=0 // pred_check
    _
  $region11: #{cmta_binary_forward.20} parent=0 // pred_check_branch
    %35 = sbr.rel (0) target = $region13
  $region12: #{cmta_binary_forward.20} parent=0 // pred_region
    _
  $region13: #{cmta_binary_forward.20} parent=0 // pred_fallthru
    _
  // Predicated region
  $region14: #{cmta_binary_forward.20} parent=0 // pred_check
    _
  $region15: #{cmta_binary_forward.20} parent=0 // pred_check_branch
    %37 = sbr.rel (0) target = $region17
  $region16: #{cmta_binary_forward.20} parent=0 // pred_region
    _
  $region17: #{cmta_binary_forward.20} parent=0 // pred_fallthru
    _
  // Predicated region
  $region18: #{cmta_binary_forward.20} parent=0 // pred_check
    _
  $region19: #{cmta_binary_forward.20} parent=0 // pred_check_branch
    %39 = sbr.rel (0) target = $region21
  $region20: #{cmta_binary_forward.20} parent=0 // pred_region
    _
  $region21: #{cmta_binary_forward.20} parent=0 // pred_fallthru
    _
  // Predicated region
  $region22: #{cmta_binary_forward.20} parent=0 // pred_check
    _
  $region23: #{cmta_binary_forward.20} parent=0 // pred_check_branch
    %41 = sbr.rel (0) target = $region25
  $region24: #{cmta_binary_forward.20} parent=0 // pred_region
    _
  $region25: #{cmta_binary_forward.20} parent=0 // pred_fallthru
    _
  // Predicated region
  $region26: #{cmta_binary_forward.20} parent=0 // pred_check
    _
  $region27: #{cmta_binary_forward.20} parent=0 // pred_check_branch
    %43 = sbr.rel (0) target = $region29
  $region28: #{cmta_binary_forward.20} parent=0 // pred_region
    _
  $region29: #{cmta_binary_forward.20} parent=0 // pred_fallthru
    _
  // Predicated region
  $region30: #{cmta_binary_forward.20} parent=0 // pred_check
    _
  $region31: #{cmta_binary_forward.20} parent=0 // pred_check_branch
    %45 = sbr.rel (0) target = $region33
  $region32: #{cmta_binary_forward.20} parent=0 // pred_region
    _
  $region33: #{cmta_binary_forward.20} parent=0 // pred_fallthru
    _
  // Predicated region
  $region34: #{cmta_binary_forward.20} parent=0 // pred_check
    _
  $region35: #{cmta_binary_forward.20} parent=0 // pred_check_branch
    %47 = sbr.rel (0) target = $region37
  $region36: #{cmta_binary_forward.20} parent=0 // pred_region
    _
  $region37: #{cmta_binary_forward.20} parent=0 // pred_fallthru
    _
  // Predicated region
  $region38: #{cmta_binary_forward.20} parent=0 // pred_check
    _
  $region39: #{cmta_binary_forward.20} parent=0 // pred_check_branch
    %49 = sbr.rel (0) target = $region41
  $region40: #{cmta_binary_forward.20} parent=0 // pred_region
    _
  $region41: #{cmta_binary_forward.20} parent=0 // pred_fallthru
    _
  // Predicated region
  $region42: #{cmta_binary_forward.20} parent=0 // pred_check
    _
  $region43: #{cmta_binary_forward.20} parent=0 // pred_check_branch
    %51 = sbr.rel (0) target = $region45
  $region44: #{cmta_binary_forward.20} parent=0 // pred_region
    _
  $region45: #{cmta_binary_forward.20} parent=0 // pred_fallthru
    _
  // Predicated region
  $region46: #{cmta_binary_forward.20} parent=0 // pred_check
    _
  $region47: #{cmta_binary_forward.20} parent=0 // pred_check_branch
    %53 = sbr.rel (0) target = $region49
  $region48: #{cmta_binary_forward.20} parent=0 // pred_region
    _
  $region49: #{cmta_binary_forward.20} parent=0 // pred_fallthru
    _
  // Predicated region
  $region50: #{cmta_binary_forward.20} parent=0 // pred_check
    _
  $region51: #{cmta_binary_forward.20} parent=0 // pred_check_branch
    %55 = sbr.rel (0) target = $region53
  $region52: #{cmta_binary_forward.20} parent=0 // pred_region
    _
  $region53: #{cmta_binary_forward.20} parent=0 // pred_fallthru
    _
  // Predicated region
  $region54: #{cmta_binary_forward.20} parent=0 // pred_check
    _
  $region55: #{cmta_binary_forward.20} parent=0 // pred_check_branch
    %57 = sbr.rel (0) target = $region57
  $region56: #{cmta_binary_forward.20} parent=0 // pred_region
    _
  $region57: #{cmta_binary_forward.20} parent=0 // pred_fallthru
    _
  // Predicated region
  $region58: #{cmta_binary_forward.20} parent=0 // pred_check
    _
  $region59: #{cmta_binary_forward.20} parent=0 // pred_check_branch
    %59 = sbr.rel (0) target = $region61
  $region60: #{cmta_binary_forward.20} parent=0 // pred_region
    _
  $region61: #{cmta_binary_forward.20} parent=0 // pred_fallthru
    _
  // Predicated region
  $region62: #{cmta_binary_forward.20} parent=0 // pred_check
    _
  $region63: #{cmta_binary_forward.20} parent=0 // pred_check_branch
    %61 = sbr.rel (0) target = $region65
  $region64: #{cmta_binary_forward.20} parent=0 // pred_region
    _
  $region65: #{cmta_binary_forward.20} parent=0 // pred_fallthru
    _
  // Predicated region
  $region66: #{cmta_binary_forward.20} parent=0 // pred_check
    _
  $region67: #{cmta_binary_forward.20} parent=0 // pred_check_branch
    %63 = sbr.rel (0) target = $region69
  $region68: #{cmta_binary_forward.20} parent=0 // pred_region
    _
  $region69: #{cmta_binary_forward.20} parent=0 // pred_fallthru
    _
  // Predicated region
  $region70: #{cmta_binary_forward.20} parent=0 // pred_check
    _
  $region71: #{cmta_binary_forward.20} parent=0 // pred_check_branch
    %65 = sbr.rel (0) target = $region73
  $region72: #{cmta_binary_forward.20} parent=0 // pred_region
    _
  $region73: #{cmta_binary_forward.20} parent=0 // pred_fallthru
    _
  // Predicated region
  $region74: #{cmta_binary_forward.20} parent=0 // pred_check
    _
  $region75: #{cmta_binary_forward.20} parent=0 // pred_check_branch
    %67 = sbr.rel (0) target = $region77
  $region76: #{cmta_binary_forward.20} parent=0 // pred_region
    _
  $region77: #{cmta_binary_forward.20} parent=0 // pred_fallthru
    _
  // Predicated region
  $region78: #{cmta_binary_forward.20} parent=0 // pred_check
    _
  $region79: #{cmta_binary_forward.20} parent=0 // pred_check_branch
    %69 = sbr.rel (0) target = $region81
  $region80: #{cmta_binary_forward.20} parent=0 // pred_region
    _
  $region81: #{cmta_binary_forward.20} parent=0 // pred_fallthru
    _
  // Predicated region
  $region82: #{cmta_binary_forward.20} parent=0 // pred_check
    _
  $region83: #{cmta_binary_forward.20} parent=0 // pred_check_branch
    %71 = sbr.rel (0) target = $region85
  $region84: #{cmta_binary_forward.20} parent=0 // pred_region
    _
  $region85: #{cmta_binary_forward.20} parent=0 // pred_fallthru
    _
  // Predicated region
  $region86: #{cmta_binary_forward.20} parent=0 // pred_check
    _
  $region87: #{cmta_binary_forward.20} parent=0 // pred_check_branch
    %73 = sbr.rel (0) target = $region89
  $region88: #{cmta_binary_forward.20} parent=0 // pred_region
    _
  $region89: #{cmta_binary_forward.20} parent=0 // pred_fallthru
    _
  // Predicated region
  $region90: #{cmta_binary_forward.20} parent=0 // pred_check
    _
  $region91: #{cmta_binary_forward.20} parent=0 // pred_check_branch
    %75 = sbr.rel (0) target = $region93
  $region92: #{cmta_binary_forward.20} parent=0 // pred_region
    _
  $region93: #{cmta_binary_forward.20} parent=0 // pred_fallthru
    _
  // Predicated region
  $region94: #{cmta_binary_forward.20} parent=0 // pred_check
    _
  $region95: #{cmta_binary_forward.20} parent=0 // pred_check_branch
    %77 = sbr.rel (0) target = $region97
  $region96: #{cmta_binary_forward.20} parent=0 // pred_region
    _
  $region97: #{cmta_binary_forward.20} parent=0 // pred_fallthru
    _
  // Predicated region
  $region98: #{cmta_binary_forward.20} parent=0 // pred_check
    _
  $region99: #{cmta_binary_forward.20} parent=0 // pred_check_branch
    %79 = sbr.rel (0) target = $region101
  $region100: #{cmta_binary_forward.20} parent=0 // pred_region
    _
  $region101: #{cmta_binary_forward.20} parent=0 // pred_fallthru
    _
  %vm81 = vcmask 261120
  %82 = vst.msk [vmem:[#allocation2] sm:$0xff] %vm81, 0.0
  %v83 = vld [vmem:[%s10] sm:$0x1]
  %vm84 = vcmask 253952
  %85 = vst.msk [vmem:[#allocation2] sm:$0x1] %vm84, %v83
  %v86 = vld [vmem:[%s0] sm:$0x1]
  %v87 = vld [vmem:[%s2] sm:$0xf]
  %v88 = vld [vmem:[%s2 + $0x4] sm:$0xf]
  %v89 = vld [vmem:[%s3] sm:$0x1]
  %v90 = vpack.c.bf16 %v86, %v86
  %v93 = vunpack.c.l.b16 %v87
  %v94 = vunpack.c.l.b16 %v88
  %v95 = vpack.c.b16 %v94, %v93
  %vm97 = vcmask 130048
  %v99 = vsel %vm97, %v90, 0
  %101 = vmatprep.subr.bf16.mxu0 0
  %102 = vmatpush1.bf16.msra.mxu0 0
  %103 = vmatprep.subr.bf16.mxu0 0
  %104 = vmatpush1.bf16.msra.mxu0 0
  %105 = vmatprep.subr.bf16.mxu0 0
  %106 = vmatpush1.bf16.msra.mxu0 0
  %107 = vmatprep.subr.bf16.mxu0 0
  %108 = vmatpush1.bf16.msra.mxu0 0
  %109 = vmatprep.subr.bf16.mxu0 0
  %110 = vmatpush1.bf16.msra.mxu0 0
  %111 = vmatprep.subr.bf16.mxu0 0
  %112 = vmatpush1.bf16.msra.mxu0 0
  %113 = vmatprep.subr.bf16.mxu0 0
  %114 = vmatpush1.bf16.msra.mxu0 0
  %115 = vmatprep.subr.bf16.mxu0 0
  %116 = vmatpush1.bf16.msra.mxu0 %v95
  %117 = vmatprep.subr.bf16.mxu0 0
  %118 = vmatpush2.bf16.msra.mxu0 0
  %119 = vmatprep.subr.bf16.mxu0 0
  %120 = vmatpush2.bf16.msra.mxu0 0
  %121 = vmatprep.subr.bf16.mxu0 0
  %122 = vmatpush2.bf16.msra.mxu0 0
  %123 = vmatprep.subr.bf16.mxu0 0
  %124 = vmatpush2.bf16.msra.mxu0 0
  %125 = vmatprep.subr.bf16.mxu0 0
  %126 = vmatpush2.bf16.msra.mxu0 0
  %127 = vmatprep.subr.bf16.mxu0 0
  %128 = vmatpush2.bf16.msra.mxu0 0
  %129 = vmatprep.subr.bf16.mxu0 0
  %130 = vmatpush2.bf16.msra.mxu0 0
  %131 = vmatprep.subr.bf16.mxu0 0
  %132 = vmatpush2.bf16.msra.mxu0 0
  %133 = vmatprep.mubr.bf16.mxu0 0
  %134 = vmatmul.mubr.bf16.gmra.mxu0 %v99
  %v135 = vpop.f32.mrf.mxu0
  %v136 = vadd.f32 %v89, %v135
  %v137 = vpop.f32.mrf.mxu0
  %v138 = vpop.f32.mrf.mxu0
  %v139 = vpop.f32.mrf.mxu0
  %140 = vdwg.mxu0
  %vm141 = vcmp.gt.f32.partialorder %v136, 0.0
  %v142 = vmin.f32 %v136, 0.0
  %v143 = vmul.f32 %v142, 1.442695
  %v144 = vpow.pop %v143
  %v145 = vsub.f32 %v144, 1.0
  %v146 = vsel %vm141, %v136, %v145
  %v147 = vld [vmem:[%s4] sm:$0xf]
  %v148 = vld [vmem:[%s4 + $0x4] sm:$0xf]
  %v149 = vld [vmem:[%s4 + $0x8] sm:$0xf]
  %v150 = vld [vmem:[%s4 + $0xc] sm:$0xf]
  %v151 = vld [vmem:[%s4 + $0x10] sm:$0xf]
  %v152 = vld [vmem:[%s4 + $0x14] sm:$0xf]
  %v153 = vld [vmem:[%s5] sm:$0x1]
  %v154 = vpack.c.bf16 %v146, %v146
  %v161 = vunpack.c.l.b16 %v147
  %v162 = vunpack.c.l.b16 %v148
  %v163 = vunpack.c.l.b16 %v149
  %v164 = vunpack.c.l.b16 %v150
  %v165 = vunpack.c.l.b16 %v151
  %v166 = vunpack.c.l.b16 %v152
  %v167 = vpack.c.b16 %v162, %v161
  %v168 = vpack.c.b16 %v164, %v163
  %v169 = vpack.c.b16 %v166, %v165
  %vm173 = vcmask 392192
  %v175 = vsel %vm173, %v154, 0
  %177 = vmatprep.subr.bf16.mxu0 0
  %178 = vmatpush1.bf16.msra.mxu0 0
  %179 = vmatprep.subr.bf16.mxu0 0
  %180 = vmatpush1.bf16.msra.mxu0 0
  %181 = vmatprep.subr.bf16.mxu0 0
  %182 = vmatpush1.bf16.msra.mxu0 0
  %183 = vmatprep.subr.bf16.mxu0 0
  %184 = vmatpush1.bf16.msra.mxu0 0
  %185 = vmatprep.subr.bf16.mxu0 0
  %186 = vmatpush1.bf16.msra.mxu0 0
  %187 = vmatprep.subr.bf16.mxu0 0
  %188 = vmatpush1.bf16.msra.mxu0 %v169
  %189 = vmatprep.subr.bf16.mxu0 0
  %190 = vmatpush1.bf16.msra.mxu0 %v168
  %191 = vmatprep.subr.bf16.mxu0 0
  %192 = vmatpush1.bf16.msra.mxu0 %v167
  %193 = vmatprep.subr.bf16.mxu0 0
  %194 = vmatpush2.bf16.msra.mxu0 0
  %195 = vmatprep.subr.bf16.mxu0 0
  %196 = vmatpush2.bf16.msra.mxu0 0
  %197 = vmatprep.subr.bf16.mxu0 0
  %198 = vmatpush2.bf16.msra.mxu0 0
  %199 = vmatprep.subr.bf16.mxu0 0
  %200 = vmatpush2.bf16.msra.mxu0 0
  %201 = vmatprep.subr.bf16.mxu0 0
  %202 = vmatpush2.bf16.msra.mxu0 0
  %203 = vmatprep.subr.bf16.mxu0 0
  %204 = vmatpush2.bf16.msra.mxu0 0
  %205 = vmatprep.subr.bf16.mxu0 0
  %206 = vmatpush2.bf16.msra.mxu0 0
  %207 = vmatprep.subr.bf16.mxu0 0
  %208 = vmatpush2.bf16.msra.mxu0 0
  %209 = vmatprep.mubr.bf16.mxu0 0
  %210 = vmatmul.mubr.bf16.gmra.mxu0 %v175
  %v211 = vpop.f32.mrf.mxu0
  %v212 = vadd.f32 %v153, %v211
  %v213 = vpop.f32.mrf.mxu0
  %v214 = vpop.f32.mrf.mxu0
  %v215 = vpop.f32.mrf.mxu0
  %216 = vdwg.mxu0
  %vm217 = vcmp.gt.f32.partialorder %v212, 0.0
  %v218 = vmin.f32 %v212, 0.0
  %v219 = vmul.f32 %v218, 1.442695
  %v220 = vpow.pop %v219
  %v221 = vsub.f32 %v220, 1.0
  %v222 = vsel %vm217, %v212, %v221
  %223 = vst.msk [vmem:[#allocation2 + $0x1] sm:$0x1] %vm84, %v222
  %v224 = vld [vmem:[%s1] sm:$0x1]
  %v225 = vld [vmem:[%s6] sm:$0xf]
  %v226 = vld [vmem:[%s6 + $0x4] sm:$0xf]
  %v227 = vld [vmem:[%s6 + $0x8] sm:$0xf]
  %v228 = vld [vmem:[%s7] sm:$0x1]
  %v229 = vpack.c.bf16 %v224, %v224
  %v233 = vunpack.c.l.b16 %v225
  %v234 = vunpack.c.l.b16 %v226
  %v235 = vunpack.c.l.b16 %v227
  %v236 = vpack.c.b16 %v234, %v233
  %v237 = vpack.c.b16 %v235, %v235
  %vm239 = vcmask 195584
  %v241 = vsel %vm239, %v229, 0
  %vm243 = vcmask 1043456
  %v245 = vsel %vm243, %v237, 0
  %247 = vmatprep.subr.bf16.mxu0 0
  %248 = vmatpush1.bf16.msra.mxu0 0
  %249 = vmatprep.subr.bf16.mxu0 0
  %250 = vmatpush1.bf16.msra.mxu0 0
  %251 = vmatprep.subr.bf16.mxu0 0
  %252 = vmatpush1.bf16.msra.mxu0 0
  %253 = vmatprep.subr.bf16.mxu0 0
  %254 = vmatpush1.bf16.msra.mxu0 0
  %255 = vmatprep.subr.bf16.mxu0 0
  %256 = vmatpush1.bf16.msra.mxu0 0
  %257 = vmatprep.subr.bf16.mxu0 0
  %258 = vmatpush1.bf16.msra.mxu0 0
  %259 = vmatprep.subr.bf16.mxu0 0
  %260 = vmatpush1.bf16.msra.mxu0 %v245
  %261 = vmatprep.subr.bf16.mxu0 0
  %262 = vmatpush1.bf16.msra.mxu0 %v236
  %263 = vmatprep.subr.bf16.mxu0 0
  %264 = vmatpush2.bf16.msra.mxu0 0
  %265 = vmatprep.subr.bf16.mxu0 0
  %266 = vmatpush2.bf16.msra.mxu0 0
  %267 = vmatprep.subr.bf16.mxu0 0
  %268 = vmatpush2.bf16.msra.mxu0 0
  %269 = vmatprep.subr.bf16.mxu0 0
  %270 = vmatpush2.bf16.msra.mxu0 0
  %271 = vmatprep.subr.bf16.mxu0 0
  %272 = vmatpush2.bf16.msra.mxu0 0
  %273 = vmatprep.subr.bf16.mxu0 0
  %274 = vmatpush2.bf16.msra.mxu0 0
  %275 = vmatprep.subr.bf16.mxu0 0
  %276 = vmatpush2.bf16.msra.mxu0 0
  %277 = vmatprep.subr.bf16.mxu0 0
  %278 = vmatpush2.bf16.msra.mxu0 0
  %279 = vmatprep.mubr.bf16.mxu0 0
  %280 = vmatmul.mubr.bf16.gmra.mxu0 %v241
  %v281 = vpop.f32.mrf.mxu0
  %v282 = vadd.f32 %v228, %v281
  %v283 = vpop.f32.mrf.mxu0
  %v284 = vpop.f32.mrf.mxu0
  %v285 = vpop.f32.mrf.mxu0
  %286 = vdwg.mxu0
  %vm287 = vcmp.gt.f32.partialorder %v282, 0.0
  %v288 = vmin.f32 %v282, 0.0
  %v289 = vmul.f32 %v288, 1.442695
  %v290 = vpow.pop %v289
  %v291 = vsub.f32 %v290, 1.0
  %v292 = vsel %vm287, %v282, %v291
  %v293 = vld [vmem:[%s8] sm:$0xf]
  %v294 = vld [vmem:[%s8 + $0x4] sm:$0xf]
  %v295 = vld [vmem:[%s8 + $0x8] sm:$0xf]
  %v296 = vld [vmem:[%s8 + $0xc] sm:$0xf]
  %v297 = vld [vmem:[%s8 + $0x10] sm:$0xf]
  %v298 = vld [vmem:[%s8 + $0x14] sm:$0xf]
  %v299 = vld [vmem:[%s9] sm:$0x1]
  %v300 = vpack.c.bf16 %v292, %v292
  %v307 = vunpack.c.l.b16 %v293
  %v308 = vunpack.c.l.b16 %v294
  %v309 = vunpack.c.l.b16 %v295
  %v310 = vunpack.c.l.b16 %v296
  %v311 = vunpack.c.l.b16 %v297
  %v312 = vunpack.c.l.b16 %v298
  %v313 = vpack.c.b16 %v308, %v307
  %v314 = vpack.c.b16 %v310, %v309
  %v315 = vpack.c.b16 %v312, %v311
  %v320 = vsel %vm173, %v300, 0
  %322 = vmatprep.subr.bf16.mxu0 0
  %323 = vmatpush1.bf16.msra.mxu0 0
  %324 = vmatprep.subr.bf16.mxu0 0
  %325 = vmatpush1.bf16.msra.mxu0 0
  %326 = vmatprep.subr.bf16.mxu0 0
  %327 = vmatpush1.bf16.msra.mxu0 0
  %328 = vmatprep.subr.bf16.mxu0 0
  %329 = vmatpush1.bf16.msra.mxu0 0
  %330 = vmatprep.subr.bf16.mxu0 0
  %331 = vmatpush1.bf16.msra.mxu0 0
  %332 = vmatprep.subr.bf16.mxu0 0
  %333 = vmatpush1.bf16.msra.mxu0 %v315
  %334 = vmatprep.subr.bf16.mxu0 0
  %335 = vmatpush1.bf16.msra.mxu0 %v314
  %336 = vmatprep.subr.bf16.mxu0 0
  %337 = vmatpush1.bf16.msra.mxu0 %v313
  %338 = vmatprep.subr.bf16.mxu0 0
  %339 = vmatpush2.bf16.msra.mxu0 0
  %340 = vmatprep.subr.bf16.mxu0 0
  %341 = vmatpush2.bf16.msra.mxu0 0
  %342 = vmatprep.subr.bf16.mxu0 0
  %343 = vmatpush2.bf16.msra.mxu0 0
  %344 = vmatprep.subr.bf16.mxu0 0
  %345 = vmatpush2.bf16.msra.mxu0 0
  %346 = vmatprep.subr.bf16.mxu0 0
  %347 = vmatpush2.bf16.msra.mxu0 0
  %348 = vmatprep.subr.bf16.mxu0 0
  %349 = vmatpush2.bf16.msra.mxu0 0
  %350 = vmatprep.subr.bf16.mxu0 0
  %351 = vmatpush2.bf16.msra.mxu0 0
  %352 = vmatprep.subr.bf16.mxu0 0
  %353 = vmatpush2.bf16.msra.mxu0 0
  %354 = vmatprep.mubr.bf16.mxu0 0
  %355 = vmatmul.mubr.bf16.gmra.mxu0 %v320
  %v356 = vpop.f32.mrf.mxu0
  %v357 = vadd.f32 %v299, %v356
  %v358 = vpop.f32.mrf.mxu0
  %v359 = vpop.f32.mrf.mxu0
  %v360 = vpop.f32.mrf.mxu0
  %361 = vdwg.mxu0
  %vm362 = vcmp.gt.f32.partialorder %v357, 0.0
  %v363 = vmin.f32 %v357, 0.0
  %v364 = vmul.f32 %v363, 1.442695
  %v365 = vpow.pop %v364
  %v366 = vsub.f32 %v365, 1.0
  %v367 = vsel %vm362, %v357, %v366
  %368 = vst.msk [vmem:[#allocation2 + $0x2] sm:$0x1] %vm84, %v367
  %v369 = vld [vmem:[#allocation2] sm:$0xff]
  %v370 = vld [vmem:[%s11] sm:$0x1]
  %v371 = vld [vmem:[%s12] sm:$0x1]
  %v372 = vld [vmem:[%s13] sm:$0xf]
  %v373 = vld [vmem:[%s13 + $0x4] sm:$0xf]
  %v374 = vld [vmem:[%s13 + $0x8] sm:$0xf]
  %v375 = vld [vmem:[%s13 + $0xc] sm:$0xf]
  %v376 = vld [vmem:[%s14] sm:$0x1]
  %v377 = vld [vmem:[%s15] sm:$0xf]
  %v378 = vld [vmem:[%s15 + $0x4] sm:$0xf]
  %v379 = vld [vmem:[%s15 + $0x8] sm:$0xf]
  %v380 = vld [vmem:[%s15 + $0xc] sm:$0xf]
  %v381 = vld [vmem:[%s16] sm:$0x1]
  %v382 = vsel %vm81, %v369, 0.0
  %383 = vadd.xlane.f32.xlu0 %v382
  %v384 = vpop.xlane.xlu0 %383
  %v385 = vrcp.pop 32.0
  %v386 = vmul.f32 %v384, %v385
  %v387 = vsub.f32 %v369, %v386
  %v388 = vmul.f32 %v387, %v387
  %v389 = vsel %vm81, %v388, 0.0
  %390 = vadd.xlane.f32.xlu0 %v389
  %v391 = vpop.xlane.xlu0 %390
  %v392 = vmul.f32 %v391, %v385
  %v393 = vadd.f32 %v392, 1e-05
  %v394 = vrsqrt.pop %v393
  %v395 = vmul.f32 %v387, %v394
  %v397 = vlaneseq
  %v398 = vshrl.u32 %v397, 7
  %v399 = vsub.s32 0, %v398
  %v400 = vrot.slane %v370, %v399
  %v402 = vmul.f32 %v395, %v400
  %v404 = vlaneseq
  %v405 = vshrl.u32 %v404, 7
  %v406 = vsub.s32 0, %v405
  %v407 = vrot.slane %v371, %v406
  %v409 = vadd.f32 %v402, %v407
  %v410 = vpack.c.bf16 %v409, %v409
  %v412 = vlaneseq
  %v413 = vshrl.u32 %v412, 7
  %v414 = vsub.s32 0, %v413
  %v415 = vrot.slane %v376, %v414
  %v421 = vunpack.c.l.b16 %v372
  %v422 = vunpack.c.l.b16 %v373
  %v423 = vunpack.c.l.b16 %v374
  %v424 = vunpack.c.l.b16 %v375
  %v425 = vpack.c.b16 %v422, %v421
  %v426 = vpack.c.b16 %v424, %v423
  %v430 = vsel %vm81, %v410, 0
  %432 = vmatprep.subr.bf16.mxu0 0
  %433 = vmatpush1.bf16.msra.mxu0 0
  %434 = vmatprep.subr.bf16.mxu0 0
  %435 = vmatpush1.bf16.msra.mxu0 0
  %436 = vmatprep.subr.bf16.mxu0 0
  %437 = vmatpush1.bf16.msra.mxu0 0
  %438 = vmatprep.subr.bf16.mxu0 0
  %439 = vmatpush1.bf16.msra.mxu0 0
  %440 = vmatprep.subr.bf16.mxu0 0
  %441 = vmatpush1.bf16.msra.mxu0 0
  %442 = vmatprep.subr.bf16.mxu0 0
  %443 = vmatpush1.bf16.msra.mxu0 0
  %444 = vmatprep.subr.bf16.mxu0 0
  %445 = vmatpush1.bf16.msra.mxu0 %v426
  %446 = vmatprep.subr.bf16.mxu0 0
  %447 = vmatpush1.bf16.msra.mxu0 %v425
  %448 = vmatprep.subr.bf16.mxu0 0
  %449 = vmatpush2.bf16.msra.mxu0 0
  %450 = vmatprep.subr.bf16.mxu0 0
  %451 = vmatpush2.bf16.msra.mxu0 0
  %452 = vmatprep.subr.bf16.mxu0 0
  %453 = vmatpush2.bf16.msra.mxu0 0
  %454 = vmatprep.subr.bf16.mxu0 0
  %455 = vmatpush2.bf16.msra.mxu0 0
  %456 = vmatprep.subr.bf16.mxu0 0
  %457 = vmatpush2.bf16.msra.mxu0 0
  %458 = vmatprep.subr.bf16.mxu0 0
  %459 = vmatpush2.bf16.msra.mxu0 0
  %460 = vmatprep.subr.bf16.mxu0 0
  %461 = vmatpush2.bf16.msra.mxu0 0
  %462 = vmatprep.subr.bf16.mxu0 0
  %463 = vmatpush2.bf16.msra.mxu0 0
  %464 = vmatprep.mubr.bf16.mxu0 0
  %465 = vmatmul.mubr.bf16.gmra.mxu0 %v430
  %v466 = vpop.f32.mrf.mxu0
  %v467 = vadd.f32 %v415, %v466
  %v468 = vpop.f32.mrf.mxu0
  %v469 = vpop.f32.mrf.mxu0
  %v470 = vpop.f32.mrf.mxu0
  %471 = vdwg.mxu0
  %v472 = vpack.c.bf16 %v467, %v467
  %474 = vrot.lane.b32.xlu0 %v472, 96
  %v475 = vpop.permute.xlu0 %474
  %v477 = vsel %vm81, %v472, 0
  %v480 = vsel %vm81, %v475, 0
  %482 = vmatprep.subr.bf16.mxu0 0
  %483 = vmatpush1.bf16.xpose.msra.mxu0 0
  %484 = vmatprep.subr.bf16.mxu0 0
  %485 = vmatpush1.bf16.xpose.msra.mxu0 0
  %486 = vmatprep.subr.bf16.mxu0 0
  %487 = vmatpush1.bf16.xpose.msra.mxu0 0
  %488 = vmatprep.subr.bf16.mxu0 0
  %489 = vmatpush1.bf16.xpose.msra.mxu0 0
  %490 = vmatprep.subr.bf16.mxu0 0
  %491 = vmatpush1.bf16.xpose.msra.mxu0 0
  %492 = vmatprep.subr.bf16.mxu0 0
  %493 = vmatpush1.bf16.xpose.msra.mxu0 0
  %494 = vmatprep.subr.bf16.mxu0 0
  %495 = vmatpush1.bf16.xpose.msra.mxu0 0
  %496 = vmatprep.subr.bf16.mxu0 0
  %497 = vmatpush1.bf16.xpose.msra.mxu0 %v480
  %498 = vmatprep.subr.bf16.mxu0 0
  %499 = vmatpush2.bf16.xpose.msra.mxu0 0
  %500 = vmatprep.subr.bf16.mxu0 0
  %501 = vmatpush2.bf16.xpose.msra.mxu0 0
  %502 = vmatprep.subr.bf16.mxu0 0
  %503 = vmatpush2.bf16.xpose.msra.mxu0 0
  %504 = vmatprep.subr.bf16.mxu0 0
  %505 = vmatpush2.bf16.xpose.msra.mxu0 0
  %506 = vmatprep.subr.bf16.mxu0 0
  %507 = vmatpush2.bf16.xpose.msra.mxu0 0
  %508 = vmatprep.subr.bf16.mxu0 0
  %509 = vmatpush2.bf16.xpose.msra.mxu0 0
  %510 = vmatprep.subr.bf16.mxu0 0
  %511 = vmatpush2.bf16.xpose.msra.mxu0 0
  %512 = vmatprep.subr.bf16.mxu0 0
  %513 = vmatpush2.bf16.xpose.msra.mxu0 0
  %514 = vmatprep.mubr.bf16.mxu0 0
  %515 = vmatmul.mubr.bf16.gmra.mxu0 %v477
  %v516 = vpop.f32.mrf.mxu0
  %v517 = vadd.f32 0.0, %v516
  %v518 = vpop.f32.mrf.mxu0
  %v519 = vpop.f32.mrf.mxu0
  %v520 = vpop.f32.mrf.mxu0
  %521 = vdwg.mxu0
  %v522 = vlaneseq
  %v523 = vand.u32 %v522, 127
  %vm524 = vcmp.lt.s32.totalorder %v523, 3
  %v525 = vsel %vm524, %v517, -1e+30
  %vm526 = vcmask 64512
  %v527 = vsel %vm526, %v525, -inf
  %528 = vmax.xlane.f32.xlu0 %v527
  %v529 = vpop.xlane.xlu0 %528
  %v530 = vsub.f32 %v525, %v529
  %v531 = vmul.f32 %v530, 1.442695
  %v532 = vpow.pop %v531
  %v533 = vsel %vm524, %v532, 0.0
  %v534 = vsel %vm526, %v533, 0.0
  %535 = vadd.xlane.f32.xlu0 %v534
  %v536 = vpop.xlane.xlu0 %535
  %v537 = vrcp.pop %v536
  %v538 = vmul.f32 %v533, %v537
  %v539 = vpack.c.bf16 %v538, %v538
  %540 = vrot.lane.b32.xlu0 %v472, 64
  %v541 = vpop.permute.xlu0 %540
  %v543 = vsel %vm526, %v539, 0
  %v546 = vsel %vm243, %v541, 0
  %548 = vmatprep.subr.bf16.mxu0 0
  %549 = vmatpush1.bf16.msra.mxu0 0
  %550 = vmatprep.subr.bf16.mxu0 0
  %551 = vmatpush1.bf16.msra.mxu0 0
  %552 = vmatprep.subr.bf16.mxu0 0
  %553 = vmatpush1.bf16.msra.mxu0 0
  %554 = vmatprep.subr.bf16.mxu0 0
  %555 = vmatpush1.bf16.msra.mxu0 0
  %556 = vmatprep.subr.bf16.mxu0 0
  %557 = vmatpush1.bf16.msra.mxu0 0
  %558 = vmatprep.subr.bf16.mxu0 0
  %559 = vmatpush1.bf16.msra.mxu0 0
  %560 = vmatprep.subr.bf16.mxu0 0
  %561 = vmatpush1.bf16.msra.mxu0 0
  %562 = vmatprep.subr.bf16.mxu0 0
  %563 = vmatpush1.bf16.msra.mxu0 %v546
  %564 = vmatprep.subr.bf16.mxu0 0
  %565 = vmatpush2.bf16.msra.mxu0 0
  %566 = vmatprep.subr.bf16.mxu0 0
  %567 = vmatpush2.bf16.msra.mxu0 0
  %568 = vmatprep.subr.bf16.mxu0 0
  %569 = vmatpush2.bf16.msra.mxu0 0
  %570 = vmatprep.subr.bf16.mxu0 0
  %571 = vmatpush2.bf16.msra.mxu0 0
  %572 = vmatprep.subr.bf16.mxu0 0
  %573 = vmatpush2.bf16.msra.mxu0 0
  %574 = vmatprep.subr.bf16.mxu0 0
  %575 = vmatpush2.bf16.msra.mxu0 0
  %576 = vmatprep.subr.bf16.mxu0 0
  %577 = vmatpush2.bf16.msra.mxu0 0
  %578 = vmatprep.subr.bf16.mxu0 0
  %579 = vmatpush2.bf16.msra.mxu0 0
  %580 = vmatprep.mubr.bf16.mxu0 0
  %581 = vmatmul.mubr.bf16.gmra.mxu0 %v543
  %v582 = vpop.f32.mrf.mxu0
  %v583 = vadd.f32 0.0, %v582
  %v584 = vpop.f32.mrf.mxu0
  %v585 = vpop.f32.mrf.mxu0
  %v586 = vpop.f32.mrf.mxu0
  %587 = vdwg.mxu0
  %v588 = vpack.c.bf16 %v583, %v583
  %v593 = vunpack.c.l.b16 %v377
  %v594 = vunpack.c.l.b16 %v378
  %v595 = vunpack.c.l.b16 %v379
  %v596 = vunpack.c.l.b16 %v380
  %v597 = vpack.c.b16 %v594, %v593
  %v598 = vpack.c.b16 %v596, %v595
  %v602 = vsel %vm81, %v588, 0
  %604 = vmatprep.subr.bf16.mxu0 0
  %605 = vmatpush1.bf16.msra.mxu0 0
  %606 = vmatprep.subr.bf16.mxu0 0
  %607 = vmatpush1.bf16.msra.mxu0 0
  %608 = vmatprep.subr.bf16.mxu0 0
  %609 = vmatpush1.bf16.msra.mxu0 0
  %610 = vmatprep.subr.bf16.mxu0 0
  %611 = vmatpush1.bf16.msra.mxu0 0
  %612 = vmatprep.subr.bf16.mxu0 0
  %613 = vmatpush1.bf16.msra.mxu0 0
  %614 = vmatprep.subr.bf16.mxu0 0
  %615 = vmatpush1.bf16.msra.mxu0 0
  %616 = vmatprep.subr.bf16.mxu0 0
  %617 = vmatpush1.bf16.msra.mxu0 %v598
  %618 = vmatprep.subr.bf16.mxu0 0
  %619 = vmatpush1.bf16.msra.mxu0 %v597
  %620 = vmatprep.subr.bf16.mxu0 0
  %621 = vmatpush2.bf16.msra.mxu0 0
  %622 = vmatprep.subr.bf16.mxu0 0
  %623 = vmatpush2.bf16.msra.mxu0 0
  %624 = vmatprep.subr.bf16.mxu0 0
  %625 = vmatpush2.bf16.msra.mxu0 0
  %626 = vmatprep.subr.bf16.mxu0 0
  %627 = vmatpush2.bf16.msra.mxu0 0
  %628 = vmatprep.subr.bf16.mxu0 0
  %629 = vmatpush2.bf16.msra.mxu0 0
  %630 = vmatprep.subr.bf16.mxu0 0
  %631 = vmatpush2.bf16.msra.mxu0 0
  %632 = vmatprep.subr.bf16.mxu0 0
  %633 = vmatpush2.bf16.msra.mxu0 0
  %634 = vmatprep.subr.bf16.mxu0 0
  %635 = vmatpush2.bf16.msra.mxu0 0
  %636 = vmatprep.mubr.bf16.mxu0 0
  %637 = vmatmul.mubr.bf16.gmra.mxu0 %v602
  %v638 = vpop.f32.mrf.mxu0
  %v639 = vadd.f32 0.0, %v638
  %v640 = vpop.f32.mrf.mxu0
  %v641 = vpop.f32.mrf.mxu0
  %v642 = vpop.f32.mrf.mxu0
  %643 = vdwg.mxu0
  %v644 = vadd.f32 %v369, %v639
  %v646 = vlaneseq
  %v647 = vshrl.u32 %v646, 7
  %v648 = vsub.s32 0, %v647
  %v649 = vrot.slane %v381, %v648
  %v651 = vadd.f32 %v644, %v649
  %v652 = vld [vmem:[%s17] sm:$0x1]
  %v653 = vld [vmem:[%s18] sm:$0x1]
  %v654 = vld [vmem:[%s19] sm:$0xf]
  %v655 = vld [vmem:[%s19 + $0x4] sm:$0xf]
  %v656 = vld [vmem:[%s19 + $0x8] sm:$0xf]
  %v657 = vld [vmem:[%s19 + $0xc] sm:$0xf]
  %v658 = vld [vmem:[%s20] sm:$0x1]
  %v659 = vld [vmem:[%s21] sm:$0xf]
  %v660 = vld [vmem:[%s21 + $0x4] sm:$0xf]
  %v661 = vld [vmem:[%s21 + $0x8] sm:$0xf]
  %v662 = vld [vmem:[%s21 + $0xc] sm:$0xf]
  %v663 = vld [vmem:[%s22] sm:$0x1]
  %v664 = vsel %vm81, %v651, 0.0
  %665 = vadd.xlane.f32.xlu0 %v664
  %v666 = vpop.xlane.xlu0 %665
  %v667 = vmul.f32 %v666, %v385
  %v668 = vsub.f32 %v651, %v667
  %v669 = vmul.f32 %v668, %v668
  %v670 = vsel %vm81, %v669, 0.0
  %671 = vadd.xlane.f32.xlu0 %v670
  %v672 = vpop.xlane.xlu0 %671
  %v673 = vmul.f32 %v672, %v385
  %v674 = vadd.f32 %v673, 1e-05
  %v675 = vrsqrt.pop %v674
  %v676 = vmul.f32 %v668, %v675
  %v678 = vlaneseq
  %v679 = vshrl.u32 %v678, 7
  %v680 = vsub.s32 0, %v679
  %v681 = vrot.slane %v652, %v680
  %v683 = vmul.f32 %v676, %v681
  %v685 = vlaneseq
  %v686 = vshrl.u32 %v685, 7
  %v687 = vsub.s32 0, %v686
  %v688 = vrot.slane %v653, %v687
  %v690 = vadd.f32 %v683, %v688
  %v691 = vpack.c.bf16 %v690, %v690
  %v693 = vlaneseq
  %v694 = vshrl.u32 %v693, 7
  %v695 = vsub.s32 0, %v694
  %v696 = vrot.slane %v658, %v695
  %v702 = vunpack.c.l.b16 %v654
  %v703 = vunpack.c.l.b16 %v655
  %v704 = vunpack.c.l.b16 %v656
  %v705 = vunpack.c.l.b16 %v657
  %v706 = vpack.c.b16 %v703, %v702
  %v707 = vpack.c.b16 %v705, %v704
  %v711 = vsel %vm81, %v691, 0
  %713 = vmatprep.subr.bf16.mxu0 0
  %714 = vmatpush1.bf16.msra.mxu0 0
  %715 = vmatprep.subr.bf16.mxu0 0
  %716 = vmatpush1.bf16.msra.mxu0 0
  %717 = vmatprep.subr.bf16.mxu0 0
  %718 = vmatpush1.bf16.msra.mxu0 0
  %719 = vmatprep.subr.bf16.mxu0 0
  %720 = vmatpush1.bf16.msra.mxu0 0
  %721 = vmatprep.subr.bf16.mxu0 0
  %722 = vmatpush1.bf16.msra.mxu0 0
  %723 = vmatprep.subr.bf16.mxu0 0
  %724 = vmatpush1.bf16.msra.mxu0 0
  %725 = vmatprep.subr.bf16.mxu0 0
  %726 = vmatpush1.bf16.msra.mxu0 %v707
  %727 = vmatprep.subr.bf16.mxu0 0
  %728 = vmatpush1.bf16.msra.mxu0 %v706
  %729 = vmatprep.subr.bf16.mxu0 0
  %730 = vmatpush2.bf16.msra.mxu0 0
  %731 = vmatprep.subr.bf16.mxu0 0
  %732 = vmatpush2.bf16.msra.mxu0 0
  %733 = vmatprep.subr.bf16.mxu0 0
  %734 = vmatpush2.bf16.msra.mxu0 0
  %735 = vmatprep.subr.bf16.mxu0 0
  %736 = vmatpush2.bf16.msra.mxu0 0
  %737 = vmatprep.subr.bf16.mxu0 0
  %738 = vmatpush2.bf16.msra.mxu0 0
  %739 = vmatprep.subr.bf16.mxu0 0
  %740 = vmatpush2.bf16.msra.mxu0 0
  %741 = vmatprep.subr.bf16.mxu0 0
  %742 = vmatpush2.bf16.msra.mxu0 0
  %743 = vmatprep.subr.bf16.mxu0 0
  %744 = vmatpush2.bf16.msra.mxu0 0
  %745 = vmatprep.mubr.bf16.mxu0 0
  %746 = vmatmul.mubr.bf16.gmra.mxu0 %v711
  %v747 = vpop.f32.mrf.mxu0
  %v748 = vadd.f32 %v696, %v747
  %v749 = vpop.f32.mrf.mxu0
  %v750 = vpop.f32.mrf.mxu0
  %v751 = vpop.f32.mrf.mxu0
  %752 = vdwg.mxu0
  %v753 = vpack.c.bf16 %v748, %v748
  %755 = vrot.lane.b32.xlu0 %v753, 96
  %v756 = vpop.permute.xlu0 %755
  %v758 = vsel %vm81, %v753, 0
  %v761 = vsel %vm81, %v756, 0
  %763 = vmatprep.subr.bf16.mxu0 0
  %764 = vmatpush1.bf16.xpose.msra.mxu0 0
  %765 = vmatprep.subr.bf16.mxu0 0
  %766 = vmatpush1.bf16.xpose.msra.mxu0 0
  %767 = vmatprep.subr.bf16.mxu0 0
  %768 = vmatpush1.bf16.xpose.msra.mxu0 0
  %769 = vmatprep.subr.bf16.mxu0 0
  %770 = vmatpush1.bf16.xpose.msra.mxu0 0
  %771 = vmatprep.subr.bf16.mxu0 0
  %772 = vmatpush1.bf16.xpose.msra.mxu0 0
  %773 = vmatprep.subr.bf16.mxu0 0
  %774 = vmatpush1.bf16.xpose.msra.mxu0 0
  %775 = vmatprep.subr.bf16.mxu0 0
  %776 = vmatpush1.bf16.xpose.msra.mxu0 0
  %777 = vmatprep.subr.bf16.mxu0 0
  %778 = vmatpush1.bf16.xpose.msra.mxu0 %v761
  %779 = vmatprep.subr.bf16.mxu0 0
  %780 = vmatpush2.bf16.xpose.msra.mxu0 0
  %781 = vmatprep.subr.bf16.mxu0 0
  %782 = vmatpush2.bf16.xpose.msra.mxu0 0
  %783 = vmatprep.subr.bf16.mxu0 0
  %784 = vmatpush2.bf16.xpose.msra.mxu0 0
  %785 = vmatprep.subr.bf16.mxu0 0
  %786 = vmatpush2.bf16.xpose.msra.mxu0 0
  %787 = vmatprep.subr.bf16.mxu0 0
  %788 = vmatpush2.bf16.xpose.msra.mxu0 0
  %789 = vmatprep.subr.bf16.mxu0 0
  %790 = vmatpush2.bf16.xpose.msra.mxu0 0
  %791 = vmatprep.subr.bf16.mxu0 0
  %792 = vmatpush2.bf16.xpose.msra.mxu0 0
  %793 = vmatprep.subr.bf16.mxu0 0
  %794 = vmatpush2.bf16.xpose.msra.mxu0 0
  %795 = vmatprep.mubr.bf16.mxu0 0
  %796 = vmatmul.mubr.bf16.gmra.mxu0 %v758
  %v797 = vpop.f32.mrf.mxu0
  %v798 = vadd.f32 0.0, %v797
  %v799 = vpop.f32.mrf.mxu0
  %v800 = vpop.f32.mrf.mxu0
  %v801 = vpop.f32.mrf.mxu0
  %802 = vdwg.mxu0
  %v803 = vsel %vm524, %v798, -1e+30
  %v804 = vsel %vm526, %v803, -inf
  %805 = vmax.xlane.f32.xlu0 %v804
  %v806 = vpop.xlane.xlu0 %805
  %v807 = vsub.f32 %v803, %v806
  %v808 = vmul.f32 %v807, 1.442695
  %v809 = vpow.pop %v808
  %v810 = vsel %vm524, %v809, 0.0
  %v811 = vsel %vm526, %v810, 0.0
  %812 = vadd.xlane.f32.xlu0 %v811
  %v813 = vpop.xlane.xlu0 %812
  %v814 = vrcp.pop %v813
  %v815 = vmul.f32 %v810, %v814
  %v816 = vpack.c.bf16 %v815, %v815
  %817 = vrot.lane.b32.xlu0 %v753, 64
  %v818 = vpop.permute.xlu0 %817
  %v820 = vsel %vm526, %v816, 0
  %v823 = vsel %vm243, %v818, 0
  %825 = vmatprep.subr.bf16.mxu0 0
  %826 = vmatpush1.bf16.msra.mxu0 0
  %827 = vmatprep.subr.bf16.mxu0 0
  %828 = vmatpush1.bf16.msra.mxu0 0
  %829 = vmatprep.subr.bf16.mxu0 0
  %830 = vmatpush1.bf16.msra.mxu0 0
  %831 = vmatprep.subr.bf16.mxu0 0
  %832 = vmatpush1.bf16.msra.mxu0 0
  %833 = vmatprep.subr.bf16.mxu0 0
  %834 = vmatpush1.bf16.msra.mxu0 0
  %835 = vmatprep.subr.bf16.mxu0 0
  %836 = vmatpush1.bf16.msra.mxu0 0
  %837 = vmatprep.subr.bf16.mxu0 0
  %838 = vmatpush1.bf16.msra.mxu0 0
  %839 = vmatprep.subr.bf16.mxu0 0
  %840 = vmatpush1.bf16.msra.mxu0 %v823
  %841 = vmatprep.subr.bf16.mxu0 0
  %842 = vmatpush2.bf16.msra.mxu0 0
  %843 = vmatprep.subr.bf16.mxu0 0
  %844 = vmatpush2.bf16.msra.mxu0 0
  %845 = vmatprep.subr.bf16.mxu0 0
  %846 = vmatpush2.bf16.msra.mxu0 0
  %847 = vmatprep.subr.bf16.mxu0 0
  %848 = vmatpush2.bf16.msra.mxu0 0
  %849 = vmatprep.subr.bf16.mxu0 0
  %850 = vmatpush2.bf16.msra.mxu0 0
  %851 = vmatprep.subr.bf16.mxu0 0
  %852 = vmatpush2.bf16.msra.mxu0 0
  %853 = vmatprep.subr.bf16.mxu0 0
  %854 = vmatpush2.bf16.msra.mxu0 0
  %855 = vmatprep.subr.bf16.mxu0 0
  %856 = vmatpush2.bf16.msra.mxu0 0
  %857 = vmatprep.mubr.bf16.mxu0 0
  %858 = vmatmul.mubr.bf16.gmra.mxu0 %v820
  %v859 = vpop.f32.mrf.mxu0
  %v860 = vadd.f32 0.0, %v859
  %v861 = vpop.f32.mrf.mxu0
  %v862 = vpop.f32.mrf.mxu0
  %v863 = vpop.f32.mrf.mxu0
  %864 = vdwg.mxu0
  %v865 = vpack.c.bf16 %v860, %v860
  %v870 = vunpack.c.l.b16 %v659
  %v871 = vunpack.c.l.b16 %v660
  %v872 = vunpack.c.l.b16 %v661
  %v873 = vunpack.c.l.b16 %v662
  %v874 = vpack.c.b16 %v871, %v870
  %v875 = vpack.c.b16 %v873, %v872
  %v879 = vsel %vm81, %v865, 0
  %881 = vmatprep.subr.bf16.mxu0 0
  %882 = vmatpush1.bf16.msra.mxu0 0
  %883 = vmatprep.subr.bf16.mxu0 0
  %884 = vmatpush1.bf16.msra.mxu0 0
  %885 = vmatprep.subr.bf16.mxu0 0
  %886 = vmatpush1.bf16.msra.mxu0 0
  %887 = vmatprep.subr.bf16.mxu0 0
  %888 = vmatpush1.bf16.msra.mxu0 0
  %889 = vmatprep.subr.bf16.mxu0 0
  %890 = vmatpush1.bf16.msra.mxu0 0
  %891 = vmatprep.subr.bf16.mxu0 0
  %892 = vmatpush1.bf16.msra.mxu0 0
  %893 = vmatprep.subr.bf16.mxu0 0
  %894 = vmatpush1.bf16.msra.mxu0 %v875
  %895 = vmatprep.subr.bf16.mxu0 0
  %896 = vmatpush1.bf16.msra.mxu0 %v874
  %897 = vmatprep.subr.bf16.mxu0 0
  %898 = vmatpush2.bf16.msra.mxu0 0
  %899 = vmatprep.subr.bf16.mxu0 0
  %900 = vmatpush2.bf16.msra.mxu0 0
  %901 = vmatprep.subr.bf16.mxu0 0
  %902 = vmatpush2.bf16.msra.mxu0 0
  %903 = vmatprep.subr.bf16.mxu0 0
  %904 = vmatpush2.bf16.msra.mxu0 0
  %905 = vmatprep.subr.bf16.mxu0 0
  %906 = vmatpush2.bf16.msra.mxu0 0
  %907 = vmatprep.subr.bf16.mxu0 0
  %908 = vmatpush2.bf16.msra.mxu0 0
  %909 = vmatprep.subr.bf16.mxu0 0
  %910 = vmatpush2.bf16.msra.mxu0 0
  %911 = vmatprep.subr.bf16.mxu0 0
  %912 = vmatpush2.bf16.msra.mxu0 0
  %913 = vmatprep.mubr.bf16.mxu0 0
  %914 = vmatmul.mubr.bf16.gmra.mxu0 %v879
  %v915 = vpop.f32.mrf.mxu0
  %v916 = vadd.f32 0.0, %v915
  %v917 = vpop.f32.mrf.mxu0
  %v918 = vpop.f32.mrf.mxu0
  %v919 = vpop.f32.mrf.mxu0
  %920 = vdwg.mxu0
  %v921 = vadd.f32 %v651, %v916
  %v923 = vlaneseq
  %v924 = vshrl.u32 %v923, 7
  %v925 = vsub.s32 0, %v924
  %v926 = vrot.slane %v663, %v925
  %v928 = vadd.f32 %v921, %v926
  %v929 = vld [vmem:[%s23] sm:$0x1]
  %v930 = vld [vmem:[%s24] sm:$0x1]
  %v931 = vsel %vm81, %v928, 0.0
  %932 = vadd.xlane.f32.xlu0 %v931
  %v933 = vpop.xlane.xlu0 %932
  %v934 = vmul.f32 %v933, %v385
  %v935 = vsub.f32 %v928, %v934
  %v936 = vmul.f32 %v935, %v935
  %v937 = vsel %vm81, %v936, 0.0
  %938 = vadd.xlane.f32.xlu0 %v937
  %v939 = vpop.xlane.xlu0 %938
  %v940 = vmul.f32 %v939, %v385
  %v941 = vadd.f32 %v940, 1e-05
  %v942 = vrsqrt.pop %v941
  %v943 = vmul.f32 %v935, %v942
  %v945 = vlaneseq
  %v946 = vshrl.u32 %v945, 7
  %v947 = vsub.s32 0, %v946
  %v948 = vrot.slane %v929, %v947
  %v950 = vmul.f32 %v943, %v948
  %v952 = vlaneseq
  %v953 = vshrl.u32 %v952, 7
  %v954 = vsub.s32 0, %v953
  %v955 = vrot.slane %v930, %v954
  %v957 = vadd.f32 %v950, %v955
  %958 = vst.msk [vmem:[%s25] sm:$0xff] %vm81, %v957
  // Predicated region
  $region102: #{cmta_binary_forward.20} parent=0 // pred_check
    _
  $region103: #{cmta_binary_forward.20} parent=0 // pred_check_branch
    %960 = sbr.rel (0) target = $region105
  $region104: #{cmta_binary_forward.20} parent=0 // pred_region
    _
  $region105: #{cmta_binary_forward.20} parent=0 // pred_fallthru
    _
  // Predicated region
  $region106: #{cmta_binary_forward.20} parent=0 // pred_check
    _
  $region107: #{cmta_binary_forward.20} parent=0 // pred_check_branch
    %962 = sbr.rel (0) target = $region109
  $region108: #{cmta_binary_forward.20} parent=0 // pred_region
    _
  $region109: #{cmta_binary_forward.20} parent=0 // pred_fallthru
    _

// kernel: cmta_binary_forward.21
$region0: #{cmta_binary_forward.21}
  #allocation0 [shape = 'u32[]', space=smem, size = 0x4, offset = 0x4, fixed_abs, tag = 'smem constant byte address 0x4 - core index']
  #allocation1 [shape = 'u32[144,128]{1,0:T(1,128)}', space=vmem, size = 0x12000, scoped, tag = 'internal scratch']
  %s0 = inlined_call_operand.vmem [shape: f32[16,32], index: 0, kind: input, shape index: {}]
  %s1 = inlined_call_operand.vmem [shape: f32[8,32], index: 1, kind: input, shape index: {}]
  %s2 = inlined_call_operand.vmem [shape: bf16[32,32], index: 2, kind: input, shape index: {}]
  %s3 = inlined_call_operand.vmem [shape: f32[1,32], index: 3, kind: input, shape index: {}]
  %s4 = inlined_call_operand.vmem [shape: bf16[32,64], index: 4, kind: input, shape index: {}]
  %s5 = inlined_call_operand.vmem [shape: f32[1,64], index: 5, kind: input, shape index: {}]
  %s6 = inlined_call_operand.vmem [shape: bf16[32,32], index: 6, kind: input, shape index: {}]
  %s7 = inlined_call_operand.vmem [shape: f32[1,32], index: 7, kind: input, shape index: {}]
  %s8 = inlined_call_operand.vmem [shape: f32[16,32], index: 8, kind: output, shape index: {}]
  %s9 = sld [smem:[#allocation0]]
  $region42: #{cmta_binary_forward.21} parent=0
    _
  %s11 = ssub.s32 1, %s9
  %s12 = scalar_select 0, %s11, %s9
  // Predicated region
  $region2: #{cmta_binary_forward.21} parent=0 // pred_check
    _
  $region3: #{cmta_binary_forward.21} parent=0 // pred_check_branch
    %14 = sbr.rel (0) target = $region5
  $region4: #{cmta_binary_forward.21} parent=0 // pred_region
    _
  $region5: #{cmta_binary_forward.21} parent=0 // pred_fallthru
    _
  // Predicated region
  $region6: #{cmta_binary_forward.21} parent=0 // pred_check
    _
  $region7: #{cmta_binary_forward.21} parent=0 // pred_check_branch
    %16 = sbr.rel (0) target = $region9
  $region8: #{cmta_binary_forward.21} parent=0 // pred_region
    _
  $region9: #{cmta_binary_forward.21} parent=0 // pred_fallthru
    _
  // Predicated region
  $region10: #{cmta_binary_forward.21} parent=0 // pred_check
    _
  $region11: #{cmta_binary_forward.21} parent=0 // pred_check_branch
    %18 = sbr.rel (0) target = $region13
  $region12: #{cmta_binary_forward.21} parent=0 // pred_region
    _
  $region13: #{cmta_binary_forward.21} parent=0 // pred_fallthru
    _
  // Predicated region
  $region14: #{cmta_binary_forward.21} parent=0 // pred_check
    _
  $region15: #{cmta_binary_forward.21} parent=0 // pred_check_branch
    %20 = sbr.rel (0) target = $region17
  $region16: #{cmta_binary_forward.21} parent=0 // pred_region
    _
  $region17: #{cmta_binary_forward.21} parent=0 // pred_fallthru
    _
  // Predicated region
  $region18: #{cmta_binary_forward.21} parent=0 // pred_check
    _
  $region19: #{cmta_binary_forward.21} parent=0 // pred_check_branch
    %22 = sbr.rel (0) target = $region21
  $region20: #{cmta_binary_forward.21} parent=0 // pred_region
    _
  $region21: #{cmta_binary_forward.21} parent=0 // pred_fallthru
    _
  // Predicated region
  $region22: #{cmta_binary_forward.21} parent=0 // pred_check
    _
  $region23: #{cmta_binary_forward.21} parent=0 // pred_check_branch
    %24 = sbr.rel (0) target = $region25
  $region24: #{cmta_binary_forward.21} parent=0 // pred_region
    _
  $region25: #{cmta_binary_forward.21} parent=0 // pred_fallthru
    _
  // Predicated region
  $region26: #{cmta_binary_forward.21} parent=0 // pred_check
    _
  $region27: #{cmta_binary_forward.21} parent=0 // pred_check_branch
    %26 = sbr.rel (0) target = $region29
  $region28: #{cmta_binary_forward.21} parent=0 // pred_region
    _
  $region29: #{cmta_binary_forward.21} parent=0 // pred_fallthru
    _
  // Predicated region
  $region30: #{cmta_binary_forward.21} parent=0 // pred_check
    _
  $region31: #{cmta_binary_forward.21} parent=0 // pred_check_branch
    %28 = sbr.rel (0) target = $region33
  $region32: #{cmta_binary_forward.21} parent=0 // pred_region
    _
  $region33: #{cmta_binary_forward.21} parent=0 // pred_fallthru
    _
  %v30 = vld [vmem:[%s0] sm:$0xff]
  %v31 = vld [vmem:[%s0 + $0x8] sm:$0xff]
  %v32 = vpack.c.bf16 %v31, %v30
  %v33 = vld [vmem:[%s2] sm:$0xf]
  %v34 = vld [vmem:[%s2 + $0x4] sm:$0xf]
  %v35 = vld [vmem:[%s2 + $0x8] sm:$0xf]
  %v36 = vld [vmem:[%s2 + $0xc] sm:$0xf]
  %v37 = vld [vmem:[%s3] sm:$0x1]
  %v39 = vlaneseq
  %v40 = vshrl.u32 %v39, 7
  %v41 = vsub.s32 0, %v40
  %v42 = vrot.slane %v37, %v41
  %v48 = vunpack.c.l.b16 %v33
  %v49 = vunpack.c.l.b16 %v34
  %v50 = vunpack.c.l.b16 %v35
  %v51 = vunpack.c.l.b16 %v36
  %v52 = vpack.c.b16 %v49, %v48
  %v53 = vpack.c.b16 %v51, %v50
  %vm56 = vcmask 261120
  %v58 = vsel %vm56, %v32, 0
  %60 = vmatprep.subr.bf16.mxu0 0
  %61 = vmatpush1.bf16.msra.mxu0 0
  %62 = vmatprep.subr.bf16.mxu0 0
  %63 = vmatpush1.bf16.msra.mxu0 0
  %64 = vmatprep.subr.bf16.mxu0 0
  %65 = vmatpush1.bf16.msra.mxu0 0
  %66 = vmatprep.subr.bf16.mxu0 0
  %67 = vmatpush1.bf16.msra.mxu0 0
  %68 = vmatprep.subr.bf16.mxu0 0
  %69 = vmatpush1.bf16.msra.mxu0 0
  %70 = vmatprep.subr.bf16.mxu0 0
  %71 = vmatpush1.bf16.msra.mxu0 0
  %72 = vmatprep.subr.bf16.mxu0 0
  %73 = vmatpush1.bf16.msra.mxu0 %v53
  %74 = vmatprep.subr.bf16.mxu0 0
  %75 = vmatpush1.bf16.msra.mxu0 %v52
  %76 = vmatprep.subr.bf16.mxu0 0
  %77 = vmatpush2.bf16.msra.mxu0 0
  %78 = vmatprep.subr.bf16.mxu0 0
  %79 = vmatpush2.bf16.msra.mxu0 0
  %80 = vmatprep.subr.bf16.mxu0 0
  %81 = vmatpush2.bf16.msra.mxu0 0
  %82 = vmatprep.subr.bf16.mxu0 0
  %83 = vmatpush2.bf16.msra.mxu0 0
  %84 = vmatprep.subr.bf16.mxu0 0
  %85 = vmatpush2.bf16.msra.mxu0 0
  %86 = vmatprep.subr.bf16.mxu0 0
  %87 = vmatpush2.bf16.msra.mxu0 0
  %88 = vmatprep.subr.bf16.mxu0 0
  %89 = vmatpush2.bf16.msra.mxu0 0
  %90 = vmatprep.subr.bf16.mxu0 0
  %91 = vmatpush2.bf16.msra.mxu0 0
  %92 = vmatprep.mubr.bf16.mxu0 0
  %93 = vmatmul.mubr.bf16.gmra.mxu0 %v58
  %v94 = vpop.f32.mrf.mxu0
  %v95 = vadd.f32 %v42, %v94
  %v96 = vpop.f32.mrf.mxu0
  %v97 = vpop.f32.mrf.mxu0
  %v98 = vadd.f32 %v42, %v97
  %v99 = vpop.f32.mrf.mxu0
  %100 = vdwg.mxu0
  %v101 = vld [vmem:[%s1] sm:$0xff]
  %v102 = vpack.c.bf16 %v101, %v101
  %v103 = vld [vmem:[%s4] sm:$0xf]
  %v104 = vld [vmem:[%s4 + $0x4] sm:$0xf]
  %v105 = vld [vmem:[%s4 + $0x8] sm:$0xf]
  %v106 = vld [vmem:[%s4 + $0xc] sm:$0xf]
  %v107 = vld [vmem:[%s5] sm:$0x1]
  %v109 = vlaneseq
  %v110 = vshrl.u32 %v109, 7
  %v111 = vsub.s32 0, %v110
  %v112 = vrot.slane %v107, %v111
  %v118 = vunpack.c.l.b16 %v103
  %v119 = vunpack.c.l.b16 %v104
  %v120 = vunpack.c.l.b16 %v105
  %v121 = vunpack.c.l.b16 %v106
  %v122 = vpack.c.b16 %v119, %v118
  %v123 = vpack.c.b16 %v121, %v120
  %v127 = vsel %vm56, %v102, 0
  %129 = vmatprep.subr.bf16.mxu0 0
  %130 = vmatpush1.bf16.msra.mxu0 0
  %131 = vmatprep.subr.bf16.mxu0 0
  %132 = vmatpush1.bf16.msra.mxu0 0
  %133 = vmatprep.subr.bf16.mxu0 0
  %134 = vmatpush1.bf16.msra.mxu0 0
  %135 = vmatprep.subr.bf16.mxu0 0
  %136 = vmatpush1.bf16.msra.mxu0 0
  %137 = vmatprep.subr.bf16.mxu0 0
  %138 = vmatpush1.bf16.msra.mxu0 0
  %139 = vmatprep.subr.bf16.mxu0 0
  %140 = vmatpush1.bf16.msra.mxu0 0
  %141 = vmatprep.subr.bf16.mxu0 0
  %142 = vmatpush1.bf16.msra.mxu0 %v123
  %143 = vmatprep.subr.bf16.mxu0 0
  %144 = vmatpush1.bf16.msra.mxu0 %v122
  %145 = vmatprep.subr.bf16.mxu0 0
  %146 = vmatpush2.bf16.msra.mxu0 0
  %147 = vmatprep.subr.bf16.mxu0 0
  %148 = vmatpush2.bf16.msra.mxu0 0
  %149 = vmatprep.subr.bf16.mxu0 0
  %150 = vmatpush2.bf16.msra.mxu0 0
  %151 = vmatprep.subr.bf16.mxu0 0
  %152 = vmatpush2.bf16.msra.mxu0 0
  %153 = vmatprep.subr.bf16.mxu0 0
  %154 = vmatpush2.bf16.msra.mxu0 0
  %155 = vmatprep.subr.bf16.mxu0 0
  %156 = vmatpush2.bf16.msra.mxu0 0
  %157 = vmatprep.subr.bf16.mxu0 0
  %158 = vmatpush2.bf16.msra.mxu0 0
  %159 = vmatprep.subr.bf16.mxu0 0
  %160 = vmatpush2.bf16.msra.mxu0 0
  %161 = vmatprep.mubr.bf16.mxu0 0
  %162 = vmatmul.mubr.bf16.gmra.mxu0 %v127
  %v163 = vpop.f32.mrf.mxu0
  %v164 = vadd.f32 %v112, %v163
  %v165 = vpop.f32.mrf.mxu0
  %v166 = vpop.f32.mrf.mxu0
  %v167 = vpop.f32.mrf.mxu0
  %168 = vdwg.mxu0
  %v169 = vpack.c.bf16 %v98, %v95
  %v170 = vpack.c.bf16 %v164, %v164
  %v172 = vsel %vm56, %v169, 0
  %v175 = vsel %vm56, %v170, 0
  %177 = vmatprep.subr.bf16.mxu0 0
  %178 = vmatpush1.bf16.xpose.msra.mxu0 0
  %179 = vmatprep.subr.bf16.mxu0 0
  %180 = vmatpush1.bf16.xpose.msra.mxu0 0
  %181 = vmatprep.subr.bf16.mxu0 0
  %182 = vmatpush1.bf16.xpose.msra.mxu0 0
  %183 = vmatprep.subr.bf16.mxu0 0
  %184 = vmatpush1.bf16.xpose.msra.mxu0 0
  %185 = vmatprep.subr.bf16.mxu0 0
  %186 = vmatpush1.bf16.xpose.msra.mxu0 0
  %187 = vmatprep.subr.bf16.mxu0 0
  %188 = vmatpush1.bf16.xpose.msra.mxu0 0
  %189 = vmatprep.subr.bf16.mxu0 0
  %190 = vmatpush1.bf16.xpose.msra.mxu0 0
  %191 = vmatprep.subr.bf16.mxu0 0
  %192 = vmatpush1.bf16.xpose.msra.mxu0 %v175
  %193 = vmatprep.subr.bf16.mxu0 0
  %194 = vmatpush2.bf16.xpose.msra.mxu0 0
  %195 = vmatprep.subr.bf16.mxu0 0
  %196 = vmatpush2.bf16.xpose.msra.mxu0 0
  %197 = vmatprep.subr.bf16.mxu0 0
  %198 = vmatpush2.bf16.xpose.msra.mxu0 0
  %199 = vmatprep.subr.bf16.mxu0 0
  %200 = vmatpush2.bf16.xpose.msra.mxu0 0
  %201 = vmatprep.subr.bf16.mxu0 0
  %202 = vmatpush2.bf16.xpose.msra.mxu0 0
  %203 = vmatprep.subr.bf16.mxu0 0
  %204 = vmatpush2.bf16.xpose.msra.mxu0 0
  %205 = vmatprep.subr.bf16.mxu0 0
  %206 = vmatpush2.bf16.xpose.msra.mxu0 0
  %207 = vmatprep.subr.bf16.mxu0 0
  %208 = vmatpush2.bf16.xpose.msra.mxu0 0
  %209 = vmatprep.mubr.bf16.mxu0 0
  %210 = vmatmul.mubr.bf16.gmra.mxu0 %v172
  %v211 = vpop.f32.mrf.mxu0
  %v212 = vadd.f32 0.0, %v211
  %v213 = vpop.f32.mrf.mxu0
  %v214 = vpop.f32.mrf.mxu0
  %v215 = vadd.f32 0.0, %v214
  %v216 = vpop.f32.mrf.mxu0
  %217 = vdwg.mxu0
  %v218 = vlaneseq
  %v219 = vand.u32 %v218, 127
  %vm220 = vcmp.lt.s32.totalorder %v219, 2
  %v221 = vsel %vm220, %v212, -1e+30
  %v222 = vsel %vm220, %v215, -1e+30
  %vm223 = vcmask 64512
  %v224 = vsel %vm223, %v221, -inf
  %225 = vmax.xlane.f32.xlu0 %v224
  %v226 = vpop.xlane.xlu0 %225
  %v227 = vsel %vm223, %v222, -inf
  %228 = vmax.xlane.f32.xlu0 %v227
  %v229 = vpop.xlane.xlu0 %228
  %v230 = vsub.f32 %v221, %v226
  %v231 = vsub.f32 %v222, %v229
  %v232 = vmul.f32 %v230, 1.442695
  %v233 = vpow.pop %v232
  %v234 = vmul.f32 %v231, 1.442695
  %v235 = vpow.pop %v234
  %v236 = vsel %vm220, %v233, 0.0
  %v237 = vsel %vm220, %v235, 0.0
  %v238 = vsel %vm223, %v236, 0.0
  %239 = vadd.xlane.f32.xlu0 %v238
  %v240 = vpop.xlane.xlu0 %239
  %v241 = vsel %vm223, %v237, 0.0
  %242 = vadd.xlane.f32.xlu0 %v241
  %v243 = vpop.xlane.xlu0 %242
  %v244 = vrcp.pop %v240
  %v245 = vrcp.pop %v243
  %v246 = vmul.f32 %v236, %v244
  %v247 = vmul.f32 %v237, %v245
  %v248 = vpack.c.bf16 %v247, %v246
  %250 = vrot.lane.b32.xlu0 %v170, 96
  %v251 = vpop.permute.xlu0 %250
  %v253 = vsel %vm223, %v248, 0
  %vm255 = vcmask 1043456
  %v257 = vsel %vm255, %v251, 0
  %259 = vmatprep.subr.bf16.mxu0 0
  %260 = vmatpush1.bf16.msra.mxu0 0
  %261 = vmatprep.subr.bf16.mxu0 0
  %262 = vmatpush1.bf16.msra.mxu0 0
  %263 = vmatprep.subr.bf16.mxu0 0
  %264 = vmatpush1.bf16.msra.mxu0 0
  %265 = vmatprep.subr.bf16.mxu0 0
  %266 = vmatpush1.bf16.msra.mxu0 0
  %267 = vmatprep.subr.bf16.mxu0 0
  %268 = vmatpush1.bf16.msra.mxu0 0
  %269 = vmatprep.subr.bf16.mxu0 0
  %270 = vmatpush1.bf16.msra.mxu0 0
  %271 = vmatprep.subr.bf16.mxu0 0
  %272 = vmatpush1.bf16.msra.mxu0 0
  %273 = vmatprep.subr.bf16.mxu0 0
  %274 = vmatpush1.bf16.msra.mxu0 %v257
  %275 = vmatprep.subr.bf16.mxu0 0
  %276 = vmatpush2.bf16.msra.mxu0 0
  %277 = vmatprep.subr.bf16.mxu0 0
  %278 = vmatpush2.bf16.msra.mxu0 0
  %279 = vmatprep.subr.bf16.mxu0 0
  %280 = vmatpush2.bf16.msra.mxu0 0
  %281 = vmatprep.subr.bf16.mxu0 0
  %282 = vmatpush2.bf16.msra.mxu0 0
  %283 = vmatprep.subr.bf16.mxu0 0
  %284 = vmatpush2.bf16.msra.mxu0 0
  %285 = vmatprep.subr.bf16.mxu0 0
  %286 = vmatpush2.bf16.msra.mxu0 0
  %287 = vmatprep.subr.bf16.mxu0 0
  %288 = vmatpush2.bf16.msra.mxu0 0
  %289 = vmatprep.subr.bf16.mxu0 0
  %290 = vmatpush2.bf16.msra.mxu0 0
  %291 = vmatprep.mubr.bf16.mxu0 0
  %292 = vmatmul.mubr.bf16.gmra.mxu0 %v253
  %v293 = vpop.f32.mrf.mxu0
  %v294 = vadd.f32 0.0, %v293
  %v295 = vpop.f32.mrf.mxu0
  %v296 = vpop.f32.mrf.mxu0
  %v297 = vadd.f32 0.0, %v296
  %v298 = vpop.f32.mrf.mxu0
  %299 = vdwg.mxu0
  %v300 = vpack.c.bf16 %v297, %v294
  %v301 = vld [vmem:[%s6] sm:$0xf]
  %v302 = vld [vmem:[%s6 + $0x4] sm:$0xf]
  %v303 = vld [vmem:[%s6 + $0x8] sm:$0xf]
  %v304 = vld [vmem:[%s6 + $0xc] sm:$0xf]
  %v305 = vld [vmem:[%s7] sm:$0x1]
  %v307 = vlaneseq
  %v308 = vshrl.u32 %v307, 7
  %v309 = vsub.s32 0, %v308
  %v310 = vrot.slane %v305, %v309
  %v316 = vunpack.c.l.b16 %v301
  %v317 = vunpack.c.l.b16 %v302
  %v318 = vunpack.c.l.b16 %v303
  %v319 = vunpack.c.l.b16 %v304
  %v320 = vpack.c.b16 %v317, %v316
  %v321 = vpack.c.b16 %v319, %v318
  %v325 = vsel %vm56, %v300, 0
  %327 = vmatprep.subr.bf16.mxu0 0
  %328 = vmatpush1.bf16.msra.mxu0 0
  %329 = vmatprep.subr.bf16.mxu0 0
  %330 = vmatpush1.bf16.msra.mxu0 0
  %331 = vmatprep.subr.bf16.mxu0 0
  %332 = vmatpush1.bf16.msra.mxu0 0
  %333 = vmatprep.subr.bf16.mxu0 0
  %334 = vmatpush1.bf16.msra.mxu0 0
  %335 = vmatprep.subr.bf16.mxu0 0
  %336 = vmatpush1.bf16.msra.mxu0 0
  %337 = vmatprep.subr.bf16.mxu0 0
  %338 = vmatpush1.bf16.msra.mxu0 0
  %339 = vmatprep.subr.bf16.mxu0 0
  %340 = vmatpush1.bf16.msra.mxu0 %v321
  %341 = vmatprep.subr.bf16.mxu0 0
  %342 = vmatpush1.bf16.msra.mxu0 %v320
  %343 = vmatprep.subr.bf16.mxu0 0
  %344 = vmatpush2.bf16.msra.mxu0 0
  %345 = vmatprep.subr.bf16.mxu0 0
  %346 = vmatpush2.bf16.msra.mxu0 0
  %347 = vmatprep.subr.bf16.mxu0 0
  %348 = vmatpush2.bf16.msra.mxu0 0
  %349 = vmatprep.subr.bf16.mxu0 0
  %350 = vmatpush2.bf16.msra.mxu0 0
  %351 = vmatprep.subr.bf16.mxu0 0
  %352 = vmatpush2.bf16.msra.mxu0 0
  %353 = vmatprep.subr.bf16.mxu0 0
  %354 = vmatpush2.bf16.msra.mxu0 0
  %355 = vmatprep.subr.bf16.mxu0 0
  %356 = vmatpush2.bf16.msra.mxu0 0
  %357 = vmatprep.subr.bf16.mxu0 0
  %358 = vmatpush2.bf16.msra.mxu0 0
  %359 = vmatprep.mubr.bf16.mxu0 0
  %360 = vmatmul.mubr.bf16.gmra.mxu0 %v325
  %v361 = vpop.f32.mrf.mxu0
  %v362 = vadd.f32 %v310, %v361
  %v363 = vpop.f32.mrf.mxu0
  %v364 = vpop.f32.mrf.mxu0
  %v365 = vadd.f32 %v310, %v364
  %v366 = vpop.f32.mrf.mxu0
  %367 = vdwg.mxu0
  %368 = vst.msk [vmem:[%s8] sm:$0xff] %vm56, %v362
  %369 = vst.msk [vmem:[%s8 + $0x8] sm:$0xff] %vm56, %v365
  // Predicated region
  $region34: #{cmta_binary_forward.21} parent=0 // pred_check
    _
  $region35: #{cmta_binary_forward.21} parent=0 // pred_check_branch
    %371 = sbr.rel (0) target = $region37
  $region36: #{cmta_binary_forward.21} parent=0 // pred_region
    _
  $region37: #{cmta_binary_forward.21} parent=0 // pred_fallthru
    _
  // Predicated region
  $region38: #{cmta_binary_forward.21} parent=0 // pred_check
    _
  $region39: #{cmta_binary_forward.21} parent=0 // pred_check_branch
    %373 = sbr.rel (0) target = $region41
  $region40: #{cmta_binary_forward.21} parent=0 // pred_region
    _
  $region41: #{cmta_binary_forward.21} parent=0 // pred_fallthru
    _

// kernel: cmta_binary_forward.17
$region0: #{cmta_binary_forward.17}
  #allocation0 [shape = 'u32[]', space=smem, size = 0x4, offset = 0x4, fixed_abs, tag = 'smem constant byte address 0x4 - core index']
  #allocation1 [shape = 'u32[144,128]{1,0:T(1,128)}', space=vmem, size = 0x12000, scoped, tag = 'internal scratch']
  %s0 = inlined_call_operand.vmem [shape: f32[9,9,32], index: 0, kind: input, shape index: {}]
  %s1 = inlined_call_operand.vmem [shape: f32[49,32], index: 1, kind: input, shape index: {}]
  %s2 = inlined_call_operand.vmem [shape: f32[1,32], index: 2, kind: input, shape index: {}]
  %s3 = inlined_call_operand.vmem [shape: f32[3,3,32], index: 3, kind: output, shape index: {}]
  %s4 = sld [smem:[#allocation0]]
  $region22: #{cmta_binary_forward.17} parent=0
    _
  %s6 = ssub.s32 1, %s4
  %s7 = scalar_select 0, %s6, %s4
  // Predicated region
  $region2: #{cmta_binary_forward.17} parent=0 // pred_check
    _
  $region3: #{cmta_binary_forward.17} parent=0 // pred_check_branch
    %9 = sbr.rel (0) target = $region5
  $region4: #{cmta_binary_forward.17} parent=0 // pred_region
    _
  $region5: #{cmta_binary_forward.17} parent=0 // pred_fallthru
    _
  // Predicated region
  $region6: #{cmta_binary_forward.17} parent=0 // pred_check
    _
  $region7: #{cmta_binary_forward.17} parent=0 // pred_check_branch
    %11 = sbr.rel (0) target = $region9
  $region8: #{cmta_binary_forward.17} parent=0 // pred_region
    _
  $region9: #{cmta_binary_forward.17} parent=0 // pred_fallthru
    _
  // Predicated region
  $region10: #{cmta_binary_forward.17} parent=0 // pred_check
    _
  $region11: #{cmta_binary_forward.17} parent=0 // pred_check_branch
    %13 = sbr.rel (0) target = $region13
  $region12: #{cmta_binary_forward.17} parent=0 // pred_region
    _
  $region13: #{cmta_binary_forward.17} parent=0 // pred_fallthru
    _
  %v14 = vld [vmem:[%s2] sm:$0x1]
  %v16 = vlaneseq
  %v17 = vshrl.u32 %v16, 7
  %v18 = vsub.s32 0, %v17
  %v19 = vrot.slane %v14, %v18
  %v21 = vadd.f32 %v19, 0.0
  %v22 = vld [vmem:[%s0] sm:$0x7]
  %v23 = vld [vmem:[%s0 + $0x10] sm:$0x7]
  %v24 = vld [vmem:[%s0 + $0x20] sm:$0x7]
  %v25 = vld [vmem:[%s1] sm:$0x1]
  %v26 = vlaneseq
  %v27 = vshrl.u32 %v26, 7
  %v28 = vsub.s32 0, %v27
  %v29 = vrot.slane %v25, %v28
  %v30 = vmul.f32 %v22, %v29
  %v31 = vmul.f32 %v23, %v29
  %v32 = vmul.f32 %v24, %v29
  %v33 = vadd.f32 %v21, %v30
  %v34 = vadd.f32 %v21, %v31
  %v35 = vadd.f32 %v21, %v32
  %v36 = vld [vmem:[%s0 + $0x1] sm:$0x7]
  %v37 = vld [vmem:[%s0 + $0x11] sm:$0x7]
  %v38 = vld [vmem:[%s0 + $0x21] sm:$0x7]
  %v39 = vld [vmem:[%s1 + $0x1] sm:$0x1]
  %v40 = vlaneseq
  %v41 = vshrl.u32 %v40, 7
  %v42 = vsub.s32 0, %v41
  %v43 = vrot.slane %v39, %v42
  %v44 = vmul.f32 %v36, %v43
  %v45 = vmul.f32 %v37, %v43
  %v46 = vmul.f32 %v38, %v43
  %v47 = vadd.f32 %v33, %v44
  %v48 = vadd.f32 %v34, %v45
  %v49 = vadd.f32 %v35, %v46
  %v50 = vld [vmem:[%s0 + $0x2] sm:$0x7]
  %v51 = vld [vmem:[%s0 + $0x12] sm:$0x7]
  %v52 = vld [vmem:[%s0 + $0x22] sm:$0x7]
  %v53 = vld [vmem:[%s1 + $0x2] sm:$0x1]
  %v54 = vlaneseq
  %v55 = vshrl.u32 %v54, 7
  %v56 = vsub.s32 0, %v55
  %v57 = vrot.slane %v53, %v56
  %v58 = vmul.f32 %v50, %v57
  %v59 = vmul.f32 %v51, %v57
  %v60 = vmul.f32 %v52, %v57
  %v61 = vadd.f32 %v47, %v58
  %v62 = vadd.f32 %v48, %v59
  %v63 = vadd.f32 %v49, %v60
  %v64 = vld [vmem:[%s0 + $0x3] sm:$0x7]
  %v65 = vld [vmem:[%s0 + $0x13] sm:$0x7]
  %v66 = vld [vmem:[%s0 + $0x23] sm:$0x7]
  %v67 = vld [vmem:[%s1 + $0x3] sm:$0x1]
  %v68 = vlaneseq
  %v69 = vshrl.u32 %v68, 7
  %v70 = vsub.s32 0, %v69
  %v71 = vrot.slane %v67, %v70
  %v72 = vmul.f32 %v64, %v71
  %v73 = vmul.f32 %v65, %v71
  %v74 = vmul.f32 %v66, %v71
  %v75 = vadd.f32 %v61, %v72
  %v76 = vadd.f32 %v62, %v73
  %v77 = vadd.f32 %v63, %v74
  %v78 = vld [vmem:[%s0 + $0x4] sm:$0x7]
  %v79 = vld [vmem:[%s0 + $0x14] sm:$0x7]
  %v80 = vld [vmem:[%s0 + $0x24] sm:$0x7]
  %v81 = vld [vmem:[%s1 + $0x4] sm:$0x1]
  %v82 = vlaneseq
  %v83 = vshrl.u32 %v82, 7
  %v84 = vsub.s32 0, %v83
  %v85 = vrot.slane %v81, %v84
  %v86 = vmul.f32 %v78, %v85
  %v87 = vmul.f32 %v79, %v85
  %v88 = vmul.f32 %v80, %v85
  %v89 = vadd.f32 %v75, %v86
  %v90 = vadd.f32 %v76, %v87
  %v91 = vadd.f32 %v77, %v88
  %v92 = vld [vmem:[%s0 + $0x5] sm:$0x7]
  %v93 = vld [vmem:[%s0 + $0x15] sm:$0x7]
  %v94 = vld [vmem:[%s0 + $0x25] sm:$0x7]
  %v95 = vld [vmem:[%s1 + $0x5] sm:$0x1]
  %v96 = vlaneseq
  %v97 = vshrl.u32 %v96, 7
  %v98 = vsub.s32 0, %v97
  %v99 = vrot.slane %v95, %v98
  %v100 = vmul.f32 %v92, %v99
  %v101 = vmul.f32 %v93, %v99
  %v102 = vmul.f32 %v94, %v99
  %v103 = vadd.f32 %v89, %v100
  %v104 = vadd.f32 %v90, %v101
  %v105 = vadd.f32 %v91, %v102
  %v106 = vld [vmem:[%s0 + $0x6] sm:$0x7]
  %v107 = vld [vmem:[%s0 + $0x16] sm:$0x7]
  %v108 = vld [vmem:[%s0 + $0x26] sm:$0x7]
  %v109 = vld [vmem:[%s1 + $0x6] sm:$0x1]
  %v110 = vlaneseq
  %v111 = vshrl.u32 %v110, 7
  %v112 = vsub.s32 0, %v111
  %v113 = vrot.slane %v109, %v112
  %v114 = vmul.f32 %v106, %v113
  %v115 = vmul.f32 %v107, %v113
  %v116 = vmul.f32 %v108, %v113
  %v117 = vadd.f32 %v103, %v114
  %v118 = vadd.f32 %v104, %v115
  %v119 = vadd.f32 %v105, %v116
  %s120 = scalar_lea.vmem %s0, 16
  %v121 = vld [vmem:[%s120] sm:$0x7]
  %v122 = vld [vmem:[%s120 + $0x10] sm:$0x7]
  %v123 = vld [vmem:[%s120 + $0x20] sm:$0x7]
  %v124 = vld [vmem:[%s1 + $0x7] sm:$0x1]
  %v125 = vlaneseq
  %v126 = vshrl.u32 %v125, 7
  %v127 = vsub.s32 0, %v126
  %v128 = vrot.slane %v124, %v127
  %v129 = vmul.f32 %v121, %v128
  %v130 = vmul.f32 %v122, %v128
  %v131 = vmul.f32 %v123, %v128
  %v132 = vadd.f32 %v117, %v129
  %v133 = vadd.f32 %v118, %v130
  %v134 = vadd.f32 %v119, %v131
  %v135 = vld [vmem:[%s120 + $0x1] sm:$0x7]
  %v136 = vld [vmem:[%s120 + $0x11] sm:$0x7]
  %v137 = vld [vmem:[%s120 + $0x21] sm:$0x7]
  %v138 = vld [vmem:[%s1 + $0x8] sm:$0x1]
  %v139 = vlaneseq
  %v140 = vshrl.u32 %v139, 7
  %v141 = vsub.s32 0, %v140
  %v142 = vrot.slane %v138, %v141
  %v143 = vmul.f32 %v135, %v142
  %v144 = vmul.f32 %v136, %v142
  %v145 = vmul.f32 %v137, %v142
  %v146 = vadd.f32 %v132, %v143
  %v147 = vadd.f32 %v133, %v144
  %v148 = vadd.f32 %v134, %v145
  %v149 = vld [vmem:[%s120 + $0x2] sm:$0x7]
  %v150 = vld [vmem:[%s120 + $0x12] sm:$0x7]
  %v151 = vld [vmem:[%s120 + $0x22] sm:$0x7]
  %v152 = vld [vmem:[%s1 + $0x9] sm:$0x1]
  %v153 = vlaneseq
  %v154 = vshrl.u32 %v153, 7
  %v155 = vsub.s32 0, %v154
  %v156 = vrot.slane %v152, %v155
  %v157 = vmul.f32 %v149, %v156
  %v158 = vmul.f32 %v150, %v156
  %v159 = vmul.f32 %v151, %v156
  %v160 = vadd.f32 %v146, %v157
  %v161 = vadd.f32 %v147, %v158
  %v162 = vadd.f32 %v148, %v159
  %v163 = vld [vmem:[%s120 + $0x3] sm:$0x7]
  %v164 = vld [vmem:[%s120 + $0x13] sm:$0x7]
  %v165 = vld [vmem:[%s120 + $0x23] sm:$0x7]
  %v166 = vld [vmem:[%s1 + $0xa] sm:$0x1]
  %v167 = vlaneseq
  %v168 = vshrl.u32 %v167, 7
  %v169 = vsub.s32 0, %v168
  %v170 = vrot.slane %v166, %v169
  %v171 = vmul.f32 %v163, %v170
  %v172 = vmul.f32 %v164, %v170
  %v173 = vmul.f32 %v165, %v170
  %v174 = vadd.f32 %v160, %v171
  %v175 = vadd.f32 %v161, %v172
  %v176 = vadd.f32 %v162, %v173
  %v177 = vld [vmem:[%s120 + $0x4] sm:$0x7]
  %v178 = vld [vmem:[%s120 + $0x14] sm:$0x7]
  %v179 = vld [vmem:[%s120 + $0x24] sm:$0x7]
  %v180 = vld [vmem:[%s1 + $0xb] sm:$0x1]
  %v181 = vlaneseq
  %v182 = vshrl.u32 %v181, 7
  %v183 = vsub.s32 0, %v182
  %v184 = vrot.slane %v180, %v183
  %v185 = vmul.f32 %v177, %v184
  %v186 = vmul.f32 %v178, %v184
  %v187 = vmul.f32 %v179, %v184
  %v188 = vadd.f32 %v174, %v185
  %v189 = vadd.f32 %v175, %v186
  %v190 = vadd.f32 %v176, %v187
  %v191 = vld [vmem:[%s120 + $0x5] sm:$0x7]
  %v192 = vld [vmem:[%s120 + $0x15] sm:$0x7]
  %v193 = vld [vmem:[%s120 + $0x25] sm:$0x7]
  %v194 = vld [vmem:[%s1 + $0xc] sm:$0x1]
  %v195 = vlaneseq
  %v196 = vshrl.u32 %v195, 7
  %v197 = vsub.s32 0, %v196
  %v198 = vrot.slane %v194, %v197
  %v199 = vmul.f32 %v191, %v198
  %v200 = vmul.f32 %v192, %v198
  %v201 = vmul.f32 %v193, %v198
  %v202 = vadd.f32 %v188, %v199
  %v203 = vadd.f32 %v189, %v200
  %v204 = vadd.f32 %v190, %v201
  %v205 = vld [vmem:[%s120 + $0x6] sm:$0x7]
  %v206 = vld [vmem:[%s120 + $0x16] sm:$0x7]
  %v207 = vld [vmem:[%s120 + $0x26] sm:$0x7]
  %v208 = vld [vmem:[%s1 + $0xd] sm:$0x1]
  %v209 = vlaneseq
  %v210 = vshrl.u32 %v209, 7
  %v211 = vsub.s32 0, %v210
  %v212 = vrot.slane %v208, %v211
  %v213 = vmul.f32 %v205, %v212
  %v214 = vmul.f32 %v206, %v212
  %v215 = vmul.f32 %v207, %v212
  %v216 = vadd.f32 %v202, %v213
  %v217 = vadd.f32 %v203, %v214
  %v218 = vadd.f32 %v204, %v215
  %s219 = scalar_lea.vmem %s0, 32
  %v220 = vld [vmem:[%s219] sm:$0x7]
  %v221 = vld [vmem:[%s219 + $0x10] sm:$0x7]
  %v222 = vld [vmem:[%s219 + $0x20] sm:$0x7]
  %v223 = vld [vmem:[%s1 + $0xe] sm:$0x1]
  %v224 = vlaneseq
  %v225 = vshrl.u32 %v224, 7
  %v226 = vsub.s32 0, %v225
  %v227 = vrot.slane %v223, %v226
  %v228 = vmul.f32 %v220, %v227
  %v229 = vmul.f32 %v221, %v227
  %v230 = vmul.f32 %v222, %v227
  %v231 = vadd.f32 %v216, %v228
  %v232 = vadd.f32 %v217, %v229
  %v233 = vadd.f32 %v218, %v230
  %v234 = vld [vmem:[%s219 + $0x1] sm:$0x7]
  %v235 = vld [vmem:[%s219 + $0x11] sm:$0x7]
  %v236 = vld [vmem:[%s219 + $0x21] sm:$0x7]
  %v237 = vld [vmem:[%s1 + $0xf] sm:$0x1]
  %v238 = vlaneseq
  %v239 = vshrl.u32 %v238, 7
  %v240 = vsub.s32 0, %v239
  %v241 = vrot.slane %v237, %v240
  %v242 = vmul.f32 %v234, %v241
  %v243 = vmul.f32 %v235, %v241
  %v244 = vmul.f32 %v236, %v241
  %v245 = vadd.f32 %v231, %v242
  %v246 = vadd.f32 %v232, %v243
  %v247 = vadd.f32 %v233, %v244
  %v248 = vld [vmem:[%s219 + $0x2] sm:$0x7]
  %v249 = vld [vmem:[%s219 + $0x12] sm:$0x7]
  %v250 = vld [vmem:[%s219 + $0x22] sm:$0x7]
  %v251 = vld [vmem:[%s1 + $0x10] sm:$0x1]
  %v252 = vlaneseq
  %v253 = vshrl.u32 %v252, 7
  %v254 = vsub.s32 0, %v253
  %v255 = vrot.slane %v251, %v254
  %v256 = vmul.f32 %v248, %v255
  %v257 = vmul.f32 %v249, %v255
  %v258 = vmul.f32 %v250, %v255
  %v259 = vadd.f32 %v245, %v256
  %v260 = vadd.f32 %v246, %v257
  %v261 = vadd.f32 %v247, %v258
  %v262 = vld [vmem:[%s219 + $0x3] sm:$0x7]
  %v263 = vld [vmem:[%s219 + $0x13] sm:$0x7]
  %v264 = vld [vmem:[%s219 + $0x23] sm:$0x7]
  %v265 = vld [vmem:[%s1 + $0x11] sm:$0x1]
  %v266 = vlaneseq
  %v267 = vshrl.u32 %v266, 7
  %v268 = vsub.s32 0, %v267
  %v269 = vrot.slane %v265, %v268
  %v270 = vmul.f32 %v262, %v269
  %v271 = vmul.f32 %v263, %v269
  %v272 = vmul.f32 %v264, %v269
  %v273 = vadd.f32 %v259, %v270
  %v274 = vadd.f32 %v260, %v271
  %v275 = vadd.f32 %v261, %v272
  %v276 = vld [vmem:[%s219 + $0x4] sm:$0x7]
  %v277 = vld [vmem:[%s219 + $0x14] sm:$0x7]
  %v278 = vld [vmem:[%s219 + $0x24] sm:$0x7]
  %v279 = vld [vmem:[%s1 + $0x12] sm:$0x1]
  %v280 = vlaneseq
  %v281 = vshrl.u32 %v280, 7
  %v282 = vsub.s32 0, %v281
  %v283 = vrot.slane %v279, %v282
  %v284 = vmul.f32 %v276, %v283
  %v285 = vmul.f32 %v277, %v283
  %v286 = vmul.f32 %v278, %v283
  %v287 = vadd.f32 %v273, %v284
  %v288 = vadd.f32 %v274, %v285
  %v289 = vadd.f32 %v275, %v286
  %v290 = vld [vmem:[%s219 + $0x5] sm:$0x7]
  %v291 = vld [vmem:[%s219 + $0x15] sm:$0x7]
  %v292 = vld [vmem:[%s219 + $0x25] sm:$0x7]
  %v293 = vld [vmem:[%s1 + $0x13] sm:$0x1]
  %v294 = vlaneseq
  %v295 = vshrl.u32 %v294, 7
  %v296 = vsub.s32 0, %v295
  %v297 = vrot.slane %v293, %v296
  %v298 = vmul.f32 %v290, %v297
  %v299 = vmul.f32 %v291, %v297
  %v300 = vmul.f32 %v292, %v297
  %v301 = vadd.f32 %v287, %v298
  %v302 = vadd.f32 %v288, %v299
  %v303 = vadd.f32 %v289, %v300
  %v304 = vld [vmem:[%s219 + $0x6] sm:$0x7]
  %v305 = vld [vmem:[%s219 + $0x16] sm:$0x7]
  %v306 = vld [vmem:[%s219 + $0x26] sm:$0x7]
  %v307 = vld [vmem:[%s1 + $0x14] sm:$0x1]
  %v308 = vlaneseq
  %v309 = vshrl.u32 %v308, 7
  %v310 = vsub.s32 0, %v309
  %v311 = vrot.slane %v307, %v310
  %v312 = vmul.f32 %v304, %v311
  %v313 = vmul.f32 %v305, %v311
  %v314 = vmul.f32 %v306, %v311
  %v315 = vadd.f32 %v301, %v312
  %v316 = vadd.f32 %v302, %v313
  %v317 = vadd.f32 %v303, %v314
  %s318 = scalar_lea.vmem %s0, 48
  %v319 = vld [vmem:[%s318] sm:$0x7]
  %v320 = vld [vmem:[%s318 + $0x10] sm:$0x7]
  %v321 = vld [vmem:[%s318 + $0x20] sm:$0x7]
  %v322 = vld [vmem:[%s1 + $0x15] sm:$0x1]
  %v323 = vlaneseq
  %v324 = vshrl.u32 %v323, 7
  %v325 = vsub.s32 0, %v324
  %v326 = vrot.slane %v322, %v325
  %v327 = vmul.f32 %v319, %v326
  %v328 = vmul.f32 %v320, %v326
  %v329 = vmul.f32 %v321, %v326
  %v330 = vadd.f32 %v315, %v327
  %v331 = vadd.f32 %v316, %v328
  %v332 = vadd.f32 %v317, %v329
  %v333 = vld [vmem:[%s318 + $0x1] sm:$0x7]
  %v334 = vld [vmem:[%s318 + $0x11] sm:$0x7]
  %v335 = vld [vmem:[%s318 + $0x21] sm:$0x7]
  %v336 = vld [vmem:[%s1 + $0x16] sm:$0x1]
  %v337 = vlaneseq
  %v338 = vshrl.u32 %v337, 7
  %v339 = vsub.s32 0, %v338
  %v340 = vrot.slane %v336, %v339
  %v341 = vmul.f32 %v333, %v340
  %v342 = vmul.f32 %v334, %v340
  %v343 = vmul.f32 %v335, %v340
  %v344 = vadd.f32 %v330, %v341
  %v345 = vadd.f32 %v331, %v342
  %v346 = vadd.f32 %v332, %v343
  %v347 = vld [vmem:[%s318 + $0x2] sm:$0x7]
  %v348 = vld [vmem:[%s318 + $0x12] sm:$0x7]
  %v349 = vld [vmem:[%s318 + $0x22] sm:$0x7]
  %v350 = vld [vmem:[%s1 + $0x17] sm:$0x1]
  %v351 = vlaneseq
  %v352 = vshrl.u32 %v351, 7
  %v353 = vsub.s32 0, %v352
  %v354 = vrot.slane %v350, %v353
  %v355 = vmul.f32 %v347, %v354
  %v356 = vmul.f32 %v348, %v354
  %v357 = vmul.f32 %v349, %v354
  %v358 = vadd.f32 %v344, %v355
  %v359 = vadd.f32 %v345, %v356
  %v360 = vadd.f32 %v346, %v357
  %v361 = vld [vmem:[%s318 + $0x3] sm:$0x7]
  %v362 = vld [vmem:[%s318 + $0x13] sm:$0x7]
  %v363 = vld [vmem:[%s318 + $0x23] sm:$0x7]
  %v364 = vld [vmem:[%s1 + $0x18] sm:$0x1]
  %v365 = vlaneseq
  %v366 = vshrl.u32 %v365, 7
  %v367 = vsub.s32 0, %v366
  %v368 = vrot.slane %v364, %v367
  %v369 = vmul.f32 %v361, %v368
  %v370 = vmul.f32 %v362, %v368
  %v371 = vmul.f32 %v363, %v368
  %v372 = vadd.f32 %v358, %v369
  %v373 = vadd.f32 %v359, %v370
  %v374 = vadd.f32 %v360, %v371
  %v375 = vld [vmem:[%s318 + $0x4] sm:$0x7]
  %v376 = vld [vmem:[%s318 + $0x14] sm:$0x7]
  %v377 = vld [vmem:[%s318 + $0x24] sm:$0x7]
  %v378 = vld [vmem:[%s1 + $0x19] sm:$0x1]
  %v379 = vlaneseq
  %v380 = vshrl.u32 %v379, 7
  %v381 = vsub.s32 0, %v380
  %v382 = vrot.slane %v378, %v381
  %v383 = vmul.f32 %v375, %v382
  %v384 = vmul.f32 %v376, %v382
  %v385 = vmul.f32 %v377, %v382
  %v386 = vadd.f32 %v372, %v383
  %v387 = vadd.f32 %v373, %v384
  %v388 = vadd.f32 %v374, %v385
  %v389 = vld [vmem:[%s318 + $0x5] sm:$0x7]
  %v390 = vld [vmem:[%s318 + $0x15] sm:$0x7]
  %v391 = vld [vmem:[%s318 + $0x25] sm:$0x7]
  %v392 = vld [vmem:[%s1 + $0x1a] sm:$0x1]
  %v393 = vlaneseq
  %v394 = vshrl.u32 %v393, 7
  %v395 = vsub.s32 0, %v394
  %v396 = vrot.slane %v392, %v395
  %v397 = vmul.f32 %v389, %v396
  %v398 = vmul.f32 %v390, %v396
  %v399 = vmul.f32 %v391, %v396
  %v400 = vadd.f32 %v386, %v397
  %v401 = vadd.f32 %v387, %v398
  %v402 = vadd.f32 %v388, %v399
  %v403 = vld [vmem:[%s318 + $0x6] sm:$0x7]
  %v404 = vld [vmem:[%s318 + $0x16] sm:$0x7]
  %v405 = vld [vmem:[%s318 + $0x26] sm:$0x7]
  %v406 = vld [vmem:[%s1 + $0x1b] sm:$0x1]
  %v407 = vlaneseq
  %v408 = vshrl.u32 %v407, 7
  %v409 = vsub.s32 0, %v408
  %v410 = vrot.slane %v406, %v409
  %v411 = vmul.f32 %v403, %v410
  %v412 = vmul.f32 %v404, %v410
  %v413 = vmul.f32 %v405, %v410
  %v414 = vadd.f32 %v400, %v411
  %v415 = vadd.f32 %v401, %v412
  %v416 = vadd.f32 %v402, %v413
  %s417 = scalar_lea.vmem %s0, 64
  %v418 = vld [vmem:[%s417] sm:$0x7]
  %v419 = vld [vmem:[%s417 + $0x10] sm:$0x7]
  %v420 = vld [vmem:[%s417 + $0x20] sm:$0x7]
  %v421 = vld [vmem:[%s1 + $0x1c] sm:$0x1]
  %v422 = vlaneseq
  %v423 = vshrl.u32 %v422, 7
  %v424 = vsub.s32 0, %v423
  %v425 = vrot.slane %v421, %v424
  %v426 = vmul.f32 %v418, %v425
  %v427 = vmul.f32 %v419, %v425
  %v428 = vmul.f32 %v420, %v425
  %v429 = vadd.f32 %v414, %v426
  %v430 = vadd.f32 %v415, %v427
  %v431 = vadd.f32 %v416, %v428
  %v432 = vld [vmem:[%s417 + $0x1] sm:$0x7]
  %v433 = vld [vmem:[%s417 + $0x11] sm:$0x7]
  %v434 = vld [vmem:[%s417 + $0x21] sm:$0x7]
  %v435 = vld [vmem:[%s1 + $0x1d] sm:$0x1]
  %v436 = vlaneseq
  %v437 = vshrl.u32 %v436, 7
  %v438 = vsub.s32 0, %v437
  %v439 = vrot.slane %v435, %v438
  %v440 = vmul.f32 %v432, %v439
  %v441 = vmul.f32 %v433, %v439
  %v442 = vmul.f32 %v434, %v439
  %v443 = vadd.f32 %v429, %v440
  %v444 = vadd.f32 %v430, %v441
  %v445 = vadd.f32 %v431, %v442
  %v446 = vld [vmem:[%s417 + $0x2] sm:$0x7]
  %v447 = vld [vmem:[%s417 + $0x12] sm:$0x7]
  %v448 = vld [vmem:[%s417 + $0x22] sm:$0x7]
  %v449 = vld [vmem:[%s1 + $0x1e] sm:$0x1]
  %v450 = vlaneseq
  %v451 = vshrl.u32 %v450, 7
  %v452 = vsub.s32 0, %v451
  %v453 = vrot.slane %v449, %v452
  %v454 = vmul.f32 %v446, %v453
  %v455 = vmul.f32 %v447, %v453
  %v456 = vmul.f32 %v448, %v453
  %v457 = vadd.f32 %v443, %v454
  %v458 = vadd.f32 %v444, %v455
  %v459 = vadd.f32 %v445, %v456
  %v460 = vld [vmem:[%s417 + $0x3] sm:$0x7]
  %v461 = vld [vmem:[%s417 + $0x13] sm:$0x7]
  %v462 = vld [vmem:[%s417 + $0x23] sm:$0x7]
  %v463 = vld [vmem:[%s1 + $0x1f] sm:$0x1]
  %v464 = vlaneseq
  %v465 = vshrl.u32 %v464, 7
  %v466 = vsub.s32 0, %v465
  %v467 = vrot.slane %v463, %v466
  %v468 = vmul.f32 %v460, %v467
  %v469 = vmul.f32 %v461, %v467
  %v470 = vmul.f32 %v462, %v467
  %v471 = vadd.f32 %v457, %v468
  %v472 = vadd.f32 %v458, %v469
  %v473 = vadd.f32 %v459, %v470
  %v474 = vld [vmem:[%s417 + $0x4] sm:$0x7]
  %v475 = vld [vmem:[%s417 + $0x14] sm:$0x7]
  %v476 = vld [vmem:[%s417 + $0x24] sm:$0x7]
  %v477 = vld [vmem:[%s1 + $0x20] sm:$0x1]
  %v478 = vlaneseq
  %v479 = vshrl.u32 %v478, 7
  %v480 = vsub.s32 0, %v479
  %v481 = vrot.slane %v477, %v480
  %v482 = vmul.f32 %v474, %v481
  %v483 = vmul.f32 %v475, %v481
  %v484 = vmul.f32 %v476, %v481
  %v485 = vadd.f32 %v471, %v482
  %v486 = vadd.f32 %v472, %v483
  %v487 = vadd.f32 %v473, %v484
  %v488 = vld [vmem:[%s417 + $0x5] sm:$0x7]
  %v489 = vld [vmem:[%s417 + $0x15] sm:$0x7]
  %v490 = vld [vmem:[%s417 + $0x25] sm:$0x7]
  %v491 = vld [vmem:[%s1 + $0x21] sm:$0x1]
  %v492 = vlaneseq
  %v493 = vshrl.u32 %v492, 7
  %v494 = vsub.s32 0, %v493
  %v495 = vrot.slane %v491, %v494
  %v496 = vmul.f32 %v488, %v495
  %v497 = vmul.f32 %v489, %v495
  %v498 = vmul.f32 %v490, %v495
  %v499 = vadd.f32 %v485, %v496
  %v500 = vadd.f32 %v486, %v497
  %v501 = vadd.f32 %v487, %v498
  %v502 = vld [vmem:[%s417 + $0x6] sm:$0x7]
  %v503 = vld [vmem:[%s417 + $0x16] sm:$0x7]
  %v504 = vld [vmem:[%s417 + $0x26] sm:$0x7]
  %v505 = vld [vmem:[%s1 + $0x22] sm:$0x1]
  %v506 = vlaneseq
  %v507 = vshrl.u32 %v506, 7
  %v508 = vsub.s32 0, %v507
  %v509 = vrot.slane %v505, %v508
  %v510 = vmul.f32 %v502, %v509
  %v511 = vmul.f32 %v503, %v509
  %v512 = vmul.f32 %v504, %v509
  %v513 = vadd.f32 %v499, %v510
  %v514 = vadd.f32 %v500, %v511
  %v515 = vadd.f32 %v501, %v512
  %s516 = scalar_lea.vmem %s0, 80
  %v517 = vld [vmem:[%s516] sm:$0x7]
  %v518 = vld [vmem:[%s516 + $0x10] sm:$0x7]
  %v519 = vld [vmem:[%s516 + $0x20] sm:$0x7]
  %v520 = vld [vmem:[%s1 + $0x23] sm:$0x1]
  %v521 = vlaneseq
  %v522 = vshrl.u32 %v521, 7
  %v523 = vsub.s32 0, %v522
  %v524 = vrot.slane %v520, %v523
  %v525 = vmul.f32 %v517, %v524
  %v526 = vmul.f32 %v518, %v524
  %v527 = vmul.f32 %v519, %v524
  %v528 = vadd.f32 %v513, %v525
  %v529 = vadd.f32 %v514, %v526
  %v530 = vadd.f32 %v515, %v527
  %v531 = vld [vmem:[%s516 + $0x1] sm:$0x7]
  %v532 = vld [vmem:[%s516 + $0x11] sm:$0x7]
  %v533 = vld [vmem:[%s516 + $0x21] sm:$0x7]
  %v534 = vld [vmem:[%s1 + $0x24] sm:$0x1]
  %v535 = vlaneseq
  %v536 = vshrl.u32 %v535, 7
  %v537 = vsub.s32 0, %v536
  %v538 = vrot.slane %v534, %v537
  %v539 = vmul.f32 %v531, %v538
  %v540 = vmul.f32 %v532, %v538
  %v541 = vmul.f32 %v533, %v538
  %v542 = vadd.f32 %v528, %v539
  %v543 = vadd.f32 %v529, %v540
  %v544 = vadd.f32 %v530, %v541
  %v545 = vld [vmem:[%s516 + $0x2] sm:$0x7]
  %v546 = vld [vmem:[%s516 + $0x12] sm:$0x7]
  %v547 = vld [vmem:[%s516 + $0x22] sm:$0x7]
  %v548 = vld [vmem:[%s1 + $0x25] sm:$0x1]
  %v549 = vlaneseq
  %v550 = vshrl.u32 %v549, 7
  %v551 = vsub.s32 0, %v550
  %v552 = vrot.slane %v548, %v551
  %v553 = vmul.f32 %v545, %v552
  %v554 = vmul.f32 %v546, %v552
  %v555 = vmul.f32 %v547, %v552
  %v556 = vadd.f32 %v542, %v553
  %v557 = vadd.f32 %v543, %v554
  %v558 = vadd.f32 %v544, %v555
  %v559 = vld [vmem:[%s516 + $0x3] sm:$0x7]
  %v560 = vld [vmem:[%s516 + $0x13] sm:$0x7]
  %v561 = vld [vmem:[%s516 + $0x23] sm:$0x7]
  %v562 = vld [vmem:[%s1 + $0x26] sm:$0x1]
  %v563 = vlaneseq
  %v564 = vshrl.u32 %v563, 7
  %v565 = vsub.s32 0, %v564
  %v566 = vrot.slane %v562, %v565
  %v567 = vmul.f32 %v559, %v566
  %v568 = vmul.f32 %v560, %v566
  %v569 = vmul.f32 %v561, %v566
  %v570 = vadd.f32 %v556, %v567
  %v571 = vadd.f32 %v557, %v568
  %v572 = vadd.f32 %v558, %v569
  %v573 = vld [vmem:[%s516 + $0x4] sm:$0x7]
  %v574 = vld [vmem:[%s516 + $0x14] sm:$0x7]
  %v575 = vld [vmem:[%s516 + $0x24] sm:$0x7]
  %v576 = vld [vmem:[%s1 + $0x27] sm:$0x1]
  %v577 = vlaneseq
  %v578 = vshrl.u32 %v577, 7
  %v579 = vsub.s32 0, %v578
  %v580 = vrot.slane %v576, %v579
  %v581 = vmul.f32 %v573, %v580
  %v582 = vmul.f32 %v574, %v580
  %v583 = vmul.f32 %v575, %v580
  %v584 = vadd.f32 %v570, %v581
  %v585 = vadd.f32 %v571, %v582
  %v586 = vadd.f32 %v572, %v583
  %v587 = vld [vmem:[%s516 + $0x5] sm:$0x7]
  %v588 = vld [vmem:[%s516 + $0x15] sm:$0x7]
  %v589 = vld [vmem:[%s516 + $0x25] sm:$0x7]
  %v590 = vld [vmem:[%s1 + $0x28] sm:$0x1]
  %v591 = vlaneseq
  %v592 = vshrl.u32 %v591, 7
  %v593 = vsub.s32 0, %v592
  %v594 = vrot.slane %v590, %v593
  %v595 = vmul.f32 %v587, %v594
  %v596 = vmul.f32 %v588, %v594
  %v597 = vmul.f32 %v589, %v594
  %v598 = vadd.f32 %v584, %v595
  %v599 = vadd.f32 %v585, %v596
  %v600 = vadd.f32 %v586, %v597
  %v601 = vld [vmem:[%s516 + $0x6] sm:$0x7]
  %v602 = vld [vmem:[%s516 + $0x16] sm:$0x7]
  %v603 = vld [vmem:[%s516 + $0x26] sm:$0x7]
  %v604 = vld [vmem:[%s1 + $0x29] sm:$0x1]
  %v605 = vlaneseq
  %v606 = vshrl.u32 %v605, 7
  %v607 = vsub.s32 0, %v606
  %v608 = vrot.slane %v604, %v607
  %v609 = vmul.f32 %v601, %v608
  %v610 = vmul.f32 %v602, %v608
  %v611 = vmul.f32 %v603, %v608
  %v612 = vadd.f32 %v598, %v609
  %v613 = vadd.f32 %v599, %v610
  %v614 = vadd.f32 %v600, %v611
  %s615 = scalar_lea.vmem %s0, 96
  %v616 = vld [vmem:[%s615] sm:$0x7]
  %v617 = vld [vmem:[%s615 + $0x10] sm:$0x7]
  %v618 = vld [vmem:[%s615 + $0x20] sm:$0x7]
  %v619 = vld [vmem:[%s1 + $0x2a] sm:$0x1]
  %v620 = vlaneseq
  %v621 = vshrl.u32 %v620, 7
  %v622 = vsub.s32 0, %v621
  %v623 = vrot.slane %v619, %v622
  %v624 = vmul.f32 %v616, %v623
  %v625 = vmul.f32 %v617, %v623
  %v626 = vmul.f32 %v618, %v623
  %v627 = vadd.f32 %v612, %v624
  %v628 = vadd.f32 %v613, %v625
  %v629 = vadd.f32 %v614, %v626
  %v630 = vld [vmem:[%s615 + $0x1] sm:$0x7]
  %v631 = vld [vmem:[%s615 + $0x11] sm:$0x7]
  %v632 = vld [vmem:[%s615 + $0x21] sm:$0x7]
  %v633 = vld [vmem:[%s1 + $0x2b] sm:$0x1]
  %v634 = vlaneseq
  %v635 = vshrl.u32 %v634, 7
  %v636 = vsub.s32 0, %v635
  %v637 = vrot.slane %v633, %v636
  %v638 = vmul.f32 %v630, %v637
  %v639 = vmul.f32 %v631, %v637
  %v640 = vmul.f32 %v632, %v637
  %v641 = vadd.f32 %v627, %v638
  %v642 = vadd.f32 %v628, %v639
  %v643 = vadd.f32 %v629, %v640
  %v644 = vld [vmem:[%s615 + $0x2] sm:$0x7]
  %v645 = vld [vmem:[%s615 + $0x12] sm:$0x7]
  %v646 = vld [vmem:[%s615 + $0x22] sm:$0x7]
  %v647 = vld [vmem:[%s1 + $0x2c] sm:$0x1]
  %v648 = vlaneseq
  %v649 = vshrl.u32 %v648, 7
  %v650 = vsub.s32 0, %v649
  %v651 = vrot.slane %v647, %v650
  %v652 = vmul.f32 %v644, %v651
  %v653 = vmul.f32 %v645, %v651
  %v654 = vmul.f32 %v646, %v651
  %v655 = vadd.f32 %v641, %v652
  %v656 = vadd.f32 %v642, %v653
  %v657 = vadd.f32 %v643, %v654
  %v658 = vld [vmem:[%s615 + $0x3] sm:$0x7]
  %v659 = vld [vmem:[%s615 + $0x13] sm:$0x7]
  %v660 = vld [vmem:[%s615 + $0x23] sm:$0x7]
  %v661 = vld [vmem:[%s1 + $0x2d] sm:$0x1]
  %v662 = vlaneseq
  %v663 = vshrl.u32 %v662, 7
  %v664 = vsub.s32 0, %v663
  %v665 = vrot.slane %v661, %v664
  %v666 = vmul.f32 %v658, %v665
  %v667 = vmul.f32 %v659, %v665
  %v668 = vmul.f32 %v660, %v665
  %v669 = vadd.f32 %v655, %v666
  %v670 = vadd.f32 %v656, %v667
  %v671 = vadd.f32 %v657, %v668
  %v672 = vld [vmem:[%s615 + $0x4] sm:$0x7]
  %v673 = vld [vmem:[%s615 + $0x14] sm:$0x7]
  %v674 = vld [vmem:[%s615 + $0x24] sm:$0x7]
  %v675 = vld [vmem:[%s1 + $0x2e] sm:$0x1]
  %v676 = vlaneseq
  %v677 = vshrl.u32 %v676, 7
  %v678 = vsub.s32 0, %v677
  %v679 = vrot.slane %v675, %v678
  %v680 = vmul.f32 %v672, %v679
  %v681 = vmul.f32 %v673, %v679
  %v682 = vmul.f32 %v674, %v679
  %v683 = vadd.f32 %v669, %v680
  %v684 = vadd.f32 %v670, %v681
  %v685 = vadd.f32 %v671, %v682
  %v686 = vld [vmem:[%s615 + $0x5] sm:$0x7]
  %v687 = vld [vmem:[%s615 + $0x15] sm:$0x7]
  %v688 = vld [vmem:[%s615 + $0x25] sm:$0x7]
  %v689 = vld [vmem:[%s1 + $0x2f] sm:$0x1]
  %v690 = vlaneseq
  %v691 = vshrl.u32 %v690, 7
  %v692 = vsub.s32 0, %v691
  %v693 = vrot.slane %v689, %v692
  %v694 = vmul.f32 %v686, %v693
  %v695 = vmul.f32 %v687, %v693
  %v696 = vmul.f32 %v688, %v693
  %v697 = vadd.f32 %v683, %v694
  %v698 = vadd.f32 %v684, %v695
  %v699 = vadd.f32 %v685, %v696
  %v700 = vld [vmem:[%s615 + $0x6] sm:$0x7]
  %v701 = vld [vmem:[%s615 + $0x16] sm:$0x7]
  %v702 = vld [vmem:[%s615 + $0x26] sm:$0x7]
  %v703 = vld [vmem:[%s1 + $0x30] sm:$0x1]
  %v704 = vlaneseq
  %v705 = vshrl.u32 %v704, 7
  %v706 = vsub.s32 0, %v705
  %v707 = vrot.slane %v703, %v706
  %v708 = vmul.f32 %v700, %v707
  %v709 = vmul.f32 %v701, %v707
  %v710 = vmul.f32 %v702, %v707
  %v711 = vadd.f32 %v697, %v708
  %v712 = vadd.f32 %v698, %v709
  %v713 = vadd.f32 %v699, %v710
  %vm714 = vcmask 256000
  %715 = vst.msk [vmem:[%s3] sm:$0x7] %vm714, %v711
  %716 = vst.msk [vmem:[%s3 + $0x4] sm:$0x7] %vm714, %v712
  %717 = vst.msk [vmem:[%s3 + $0x8] sm:$0x7] %vm714, %v713
  // Predicated region
  $region14: #{cmta_binary_forward.17} parent=0 // pred_check
    _
  $region15: #{cmta_binary_forward.17} parent=0 // pred_check_branch
    %719 = sbr.rel (0) target = $region17
  $region16: #{cmta_binary_forward.17} parent=0 // pred_region
    _
  $region17: #{cmta_binary_forward.17} parent=0 // pred_fallthru
    _
  // Predicated region
  $region18: #{cmta_binary_forward.17} parent=0 // pred_check
    _
  $region19: #{cmta_binary_forward.17} parent=0 // pred_check_branch
    %721 = sbr.rel (0) target = $region21
  $region20: #{cmta_binary_forward.17} parent=0 // pred_region
    _
  $region21: #{cmta_binary_forward.17} parent=0 // pred_fallthru
    _

// kernel: cmta_binary_forward.19
$region0: #{cmta_binary_forward.19}
  #allocation0 [shape = 'u32[]', space=smem, size = 0x4, offset = 0x4, fixed_abs, tag = 'smem constant byte address 0x4 - core index']
  #allocation1 [shape = 'u32[144,128]{1,0:T(1,128)}', space=vmem, size = 0x12000, scoped, tag = 'internal scratch']
  #allocation2 [shape = 'f32[16,1]{1,0:T(8,128)}', space=vmem, size = 0x2000, scoped, tag = 'scratch operand']
  #allocation3 [shape = 'f32[16,1]{1,0:T(8,128)}', space=vmem, size = 0x2000, scoped, tag = 'scratch operand']
  #allocation4 [shape = 'f32[16,32]{1,0:T(8,128)}', space=vmem, size = 0x2000, scoped, tag = 'scratch operand']
  %s0 = inlined_call_operand.vmem [shape: f32[16,32], index: 0, kind: input, shape index: {}]
  %s1 = inlined_call_operand.vmem [shape: bf16[16,128], index: 1, kind: input, shape index: {}, may-alias: {1,2}]
  %s2 = inlined_call_operand.vmem [shape: bf16[16,128], index: 2, kind: input, shape index: {}, may-alias: {1,2}]
  %s3 = inlined_call_operand.vmem [shape: f32[1,32], index: 3, kind: input, shape index: {}]
  %s4 = inlined_call_operand.vmem [shape: f32[1,32], index: 4, kind: input, shape index: {}]
  %s5 = inlined_call_operand.vmem [shape: bf16[32,32], index: 5, kind: input, shape index: {}]
  %s6 = inlined_call_operand.vmem [shape: f32[1,32], index: 6, kind: input, shape index: {}]
  %s7 = inlined_call_operand.vmem [shape: f32[16,32], index: 7, kind: output, shape index: {}]
  %s8 = sld [smem:[#allocation0]]
  $region46: #{cmta_binary_forward.19} parent=0
    _
  %s10 = ssub.s32 1, %s8
  %s11 = scalar_select 0, %s10, %s8
  // Predicated region
  $region2: #{cmta_binary_forward.19} parent=0 // pred_check
    _
  $region3: #{cmta_binary_forward.19} parent=0 // pred_check_branch
    %13 = sbr.rel (0) target = $region5
  $region4: #{cmta_binary_forward.19} parent=0 // pred_region
    _
  $region5: #{cmta_binary_forward.19} parent=0 // pred_fallthru
    _
  // Predicated region
  $region6: #{cmta_binary_forward.19} parent=0 // pred_check
    _
  $region7: #{cmta_binary_forward.19} parent=0 // pred_check_branch
    %15 = sbr.rel (0) target = $region9
  $region8: #{cmta_binary_forward.19} parent=0 // pred_region
    _
  $region9: #{cmta_binary_forward.19} parent=0 // pred_fallthru
    _
  // Predicated region
  $region10: #{cmta_binary_forward.19} parent=0 // pred_check
    _
  $region11: #{cmta_binary_forward.19} parent=0 // pred_check_branch
    %17 = sbr.rel (0) target = $region13
  $region12: #{cmta_binary_forward.19} parent=0 // pred_region
    _
  $region13: #{cmta_binary_forward.19} parent=0 // pred_fallthru
    _
  // Predicated region
  $region14: #{cmta_binary_forward.19} parent=0 // pred_check
    _
  $region15: #{cmta_binary_forward.19} parent=0 // pred_check_branch
    %19 = sbr.rel (0) target = $region17
  $region16: #{cmta_binary_forward.19} parent=0 // pred_region
    _
  $region17: #{cmta_binary_forward.19} parent=0 // pred_fallthru
    _
  // Predicated region
  $region18: #{cmta_binary_forward.19} parent=0 // pred_check
    _
  $region19: #{cmta_binary_forward.19} parent=0 // pred_check_branch
    %21 = sbr.rel (0) target = $region21
  $region20: #{cmta_binary_forward.19} parent=0 // pred_region
    _
  $region21: #{cmta_binary_forward.19} parent=0 // pred_fallthru
    _
  // Predicated region
  $region22: #{cmta_binary_forward.19} parent=0 // pred_check
    _
  $region23: #{cmta_binary_forward.19} parent=0 // pred_check_branch
    %23 = sbr.rel (0) target = $region25
  $region24: #{cmta_binary_forward.19} parent=0 // pred_region
    _
  $region25: #{cmta_binary_forward.19} parent=0 // pred_fallthru
    _
  // Predicated region
  $region26: #{cmta_binary_forward.19} parent=0 // pred_check
    _
  $region27: #{cmta_binary_forward.19} parent=0 // pred_check_branch
    %25 = sbr.rel (0) target = $region29
  $region28: #{cmta_binary_forward.19} parent=0 // pred_region
    _
  $region29: #{cmta_binary_forward.19} parent=0 // pred_fallthru
    _
  %p27 = scmp.eq.s32.totalorder 0, 0
  // Predicated region
  $region30: #{cmta_binary_forward.19} parent=0 // pred_check
    %p28 = pneg %p27
  $region31: #{cmta_binary_forward.19} parent=0 // pred_check_branch
    %30 = sbr.rel (%p28) target = $region33
  $region32: #{cmta_binary_forward.19} parent=0 // pred_region
    %vm31 = vcmask 7168
    %32 = vst.msk [vmem:[#allocation2] sm:$0xff] %vm31, -1e+30
    %33 = vst.msk [vmem:[#allocation2 + $0x8] sm:$0xff] %vm31, -1e+30
    %34 = vst.msk [vmem:[#allocation3] sm:$0xff] %vm31, 0.0
    %35 = vst.msk [vmem:[#allocation3 + $0x8] sm:$0xff] %vm31, 0.0
    %vm36 = vcmask 261120
    %37 = vst.msk [vmem:[#allocation4] sm:$0xff] %vm36, 0.0
    %38 = vst.msk [vmem:[#allocation4 + $0x8] sm:$0xff] %vm36, 0.0
  $region33: #{cmta_binary_forward.19} parent=0 // pred_fallthru
    _
  %v39 = vld [vmem:[%s1] sm:$0xf]
  %v40 = vld [vmem:[%s1 + $0x4] sm:$0xf]
  %v41 = vld [vmem:[%s2] sm:$0xf]
  %v42 = vld [vmem:[%s2 + $0x4] sm:$0xf]
  %v45 = vunpack.c.l.b16 %v39
  %v46 = vunpack.c.l.b16 %v40
  %v47 = vpack.c.b16 %v46, %v45
  %v50 = vunpack.c.l.b16 %v41
  %v51 = vunpack.c.l.b16 %v42
  %v52 = vpack.c.b16 %v51, %v50
  %53 = vrot.lane.b32.xlu0 %v52, 96
  %v54 = vpop.permute.xlu0 %53
  %vm55 = vcmask 261120
  %v57 = vsel %vm55, %v47, 0
  %v60 = vsel %vm55, %v54, 0
  %62 = vmatprep.subr.bf16.mxu0 0
  %63 = vmatpush1.bf16.xpose.msra.mxu0 0
  %64 = vmatprep.subr.bf16.mxu0 0
  %65 = vmatpush1.bf16.xpose.msra.mxu0 0
  %66 = vmatprep.subr.bf16.mxu0 0
  %67 = vmatpush1.bf16.xpose.msra.mxu0 0
  %68 = vmatprep.subr.bf16.mxu0 0
  %69 = vmatpush1.bf16.xpose.msra.mxu0 0
  %70 = vmatprep.subr.bf16.mxu0 0
  %71 = vmatpush1.bf16.xpose.msra.mxu0 0
  %72 = vmatprep.subr.bf16.mxu0 0
  %73 = vmatpush1.bf16.xpose.msra.mxu0 0
  %74 = vmatprep.subr.bf16.mxu0 0
  %75 = vmatpush1.bf16.xpose.msra.mxu0 0
  %76 = vmatprep.subr.bf16.mxu0 0
  %77 = vmatpush1.bf16.xpose.msra.mxu0 %v60
  %78 = vmatprep.subr.bf16.mxu0 0
  %79 = vmatpush2.bf16.xpose.msra.mxu0 0
  %80 = vmatprep.subr.bf16.mxu0 0
  %81 = vmatpush2.bf16.xpose.msra.mxu0 0
  %82 = vmatprep.subr.bf16.mxu0 0
  %83 = vmatpush2.bf16.xpose.msra.mxu0 0
  %84 = vmatprep.subr.bf16.mxu0 0
  %85 = vmatpush2.bf16.xpose.msra.mxu0 0
  %86 = vmatprep.subr.bf16.mxu0 0
  %87 = vmatpush2.bf16.xpose.msra.mxu0 0
  %88 = vmatprep.subr.bf16.mxu0 0
  %89 = vmatpush2.bf16.xpose.msra.mxu0 0
  %90 = vmatprep.subr.bf16.mxu0 0
  %91 = vmatpush2.bf16.xpose.msra.mxu0 0
  %92 = vmatprep.subr.bf16.mxu0 0
  %93 = vmatpush2.bf16.xpose.msra.mxu0 0
  %94 = vmatprep.mubr.bf16.mxu0 0
  %95 = vmatmul.mubr.bf16.gmra.mxu0 %v57
  %v96 = vpop.f32.mrf.mxu0
  %v97 = vadd.f32 0.0, %v96
  %v98 = vpop.f32.mrf.mxu0
  %v99 = vpop.f32.mrf.mxu0
  %v100 = vadd.f32 0.0, %v99
  %v101 = vpop.f32.mrf.mxu0
  %102 = vdwg.mxu0
  %v103 = vlaneseq
  %v104 = vand.u32 %v103, 127
  %s105 = smul.u32 0, 16
  %v106 = vstv %s105
  %v107 = vadd.s32 %v104, %v106
  %vm108 = vcmp.lt.s32.totalorder %v107, 10
  %v109 = vsel %vm108, %v97, -1e+30
  %v110 = vsel %vm108, %v100, -1e+30
  %v111 = vld [vmem:[#allocation2] sm:$0xff]
  %v112 = vld [vmem:[#allocation2 + $0x8] sm:$0xff]
  %vm113 = vcmask 130048
  %v114 = vsel %vm113, %v109, -inf
  %115 = vmax.xlane.f32.xlu0 %v114
  %v116 = vpop.xlane.xlu0 %115
  %v117 = vsel %vm113, %v110, -inf
  %118 = vmax.xlane.f32.xlu0 %v117
  %v119 = vpop.xlane.xlu0 %118
  %v120 = vmax.f32 %v111, %v116
  %v121 = vmax.f32 %v112, %v119
  %v122 = vsub.f32 %v111, %v120
  %v123 = vsub.f32 %v112, %v121
  %v124 = vmul.f32 %v122, 1.442695
  %v125 = vpow.pop %v124
  %v126 = vmul.f32 %v123, 1.442695
  %v127 = vpow.pop %v126
  %129 = vset.pattern.permute.xlu0 0
  %130 = vperm.xlu0 %129, %v120
  %v131 = vpop.permute.xlu0 %130
  %134 = vset.pattern.permute.xlu0 0
  %135 = vperm.xlu0 %134, %v121
  %v136 = vpop.permute.xlu0 %135
  %v138 = vsub.f32 %v109, %v131
  %v139 = vsub.f32 %v110, %v136
  %v140 = vmul.f32 %v138, 1.442695
  %v141 = vpow.pop %v140
  %v142 = vmul.f32 %v139, 1.442695
  %v143 = vpow.pop %v142
  %v144 = vsel %vm108, %v141, 0.0
  %v145 = vsel %vm108, %v143, 0.0
  %v146 = vld [vmem:[#allocation3] sm:$0xff]
  %v147 = vld [vmem:[#allocation3 + $0x8] sm:$0xff]
  %v148 = vmul.f32 %v125, %v146
  %v149 = vmul.f32 %v127, %v147
  %v150 = vsel %vm113, %v144, 0.0
  %151 = vadd.xlane.f32.xlu0 %v150
  %v152 = vpop.xlane.xlu0 %151
  %v153 = vsel %vm113, %v145, 0.0
  %154 = vadd.xlane.f32.xlu0 %v153
  %v155 = vpop.xlane.xlu0 %154
  %v156 = vadd.f32 %v148, %v152
  %v157 = vadd.f32 %v149, %v155
  %vm158 = vcmask 7168
  %159 = vst.msk [vmem:[#allocation3] sm:$0xff] %vm158, %v156
  %160 = vst.msk [vmem:[#allocation3 + $0x8] sm:$0xff] %vm158, %v157
  %v161 = vld [vmem:[#allocation4] sm:$0xff]
  %v162 = vld [vmem:[#allocation4 + $0x8] sm:$0xff]
  %164 = vset.pattern.permute.xlu0 0
  %165 = vperm.xlu0 %164, %v125
  %v166 = vpop.permute.xlu0 %165
  %169 = vset.pattern.permute.xlu0 0
  %170 = vperm.xlu0 %169, %v127
  %v171 = vpop.permute.xlu0 %170
  %v173 = vmul.f32 %v166, %v161
  %v174 = vmul.f32 %v171, %v162
  %v175 = vpack.c.bf16 %v145, %v144
  %176 = vrot.lane.b32.xlu0 %v52, 64
  %v177 = vpop.permute.xlu0 %176
  %v180 = vsel %vm113, %v175, 0
  %182 = vmatprep.subr.bf16.mxu0 0
  %183 = vmatpush1.bf16.msra.mxu0 0
  %184 = vmatprep.subr.bf16.mxu0 0
  %185 = vmatpush1.bf16.msra.mxu0 0
  %186 = vmatprep.subr.bf16.mxu0 0
  %187 = vmatpush1.bf16.msra.mxu0 0
  %188 = vmatprep.subr.bf16.mxu0 0
  %189 = vmatpush1.bf16.msra.mxu0 0
  %190 = vmatprep.subr.bf16.mxu0 0
  %191 = vmatpush1.bf16.msra.mxu0 0
  %192 = vmatprep.subr.bf16.mxu0 0
  %193 = vmatpush1.bf16.msra.mxu0 0
  %194 = vmatprep.subr.bf16.mxu0 0
  %195 = vmatpush1.bf16.msra.mxu0 0
  %196 = vmatprep.subr.bf16.mxu0 0
  %197 = vmatpush1.bf16.msra.mxu0 %v177
  %198 = vmatprep.subr.bf16.mxu0 0
  %199 = vmatpush2.bf16.msra.mxu0 0
  %200 = vmatprep.subr.bf16.mxu0 0
  %201 = vmatpush2.bf16.msra.mxu0 0
  %202 = vmatprep.subr.bf16.mxu0 0
  %203 = vmatpush2.bf16.msra.mxu0 0
  %204 = vmatprep.subr.bf16.mxu0 0
  %205 = vmatpush2.bf16.msra.mxu0 0
  %206 = vmatprep.subr.bf16.mxu0 0
  %207 = vmatpush2.bf16.msra.mxu0 0
  %208 = vmatprep.subr.bf16.mxu0 0
  %209 = vmatpush2.bf16.msra.mxu0 0
  %210 = vmatprep.subr.bf16.mxu0 0
  %211 = vmatpush2.bf16.msra.mxu0 0
  %212 = vmatprep.subr.bf16.mxu0 0
  %213 = vmatpush2.bf16.msra.mxu0 0
  %214 = vmatprep.mubr.bf16.mxu0 0
  %215 = vmatmul.mubr.bf16.gmra.mxu0 %v180
  %v216 = vpop.f32.mrf.mxu0
  %v217 = vadd.f32 0.0, %v216
  %v218 = vpop.f32.mrf.mxu0
  %v219 = vpop.f32.mrf.mxu0
  %v220 = vadd.f32 0.0, %v219
  %v221 = vpop.f32.mrf.mxu0
  %222 = vdwg.mxu0
  %v223 = vadd.f32 %v173, %v217
  %v224 = vadd.f32 %v174, %v220
  %225 = vst.msk [vmem:[#allocation4] sm:$0xff] %vm55, %v223
  %226 = vst.msk [vmem:[#allocation4 + $0x8] sm:$0xff] %vm55, %v224
  %227 = vst.msk [vmem:[#allocation2] sm:$0xff] %vm158, %v120
  %228 = vst.msk [vmem:[#allocation2 + $0x8] sm:$0xff] %vm158, %v121
  // Predicated region
  $region34: #{cmta_binary_forward.19} parent=0 // pred_check
    %p229 = pneg %p27
  $region35: #{cmta_binary_forward.19} parent=0 // pred_check_branch
    %231 = sbr.rel (%p229) target = $region37
  $region36: #{cmta_binary_forward.19} parent=0 // pred_region
    %v232 = vld [vmem:[#allocation4] sm:$0xff]
    %v233 = vld [vmem:[#allocation4 + $0x8] sm:$0xff]
    %v234 = vld [vmem:[#allocation3] sm:$0xff]
    %v235 = vld [vmem:[#allocation3 + $0x8] sm:$0xff]
    %v236 = vrcp.pop %v234
    %v237 = vrcp.pop %v235
    %239 = vset.pattern.permute.xlu0 0
    %240 = vperm.xlu0 %239, %v236
    %v241 = vpop.permute.xlu0 %240
    %244 = vset.pattern.permute.xlu0 0
    %245 = vperm.xlu0 %244, %v237
    %v246 = vpop.permute.xlu0 %245
    %v248 = vmul.f32 %v232, %v241
    %v249 = vmul.f32 %v233, %v246
    %v250 = vpack.c.bf16 %v249, %v248
    %v251 = vld [vmem:[%s5] sm:$0xf]
    %v252 = vld [vmem:[%s5 + $0x4] sm:$0xf]
    %v253 = vld [vmem:[%s5 + $0x8] sm:$0xf]
    %v254 = vld [vmem:[%s5 + $0xc] sm:$0xf]
    %v255 = vld [vmem:[%s6] sm:$0x1]
    %v257 = vlaneseq
    %v258 = vshrl.u32 %v257, 7
    %v259 = vsub.s32 0, %v258
    %v260 = vrot.slane %v255, %v259
    %v266 = vunpack.c.l.b16 %v251
    %v267 = vunpack.c.l.b16 %v252
    %v268 = vunpack.c.l.b16 %v253
    %v269 = vunpack.c.l.b16 %v254
    %v270 = vpack.c.b16 %v267, %v266
    %v271 = vpack.c.b16 %v269, %v268
    %v275 = vsel %vm55, %v250, 0
    %277 = vmatprep.subr.bf16.mxu0 0
    %278 = vmatpush1.bf16.msra.mxu0 0
    %279 = vmatprep.subr.bf16.mxu0 0
    %280 = vmatpush1.bf16.msra.mxu0 0
    %281 = vmatprep.subr.bf16.mxu0 0
    %282 = vmatpush1.bf16.msra.mxu0 0
    %283 = vmatprep.subr.bf16.mxu0 0
    %284 = vmatpush1.bf16.msra.mxu0 0
    %285 = vmatprep.subr.bf16.mxu0 0
    %286 = vmatpush1.bf16.msra.mxu0 0
    %287 = vmatprep.subr.bf16.mxu0 0
    %288 = vmatpush1.bf16.msra.mxu0 0
    %289 = vmatprep.subr.bf16.mxu0 0
    %290 = vmatpush1.bf16.msra.mxu0 %v271
    %291 = vmatprep.subr.bf16.mxu0 0
    %292 = vmatpush1.bf16.msra.mxu0 %v270
    %293 = vmatprep.subr.bf16.mxu0 0
    %294 = vmatpush2.bf16.msra.mxu0 0
    %295 = vmatprep.subr.bf16.mxu0 0
    %296 = vmatpush2.bf16.msra.mxu0 0
    %297 = vmatprep.subr.bf16.mxu0 0
    %298 = vmatpush2.bf16.msra.mxu0 0
    %299 = vmatprep.subr.bf16.mxu0 0
    %300 = vmatpush2.bf16.msra.mxu0 0
    %301 = vmatprep.subr.bf16.mxu0 0
    %302 = vmatpush2.bf16.msra.mxu0 0
    %303 = vmatprep.subr.bf16.mxu0 0
    %304 = vmatpush2.bf16.msra.mxu0 0
    %305 = vmatprep.subr.bf16.mxu0 0
    %306 = vmatpush2.bf16.msra.mxu0 0
    %307 = vmatprep.subr.bf16.mxu0 0
    %308 = vmatpush2.bf16.msra.mxu0 0
    %309 = vmatprep.mubr.bf16.mxu0 0
    %310 = vmatmul.mubr.bf16.gmra.mxu0 %v275
    %v311 = vpop.f32.mrf.mxu0
    %v312 = vadd.f32 %v260, %v311
    %v313 = vpop.f32.mrf.mxu0
    %v314 = vpop.f32.mrf.mxu0
    %v315 = vadd.f32 %v260, %v314
    %v316 = vpop.f32.mrf.mxu0
    %317 = vdwg.mxu0
    %v318 = vld [vmem:[%s0] sm:$0xff]
    %v319 = vld [vmem:[%s0 + $0x8] sm:$0xff]
    %v320 = vadd.f32 %v312, %v318
    %v321 = vadd.f32 %v315, %v319
    %v322 = vld [vmem:[%s3] sm:$0x1]
    %v323 = vld [vmem:[%s4] sm:$0x1]
    %v324 = vsel %vm55, %v320, 0.0
    %325 = vadd.xlane.f32.xlu0 %v324
    %v326 = vpop.xlane.xlu0 %325
    %v327 = vsel %vm55, %v321, 0.0
    %328 = vadd.xlane.f32.xlu0 %v327
    %v329 = vpop.xlane.xlu0 %328
    %v330 = vrcp.pop 32.0
    %v331 = vmul.f32 %v326, %v330
    %v332 = vmul.f32 %v329, %v330
    %v333 = vsub.f32 %v320, %v331
    %v334 = vsub.f32 %v321, %v332
    %v335 = vmul.f32 %v333, %v333
    %v336 = vmul.f32 %v334, %v334
    %v337 = vsel %vm55, %v335, 0.0
    %338 = vadd.xlane.f32.xlu0 %v337
    %v339 = vpop.xlane.xlu0 %338
    %v340 = vsel %vm55, %v336, 0.0
    %341 = vadd.xlane.f32.xlu0 %v340
    %v342 = vpop.xlane.xlu0 %341
    %v343 = vmul.f32 %v339, %v330
    %v344 = vmul.f32 %v342, %v330
    %v345 = vadd.f32 %v343, 1e-05
    %v346 = vadd.f32 %v344, 1e-05
    %v347 = vrsqrt.pop %v345
    %v348 = vrsqrt.pop %v346
    %v349 = vmul.f32 %v333, %v347
    %v350 = vmul.f32 %v334, %v348
    %v352 = vlaneseq
    %v353 = vshrl.u32 %v352, 7
    %v354 = vsub.s32 0, %v353
    %v355 = vrot.slane %v322, %v354
    %v357 = vmul.f32 %v349, %v355
    %v358 = vmul.f32 %v350, %v355
    %v360 = vlaneseq
    %v361 = vshrl.u32 %v360, 7
    %v362 = vsub.s32 0, %v361
    %v363 = vrot.slane %v323, %v362
    %v365 = vadd.f32 %v357, %v363
    %v366 = vadd.f32 %v358, %v363
    %367 = vst.msk [vmem:[%s7] sm:$0xff] %vm55, %v365
    %368 = vst.msk [vmem:[%s7 + $0x8] sm:$0xff] %vm55, %v366
  $region37: #{cmta_binary_forward.19} parent=0 // pred_fallthru
    _
  // Predicated region
  $region38: #{cmta_binary_forward.19} parent=0 // pred_check
    _
  $region39: #{cmta_binary_forward.19} parent=0 // pred_check_branch
    %370 = sbr.rel (0) target = $region41
  $region40: #{cmta_binary_forward.19} parent=0 // pred_region
    _
  $region41: #{cmta_binary_forward.19} parent=0 // pred_fallthru
    _
  // Predicated region
  $region42: #{cmta_binary_forward.19} parent=0 // pred_check
    _
  $region43: #{cmta_binary_forward.19} parent=0 // pred_check_branch
    %372 = sbr.rel (0) target = $region45
  $region44: #{cmta_binary_forward.19} parent=0 // pred_region
    _
  $region45: #{cmta_binary_forward.19} parent=0 // pred_fallthru
    _

// kernel: cmta_binary_forward.27
$region0: #{cmta_binary_forward.27}
  #allocation0 [shape = 'u32[]', space=smem, size = 0x4, offset = 0x4, fixed_abs, tag = 'smem constant byte address 0x4 - core index']
  #allocation1 [shape = 'u32[144,128]{1,0:T(1,128)}', space=vmem, size = 0x12000, scoped, tag = 'internal scratch']
  #allocation2 [shape = 'f32[8,32]{1,0:T(8,128)}', space=vmem, size = 0x1000, scoped, tag = 'scratch operand']
  #allocation3 [shape = 'f32[1,1]{1,0:T(1,128)S(1)}', space=vmem, size = 0x200, scoped, tag = 'scoped memory for cmta_binary_forward.27']
  %s0 = inlined_call_operand.smem [shape: u32[32], index: -1, kind: input, shape index: {}]
  %s1 = sld [smem:[%s0]]
  %s2 = scalar_lea.smem %s0, 1
  %s3 = sld [smem:[%s2]]
  %s4 = scalar_lea.smem %s0, 2
  %s5 = sld [smem:[%s4]]
  %s6 = scalar_lea.smem %s0, 3
  %s7 = sld [smem:[%s6]]
  %s8 = scalar_lea.smem %s0, 4
  %s9 = sld [smem:[%s8]]
  %s10 = scalar_lea.smem %s0, 5
  %s11 = sld [smem:[%s10]]
  %s12 = scalar_lea.smem %s0, 6
  %s13 = sld [smem:[%s12]]
  %s14 = scalar_lea.smem %s0, 7
  %s15 = sld [smem:[%s14]]
  %s16 = scalar_lea.smem %s0, 8
  %s17 = sld [smem:[%s16]]
  %s18 = scalar_lea.smem %s0, 9
  %s19 = sld [smem:[%s18]]
  %s20 = scalar_lea.smem %s0, 10
  %s21 = sld [smem:[%s20]]
  %s22 = scalar_lea.smem %s0, 11
  %s23 = sld [smem:[%s22]]
  %s24 = scalar_lea.smem %s0, 12
  %s25 = sld [smem:[%s24]]
  %s26 = scalar_lea.smem %s0, 13
  %s27 = sld [smem:[%s26]]
  %s28 = scalar_lea.smem %s0, 14
  %s29 = sld [smem:[%s28]]
  %s30 = scalar_lea.smem %s0, 15
  %s31 = sld [smem:[%s30]]
  %s32 = scalar_lea.smem %s0, 16
  %s33 = sld [smem:[%s32]]
  %s34 = scalar_lea.smem %s0, 17
  %s35 = sld [smem:[%s34]]
  %s36 = scalar_lea.smem %s0, 18
  %s37 = sld [smem:[%s36]]
  %s38 = scalar_lea.smem %s0, 19
  %s39 = sld [smem:[%s38]]
  %s40 = scalar_lea.smem %s0, 20
  %s41 = sld [smem:[%s40]]
  %s42 = scalar_lea.smem %s0, 21
  %s43 = sld [smem:[%s42]]
  %s44 = scalar_lea.smem %s0, 22
  %s45 = sld [smem:[%s44]]
  %s46 = scalar_lea.smem %s0, 23
  %s47 = sld [smem:[%s46]]
  %s48 = scalar_lea.smem %s0, 24
  %s49 = sld [smem:[%s48]]
  %s50 = scalar_lea.smem %s0, 25
  %s51 = sld [smem:[%s50]]
  %s52 = scalar_lea.smem %s0, 26
  %s53 = sld [smem:[%s52]]
  %s54 = scalar_lea.smem %s0, 27
  %s55 = sld [smem:[%s54]]
  %s56 = scalar_lea.smem %s0, 28
  %s57 = sld [smem:[%s56]]
  %s58 = scalar_lea.smem %s0, 29
  %s59 = sld [smem:[%s58]]
  %s60 = scalar_lea.smem %s0, 30
  %s61 = sld [smem:[%s60]]
  %s62 = scalar_lea.smem %s0, 31
  %s63 = sld [smem:[%s62]]
  %64 = xla_tuple %s57, %s59, %s61, %s63
  %s65 = sld [smem:[#allocation0]]
  $region146: #{cmta_binary_forward.27} parent=0
    _
  %s67 = ssub.s32 1, %s65
  %s68 = scalar_select 0, %s67, %s65
  %v69 = vstv %s55
  %70 = vst [vmem:[#allocation3] sm:$0x1] %v69
  $region1: #{cmta_binary_forward.27} parent=0
    #allocation4 [shape = 'u8[512]{0}', space=vmem, size = 0x400, scoped, tag = 'output window, operand 0, single buffered']
    #allocation5 [shape = 's32[1]{0}', space=sflag, size = 0x4, scoped, tag = 'scoped memory for cmta_binary_forward.27']
    #allocation6 [shape = 'u8[512]{0}', space=vmem, size = 0x400, scoped, tag = 'output window, operand 1, single buffered']
    #allocation7 [shape = 's32[1]{0}', space=sflag, size = 0x4, scoped, tag = 'scoped memory for cmta_binary_forward.27']
    #allocation8 [shape = 'u8[512]{0}', space=vmem, size = 0x400, scoped, tag = 'output window, operand 2, single buffered']
    #allocation9 [shape = 'u8[512]{0}', space=vmem, size = 0x400, scoped, tag = 'output window, operand 3, single buffered']
    #allocation10 [shape = 's32[1]{0}', space=sflag, size = 0x4, scoped, tag = 'scoped memory for cmta_binary_forward.27']
    %71 = vsyncpa [#allocation5], 0
    %72 = vsyncpa [#allocation7], 0
    %73 = vsyncpa [#allocation10], 0
    // Predicated region
    $region2: #{cmta_binary_forward.27} parent=1 // pred_check
      _
    $region3: #{cmta_binary_forward.27} parent=1 // pred_check_branch
      %75 = sbr.rel (0) target = $region5
    $region4: #{cmta_binary_forward.27} parent=1 // pred_region
      _
    $region5: #{cmta_binary_forward.27} parent=1 // pred_fallthru
      _
    // Predicated region
    $region6: #{cmta_binary_forward.27} parent=1 // pred_check
      _
    $region7: #{cmta_binary_forward.27} parent=1 // pred_check_branch
      %77 = sbr.rel (0) target = $region9
    $region8: #{cmta_binary_forward.27} parent=1 // pred_region
      _
    $region9: #{cmta_binary_forward.27} parent=1 // pred_fallthru
      _
    // Predicated region
    $region10: #{cmta_binary_forward.27} parent=1 // pred_check
      _
    $region11: #{cmta_binary_forward.27} parent=1 // pred_check_branch
      %79 = sbr.rel (0) target = $region13
    $region12: #{cmta_binary_forward.27} parent=1 // pred_region
      _
    $region13: #{cmta_binary_forward.27} parent=1 // pred_fallthru
      _
    // Predicated region
    $region14: #{cmta_binary_forward.27} parent=1 // pred_check
      _
    $region15: #{cmta_binary_forward.27} parent=1 // pred_check_branch
      %81 = sbr.rel (0) target = $region17
    $region16: #{cmta_binary_forward.27} parent=1 // pred_region
      _
    $region17: #{cmta_binary_forward.27} parent=1 // pred_fallthru
      _
    // Predicated region
    $region18: #{cmta_binary_forward.27} parent=1 // pred_check
      _
    $region19: #{cmta_binary_forward.27} parent=1 // pred_check_branch
      %83 = sbr.rel (0) target = $region21
    $region20: #{cmta_binary_forward.27} parent=1 // pred_region
      _
    $region21: #{cmta_binary_forward.27} parent=1 // pred_fallthru
      _
    // Predicated region
    $region22: #{cmta_binary_forward.27} parent=1 // pred_check
      _
    $region23: #{cmta_binary_forward.27} parent=1 // pred_check_branch
      %85 = sbr.rel (0) target = $region25
    $region24: #{cmta_binary_forward.27} parent=1 // pred_region
      _
    $region25: #{cmta_binary_forward.27} parent=1 // pred_fallthru
      _
    // Predicated region
    $region26: #{cmta_binary_forward.27} parent=1 // pred_check
      _
    $region27: #{cmta_binary_forward.27} parent=1 // pred_check_branch
      %87 = sbr.rel (0) target = $region29
    $region28: #{cmta_binary_forward.27} parent=1 // pred_region
      _
    $region29: #{cmta_binary_forward.27} parent=1 // pred_fallthru
      _
    // Predicated region
    $region30: #{cmta_binary_forward.27} parent=1 // pred_check
      _
    $region31: #{cmta_binary_forward.27} parent=1 // pred_check_branch
      %89 = sbr.rel (0) target = $region33
    $region32: #{cmta_binary_forward.27} parent=1 // pred_region
      _
    $region33: #{cmta_binary_forward.27} parent=1 // pred_fallthru
      _
    // Predicated region
    $region34: #{cmta_binary_forward.27} parent=1 // pred_check
      _
    $region35: #{cmta_binary_forward.27} parent=1 // pred_check_branch
      %91 = sbr.rel (0) target = $region37
    $region36: #{cmta_binary_forward.27} parent=1 // pred_region
      _
    $region37: #{cmta_binary_forward.27} parent=1 // pred_fallthru
      _
    // Predicated region
    $region38: #{cmta_binary_forward.27} parent=1 // pred_check
      _
    $region39: #{cmta_binary_forward.27} parent=1 // pred_check_branch
      %93 = sbr.rel (0) target = $region41
    $region40: #{cmta_binary_forward.27} parent=1 // pred_region
      _
    $region41: #{cmta_binary_forward.27} parent=1 // pred_fallthru
      _
    // Predicated region
    $region42: #{cmta_binary_forward.27} parent=1 // pred_check
      _
    $region43: #{cmta_binary_forward.27} parent=1 // pred_check_branch
      %95 = sbr.rel (0) target = $region45
    $region44: #{cmta_binary_forward.27} parent=1 // pred_region
      _
    $region45: #{cmta_binary_forward.27} parent=1 // pred_fallthru
      _
    // Predicated region
    $region46: #{cmta_binary_forward.27} parent=1 // pred_check
      _
    $region47: #{cmta_binary_forward.27} parent=1 // pred_check_branch
      %97 = sbr.rel (0) target = $region49
    $region48: #{cmta_binary_forward.27} parent=1 // pred_region
      _
    $region49: #{cmta_binary_forward.27} parent=1 // pred_fallthru
      _
    // Predicated region
    $region50: #{cmta_binary_forward.27} parent=1 // pred_check
      _
    $region51: #{cmta_binary_forward.27} parent=1 // pred_check_branch
      %99 = sbr.rel (0) target = $region53
    $region52: #{cmta_binary_forward.27} parent=1 // pred_region
      _
    $region53: #{cmta_binary_forward.27} parent=1 // pred_fallthru
      _
    // Predicated region
    $region54: #{cmta_binary_forward.27} parent=1 // pred_check
      _
    $region55: #{cmta_binary_forward.27} parent=1 // pred_check_branch
      %101 = sbr.rel (0) target = $region57
    $region56: #{cmta_binary_forward.27} parent=1 // pred_region
      _
    $region57: #{cmta_binary_forward.27} parent=1 // pred_fallthru
      _
    // Predicated region
    $region58: #{cmta_binary_forward.27} parent=1 // pred_check
      _
    $region59: #{cmta_binary_forward.27} parent=1 // pred_check_branch
      %103 = sbr.rel (0) target = $region61
    $region60: #{cmta_binary_forward.27} parent=1 // pred_region
      _
    $region61: #{cmta_binary_forward.27} parent=1 // pred_fallthru
      _
    // Predicated region
    $region62: #{cmta_binary_forward.27} parent=1 // pred_check
      _
    $region63: #{cmta_binary_forward.27} parent=1 // pred_check_branch
      %105 = sbr.rel (0) target = $region65
    $region64: #{cmta_binary_forward.27} parent=1 // pred_region
      _
    $region65: #{cmta_binary_forward.27} parent=1 // pred_fallthru
      _
    // Predicated region
    $region66: #{cmta_binary_forward.27} parent=1 // pred_check
      _
    $region67: #{cmta_binary_forward.27} parent=1 // pred_check_branch
      %107 = sbr.rel (0) target = $region69
    $region68: #{cmta_binary_forward.27} parent=1 // pred_region
      _
    $region69: #{cmta_binary_forward.27} parent=1 // pred_fallthru
      _
    // Predicated region
    $region70: #{cmta_binary_forward.27} parent=1 // pred_check
      _
    $region71: #{cmta_binary_forward.27} parent=1 // pred_check_branch
      %109 = sbr.rel (0) target = $region73
    $region72: #{cmta_binary_forward.27} parent=1 // pred_region
      _
    $region73: #{cmta_binary_forward.27} parent=1 // pred_fallthru
      _
    // Predicated region
    $region74: #{cmta_binary_forward.27} parent=1 // pred_check
      _
    $region75: #{cmta_binary_forward.27} parent=1 // pred_check_branch
      %111 = sbr.rel (0) target = $region77
    $region76: #{cmta_binary_forward.27} parent=1 // pred_region
      _
    $region77: #{cmta_binary_forward.27} parent=1 // pred_fallthru
      _
    // Predicated region
    $region78: #{cmta_binary_forward.27} parent=1 // pred_check
      _
    $region79: #{cmta_binary_forward.27} parent=1 // pred_check_branch
      %113 = sbr.rel (0) target = $region81
    $region80: #{cmta_binary_forward.27} parent=1 // pred_region
      _
    $region81: #{cmta_binary_forward.27} parent=1 // pred_fallthru
      _
    // Predicated region
    $region82: #{cmta_binary_forward.27} parent=1 // pred_check
      _
    $region83: #{cmta_binary_forward.27} parent=1 // pred_check_branch
      %115 = sbr.rel (0) target = $region85
    $region84: #{cmta_binary_forward.27} parent=1 // pred_region
      _
    $region85: #{cmta_binary_forward.27} parent=1 // pred_fallthru
      _
    // Predicated region
    $region86: #{cmta_binary_forward.27} parent=1 // pred_check
      _
    $region87: #{cmta_binary_forward.27} parent=1 // pred_check_branch
      %117 = sbr.rel (0) target = $region89
    $region88: #{cmta_binary_forward.27} parent=1 // pred_region
      _
    $region89: #{cmta_binary_forward.27} parent=1 // pred_fallthru
      _
    // Predicated region
    $region90: #{cmta_binary_forward.27} parent=1 // pred_check
      _
    $region91: #{cmta_binary_forward.27} parent=1 // pred_check_branch
      %119 = sbr.rel (0) target = $region93
    $region92: #{cmta_binary_forward.27} parent=1 // pred_region
      _
    $region93: #{cmta_binary_forward.27} parent=1 // pred_fallthru
      _
    // Predicated region
    $region94: #{cmta_binary_forward.27} parent=1 // pred_check
      _
    $region95: #{cmta_binary_forward.27} parent=1 // pred_check_branch
      %121 = sbr.rel (0) target = $region97
    $region96: #{cmta_binary_forward.27} parent=1 // pred_region
      _
    $region97: #{cmta_binary_forward.27} parent=1 // pred_fallthru
      _
    // Predicated region
    $region98: #{cmta_binary_forward.27} parent=1 // pred_check
      _
    $region99: #{cmta_binary_forward.27} parent=1 // pred_check_branch
      %123 = sbr.rel (0) target = $region101
    $region100: #{cmta_binary_forward.27} parent=1 // pred_region
      _
    $region101: #{cmta_binary_forward.27} parent=1 // pred_fallthru
      _
    // Predicated region
    $region102: #{cmta_binary_forward.27} parent=1 // pred_check
      _
    $region103: #{cmta_binary_forward.27} parent=1 // pred_check_branch
      %125 = sbr.rel (0) target = $region105
    $region104: #{cmta_binary_forward.27} parent=1 // pred_region
      _
    $region105: #{cmta_binary_forward.27} parent=1 // pred_fallthru
      _
    // Predicated region
    $region106: #{cmta_binary_forward.27} parent=1 // pred_check
      _
    $region107: #{cmta_binary_forward.27} parent=1 // pred_check_branch
      %127 = sbr.rel (0) target = $region109
    $region108: #{cmta_binary_forward.27} parent=1 // pred_region
      _
    $region109: #{cmta_binary_forward.27} parent=1 // pred_fallthru
      _
    // Predicated region
    $region110: #{cmta_binary_forward.27} parent=1 // pred_check
      _
    $region111: #{cmta_binary_forward.27} parent=1 // pred_check_branch
      %129 = sbr.rel (0) target = $region113
    $region112: #{cmta_binary_forward.27} parent=1 // pred_region
      _
    $region113: #{cmta_binary_forward.27} parent=1 // pred_fallthru
      _
    %v131 = vld [vmem:[%s1] sm:$0xff]
    %v132 = vpack.c.bf16 %v131, %v131
    %v133 = vld [vmem:[%s9] sm:$0xf]
    %v134 = vld [vmem:[%s9 + $0x4] sm:$0xf]
    %v135 = vld [vmem:[%s9 + $0x8] sm:$0xf]
    %v136 = vld [vmem:[%s9 + $0xc] sm:$0xf]
    %v137 = vld [vmem:[%s11] sm:$0x1]
    %v139 = vlaneseq
    %v140 = vshrl.u32 %v139, 7
    %v141 = vsub.s32 0, %v140
    %v142 = vrot.slane %v137, %v141
    %v148 = vunpack.c.l.b16 %v133
    %v149 = vunpack.c.l.b16 %v134
    %v150 = vunpack.c.l.b16 %v135
    %v151 = vunpack.c.l.b16 %v136
    %v152 = vpack.c.b16 %v149, %v148
    %v153 = vpack.c.b16 %v151, %v150
    %vm156 = vcmask 261120
    %v158 = vsel %vm156, %v132, 0
    %160 = vmatprep.subr.bf16.mxu0 0
    %161 = vmatpush1.bf16.msra.mxu0 0
    %162 = vmatprep.subr.bf16.mxu0 0
    %163 = vmatpush1.bf16.msra.mxu0 0
    %164 = vmatprep.subr.bf16.mxu0 0
    %165 = vmatpush1.bf16.msra.mxu0 0
    %166 = vmatprep.subr.bf16.mxu0 0
    %167 = vmatpush1.bf16.msra.mxu0 0
    %168 = vmatprep.subr.bf16.mxu0 0
    %169 = vmatpush1.bf16.msra.mxu0 0
    %170 = vmatprep.subr.bf16.mxu0 0
    %171 = vmatpush1.bf16.msra.mxu0 0
    %172 = vmatprep.subr.bf16.mxu0 0
    %173 = vmatpush1.bf16.msra.mxu0 %v153
    %174 = vmatprep.subr.bf16.mxu0 0
    %175 = vmatpush1.bf16.msra.mxu0 %v152
    %176 = vmatprep.subr.bf16.mxu0 0
    %177 = vmatpush2.bf16.msra.mxu0 0
    %178 = vmatprep.subr.bf16.mxu0 0
    %179 = vmatpush2.bf16.msra.mxu0 0
    %180 = vmatprep.subr.bf16.mxu0 0
    %181 = vmatpush2.bf16.msra.mxu0 0
    %182 = vmatprep.subr.bf16.mxu0 0
    %183 = vmatpush2.bf16.msra.mxu0 0
    %184 = vmatprep.subr.bf16.mxu0 0
    %185 = vmatpush2.bf16.msra.mxu0 0
    %186 = vmatprep.subr.bf16.mxu0 0
    %187 = vmatpush2.bf16.msra.mxu0 0
    %188 = vmatprep.subr.bf16.mxu0 0
    %189 = vmatpush2.bf16.msra.mxu0 0
    %190 = vmatprep.subr.bf16.mxu0 0
    %191 = vmatpush2.bf16.msra.mxu0 0
    %192 = vmatprep.mubr.bf16.mxu0 0
    %193 = vmatmul.mubr.bf16.gmra.mxu0 %v158
    %v194 = vpop.f32.mrf.mxu0
    %v195 = vadd.f32 %v142, %v194
    %v196 = vpop.f32.mrf.mxu0
    %v197 = vpop.f32.mrf.mxu0
    %v198 = vpop.f32.mrf.mxu0
    %199 = vdwg.mxu0
    %v200 = vld [vmem:[%s3] sm:$0xff]
    %v201 = vld [vmem:[%s3 + $0x8] sm:$0xff]
    %v202 = vpack.c.bf16 %v201, %v200
    %v203 = vld [vmem:[%s13] sm:$0xf]
    %v204 = vld [vmem:[%s13 + $0x4] sm:$0xf]
    %v205 = vld [vmem:[%s13 + $0x8] sm:$0xf]
    %v206 = vld [vmem:[%s13 + $0xc] sm:$0xf]
    %v207 = vld [vmem:[%s15] sm:$0x1]
    %v209 = vlaneseq
    %v210 = vshrl.u32 %v209, 7
    %v211 = vsub.s32 0, %v210
    %v212 = vrot.slane %v207, %v211
    %v218 = vunpack.c.l.b16 %v203
    %v219 = vunpack.c.l.b16 %v204
    %v220 = vunpack.c.l.b16 %v205
    %v221 = vunpack.c.l.b16 %v206
    %v222 = vpack.c.b16 %v219, %v218
    %v223 = vpack.c.b16 %v221, %v220
    %v227 = vsel %vm156, %v202, 0
    %229 = vmatprep.subr.bf16.mxu0 0
    %230 = vmatpush1.bf16.msra.mxu0 0
    %231 = vmatprep.subr.bf16.mxu0 0
    %232 = vmatpush1.bf16.msra.mxu0 0
    %233 = vmatprep.subr.bf16.mxu0 0
    %234 = vmatpush1.bf16.msra.mxu0 0
    %235 = vmatprep.subr.bf16.mxu0 0
    %236 = vmatpush1.bf16.msra.mxu0 0
    %237 = vmatprep.subr.bf16.mxu0 0
    %238 = vmatpush1.bf16.msra.mxu0 0
    %239 = vmatprep.subr.bf16.mxu0 0
    %240 = vmatpush1.bf16.msra.mxu0 0
    %241 = vmatprep.subr.bf16.mxu0 0
    %242 = vmatpush1.bf16.msra.mxu0 %v223
    %243 = vmatprep.subr.bf16.mxu0 0
    %244 = vmatpush1.bf16.msra.mxu0 %v222
    %245 = vmatprep.subr.bf16.mxu0 0
    %246 = vmatpush2.bf16.msra.mxu0 0
    %247 = vmatprep.subr.bf16.mxu0 0
    %248 = vmatpush2.bf16.msra.mxu0 0
    %249 = vmatprep.subr.bf16.mxu0 0
    %250 = vmatpush2.bf16.msra.mxu0 0
    %251 = vmatprep.subr.bf16.mxu0 0
    %252 = vmatpush2.bf16.msra.mxu0 0
    %253 = vmatprep.subr.bf16.mxu0 0
    %254 = vmatpush2.bf16.msra.mxu0 0
    %255 = vmatprep.subr.bf16.mxu0 0
    %256 = vmatpush2.bf16.msra.mxu0 0
    %257 = vmatprep.subr.bf16.mxu0 0
    %258 = vmatpush2.bf16.msra.mxu0 0
    %259 = vmatprep.subr.bf16.mxu0 0
    %260 = vmatpush2.bf16.msra.mxu0 0
    %261 = vmatprep.mubr.bf16.mxu0 0
    %262 = vmatmul.mubr.bf16.gmra.mxu0 %v227
    %v263 = vpop.f32.mrf.mxu0
    %v264 = vadd.f32 %v212, %v263
    %v265 = vpop.f32.mrf.mxu0
    %v266 = vpop.f32.mrf.mxu0
    %v267 = vadd.f32 %v212, %v266
    %v268 = vpop.f32.mrf.mxu0
    %269 = vdwg.mxu0
    %v270 = vpack.c.bf16 %v195, %v195
    %v271 = vpack.c.bf16 %v267, %v264
    %v273 = vsel %vm156, %v270, 0
    %v276 = vsel %vm156, %v271, 0
    %278 = vmatprep.subr.bf16.mxu0 0
    %279 = vmatpush1.bf16.xpose.msra.mxu0 0
    %280 = vmatprep.subr.bf16.mxu0 0
    %281 = vmatpush1.bf16.xpose.msra.mxu0 0
    %282 = vmatprep.subr.bf16.mxu0 0
    %283 = vmatpush1.bf16.xpose.msra.mxu0 0
    %284 = vmatprep.subr.bf16.mxu0 0
    %285 = vmatpush1.bf16.xpose.msra.mxu0 0
    %286 = vmatprep.subr.bf16.mxu0 0
    %287 = vmatpush1.bf16.xpose.msra.mxu0 0
    %288 = vmatprep.subr.bf16.mxu0 0
    %289 = vmatpush1.bf16.xpose.msra.mxu0 0
    %290 = vmatprep.subr.bf16.mxu0 0
    %291 = vmatpush1.bf16.xpose.msra.mxu0 0
    %292 = vmatprep.subr.bf16.mxu0 0
    %293 = vmatpush1.bf16.xpose.msra.mxu0 %v276
    %294 = vmatprep.subr.bf16.mxu0 0
    %295 = vmatpush2.bf16.xpose.msra.mxu0 0
    %296 = vmatprep.subr.bf16.mxu0 0
    %297 = vmatpush2.bf16.xpose.msra.mxu0 0
    %298 = vmatprep.subr.bf16.mxu0 0
    %299 = vmatpush2.bf16.xpose.msra.mxu0 0
    %300 = vmatprep.subr.bf16.mxu0 0
    %301 = vmatpush2.bf16.xpose.msra.mxu0 0
    %302 = vmatprep.subr.bf16.mxu0 0
    %303 = vmatpush2.bf16.xpose.msra.mxu0 0
    %304 = vmatprep.subr.bf16.mxu0 0
    %305 = vmatpush2.bf16.xpose.msra.mxu0 0
    %306 = vmatprep.subr.bf16.mxu0 0
    %307 = vmatpush2.bf16.xpose.msra.mxu0 0
    %308 = vmatprep.subr.bf16.mxu0 0
    %309 = vmatpush2.bf16.xpose.msra.mxu0 0
    %310 = vmatprep.mubr.bf16.mxu0 0
    %311 = vmatmul.mubr.bf16.gmra.mxu0 %v273
    %v312 = vpop.f32.mrf.mxu0
    %v313 = vadd.f32 0.0, %v312
    %v314 = vpop.f32.mrf.mxu0
    %v315 = vpop.f32.mrf.mxu0
    %v316 = vpop.f32.mrf.mxu0
    %317 = vdwg.mxu0
    %v318 = vlaneseq
    %v319 = vand.u32 %v318, 127
    %vm320 = vcmp.lt.s32.totalorder %v319, 9
    %v321 = vsel %vm320, %v313, -1e+30
    %vm322 = vcmask 130048
    %v323 = vsel %vm322, %v321, -inf
    %324 = vmax.xlane.f32.xlu0 %v323
    %v325 = vpop.xlane.xlu0 %324
    %v326 = vsub.f32 %v321, %v325
    %v327 = vmul.f32 %v326, 1.442695
    %v328 = vpow.pop %v327
    %v329 = vsel %vm320, %v328, 0.0
    %v330 = vsel %vm322, %v329, 0.0
    %331 = vadd.xlane.f32.xlu0 %v330
    %v332 = vpop.xlane.xlu0 %331
    %v333 = vrcp.pop %v332
    %v334 = vmul.f32 %v329, %v333
    %v335 = vpack.c.bf16 %v334, %v334
    %337 = vrot.lane.b32.xlu0 %v271, 96
    %v338 = vpop.permute.xlu0 %337
    %v341 = vsel %vm322, %v335, 0
    %343 = vmatprep.subr.bf16.mxu0 0
    %344 = vmatpush1.bf16.msra.mxu0 0
    %345 = vmatprep.subr.bf16.mxu0 0
    %346 = vmatpush1.bf16.msra.mxu0 0
    %347 = vmatprep.subr.bf16.mxu0 0
    %348 = vmatpush1.bf16.msra.mxu0 0
    %349 = vmatprep.subr.bf16.mxu0 0
    %350 = vmatpush1.bf16.msra.mxu0 0
    %351 = vmatprep.subr.bf16.mxu0 0
    %352 = vmatpush1.bf16.msra.mxu0 0
    %353 = vmatprep.subr.bf16.mxu0 0
    %354 = vmatpush1.bf16.msra.mxu0 0
    %355 = vmatprep.subr.bf16.mxu0 0
    %356 = vmatpush1.bf16.msra.mxu0 0
    %357 = vmatprep.subr.bf16.mxu0 0
    %358 = vmatpush1.bf16.msra.mxu0 %v338
    %359 = vmatprep.subr.bf16.mxu0 0
    %360 = vmatpush2.bf16.msra.mxu0 0
    %361 = vmatprep.subr.bf16.mxu0 0
    %362 = vmatpush2.bf16.msra.mxu0 0
    %363 = vmatprep.subr.bf16.mxu0 0
    %364 = vmatpush2.bf16.msra.mxu0 0
    %365 = vmatprep.subr.bf16.mxu0 0
    %366 = vmatpush2.bf16.msra.mxu0 0
    %367 = vmatprep.subr.bf16.mxu0 0
    %368 = vmatpush2.bf16.msra.mxu0 0
    %369 = vmatprep.subr.bf16.mxu0 0
    %370 = vmatpush2.bf16.msra.mxu0 0
    %371 = vmatprep.subr.bf16.mxu0 0
    %372 = vmatpush2.bf16.msra.mxu0 0
    %373 = vmatprep.subr.bf16.mxu0 0
    %374 = vmatpush2.bf16.msra.mxu0 0
    %375 = vmatprep.mubr.bf16.mxu0 0
    %376 = vmatmul.mubr.bf16.gmra.mxu0 %v341
    %v377 = vpop.f32.mrf.mxu0
    %v378 = vadd.f32 0.0, %v377
    %v379 = vpop.f32.mrf.mxu0
    %v380 = vpop.f32.mrf.mxu0
    %v381 = vpop.f32.mrf.mxu0
    %382 = vdwg.mxu0
    %v383 = vpack.c.bf16 %v378, %v378
    %v384 = vld [vmem:[%s17] sm:$0xf]
    %v385 = vld [vmem:[%s17 + $0x4] sm:$0xf]
    %v386 = vld [vmem:[%s17 + $0x8] sm:$0xf]
    %v387 = vld [vmem:[%s17 + $0xc] sm:$0xf]
    %v388 = vld [vmem:[%s19] sm:$0x1]
    %v390 = vlaneseq
    %v391 = vshrl.u32 %v390, 7
    %v392 = vsub.s32 0, %v391
    %v393 = vrot.slane %v388, %v392
    %v399 = vunpack.c.l.b16 %v384
    %v400 = vunpack.c.l.b16 %v385
    %v401 = vunpack.c.l.b16 %v386
    %v402 = vunpack.c.l.b16 %v387
    %v403 = vpack.c.b16 %v400, %v399
    %v404 = vpack.c.b16 %v402, %v401
    %v408 = vsel %vm156, %v383, 0
    %410 = vmatprep.subr.bf16.mxu0 0
    %411 = vmatpush1.bf16.msra.mxu0 0
    %412 = vmatprep.subr.bf16.mxu0 0
    %413 = vmatpush1.bf16.msra.mxu0 0
    %414 = vmatprep.subr.bf16.mxu0 0
    %415 = vmatpush1.bf16.msra.mxu0 0
    %416 = vmatprep.subr.bf16.mxu0 0
    %417 = vmatpush1.bf16.msra.mxu0 0
    %418 = vmatprep.subr.bf16.mxu0 0
    %419 = vmatpush1.bf16.msra.mxu0 0
    %420 = vmatprep.subr.bf16.mxu0 0
    %421 = vmatpush1.bf16.msra.mxu0 0
    %422 = vmatprep.subr.bf16.mxu0 0
    %423 = vmatpush1.bf16.msra.mxu0 %v404
    %424 = vmatprep.subr.bf16.mxu0 0
    %425 = vmatpush1.bf16.msra.mxu0 %v403
    %426 = vmatprep.subr.bf16.mxu0 0
    %427 = vmatpush2.bf16.msra.mxu0 0
    %428 = vmatprep.subr.bf16.mxu0 0
    %429 = vmatpush2.bf16.msra.mxu0 0
    %430 = vmatprep.subr.bf16.mxu0 0
    %431 = vmatpush2.bf16.msra.mxu0 0
    %432 = vmatprep.subr.bf16.mxu0 0
    %433 = vmatpush2.bf16.msra.mxu0 0
    %434 = vmatprep.subr.bf16.mxu0 0
    %435 = vmatpush2.bf16.msra.mxu0 0
    %436 = vmatprep.subr.bf16.mxu0 0
    %437 = vmatpush2.bf16.msra.mxu0 0
    %438 = vmatprep.subr.bf16.mxu0 0
    %439 = vmatpush2.bf16.msra.mxu0 0
    %440 = vmatprep.subr.bf16.mxu0 0
    %441 = vmatpush2.bf16.msra.mxu0 0
    %442 = vmatprep.mubr.bf16.mxu0 0
    %443 = vmatmul.mubr.bf16.gmra.mxu0 %v408
    %v444 = vpop.f32.mrf.mxu0
    %v445 = vadd.f32 %v393, %v444
    %v446 = vpop.f32.mrf.mxu0
    %v447 = vpop.f32.mrf.mxu0
    %v448 = vpop.f32.mrf.mxu0
    %449 = vdwg.mxu0
    %450 = vst.msk [vmem:[#allocation2] sm:$0xff] %vm156, 0.0
    %v451 = vld [vmem:[%s21] sm:$0x1]
    %vm452 = vcmask 253952
    %453 = vst.msk [vmem:[#allocation2] sm:$0x1] %vm452, %v451
    %vm454 = vcmask 256001
    %455 = vst.msk [vmem:[#allocation2] sm:$0x6] %vm454, %v445
    %v456 = vld [vmem:[#allocation2] sm:$0xff]
    %v457 = vld [vmem:[%s23] sm:$0x1]
    %v458 = vld [vmem:[%s25] sm:$0x1]
    %v459 = vld [vmem:[%s27] sm:$0xf]
    %v460 = vld [vmem:[%s27 + $0x4] sm:$0xf]
    %v461 = vld [vmem:[%s27 + $0x8] sm:$0xf]
    %v462 = vld [vmem:[%s27 + $0xc] sm:$0xf]
    %v463 = vld [vmem:[%s29] sm:$0x1]
    %v464 = vld [vmem:[%s31] sm:$0xf]
    %v465 = vld [vmem:[%s31 + $0x4] sm:$0xf]
    %v466 = vld [vmem:[%s31 + $0x8] sm:$0xf]
    %v467 = vld [vmem:[%s31 + $0xc] sm:$0xf]
    %v468 = vld [vmem:[%s33] sm:$0x1]
    %v469 = vsel %vm156, %v456, 0.0
    %470 = vadd.xlane.f32.xlu0 %v469
    %v471 = vpop.xlane.xlu0 %470
    %v472 = vrcp.pop 32.0
    %v473 = vmul.f32 %v471, %v472
    %v474 = vsub.f32 %v456, %v473
    %v475 = vmul.f32 %v474, %v474
    %v476 = vsel %vm156, %v475, 0.0
    %477 = vadd.xlane.f32.xlu0 %v476
    %v478 = vpop.xlane.xlu0 %477
    %v479 = vmul.f32 %v478, %v472
    %v480 = vadd.f32 %v479, 1e-05
    %v481 = vrsqrt.pop %v480
    %v482 = vmul.f32 %v474, %v481
    %v484 = vlaneseq
    %v485 = vshrl.u32 %v484, 7
    %v486 = vsub.s32 0, %v485
    %v487 = vrot.slane %v457, %v486
    %v489 = vmul.f32 %v482, %v487
    %v491 = vlaneseq
    %v492 = vshrl.u32 %v491, 7
    %v493 = vsub.s32 0, %v492
    %v494 = vrot.slane %v458, %v493
    %v496 = vadd.f32 %v489, %v494
    %v497 = vpack.c.bf16 %v496, %v496
    %v499 = vlaneseq
    %v500 = vshrl.u32 %v499, 7
    %v501 = vsub.s32 0, %v500
    %v502 = vrot.slane %v463, %v501
    %v508 = vunpack.c.l.b16 %v459
    %v509 = vunpack.c.l.b16 %v460
    %v510 = vunpack.c.l.b16 %v461
    %v511 = vunpack.c.l.b16 %v462
    %v512 = vpack.c.b16 %v509, %v508
    %v513 = vpack.c.b16 %v511, %v510
    %v517 = vsel %vm156, %v497, 0
    %519 = vmatprep.subr.bf16.mxu0 0
    %520 = vmatpush1.bf16.msra.mxu0 0
    %521 = vmatprep.subr.bf16.mxu0 0
    %522 = vmatpush1.bf16.msra.mxu0 0
    %523 = vmatprep.subr.bf16.mxu0 0
    %524 = vmatpush1.bf16.msra.mxu0 0
    %525 = vmatprep.subr.bf16.mxu0 0
    %526 = vmatpush1.bf16.msra.mxu0 0
    %527 = vmatprep.subr.bf16.mxu0 0
    %528 = vmatpush1.bf16.msra.mxu0 0
    %529 = vmatprep.subr.bf16.mxu0 0
    %530 = vmatpush1.bf16.msra.mxu0 0
    %531 = vmatprep.subr.bf16.mxu0 0
    %532 = vmatpush1.bf16.msra.mxu0 %v513
    %533 = vmatprep.subr.bf16.mxu0 0
    %534 = vmatpush1.bf16.msra.mxu0 %v512
    %535 = vmatprep.subr.bf16.mxu0 0
    %536 = vmatpush2.bf16.msra.mxu0 0
    %537 = vmatprep.subr.bf16.mxu0 0
    %538 = vmatpush2.bf16.msra.mxu0 0
    %539 = vmatprep.subr.bf16.mxu0 0
    %540 = vmatpush2.bf16.msra.mxu0 0
    %541 = vmatprep.subr.bf16.mxu0 0
    %542 = vmatpush2.bf16.msra.mxu0 0
    %543 = vmatprep.subr.bf16.mxu0 0
    %544 = vmatpush2.bf16.msra.mxu0 0
    %545 = vmatprep.subr.bf16.mxu0 0
    %546 = vmatpush2.bf16.msra.mxu0 0
    %547 = vmatprep.subr.bf16.mxu0 0
    %548 = vmatpush2.bf16.msra.mxu0 0
    %549 = vmatprep.subr.bf16.mxu0 0
    %550 = vmatpush2.bf16.msra.mxu0 0
    %551 = vmatprep.mubr.bf16.mxu0 0
    %552 = vmatmul.mubr.bf16.gmra.mxu0 %v517
    %v553 = vpop.f32.mrf.mxu0
    %v554 = vadd.f32 %v502, %v553
    %v555 = vpop.f32.mrf.mxu0
    %v556 = vpop.f32.mrf.mxu0
    %v557 = vpop.f32.mrf.mxu0
    %558 = vdwg.mxu0
    %v559 = vpack.c.bf16 %v554, %v554
    %561 = vrot.lane.b32.xlu0 %v559, 96
    %v562 = vpop.permute.xlu0 %561
    %v564 = vsel %vm156, %v559, 0
    %v567 = vsel %vm156, %v562, 0
    %569 = vmatprep.subr.bf16.mxu0 0
    %570 = vmatpush1.bf16.xpose.msra.mxu0 0
    %571 = vmatprep.subr.bf16.mxu0 0
    %572 = vmatpush1.bf16.xpose.msra.mxu0 0
    %573 = vmatprep.subr.bf16.mxu0 0
    %574 = vmatpush1.bf16.xpose.msra.mxu0 0
    %575 = vmatprep.subr.bf16.mxu0 0
    %576 = vmatpush1.bf16.xpose.msra.mxu0 0
    %577 = vmatprep.subr.bf16.mxu0 0
    %578 = vmatpush1.bf16.xpose.msra.mxu0 0
    %579 = vmatprep.subr.bf16.mxu0 0
    %580 = vmatpush1.bf16.xpose.msra.mxu0 0
    %581 = vmatprep.subr.bf16.mxu0 0
    %582 = vmatpush1.bf16.xpose.msra.mxu0 0
    %583 = vmatprep.subr.bf16.mxu0 0
    %584 = vmatpush1.bf16.xpose.msra.mxu0 %v567
    %585 = vmatprep.subr.bf16.mxu0 0
    %586 = vmatpush2.bf16.xpose.msra.mxu0 0
    %587 = vmatprep.subr.bf16.mxu0 0
    %588 = vmatpush2.bf16.xpose.msra.mxu0 0
    %589 = vmatprep.subr.bf16.mxu0 0
    %590 = vmatpush2.bf16.xpose.msra.mxu0 0
    %591 = vmatprep.subr.bf16.mxu0 0
    %592 = vmatpush2.bf16.xpose.msra.mxu0 0
    %593 = vmatprep.subr.bf16.mxu0 0
    %594 = vmatpush2.bf16.xpose.msra.mxu0 0
    %595 = vmatprep.subr.bf16.mxu0 0
    %596 = vmatpush2.bf16.xpose.msra.mxu0 0
    %597 = vmatprep.subr.bf16.mxu0 0
    %598 = vmatpush2.bf16.xpose.msra.mxu0 0
    %599 = vmatprep.subr.bf16.mxu0 0
    %600 = vmatpush2.bf16.xpose.msra.mxu0 0
    %601 = vmatprep.mubr.bf16.mxu0 0
    %602 = vmatmul.mubr.bf16.gmra.mxu0 %v564
    %v603 = vpop.f32.mrf.mxu0
    %v604 = vadd.f32 0.0, %v603
    %v605 = vpop.f32.mrf.mxu0
    %v606 = vpop.f32.mrf.mxu0
    %v607 = vpop.f32.mrf.mxu0
    %608 = vdwg.mxu0
    %vm609 = vcmp.lt.s32.totalorder %v319, 3
    %v610 = vsel %vm609, %v604, -1e+30
    %vm611 = vcmask 64512
    %v612 = vsel %vm611, %v610, -inf
    %613 = vmax.xlane.f32.xlu0 %v612
    %v614 = vpop.xlane.xlu0 %613
    %v615 = vsub.f32 %v610, %v614
    %v616 = vmul.f32 %v615, 1.442695
    %v617 = vpow.pop %v616
    %v618 = vsel %vm609, %v617, 0.0
    %v619 = vsel %vm611, %v618, 0.0
    %620 = vadd.xlane.f32.xlu0 %v619
    %v621 = vpop.xlane.xlu0 %620
    %v622 = vrcp.pop %v621
    %v623 = vmul.f32 %v618, %v622
    %v624 = vpack.c.bf16 %v623, %v623
    %625 = vrot.lane.b32.xlu0 %v559, 64
    %v626 = vpop.permute.xlu0 %625
    %v628 = vsel %vm611, %v624, 0
    %vm630 = vcmask 1043456
    %v632 = vsel %vm630, %v626, 0
    %634 = vmatprep.subr.bf16.mxu0 0
    %635 = vmatpush1.bf16.msra.mxu0 0
    %636 = vmatprep.subr.bf16.mxu0 0
    %637 = vmatpush1.bf16.msra.mxu0 0
    %638 = vmatprep.subr.bf16.mxu0 0
    %639 = vmatpush1.bf16.msra.mxu0 0
    %640 = vmatprep.subr.bf16.mxu0 0
    %641 = vmatpush1.bf16.msra.mxu0 0
    %642 = vmatprep.subr.bf16.mxu0 0
    %643 = vmatpush1.bf16.msra.mxu0 0
    %644 = vmatprep.subr.bf16.mxu0 0
    %645 = vmatpush1.bf16.msra.mxu0 0
    %646 = vmatprep.subr.bf16.mxu0 0
    %647 = vmatpush1.bf16.msra.mxu0 0
    %648 = vmatprep.subr.bf16.mxu0 0
    %649 = vmatpush1.bf16.msra.mxu0 %v632
    %650 = vmatprep.subr.bf16.mxu0 0
    %651 = vmatpush2.bf16.msra.mxu0 0
    %652 = vmatprep.subr.bf16.mxu0 0
    %653 = vmatpush2.bf16.msra.mxu0 0
    %654 = vmatprep.subr.bf16.mxu0 0
    %655 = vmatpush2.bf16.msra.mxu0 0
    %656 = vmatprep.subr.bf16.mxu0 0
    %657 = vmatpush2.bf16.msra.mxu0 0
    %658 = vmatprep.subr.bf16.mxu0 0
    %659 = vmatpush2.bf16.msra.mxu0 0
    %660 = vmatprep.subr.bf16.mxu0 0
    %661 = vmatpush2.bf16.msra.mxu0 0
    %662 = vmatprep.subr.bf16.mxu0 0
    %663 = vmatpush2.bf16.msra.mxu0 0
    %664 = vmatprep.subr.bf16.mxu0 0
    %665 = vmatpush2.bf16.msra.mxu0 0
    %666 = vmatprep.mubr.bf16.mxu0 0
    %667 = vmatmul.mubr.bf16.gmra.mxu0 %v628
    %v668 = vpop.f32.mrf.mxu0
    %v669 = vadd.f32 0.0, %v668
    %v670 = vpop.f32.mrf.mxu0
    %v671 = vpop.f32.mrf.mxu0
    %v672 = vpop.f32.mrf.mxu0
    %673 = vdwg.mxu0
    %v674 = vpack.c.bf16 %v669, %v669
    %v679 = vunpack.c.l.b16 %v464
    %v680 = vunpack.c.l.b16 %v465
    %v681 = vunpack.c.l.b16 %v466
    %v682 = vunpack.c.l.b16 %v467
    %v683 = vpack.c.b16 %v680, %v679
    %v684 = vpack.c.b16 %v682, %v681
    %v688 = vsel %vm156, %v674, 0
    %690 = vmatprep.subr.bf16.mxu0 0
    %691 = vmatpush1.bf16.msra.mxu0 0
    %692 = vmatprep.subr.bf16.mxu0 0
    %693 = vmatpush1.bf16.msra.mxu0 0
    %694 = vmatprep.subr.bf16.mxu0 0
    %695 = vmatpush1.bf16.msra.mxu0 0
    %696 = vmatprep.subr.bf16.mxu0 0
    %697 = vmatpush1.bf16.msra.mxu0 0
    %698 = vmatprep.subr.bf16.mxu0 0
    %699 = vmatpush1.bf16.msra.mxu0 0
    %700 = vmatprep.subr.bf16.mxu0 0
    %701 = vmatpush1.bf16.msra.mxu0 0
    %702 = vmatprep.subr.bf16.mxu0 0
    %703 = vmatpush1.bf16.msra.mxu0 %v684
    %704 = vmatprep.subr.bf16.mxu0 0
    %705 = vmatpush1.bf16.msra.mxu0 %v683
    %706 = vmatprep.subr.bf16.mxu0 0
    %707 = vmatpush2.bf16.msra.mxu0 0
    %708 = vmatprep.subr.bf16.mxu0 0
    %709 = vmatpush2.bf16.msra.mxu0 0
    %710 = vmatprep.subr.bf16.mxu0 0
    %711 = vmatpush2.bf16.msra.mxu0 0
    %712 = vmatprep.subr.bf16.mxu0 0
    %713 = vmatpush2.bf16.msra.mxu0 0
    %714 = vmatprep.subr.bf16.mxu0 0
    %715 = vmatpush2.bf16.msra.mxu0 0
    %716 = vmatprep.subr.bf16.mxu0 0
    %717 = vmatpush2.bf16.msra.mxu0 0
    %718 = vmatprep.subr.bf16.mxu0 0
    %719 = vmatpush2.bf16.msra.mxu0 0
    %720 = vmatprep.subr.bf16.mxu0 0
    %721 = vmatpush2.bf16.msra.mxu0 0
    %722 = vmatprep.mubr.bf16.mxu0 0
    %723 = vmatmul.mubr.bf16.gmra.mxu0 %v688
    %v724 = vpop.f32.mrf.mxu0
    %v725 = vadd.f32 0.0, %v724
    %v726 = vpop.f32.mrf.mxu0
    %v727 = vpop.f32.mrf.mxu0
    %v728 = vpop.f32.mrf.mxu0
    %729 = vdwg.mxu0
    %v730 = vadd.f32 %v456, %v725
    %v732 = vlaneseq
    %v733 = vshrl.u32 %v732, 7
    %v734 = vsub.s32 0, %v733
    %v735 = vrot.slane %v468, %v734
    %v737 = vadd.f32 %v730, %v735
    %v738 = vld [vmem:[%s35] sm:$0x1]
    %v739 = vld [vmem:[%s37] sm:$0x1]
    %v740 = vld [vmem:[%s39] sm:$0xf]
    %v741 = vld [vmem:[%s39 + $0x4] sm:$0xf]
    %v742 = vld [vmem:[%s39 + $0x8] sm:$0xf]
    %v743 = vld [vmem:[%s39 + $0xc] sm:$0xf]
    %v744 = vld [vmem:[%s41] sm:$0x1]
    %v745 = vld [vmem:[%s43] sm:$0xf]
    %v746 = vld [vmem:[%s43 + $0x4] sm:$0xf]
    %v747 = vld [vmem:[%s43 + $0x8] sm:$0xf]
    %v748 = vld [vmem:[%s43 + $0xc] sm:$0xf]
    %v749 = vld [vmem:[%s45] sm:$0x1]
    %v750 = vsel %vm156, %v737, 0.0
    %751 = vadd.xlane.f32.xlu0 %v750
    %v752 = vpop.xlane.xlu0 %751
    %v753 = vmul.f32 %v752, %v472
    %v754 = vsub.f32 %v737, %v753
    %v755 = vmul.f32 %v754, %v754
    %v756 = vsel %vm156, %v755, 0.0
    %757 = vadd.xlane.f32.xlu0 %v756
    %v758 = vpop.xlane.xlu0 %757
    %v759 = vmul.f32 %v758, %v472
    %v760 = vadd.f32 %v759, 1e-05
    %v761 = vrsqrt.pop %v760
    %v762 = vmul.f32 %v754, %v761
    %v764 = vlaneseq
    %v765 = vshrl.u32 %v764, 7
    %v766 = vsub.s32 0, %v765
    %v767 = vrot.slane %v738, %v766
    %v769 = vmul.f32 %v762, %v767
    %v771 = vlaneseq
    %v772 = vshrl.u32 %v771, 7
    %v773 = vsub.s32 0, %v772
    %v774 = vrot.slane %v739, %v773
    %v776 = vadd.f32 %v769, %v774
    %v777 = vpack.c.bf16 %v776, %v776
    %v779 = vlaneseq
    %v780 = vshrl.u32 %v779, 7
    %v781 = vsub.s32 0, %v780
    %v782 = vrot.slane %v744, %v781
    %v788 = vunpack.c.l.b16 %v740
    %v789 = vunpack.c.l.b16 %v741
    %v790 = vunpack.c.l.b16 %v742
    %v791 = vunpack.c.l.b16 %v743
    %v792 = vpack.c.b16 %v789, %v788
    %v793 = vpack.c.b16 %v791, %v790
    %v797 = vsel %vm156, %v777, 0
    %799 = vmatprep.subr.bf16.mxu0 0
    %800 = vmatpush1.bf16.msra.mxu0 0
    %801 = vmatprep.subr.bf16.mxu0 0
    %802 = vmatpush1.bf16.msra.mxu0 0
    %803 = vmatprep.subr.bf16.mxu0 0
    %804 = vmatpush1.bf16.msra.mxu0 0
    %805 = vmatprep.subr.bf16.mxu0 0
    %806 = vmatpush1.bf16.msra.mxu0 0
    %807 = vmatprep.subr.bf16.mxu0 0
    %808 = vmatpush1.bf16.msra.mxu0 0
    %809 = vmatprep.subr.bf16.mxu0 0
    %810 = vmatpush1.bf16.msra.mxu0 0
    %811 = vmatprep.subr.bf16.mxu0 0
    %812 = vmatpush1.bf16.msra.mxu0 %v793
    %813 = vmatprep.subr.bf16.mxu0 0
    %814 = vmatpush1.bf16.msra.mxu0 %v792
    %815 = vmatprep.subr.bf16.mxu0 0
    %816 = vmatpush2.bf16.msra.mxu0 0
    %817 = vmatprep.subr.bf16.mxu0 0
    %818 = vmatpush2.bf16.msra.mxu0 0
    %819 = vmatprep.subr.bf16.mxu0 0
    %820 = vmatpush2.bf16.msra.mxu0 0
    %821 = vmatprep.subr.bf16.mxu0 0
    %822 = vmatpush2.bf16.msra.mxu0 0
    %823 = vmatprep.subr.bf16.mxu0 0
    %824 = vmatpush2.bf16.msra.mxu0 0
    %825 = vmatprep.subr.bf16.mxu0 0
    %826 = vmatpush2.bf16.msra.mxu0 0
    %827 = vmatprep.subr.bf16.mxu0 0
    %828 = vmatpush2.bf16.msra.mxu0 0
    %829 = vmatprep.subr.bf16.mxu0 0
    %830 = vmatpush2.bf16.msra.mxu0 0
    %831 = vmatprep.mubr.bf16.mxu0 0
    %832 = vmatmul.mubr.bf16.gmra.mxu0 %v797
    %v833 = vpop.f32.mrf.mxu0
    %v834 = vadd.f32 %v782, %v833
    %v835 = vpop.f32.mrf.mxu0
    %v836 = vpop.f32.mrf.mxu0
    %v837 = vpop.f32.mrf.mxu0
    %838 = vdwg.mxu0
    %v839 = vpack.c.bf16 %v834, %v834
    %841 = vrot.lane.b32.xlu0 %v839, 96
    %v842 = vpop.permute.xlu0 %841
    %v844 = vsel %vm156, %v839, 0
    %v847 = vsel %vm156, %v842, 0
    %849 = vmatprep.subr.bf16.mxu0 0
    %850 = vmatpush1.bf16.xpose.msra.mxu0 0
    %851 = vmatprep.subr.bf16.mxu0 0
    %852 = vmatpush1.bf16.xpose.msra.mxu0 0
    %853 = vmatprep.subr.bf16.mxu0 0
    %854 = vmatpush1.bf16.xpose.msra.mxu0 0
    %855 = vmatprep.subr.bf16.mxu0 0
    %856 = vmatpush1.bf16.xpose.msra.mxu0 0
    %857 = vmatprep.subr.bf16.mxu0 0
    %858 = vmatpush1.bf16.xpose.msra.mxu0 0
    %859 = vmatprep.subr.bf16.mxu0 0
    %860 = vmatpush1.bf16.xpose.msra.mxu0 0
    %861 = vmatprep.subr.bf16.mxu0 0
    %862 = vmatpush1.bf16.xpose.msra.mxu0 0
    %863 = vmatprep.subr.bf16.mxu0 0
    %864 = vmatpush1.bf16.xpose.msra.mxu0 %v847
    %865 = vmatprep.subr.bf16.mxu0 0
    %866 = vmatpush2.bf16.xpose.msra.mxu0 0
    %867 = vmatprep.subr.bf16.mxu0 0
    %868 = vmatpush2.bf16.xpose.msra.mxu0 0
    %869 = vmatprep.subr.bf16.mxu0 0
    %870 = vmatpush2.bf16.xpose.msra.mxu0 0
    %871 = vmatprep.subr.bf16.mxu0 0
    %872 = vmatpush2.bf16.xpose.msra.mxu0 0
    %873 = vmatprep.subr.bf16.mxu0 0
    %874 = vmatpush2.bf16.xpose.msra.mxu0 0
    %875 = vmatprep.subr.bf16.mxu0 0
    %876 = vmatpush2.bf16.xpose.msra.mxu0 0
    %877 = vmatprep.subr.bf16.mxu0 0
    %878 = vmatpush2.bf16.xpose.msra.mxu0 0
    %879 = vmatprep.subr.bf16.mxu0 0
    %880 = vmatpush2.bf16.xpose.msra.mxu0 0
    %881 = vmatprep.mubr.bf16.mxu0 0
    %882 = vmatmul.mubr.bf16.gmra.mxu0 %v844
    %v883 = vpop.f32.mrf.mxu0
    %v884 = vadd.f32 0.0, %v883
    %v885 = vpop.f32.mrf.mxu0
    %v886 = vpop.f32.mrf.mxu0
    %v887 = vpop.f32.mrf.mxu0
    %888 = vdwg.mxu0
    %v889 = vsel %vm609, %v884, -1e+30
    %v890 = vsel %vm611, %v889, -inf
    %891 = vmax.xlane.f32.xlu0 %v890
    %v892 = vpop.xlane.xlu0 %891
    %v893 = vsub.f32 %v889, %v892
    %v894 = vmul.f32 %v893, 1.442695
    %v895 = vpow.pop %v894
    %v896 = vsel %vm609, %v895, 0.0
    %v897 = vsel %vm611, %v896, 0.0
    %898 = vadd.xlane.f32.xlu0 %v897
    %v899 = vpop.xlane.xlu0 %898
    %v900 = vrcp.pop %v899
    %v901 = vmul.f32 %v896, %v900
    %v902 = vpack.c.bf16 %v901, %v901
    %903 = vrot.lane.b32.xlu0 %v839, 64
    %v904 = vpop.permute.xlu0 %903
    %v906 = vsel %vm611, %v902, 0
    %v909 = vsel %vm630, %v904, 0
    %911 = vmatprep.subr.bf16.mxu0 0
    %912 = vmatpush1.bf16.msra.mxu0 0
    %913 = vmatprep.subr.bf16.mxu0 0
    %914 = vmatpush1.bf16.msra.mxu0 0
    %915 = vmatprep.subr.bf16.mxu0 0
    %916 = vmatpush1.bf16.msra.mxu0 0
    %917 = vmatprep.subr.bf16.mxu0 0
    %918 = vmatpush1.bf16.msra.mxu0 0
    %919 = vmatprep.subr.bf16.mxu0 0
    %920 = vmatpush1.bf16.msra.mxu0 0
    %921 = vmatprep.subr.bf16.mxu0 0
    %922 = vmatpush1.bf16.msra.mxu0 0
    %923 = vmatprep.subr.bf16.mxu0 0
    %924 = vmatpush1.bf16.msra.mxu0 0
    %925 = vmatprep.subr.bf16.mxu0 0
    %926 = vmatpush1.bf16.msra.mxu0 %v909
    %927 = vmatprep.subr.bf16.mxu0 0
    %928 = vmatpush2.bf16.msra.mxu0 0
    %929 = vmatprep.subr.bf16.mxu0 0
    %930 = vmatpush2.bf16.msra.mxu0 0
    %931 = vmatprep.subr.bf16.mxu0 0
    %932 = vmatpush2.bf16.msra.mxu0 0
    %933 = vmatprep.subr.bf16.mxu0 0
    %934 = vmatpush2.bf16.msra.mxu0 0
    %935 = vmatprep.subr.bf16.mxu0 0
    %936 = vmatpush2.bf16.msra.mxu0 0
    %937 = vmatprep.subr.bf16.mxu0 0
    %938 = vmatpush2.bf16.msra.mxu0 0
    %939 = vmatprep.subr.bf16.mxu0 0
    %940 = vmatpush2.bf16.msra.mxu0 0
    %941 = vmatprep.subr.bf16.mxu0 0
    %942 = vmatpush2.bf16.msra.mxu0 0
    %943 = vmatprep.mubr.bf16.mxu0 0
    %944 = vmatmul.mubr.bf16.gmra.mxu0 %v906
    %v945 = vpop.f32.mrf.mxu0
    %v946 = vadd.f32 0.0, %v945
    %v947 = vpop.f32.mrf.mxu0
    %v948 = vpop.f32.mrf.mxu0
    %v949 = vpop.f32.mrf.mxu0
    %950 = vdwg.mxu0
    %v951 = vpack.c.bf16 %v946, %v946
    %v956 = vunpack.c.l.b16 %v745
    %v957 = vunpack.c.l.b16 %v746
    %v958 = vunpack.c.l.b16 %v747
    %v959 = vunpack.c.l.b16 %v748
    %v960 = vpack.c.b16 %v957, %v956
    %v961 = vpack.c.b16 %v959, %v958
    %v965 = vsel %vm156, %v951, 0
    %967 = vmatprep.subr.bf16.mxu0 0
    %968 = vmatpush1.bf16.msra.mxu0 0
    %969 = vmatprep.subr.bf16.mxu0 0
    %970 = vmatpush1.bf16.msra.mxu0 0
    %971 = vmatprep.subr.bf16.mxu0 0
    %972 = vmatpush1.bf16.msra.mxu0 0
    %973 = vmatprep.subr.bf16.mxu0 0
    %974 = vmatpush1.bf16.msra.mxu0 0
    %975 = vmatprep.subr.bf16.mxu0 0
    %976 = vmatpush1.bf16.msra.mxu0 0
    %977 = vmatprep.subr.bf16.mxu0 0
    %978 = vmatpush1.bf16.msra.mxu0 0
    %979 = vmatprep.subr.bf16.mxu0 0
    %980 = vmatpush1.bf16.msra.mxu0 %v961
    %981 = vmatprep.subr.bf16.mxu0 0
    %982 = vmatpush1.bf16.msra.mxu0 %v960
    %983 = vmatprep.subr.bf16.mxu0 0
    %984 = vmatpush2.bf16.msra.mxu0 0
    %985 = vmatprep.subr.bf16.mxu0 0
    %986 = vmatpush2.bf16.msra.mxu0 0
    %987 = vmatprep.subr.bf16.mxu0 0
    %988 = vmatpush2.bf16.msra.mxu0 0
    %989 = vmatprep.subr.bf16.mxu0 0
    %990 = vmatpush2.bf16.msra.mxu0 0
    %991 = vmatprep.subr.bf16.mxu0 0
    %992 = vmatpush2.bf16.msra.mxu0 0
    %993 = vmatprep.subr.bf16.mxu0 0
    %994 = vmatpush2.bf16.msra.mxu0 0
    %995 = vmatprep.subr.bf16.mxu0 0
    %996 = vmatpush2.bf16.msra.mxu0 0
    %997 = vmatprep.subr.bf16.mxu0 0
    %998 = vmatpush2.bf16.msra.mxu0 0
    %999 = vmatprep.mubr.bf16.mxu0 0
    %1000 = vmatmul.mubr.bf16.gmra.mxu0 %v965
    %v1001 = vpop.f32.mrf.mxu0
    %v1002 = vadd.f32 0.0, %v1001
    %v1003 = vpop.f32.mrf.mxu0
    %v1004 = vpop.f32.mrf.mxu0
    %v1005 = vpop.f32.mrf.mxu0
    %1006 = vdwg.mxu0
    %v1007 = vadd.f32 %v737, %v1002
    %v1009 = vlaneseq
    %v1010 = vshrl.u32 %v1009, 7
    %v1011 = vsub.s32 0, %v1010
    %v1012 = vrot.slane %v749, %v1011
    %v1014 = vadd.f32 %v1007, %v1012
    %v1015 = vld [vmem:[%s47] sm:$0x1]
    %v1016 = vld [vmem:[%s49] sm:$0x1]
    %v1017 = vsel %vm156, %v1014, 0.0
    %1018 = vadd.xlane.f32.xlu0 %v1017
    %v1019 = vpop.xlane.xlu0 %1018
    %v1020 = vmul.f32 %v1019, %v472
    %v1021 = vsub.f32 %v1014, %v1020
    %v1022 = vmul.f32 %v1021, %v1021
    %v1023 = vsel %vm156, %v1022, 0.0
    %1024 = vadd.xlane.f32.xlu0 %v1023
    %v1025 = vpop.xlane.xlu0 %1024
    %v1026 = vmul.f32 %v1025, %v472
    %v1027 = vadd.f32 %v1026, 1e-05
    %v1028 = vrsqrt.pop %v1027
    %v1029 = vmul.f32 %v1021, %v1028
    %v1031 = vlaneseq
    %v1032 = vshrl.u32 %v1031, 7
    %v1033 = vsub.s32 0, %v1032
    %v1034 = vrot.slane %v1015, %v1033
    %v1036 = vmul.f32 %v1029, %v1034
    %v1038 = vlaneseq
    %v1039 = vshrl.u32 %v1038, 7
    %v1040 = vsub.s32 0, %v1039
    %v1041 = vrot.slane %v1016, %v1040
    %v1043 = vadd.f32 %v1036, %v1041
    %v1044 = vld [vmem:[%s5] sm:$0x1]
    %v1045 = vld [vmem:[%s7] sm:$0x1]
    %v1046 = vadd.f32 %v1044, %v1045
    %v1047 = vmul.f32 %v1046, 0.5
    %v1048 = vadd.f32 %v131, %v1043
    %v1049 = vmul.f32 %v1048, 0.5
    %1050 = vst.msk [vmem:[#allocation4] sm:$0x1] %vm452, %v1047
    %1051 = vst.msk [vmem:[#allocation6] sm:$0x1] %vm452, %v1049
    %v1052 = vld [vmem:[%s51] sm:$0x1]
    %v1053 = vmul.f32 %v1047, %v1052
    %v1054 = vsel %vm452, %v1053, 0.0
    %1055 = vadd.xlane.f32.xlu0 %v1054
    %v1056 = vpop.xlane.xlu0 %1055
    %v1057 = vld [vmem:[%s53] sm:$0x1]
    %v1058 = vmul.f32 %v1049, %v1057
    %v1059 = vsel %vm452, %v1058, 0.0
    %1060 = vadd.xlane.f32.xlu0 %v1059
    %v1061 = vpop.xlane.xlu0 %1060
    %v1062 = vadd.f32 %v1056, %v1061
    %v1063 = vld [vmem:[#allocation3] sm:$0x1]
    %v1064 = vadd.f32 %v1062, %v1063
    %vm1065 = vcmask 0
    %1066 = vst.msk [vmem:[#allocation8] sm:$0x1] %vm1065, %v1064
    %v1067 = vsub.f32 %v1047, %v1049
    %v1068 = vand.u32 2147483647, %v1067
    %v1069 = vsel %vm452, %v1068, 0.0
    %1070 = vadd.xlane.f32.xlu0 %v1069
    %v1071 = vpop.xlane.xlu0 %1070
    %v1072 = vrot.slane %v1071, 4
    %v1073 = vadd.f32 %v1071, %v1072
    %v1074 = vrot.slane %v1073, 2
    %v1075 = vadd.f32 %v1073, %v1074
    %v1076 = vrot.slane %v1075, 1
    %v1077 = vadd.f32 %v1075, %v1076
    %s1078 = vtos %v1077
    %v1079 = vstv %s1078
    %v1080 = vmul.f32 %v1079, %v472
    %1081 = vst.msk [vmem:[#allocation9] sm:$0x1] %vm1065, %v1080
    // Predicated region
    $region114: #{cmta_binary_forward.27} parent=1 // pred_check
      _
    $region115: #{cmta_binary_forward.27} parent=1 // pred_check_branch
      %1083 = sbr.rel (0) target = $region117
    $region116: #{cmta_binary_forward.27} parent=1 // pred_region
      %s1085 = ssub.s32 16, 16
      %1086 = vsyncadd [#allocation5], %s1085
      %s1088 = sshll.u32 [#allocation4], 4
      %s1089 = int_to_ptr.vmem [resolvable:$true] %s1088
      %1091 = dma.vmem_to_hbm [thread:$0]  %s1089, 16, %s57, [#allocation5]
    $region117: #{cmta_binary_forward.27} parent=1 // pred_fallthru
      _
    // Predicated region
    $region118: #{cmta_binary_forward.27} parent=1 // pred_check
      _
    $region119: #{cmta_binary_forward.27} parent=1 // pred_check_branch
      %1093 = sbr.rel (0) target = $region121
    $region120: #{cmta_binary_forward.27} parent=1 // pred_region
      %s1095 = ssub.s32 16, 16
      %1096 = vsyncadd [#allocation7], %s1095
      %s1098 = sshll.u32 [#allocation6], 4
      %s1099 = int_to_ptr.vmem [resolvable:$true] %s1098
      %1101 = dma.vmem_to_hbm [thread:$0]  %s1099, 16, %s59, [#allocation7]
    $region121: #{cmta_binary_forward.27} parent=1 // pred_fallthru
      _
    // Predicated region
    $region122: #{cmta_binary_forward.27} parent=1 // pred_check
      _
    $region123: #{cmta_binary_forward.27} parent=1 // pred_check_branch
      %1103 = sbr.rel (0) target = $region125
    $region124: #{cmta_binary_forward.27} parent=1 // pred_region
      %s1105 = ssub.s32 16, 16
      %1106 = vsyncadd [#allocation7], %s1105
      %s1108 = sshll.u32 [#allocation8], 4
      %s1109 = int_to_ptr.vmem [resolvable:$true] %s1108
      %1111 = dma.vmem_to_hbm [thread:$0]  %s1109, 16, %s61, [#allocation7]
    $region125: #{cmta_binary_forward.27} parent=1 // pred_fallthru
      _
    // Predicated region
    $region126: #{cmta_binary_forward.27} parent=1 // pred_check
      _
    $region127: #{cmta_binary_forward.27} parent=1 // pred_check_branch
      %1113 = sbr.rel (0) target = $region129
    $region128: #{cmta_binary_forward.27} parent=1 // pred_region
      %s1115 = ssub.s32 16, 16
      %1116 = vsyncadd [#allocation10], %s1115
      %s1118 = sshll.u32 [#allocation9], 4
      %s1119 = int_to_ptr.vmem [resolvable:$true] %s1118
      %1121 = dma.vmem_to_hbm [thread:$0]  %s1119, 16, %s63, [#allocation10]
    $region129: #{cmta_binary_forward.27} parent=1 // pred_fallthru
      _
    // Predicated region
    $region130: #{cmta_binary_forward.27} parent=1 // pred_check
      _
    $region131: #{cmta_binary_forward.27} parent=1 // pred_check_branch
      %1123 = sbr.rel (0) target = $region133
    $region132: #{cmta_binary_forward.27} parent=1 // pred_region
      %1124 = dma.done [#allocation5], 16
    $region133: #{cmta_binary_forward.27} parent=1 // pred_fallthru
      _
    // Predicated region
    $region134: #{cmta_binary_forward.27} parent=1 // pred_check
      _
    $region135: #{cmta_binary_forward.27} parent=1 // pred_check_branch
      %1126 = sbr.rel (0) target = $region137
    $region136: #{cmta_binary_forward.27} parent=1 // pred_region
      %1127 = dma.done [#allocation7], 16
    $region137: #{cmta_binary_forward.27} parent=1 // pred_fallthru
      _
    // Predicated region
    $region138: #{cmta_binary_forward.27} parent=1 // pred_check
      _
    $region139: #{cmta_binary_forward.27} parent=1 // pred_check_branch
      %1129 = sbr.rel (0) target = $region141
    $region140: #{cmta_binary_forward.27} parent=1 // pred_region
      %1130 = dma.done [#allocation7], 16
    $region141: #{cmta_binary_forward.27} parent=1 // pred_fallthru
      _
    // Predicated region
    $region142: #{cmta_binary_forward.27} parent=1 // pred_check
      _
    $region143: #{cmta_binary_forward.27} parent=1 // pred_check_branch
      %1132 = sbr.rel (0) target = $region145
    $region144: #{cmta_binary_forward.27} parent=1 // pred_region
      %1133 = dma.done [#allocation10], 16
    $region145: #{cmta_binary_forward.27} parent=1 // pred_fallthru
      _
    %1134 = vsyncpa [#allocation5], 1
    %1135 = vsyncpa [#allocation7], 1
    %1136 = vsyncpa [#allocation10], 1

</llo_original>
